<compile_context>
chip_gen: v7x
topology: tpu7x:2x2x1
jax: 0.10.0
libtpu: 0.0.40
codegen_flags: <defaults>
</compile_context>

<pallas_src>
import math

import jax
import jax.numpy as jnp
from jax.experimental import pallas as pl
from jax.experimental.pallas import tpu as pltpu

LANE = 128      # vreg lane width  (last-dim alignment target)
SUBLANE = 8     # vreg sublane count (second-to-last-dim alignment target)


def _round_up(x, m):
    return (x + m - 1) // m * m


def _pick_time_chunk(T):
    """Largest time-chunk <= 64 that divides T (whole sequence if T <= 64)."""
    if T <= 64:
        return T
    for cand in range(64, 0, -1):
        if T % cand == 0:
            return cand
    return 1


# ------------------------------- Pallas kernel -------------------------------
def _lstm_chunk_kernel(gx_ref, whh_ref, y_ref, hn_ref, cn_ref, h_sc, c_sc):
    """One time-chunk of an LSTM layer (grid axis 0 = time chunks, sequential).

    gx_ref : (Tc, Bp, 4*Hp) f32 — pre-projected gates (x @ W_ih^T + bias).
    whh_ref: (Hp, 4*Hp) bf16    — recurrent weight, resident across the grid.
    y_ref  : (Tc, Bp, Hp) f32   — hidden outputs for this chunk (lane-dense).
    hn_ref, cn_ref: (Bp, Hp) f32 — final states, written on the last chunk only.
    h_sc, c_sc: (Bp, Hp) f32 scratch — recurrent state, persists across grid.
    """
    Tc = gx_ref.shape[0]
    Hp = h_sc.shape[-1]

    @pl.when(pl.program_id(0) == 0)
    def _():
        h_sc[...] = jnp.zeros_like(h_sc)
        c_sc[...] = jnp.zeros_like(c_sc)

    whh = whh_ref[...]          # hoisted: one VMEM load per chunk, reused each step

    def step(s, carry):
        h = h_sc[...]
        c = c_sc[...]
        # Only the recurrent projection is done per step; the input projection
        # was hoisted out of the recurrence into a single XLA matmul.
        g = gx_ref[s] + jnp.dot(h.astype(jnp.bfloat16), whh,
                                preferred_element_type=jnp.float32)
        # Hp is a multiple of 128, so these gate slices are vreg-aligned
        # (no cross-lane XLU shuffles, no masked selects).
        i_g = jax.nn.sigmoid(g[:, 0 * Hp:1 * Hp])
        f_g = jax.nn.sigmoid(g[:, 1 * Hp:2 * Hp])
        g_g = jnp.tanh(g[:, 2 * Hp:3 * Hp])
        o_g = jax.nn.sigmoid(g[:, 3 * Hp:4 * Hp])
        c_new = f_g * c + i_g * g_g
        h_new = o_g * jnp.tanh(c_new)
        h_sc[...] = h_new
        c_sc[...] = c_new
        y_ref[s] = h_new                       # lane-dense (Hp = k*128) store
        return carry

    jax.lax.fori_loop(0, Tc, step, 0, unroll=True)

    @pl.when(pl.program_id(0) == pl.num_programs(0) - 1)
    def _():
        hn_ref[...] = h_sc[...]
        cn_ref[...] = c_sc[...]


# ------------------------------ layer wrappers -------------------------------
def _prep_layer_params(w_ih, w_hh, b_ih, b_hh):
    """Transpose, gate-major pad to the lane boundary, and fuse biases.

    w_ih: (4H, C_in), w_hh: (4H, H), biases: (4H,) in PyTorch gate order [i,f,g,o].
    Returns (w_ih_t (C_in, 4Hp) f32, w_hh_t (Hp, 4Hp) bf16, bias (1, 4Hp) f32, H, Hp).
    Padding is exact: padded gate columns get zero weight & bias, so the padded
    h/c lanes stay identically zero through the recurrence.
    """
    H4, C_in = w_ih.shape
    H = H4 // 4
    Hp = _round_up(H, LANE)

    w_ih_g = jnp.asarray(w_ih, jnp.float32).reshape(4, H, C_in)
    w_hh_g = jnp.asarray(w_hh, jnp.float32).reshape(4, H, H)
    b_g = (jnp.asarray(b_ih, jnp.float32)
           + jnp.asarray(b_hh, jnp.float32)).reshape(4, H)

    w_ih_p = jnp.zeros((4, Hp, C_in), jnp.float32).at[:, :H, :].set(w_ih_g)
    w_hh_p = jnp.zeros((4, Hp, Hp), jnp.float32).at[:, :H, :H].set(w_hh_g)
    b_p = jnp.zeros((4, Hp), jnp.float32).at[:, :H].set(b_g)

    w_ih_t = w_ih_p.reshape(4 * Hp, C_in).T                      # (C_in, 4Hp) f32
    w_hh_t = w_hh_p.reshape(4 * Hp, Hp).T.astype(jnp.bfloat16)   # (Hp, 4Hp) bf16
    bias = b_p.reshape(1, 4 * Hp)
    return w_ih_t, w_hh_t, bias, H, Hp


def lstm_layer(x, w_ih, w_hh, b_ih, b_hh):
    """One LSTM layer over a full sequence, zero initial state.

    x: (T, B, C_in) f32.  w_ih: (4H, C_in), w_hh: (4H, H), biases: (4H,).
    Returns (y (T, B, H), h_n (B, H), c_n (B, H)).
    """
    T, B, C_in = x.shape
    w_ih_t, w_hh_t, bias, H, Hp = _prep_layer_params(w_ih, w_hh, b_ih, b_hh)

    # Pad batch to a multiple of 8 sublanes so vreg rows are not mostly padding.
    Bp = _round_up(B, SUBLANE)
    x_p = jnp.pad(x.astype(jnp.float32), ((0, 0), (0, Bp - B), (0, 0)))

    # Hoisted input projection: one (T*Bp, C_in) x (C_in, 4Hp) bf16 matmul with
    # f32 accumulation, plus the fused bias — done once for the whole sequence.
    gx = jax.lax.dot_general(
        x_p.reshape(T * Bp, C_in).astype(jnp.bfloat16),
        w_ih_t.astype(jnp.bfloat16),
        dimension_numbers=(((1,), (0,)), ((), ())),
        preferred_element_type=jnp.float32)
    gx = (gx + bias).reshape(T, Bp, 4 * Hp)

    Tc = _pick_time_chunk(T)

    # TODO(synk): for production-size H on v7x (64 MiB VMEM), tile the 4*Hp gate
    # columns of W_hh^T across a grid axis and set vmem_limit_bytes explicitly;
    # at these sizes the resident bf16 weight is tiny so defaults are fine.
    grid_spec = pltpu.PrefetchScalarGridSpec(
        num_scalar_prefetch=0,
        grid=(T // Tc,),
        in_specs=[
            pl.BlockSpec((Tc, Bp, 4 * Hp), lambda t: (t, 0, 0)),  # gates_x chunk
            pl.BlockSpec((Hp, 4 * Hp), lambda t: (0, 0)),         # W_hh^T (resident, bf16)
        ],
        out_specs=(
            pl.BlockSpec((Tc, Bp, Hp), lambda t: (t, 0, 0)),      # y chunk
            pl.BlockSpec((Bp, Hp), lambda t: (0, 0)),             # h_n
            pl.BlockSpec((Bp, Hp), lambda t: (0, 0)),             # c_n
        ),
        scratch_shapes=[
            pltpu.VMEM((Bp, Hp), jnp.float32),                    # h state
            pltpu.VMEM((Bp, Hp), jnp.float32),                    # c state
        ],
    )
    y, h_n, c_n = pl.pallas_call(
        _lstm_chunk_kernel,
        out_shape=(
            jax.ShapeDtypeStruct((T, Bp, Hp), jnp.float32),
            jax.ShapeDtypeStruct((Bp, Hp), jnp.float32),
            jax.ShapeDtypeStruct((Bp, Hp), jnp.float32),
        ),
        grid_spec=grid_spec,
        compiler_params=pltpu.CompilerParams(
            # Time is a true recurrence: sequential ("arbitrary").
            dimension_semantics=("arbitrary",)),
    )(gx, w_hh_t)

    # Strip lane/sublane padding.
    return y[:, :B, :H], h_n[:B, :H], c_n[:B, :H]


def multilayer_lstm(x, params):
    """Stacked LSTM (num_layers layers), zero initial states, like nn.LSTM."""
    hs, cs = [], []
    out = x
    for (w_ih, w_hh, b_ih, b_hh) in params:
        out, h, c = lstm_layer(out, w_ih, w_hh, b_ih, b_hh)
        hs.append(h)
        cs.append(c)
    return out, jnp.stack(hs, axis=0), jnp.stack(cs, axis=0)


def init_lstm_params(key, input_dim, hidden_dim, num_layers):
    """Deterministic init matching nn.LSTM shapes: U(-1/sqrt(H), 1/sqrt(H))."""
    params = []
    k = 1.0 / math.sqrt(hidden_dim)
    for layer in range(num_layers):
        in_dim = input_dim if layer == 0 else hidden_dim
        key, k0, k1, k2, k3 = jax.random.split(key, 5)
        w_ih = jax.random.uniform(k0, (4 * hidden_dim, in_dim), jnp.float32, -k, k)
        w_hh = jax.random.uniform(k1, (4 * hidden_dim, hidden_dim), jnp.float32, -k, k)
        b_ih = jax.random.uniform(k2, (4 * hidden_dim,), jnp.float32, -k, k)
        b_hh = jax.random.uniform(k3, (4 * hidden_dim,), jnp.float32, -k, k)
        params.append((w_ih, w_hh, b_ih, b_hh))
    return params, key


@jax.jit
def lstm_autoencoder_forward(x, enc_params, dec_params):
    """Mirror of LSTM.forward in the PyTorch module (jitted so XLA can overlap
    the per-layer calls' DMA setup and fuse the pad/slice/input-projection glue)."""
    # out, (latent_state, cell_state) = self.encoder(input)
    _, latent_state, _ = multilayer_lstm(x, enc_params)      # (num_layers, B, latent)
    emb = latent_state
    # middle_layer = latent_state.repeat(len(input), 1, 1)
    middle_layer = jnp.tile(latent_state, (x.shape[0], 1, 1))
    # y, _ = self.decoder(middle_layer)
    y, _, _ = multilayer_lstm(middle_layer, dec_params)       # (num_layers*T, B, input_dim)
    # torch.squeeze semantics (note: also drops batch dim if B == 1).
    return jnp.squeeze(y), emb


# ----------------------------- pure-JAX reference -----------------------------
def _ref_lstm_layer(x, w_ih, w_hh, b_ih, b_hh):
    T, B, _ = x.shape
    H = w_hh.shape[1]

    def step(carry, x_t):
        h, c = carry
        g = x_t @ w_ih.T + h @ w_hh.T + b_ih + b_hh
        i, f, gg, o = jnp.split(g, 4, axis=-1)
        c_new = jax.nn.sigmoid(f) * c + jax.nn.sigmoid(i) * jnp.tanh(gg)
        h_new = jax.nn.sigmoid(o) * jnp.tanh(c_new)
        return (h_new, c_new), h_new

    (h, c), ys = jax.lax.scan(step, (jnp.zeros((B, H)), jnp.zeros((B, H))), x)
    return ys, h, c


def _ref_multilayer(x, params):
    hs = []
    out = x
    for p in params:
        out, h, _ = _ref_lstm_layer(out, *p)
        hs.append(h)
    return out, jnp.stack(hs, 0)


if __name__ == "__main__":
    SEQ, BATCH = 8, 2
    INPUT_DIM, LATENT_DIM, NUM_LAYERS = 16, 32, 2

    key = jax.random.PRNGKey(0)
    key, kx = jax.random.split(key)
    x = jax.random.normal(kx, (SEQ, BATCH, INPUT_DIM), jnp.float32)

    enc_params, key = init_lstm_params(key, INPUT_DIM, LATENT_DIM, NUM_LAYERS)
    dec_params, key = init_lstm_params(key, LATENT_DIM, INPUT_DIM, NUM_LAYERS)

    y, emb = lstm_autoencoder_forward(x, enc_params, dec_params)
    y = jax.block_until_ready(y)
    emb = jax.block_until_ready(emb)

    # Correctness check against a pure-JAX f32 scan reference.  The kernel uses
    # bf16 matmul operands with f32 accumulation (MXU-native), so tolerances
    # are set for bf16-level rounding.
    _, h_ref = _ref_multilayer(x, enc_params)
    middle_ref = jnp.tile(h_ref, (SEQ, 1, 1))
    y_ref, _ = _ref_multilayer(middle_ref, dec_params)
    y_ref = jnp.squeeze(y_ref)

    assert y.shape == (NUM_LAYERS * SEQ, BATCH, INPUT_DIM)
    assert emb.shape == (NUM_LAYERS, BATCH, LATENT_DIM)
    assert jnp.allclose(emb, h_ref, atol=2e-2, rtol=2e-2), \
        f"emb max err {jnp.max(jnp.abs(emb - h_ref))}"
    assert jnp.allclose(y, y_ref, atol=2e-2, rtol=2e-2), \
        f"y max err {jnp.max(jnp.abs(y - y_ref))}"

    print("KERNEL_OK")
</pallas_src>

<mosaic_0001>
module attributes {stable_mosaic.version = 11 : i64} {
  func.func @_lstm_chunk_kernel(%arg0: i32, %arg1: memref<8x8x512xf32, #tpu.memory_space<vmem>>, %arg2: memref<128x512xbf16, #tpu.memory_space<vmem>>, %arg3: memref<8x8x128xf32, #tpu.memory_space<vmem>>, %arg4: memref<8x128xf32, #tpu.memory_space<vmem>>, %arg5: memref<8x128xf32, #tpu.memory_space<vmem>>, %arg6: memref<8x128xf32, #tpu.memory_space<vmem>>, %arg7: memref<8x128xf32, #tpu.memory_space<vmem>>) attributes {dimension_semantics = [#tpu.dimension_semantics<arbitrary>], iteration_bounds = array<i64: 1>, scalar_prefetch = 0 : i64, scratch_operands = 2 : i64, tpu.core_type = #tpu.core_type<tc>, window_params = [{transform_indices = @transform_0, window_bounds = array<i64: 8, 8, 512>}, {pipeline_mode = #tpu.pipeline_mode<synchronous>, transform_indices = @transform_1, window_bounds = array<i64: 128, 512>}, {transform_indices = @transform_2, window_bounds = array<i64: 8, 8, 128>}, {pipeline_mode = #tpu.pipeline_mode<synchronous>, transform_indices = @transform_3, window_bounds = array<i64: 8, 128>}, {pipeline_mode = #tpu.pipeline_mode<synchronous>, transform_indices = @transform_4, window_bounds = array<i64: 8, 128>}]} {
    %c0_i32 = arith.constant 0 : i32
    %0 = arith.cmpi eq, %arg0, %c0_i32 : i32
    %1 = arith.extui %0 : i1 to i32
    %c0_i32_0 = arith.constant 0 : i32
    %2 = arith.cmpi ne, %1, %c0_i32_0 : i32
    scf.if %2 {
      %cst_132 = arith.constant 0.000000e+00 : f32
      %319 = vector.broadcast %cst_132 : f32 to vector<8x128xf32>
      %c0_133 = arith.constant 0 : index
      %c0_134 = arith.constant 0 : index
      %320 = vector.load %arg6[%c0_133, %c0_134] : memref<8x128xf32, #tpu.memory_space<vmem>>, vector<8x128xf32>
      tpu.vector_store %arg6[%c0_133, %c0_134], %319 {strides = array<i32>} : memref<8x128xf32, #tpu.memory_space<vmem>>, vector<8x128xf32>,
      %cst_135 = arith.constant 0.000000e+00 : f32
      %321 = vector.broadcast %cst_135 : f32 to vector<8x128xf32>
      %c0_136 = arith.constant 0 : index
      %c0_137 = arith.constant 0 : index
      %322 = vector.load %arg7[%c0_136, %c0_137] : memref<8x128xf32, #tpu.memory_space<vmem>>, vector<8x128xf32>
      tpu.vector_store %arg7[%c0_136, %c0_137], %321 {strides = array<i32>} : memref<8x128xf32, #tpu.memory_space<vmem>>, vector<8x128xf32>,
    } else {
    }
    %c0 = arith.constant 0 : index
    %c0_1 = arith.constant 0 : index
    %3 = vector.load %arg2[%c0, %c0_1] : memref<128x512xbf16, #tpu.memory_space<vmem>>, vector<128x512xbf16>
    %c0_i32_2 = arith.constant 0 : i32
    %c0_3 = arith.constant 0 : index
    %c0_4 = arith.constant 0 : index
    %4 = vector.load %arg6[%c0_3, %c0_4] : memref<8x128xf32, #tpu.memory_space<vmem>>, vector<8x128xf32>
    %c0_5 = arith.constant 0 : index
    %c0_6 = arith.constant 0 : index
    %5 = vector.load %arg7[%c0_5, %c0_6] : memref<8x128xf32, #tpu.memory_space<vmem>>, vector<8x128xf32>
    %6 = arith.index_cast %c0_i32_2 : i32 to index
    %c0_7 = arith.constant 0 : index
    %c0_8 = arith.constant 0 : index
    %7 = vector.load %arg1[%6, %c0_7, %c0_8] : memref<8x8x512xf32, #tpu.memory_space<vmem>>, vector<1x8x512xf32>
    %8 = vector.shape_cast %7 : vector<1x8x512xf32> to vector<8x512xf32>
    %9 = arith.truncf %4 : vector<8x128xf32> to vector<8x128xbf16>
    %cst = arith.constant dense<0.000000e+00> : vector<8x512xf32>
    %10 = tpu.matmul %9, %3, %cst {dimension_numbers = #tpu.dot_dimension_numbers<[1], [0], [0], [1], [0, 0, 1, 1], [], []>} : vector<8x128xbf16>, vector<128x512xbf16>, vector<8x512xf32> -> vector<8x512xf32>
    %11 = arith.addf %8, %10 : vector<8x512xf32>
    %12 = vector.extract_strided_slice %11 {offsets = [0, 0], sizes = [8, 128], strides = [1, 1]} : vector<8x512xf32> to vector<8x128xf32>
    %13 = arith.negf %12 : vector<8x128xf32>
    %14 = math.exp %13 : vector<8x128xf32>
    %cst_9 = arith.constant 1.000000e+00 : f32
    %15 = vector.broadcast %cst_9 : f32 to vector<8x128xf32>
    %16 = arith.addf %15, %14 : vector<8x128xf32>
    %17 = arith.divf %15, %16 : vector<8x128xf32>
    %18 = vector.extract_strided_slice %11 {offsets = [0, 128], sizes = [8, 128], strides = [1, 1]} : vector<8x512xf32> to vector<8x128xf32>
    %19 = arith.negf %18 : vector<8x128xf32>
    %20 = math.exp %19 : vector<8x128xf32>
    %cst_10 = arith.constant 1.000000e+00 : f32
    %21 = vector.broadcast %cst_10 : f32 to vector<8x128xf32>
    %22 = arith.addf %21, %20 : vector<8x128xf32>
    %23 = arith.divf %21, %22 : vector<8x128xf32>
    %24 = vector.extract_strided_slice %11 {offsets = [0, 256], sizes = [8, 128], strides = [1, 1]} : vector<8x512xf32> to vector<8x128xf32>
    %25 = math.tanh %24 : vector<8x128xf32>
    %26 = vector.extract_strided_slice %11 {offsets = [0, 384], sizes = [8, 128], strides = [1, 1]} : vector<8x512xf32> to vector<8x128xf32>
    %27 = arith.negf %26 : vector<8x128xf32>
    %28 = math.exp %27 : vector<8x128xf32>
    %cst_11 = arith.constant 1.000000e+00 : f32
    %29 = vector.broadcast %cst_11 : f32 to vector<8x128xf32>
    %30 = arith.addf %29, %28 : vector<8x128xf32>
    %31 = arith.divf %29, %30 : vector<8x128xf32>
    %32 = arith.mulf %23, %5 : vector<8x128xf32>
    %33 = arith.mulf %17, %25 : vector<8x128xf32>
    %34 = arith.addf %32, %33 : vector<8x128xf32>
    %35 = math.tanh %34 : vector<8x128xf32>
    %36 = arith.mulf %31, %35 : vector<8x128xf32>
    %c0_12 = arith.constant 0 : index
    %c0_13 = arith.constant 0 : index
    %37 = vector.load %arg6[%c0_12, %c0_13] : memref<8x128xf32, #tpu.memory_space<vmem>>, vector<8x128xf32>
    tpu.vector_store %arg6[%c0_12, %c0_13], %36 {strides = array<i32>} : memref<8x128xf32, #tpu.memory_space<vmem>>, vector<8x128xf32>,
    %c0_14 = arith.constant 0 : index
    %c0_15 = arith.constant 0 : index
    %38 = vector.load %arg7[%c0_14, %c0_15] : memref<8x128xf32, #tpu.memory_space<vmem>>, vector<8x128xf32>
    tpu.vector_store %arg7[%c0_14, %c0_15], %34 {strides = array<i32>} : memref<8x128xf32, #tpu.memory_space<vmem>>, vector<8x128xf32>,
    %39 = arith.index_cast %c0_i32_2 : i32 to index
    %c0_16 = arith.constant 0 : index
    %c0_17 = arith.constant 0 : index
    %40 = vector.load %arg3[%39, %c0_16, %c0_17] : memref<8x8x128xf32, #tpu.memory_space<vmem>>, vector<1x8x128xf32>
    %41 = vector.shape_cast %40 : vector<1x8x128xf32> to vector<8x128xf32>
    %42 = vector.shape_cast %36 : vector<8x128xf32> to vector<1x8x128xf32>
    tpu.vector_store %arg3[%39, %c0_16, %c0_17], %42 {strides = array<i32>} : memref<8x8x128xf32, #tpu.memory_space<vmem>>, vector<1x8x128xf32>,
    %c1_i32 = arith.constant 1 : i32
    %c0_18 = arith.constant 0 : index
    %c0_19 = arith.constant 0 : index
    %43 = vector.load %arg6[%c0_18, %c0_19] : memref<8x128xf32, #tpu.memory_space<vmem>>, vector<8x128xf32>
    %c0_20 = arith.constant 0 : index
    %c0_21 = arith.constant 0 : index
    %44 = vector.load %arg7[%c0_20, %c0_21] : memref<8x128xf32, #tpu.memory_space<vmem>>, vector<8x128xf32>
    %45 = arith.index_cast %c1_i32 : i32 to index
    %c0_22 = arith.constant 0 : index
    %c0_23 = arith.constant 0 : index
    %46 = vector.load %arg1[%45, %c0_22, %c0_23] : memref<8x8x512xf32, #tpu.memory_space<vmem>>, vector<1x8x512xf32>
    %47 = vector.shape_cast %46 : vector<1x8x512xf32> to vector<8x512xf32>
    %48 = arith.truncf %43 : vector<8x128xf32> to vector<8x128xbf16>
    %cst_24 = arith.constant dense<0.000000e+00> : vector<8x512xf32>
    %49 = tpu.matmul %48, %3, %cst_24 {dimension_numbers = #tpu.dot_dimension_numbers<[1], [0], [0], [1], [0, 0, 1, 1], [], []>} : vector<8x128xbf16>, vector<128x512xbf16>, vector<8x512xf32> -> vector<8x512xf32>
    %50 = arith.addf %47, %49 : vector<8x512xf32>
    %51 = vector.extract_strided_slice %50 {offsets = [0, 0], sizes = [8, 128], strides = [1, 1]} : vector<8x512xf32> to vector<8x128xf32>
    %52 = arith.negf %51 : vector<8x128xf32>
    %53 = math.exp %52 : vector<8x128xf32>
    %cst_25 = arith.constant 1.000000e+00 : f32
    %54 = vector.broadcast %cst_25 : f32 to vector<8x128xf32>
    %55 = arith.addf %54, %53 : vector<8x128xf32>
    %56 = arith.divf %54, %55 : vector<8x128xf32>
    %57 = vector.extract_strided_slice %50 {offsets = [0, 128], sizes = [8, 128], strides = [1, 1]} : vector<8x512xf32> to vector<8x128xf32>
    %58 = arith.negf %57 : vector<8x128xf32>
    %59 = math.exp %58 : vector<8x128xf32>
    %cst_26 = arith.constant 1.000000e+00 : f32
    %60 = vector.broadcast %cst_26 : f32 to vector<8x128xf32>
    %61 = arith.addf %60, %59 : vector<8x128xf32>
    %62 = arith.divf %60, %61 : vector<8x128xf32>
    %63 = vector.extract_strided_slice %50 {offsets = [0, 256], sizes = [8, 128], strides = [1, 1]} : vector<8x512xf32> to vector<8x128xf32>
    %64 = math.tanh %63 : vector<8x128xf32>
    %65 = vector.extract_strided_slice %50 {offsets = [0, 384], sizes = [8, 128], strides = [1, 1]} : vector<8x512xf32> to vector<8x128xf32>
    %66 = arith.negf %65 : vector<8x128xf32>
    %67 = math.exp %66 : vector<8x128xf32>
    %cst_27 = arith.constant 1.000000e+00 : f32
    %68 = vector.broadcast %cst_27 : f32 to vector<8x128xf32>
    %69 = arith.addf %68, %67 : vector<8x128xf32>
    %70 = arith.divf %68, %69 : vector<8x128xf32>
    %71 = arith.mulf %62, %44 : vector<8x128xf32>
    %72 = arith.mulf %56, %64 : vector<8x128xf32>
    %73 = arith.addf %71, %72 : vector<8x128xf32>
    %74 = math.tanh %73 : vector<8x128xf32>
    %75 = arith.mulf %70, %74 : vector<8x128xf32>
    %c0_28 = arith.constant 0 : index
    %c0_29 = arith.constant 0 : index
    %76 = vector.load %arg6[%c0_28, %c0_29] : memref<8x128xf32, #tpu.memory_space<vmem>>, vector<8x128xf32>
    tpu.vector_store %arg6[%c0_28, %c0_29], %75 {strides = array<i32>} : memref<8x128xf32, #tpu.memory_space<vmem>>, vector<8x128xf32>,
    %c0_30 = arith.constant 0 : index
    %c0_31 = arith.constant 0 : index
    %77 = vector.load %arg7[%c0_30, %c0_31] : memref<8x128xf32, #tpu.memory_space<vmem>>, vector<8x128xf32>
    tpu.vector_store %arg7[%c0_30, %c0_31], %73 {strides = array<i32>} : memref<8x128xf32, #tpu.memory_space<vmem>>, vector<8x128xf32>,
    %78 = arith.index_cast %c1_i32 : i32 to index
    %c0_32 = arith.constant 0 : index
    %c0_33 = arith.constant 0 : index
    %79 = vector.load %arg3[%78, %c0_32, %c0_33] : memref<8x8x128xf32, #tpu.memory_space<vmem>>, vector<1x8x128xf32>
    %80 = vector.shape_cast %79 : vector<1x8x128xf32> to vector<8x128xf32>
    %81 = vector.shape_cast %75 : vector<8x128xf32> to vector<1x8x128xf32>
    tpu.vector_store %arg3[%78, %c0_32, %c0_33], %81 {strides = array<i32>} : memref<8x8x128xf32, #tpu.memory_space<vmem>>, vector<1x8x128xf32>,
    %c2_i32 = arith.constant 2 : i32
    %c0_34 = arith.constant 0 : index
    %c0_35 = arith.constant 0 : index
    %82 = vector.load %arg6[%c0_34, %c0_35] : memref<8x128xf32, #tpu.memory_space<vmem>>, vector<8x128xf32>
    %c0_36 = arith.constant 0 : index
    %c0_37 = arith.constant 0 : index
    %83 = vector.load %arg7[%c0_36, %c0_37] : memref<8x128xf32, #tpu.memory_space<vmem>>, vector<8x128xf32>
    %84 = arith.index_cast %c2_i32 : i32 to index
    %c0_38 = arith.constant 0 : index
    %c0_39 = arith.constant 0 : index
    %85 = vector.load %arg1[%84, %c0_38, %c0_39] : memref<8x8x512xf32, #tpu.memory_space<vmem>>, vector<1x8x512xf32>
    %86 = vector.shape_cast %85 : vector<1x8x512xf32> to vector<8x512xf32>
    %87 = arith.truncf %82 : vector<8x128xf32> to vector<8x128xbf16>
    %cst_40 = arith.constant dense<0.000000e+00> : vector<8x512xf32>
    %88 = tpu.matmul %87, %3, %cst_40 {dimension_numbers = #tpu.dot_dimension_numbers<[1], [0], [0], [1], [0, 0, 1, 1], [], []>} : vector<8x128xbf16>, vector<128x512xbf16>, vector<8x512xf32> -> vector<8x512xf32>
    %89 = arith.addf %86, %88 : vector<8x512xf32>
    %90 = vector.extract_strided_slice %89 {offsets = [0, 0], sizes = [8, 128], strides = [1, 1]} : vector<8x512xf32> to vector<8x128xf32>
    %91 = arith.negf %90 : vector<8x128xf32>
    %92 = math.exp %91 : vector<8x128xf32>
    %cst_41 = arith.constant 1.000000e+00 : f32
    %93 = vector.broadcast %cst_41 : f32 to vector<8x128xf32>
    %94 = arith.addf %93, %92 : vector<8x128xf32>
    %95 = arith.divf %93, %94 : vector<8x128xf32>
    %96 = vector.extract_strided_slice %89 {offsets = [0, 128], sizes = [8, 128], strides = [1, 1]} : vector<8x512xf32> to vector<8x128xf32>
    %97 = arith.negf %96 : vector<8x128xf32>
    %98 = math.exp %97 : vector<8x128xf32>
    %cst_42 = arith.constant 1.000000e+00 : f32
    %99 = vector.broadcast %cst_42 : f32 to vector<8x128xf32>
    %100 = arith.addf %99, %98 : vector<8x128xf32>
    %101 = arith.divf %99, %100 : vector<8x128xf32>
    %102 = vector.extract_strided_slice %89 {offsets = [0, 256], sizes = [8, 128], strides = [1, 1]} : vector<8x512xf32> to vector<8x128xf32>
    %103 = math.tanh %102 : vector<8x128xf32>
    %104 = vector.extract_strided_slice %89 {offsets = [0, 384], sizes = [8, 128], strides = [1, 1]} : vector<8x512xf32> to vector<8x128xf32>
    %105 = arith.negf %104 : vector<8x128xf32>
    %106 = math.exp %105 : vector<8x128xf32>
    %cst_43 = arith.constant 1.000000e+00 : f32
    %107 = vector.broadcast %cst_43 : f32 to vector<8x128xf32>
    %108 = arith.addf %107, %106 : vector<8x128xf32>
    %109 = arith.divf %107, %108 : vector<8x128xf32>
    %110 = arith.mulf %101, %83 : vector<8x128xf32>
    %111 = arith.mulf %95, %103 : vector<8x128xf32>
    %112 = arith.addf %110, %111 : vector<8x128xf32>
    %113 = math.tanh %112 : vector<8x128xf32>
    %114 = arith.mulf %109, %113 : vector<8x128xf32>
    %c0_44 = arith.constant 0 : index
    %c0_45 = arith.constant 0 : index
    %115 = vector.load %arg6[%c0_44, %c0_45] : memref<8x128xf32, #tpu.memory_space<vmem>>, vector<8x128xf32>
    tpu.vector_store %arg6[%c0_44, %c0_45], %114 {strides = array<i32>} : memref<8x128xf32, #tpu.memory_space<vmem>>, vector<8x128xf32>,
    %c0_46 = arith.constant 0 : index
    %c0_47 = arith.constant 0 : index
    %116 = vector.load %arg7[%c0_46, %c0_47] : memref<8x128xf32, #tpu.memory_space<vmem>>, vector<8x128xf32>
    tpu.vector_store %arg7[%c0_46, %c0_47], %112 {strides = array<i32>} : memref<8x128xf32, #tpu.memory_space<vmem>>, vector<8x128xf32>,
    %117 = arith.index_cast %c2_i32 : i32 to index
    %c0_48 = arith.constant 0 : index
    %c0_49 = arith.constant 0 : index
    %118 = vector.load %arg3[%117, %c0_48, %c0_49] : memref<8x8x128xf32, #tpu.memory_space<vmem>>, vector<1x8x128xf32>
    %119 = vector.shape_cast %118 : vector<1x8x128xf32> to vector<8x128xf32>
    %120 = vector.shape_cast %114 : vector<8x128xf32> to vector<1x8x128xf32>
    tpu.vector_store %arg3[%117, %c0_48, %c0_49], %120 {strides = array<i32>} : memref<8x8x128xf32, #tpu.memory_space<vmem>>, vector<1x8x128xf32>,
    %c3_i32 = arith.constant 3 : i32
    %c0_50 = arith.constant 0 : index
    %c0_51 = arith.constant 0 : index
    %121 = vector.load %arg6[%c0_50, %c0_51] : memref<8x128xf32, #tpu.memory_space<vmem>>, vector<8x128xf32>
    %c0_52 = arith.constant 0 : index
    %c0_53 = arith.constant 0 : index
    %122 = vector.load %arg7[%c0_52, %c0_53] : memref<8x128xf32, #tpu.memory_space<vmem>>, vector<8x128xf32>
    %123 = arith.index_cast %c3_i32 : i32 to index
    %c0_54 = arith.constant 0 : index
    %c0_55 = arith.constant 0 : index
    %124 = vector.load %arg1[%123, %c0_54, %c0_55] : memref<8x8x512xf32, #tpu.memory_space<vmem>>, vector<1x8x512xf32>
    %125 = vector.shape_cast %124 : vector<1x8x512xf32> to vector<8x512xf32>
    %126 = arith.truncf %121 : vector<8x128xf32> to vector<8x128xbf16>
    %cst_56 = arith.constant dense<0.000000e+00> : vector<8x512xf32>
    %127 = tpu.matmul %126, %3, %cst_56 {dimension_numbers = #tpu.dot_dimension_numbers<[1], [0], [0], [1], [0, 0, 1, 1], [], []>} : vector<8x128xbf16>, vector<128x512xbf16>, vector<8x512xf32> -> vector<8x512xf32>
    %128 = arith.addf %125, %127 : vector<8x512xf32>
    %129 = vector.extract_strided_slice %128 {offsets = [0, 0], sizes = [8, 128], strides = [1, 1]} : vector<8x512xf32> to vector<8x128xf32>
    %130 = arith.negf %129 : vector<8x128xf32>
    %131 = math.exp %130 : vector<8x128xf32>
    %cst_57 = arith.constant 1.000000e+00 : f32
    %132 = vector.broadcast %cst_57 : f32 to vector<8x128xf32>
    %133 = arith.addf %132, %131 : vector<8x128xf32>
    %134 = arith.divf %132, %133 : vector<8x128xf32>
    %135 = vector.extract_strided_slice %128 {offsets = [0, 128], sizes = [8, 128], strides = [1, 1]} : vector<8x512xf32> to vector<8x128xf32>
    %136 = arith.negf %135 : vector<8x128xf32>
    %137 = math.exp %136 : vector<8x128xf32>
    %cst_58 = arith.constant 1.000000e+00 : f32
    %138 = vector.broadcast %cst_58 : f32 to vector<8x128xf32>
    %139 = arith.addf %138, %137 : vector<8x128xf32>
    %140 = arith.divf %138, %139 : vector<8x128xf32>
    %141 = vector.extract_strided_slice %128 {offsets = [0, 256], sizes = [8, 128], strides = [1, 1]} : vector<8x512xf32> to vector<8x128xf32>
    %142 = math.tanh %141 : vector<8x128xf32>
    %143 = vector.extract_strided_slice %128 {offsets = [0, 384], sizes = [8, 128], strides = [1, 1]} : vector<8x512xf32> to vector<8x128xf32>
    %144 = arith.negf %143 : vector<8x128xf32>
    %145 = math.exp %144 : vector<8x128xf32>
    %cst_59 = arith.constant 1.000000e+00 : f32
    %146 = vector.broadcast %cst_59 : f32 to vector<8x128xf32>
    %147 = arith.addf %146, %145 : vector<8x128xf32>
    %148 = arith.divf %146, %147 : vector<8x128xf32>
    %149 = arith.mulf %140, %122 : vector<8x128xf32>
    %150 = arith.mulf %134, %142 : vector<8x128xf32>
    %151 = arith.addf %149, %150 : vector<8x128xf32>
    %152 = math.tanh %151 : vector<8x128xf32>
    %153 = arith.mulf %148, %152 : vector<8x128xf32>
    %c0_60 = arith.constant 0 : index
    %c0_61 = arith.constant 0 : index
    %154 = vector.load %arg6[%c0_60, %c0_61] : memref<8x128xf32, #tpu.memory_space<vmem>>, vector<8x128xf32>
    tpu.vector_store %arg6[%c0_60, %c0_61], %153 {strides = array<i32>} : memref<8x128xf32, #tpu.memory_space<vmem>>, vector<8x128xf32>,
    %c0_62 = arith.constant 0 : index
    %c0_63 = arith.constant 0 : index
    %155 = vector.load %arg7[%c0_62, %c0_63] : memref<8x128xf32, #tpu.memory_space<vmem>>, vector<8x128xf32>
    tpu.vector_store %arg7[%c0_62, %c0_63], %151 {strides = array<i32>} : memref<8x128xf32, #tpu.memory_space<vmem>>, vector<8x128xf32>,
    %156 = arith.index_cast %c3_i32 : i32 to index
    %c0_64 = arith.constant 0 : index
    %c0_65 = arith.constant 0 : index
    %157 = vector.load %arg3[%156, %c0_64, %c0_65] : memref<8x8x128xf32, #tpu.memory_space<vmem>>, vector<1x8x128xf32>
    %158 = vector.shape_cast %157 : vector<1x8x128xf32> to vector<8x128xf32>
    %159 = vector.shape_cast %153 : vector<8x128xf32> to vector<1x8x128xf32>
    tpu.vector_store %arg3[%156, %c0_64, %c0_65], %159 {strides = array<i32>} : memref<8x8x128xf32, #tpu.memory_space<vmem>>, vector<1x8x128xf32>,
    %c4_i32 = arith.constant 4 : i32
    %c0_66 = arith.constant 0 : index
    %c0_67 = arith.constant 0 : index
    %160 = vector.load %arg6[%c0_66, %c0_67] : memref<8x128xf32, #tpu.memory_space<vmem>>, vector<8x128xf32>
    %c0_68 = arith.constant 0 : index
    %c0_69 = arith.constant 0 : index
    %161 = vector.load %arg7[%c0_68, %c0_69] : memref<8x128xf32, #tpu.memory_space<vmem>>, vector<8x128xf32>
    %162 = arith.index_cast %c4_i32 : i32 to index
    %c0_70 = arith.constant 0 : index
    %c0_71 = arith.constant 0 : index
    %163 = vector.load %arg1[%162, %c0_70, %c0_71] : memref<8x8x512xf32, #tpu.memory_space<vmem>>, vector<1x8x512xf32>
    %164 = vector.shape_cast %163 : vector<1x8x512xf32> to vector<8x512xf32>
    %165 = arith.truncf %160 : vector<8x128xf32> to vector<8x128xbf16>
    %cst_72 = arith.constant dense<0.000000e+00> : vector<8x512xf32>
    %166 = tpu.matmul %165, %3, %cst_72 {dimension_numbers = #tpu.dot_dimension_numbers<[1], [0], [0], [1], [0, 0, 1, 1], [], []>} : vector<8x128xbf16>, vector<128x512xbf16>, vector<8x512xf32> -> vector<8x512xf32>
    %167 = arith.addf %164, %166 : vector<8x512xf32>
    %168 = vector.extract_strided_slice %167 {offsets = [0, 0], sizes = [8, 128], strides = [1, 1]} : vector<8x512xf32> to vector<8x128xf32>
    %169 = arith.negf %168 : vector<8x128xf32>
    %170 = math.exp %169 : vector<8x128xf32>
    %cst_73 = arith.constant 1.000000e+00 : f32
    %171 = vector.broadcast %cst_73 : f32 to vector<8x128xf32>
    %172 = arith.addf %171, %170 : vector<8x128xf32>
    %173 = arith.divf %171, %172 : vector<8x128xf32>
    %174 = vector.extract_strided_slice %167 {offsets = [0, 128], sizes = [8, 128], strides = [1, 1]} : vector<8x512xf32> to vector<8x128xf32>
    %175 = arith.negf %174 : vector<8x128xf32>
    %176 = math.exp %175 : vector<8x128xf32>
    %cst_74 = arith.constant 1.000000e+00 : f32
    %177 = vector.broadcast %cst_74 : f32 to vector<8x128xf32>
    %178 = arith.addf %177, %176 : vector<8x128xf32>
    %179 = arith.divf %177, %178 : vector<8x128xf32>
    %180 = vector.extract_strided_slice %167 {offsets = [0, 256], sizes = [8, 128], strides = [1, 1]} : vector<8x512xf32> to vector<8x128xf32>
    %181 = math.tanh %180 : vector<8x128xf32>
    %182 = vector.extract_strided_slice %167 {offsets = [0, 384], sizes = [8, 128], strides = [1, 1]} : vector<8x512xf32> to vector<8x128xf32>
    %183 = arith.negf %182 : vector<8x128xf32>
    %184 = math.exp %183 : vector<8x128xf32>
    %cst_75 = arith.constant 1.000000e+00 : f32
    %185 = vector.broadcast %cst_75 : f32 to vector<8x128xf32>
    %186 = arith.addf %185, %184 : vector<8x128xf32>
    %187 = arith.divf %185, %186 : vector<8x128xf32>
    %188 = arith.mulf %179, %161 : vector<8x128xf32>
    %189 = arith.mulf %173, %181 : vector<8x128xf32>
    %190 = arith.addf %188, %189 : vector<8x128xf32>
    %191 = math.tanh %190 : vector<8x128xf32>
    %192 = arith.mulf %187, %191 : vector<8x128xf32>
    %c0_76 = arith.constant 0 : index
    %c0_77 = arith.constant 0 : index
    %193 = vector.load %arg6[%c0_76, %c0_77] : memref<8x128xf32, #tpu.memory_space<vmem>>, vector<8x128xf32>
    tpu.vector_store %arg6[%c0_76, %c0_77], %192 {strides = array<i32>} : memref<8x128xf32, #tpu.memory_space<vmem>>, vector<8x128xf32>,
    %c0_78 = arith.constant 0 : index
    %c0_79 = arith.constant 0 : index
    %194 = vector.load %arg7[%c0_78, %c0_79] : memref<8x128xf32, #tpu.memory_space<vmem>>, vector<8x128xf32>
    tpu.vector_store %arg7[%c0_78, %c0_79], %190 {strides = array<i32>} : memref<8x128xf32, #tpu.memory_space<vmem>>, vector<8x128xf32>,
    %195 = arith.index_cast %c4_i32 : i32 to index
    %c0_80 = arith.constant 0 : index
    %c0_81 = arith.constant 0 : index
    %196 = vector.load %arg3[%195, %c0_80, %c0_81] : memref<8x8x128xf32, #tpu.memory_space<vmem>>, vector<1x8x128xf32>
    %197 = vector.shape_cast %196 : vector<1x8x128xf32> to vector<8x128xf32>
    %198 = vector.shape_cast %192 : vector<8x128xf32> to vector<1x8x128xf32>
    tpu.vector_store %arg3[%195, %c0_80, %c0_81], %198 {strides = array<i32>} : memref<8x8x128xf32, #tpu.memory_space<vmem>>, vector<1x8x128xf32>,
    %c5_i32 = arith.constant 5 : i32
    %c0_82 = arith.constant 0 : index
    %c0_83 = arith.constant 0 : index
    %199 = vector.load %arg6[%c0_82, %c0_83] : memref<8x128xf32, #tpu.memory_space<vmem>>, vector<8x128xf32>
    %c0_84 = arith.constant 0 : index
    %c0_85 = arith.constant 0 : index
    %200 = vector.load %arg7[%c0_84, %c0_85] : memref<8x128xf32, #tpu.memory_space<vmem>>, vector<8x128xf32>
    %201 = arith.index_cast %c5_i32 : i32 to index
    %c0_86 = arith.constant 0 : index
    %c0_87 = arith.constant 0 : index
    %202 = vector.load %arg1[%201, %c0_86, %c0_87] : memref<8x8x512xf32, #tpu.memory_space<vmem>>, vector<1x8x512xf32>
    %203 = vector.shape_cast %202 : vector<1x8x512xf32> to vector<8x512xf32>
    %204 = arith.truncf %199 : vector<8x128xf32> to vector<8x128xbf16>
    %cst_88 = arith.constant dense<0.000000e+00> : vector<8x512xf32>
    %205 = tpu.matmul %204, %3, %cst_88 {dimension_numbers = #tpu.dot_dimension_numbers<[1], [0], [0], [1], [0, 0, 1, 1], [], []>} : vector<8x128xbf16>, vector<128x512xbf16>, vector<8x512xf32> -> vector<8x512xf32>
    %206 = arith.addf %203, %205 : vector<8x512xf32>
    %207 = vector.extract_strided_slice %206 {offsets = [0, 0], sizes = [8, 128], strides = [1, 1]} : vector<8x512xf32> to vector<8x128xf32>
    %208 = arith.negf %207 : vector<8x128xf32>
    %209 = math.exp %208 : vector<8x128xf32>
    %cst_89 = arith.constant 1.000000e+00 : f32
    %210 = vector.broadcast %cst_89 : f32 to vector<8x128xf32>
    %211 = arith.addf %210, %209 : vector<8x128xf32>
    %212 = arith.divf %210, %211 : vector<8x128xf32>
    %213 = vector.extract_strided_slice %206 {offsets = [0, 128], sizes = [8, 128], strides = [1, 1]} : vector<8x512xf32> to vector<8x128xf32>
    %214 = arith.negf %213 : vector<8x128xf32>
    %215 = math.exp %214 : vector<8x128xf32>
    %cst_90 = arith.constant 1.000000e+00 : f32
    %216 = vector.broadcast %cst_90 : f32 to vector<8x128xf32>
    %217 = arith.addf %216, %215 : vector<8x128xf32>
    %218 = arith.divf %216, %217 : vector<8x128xf32>
    %219 = vector.extract_strided_slice %206 {offsets = [0, 256], sizes = [8, 128], strides = [1, 1]} : vector<8x512xf32> to vector<8x128xf32>
    %220 = math.tanh %219 : vector<8x128xf32>
    %221 = vector.extract_strided_slice %206 {offsets = [0, 384], sizes = [8, 128], strides = [1, 1]} : vector<8x512xf32> to vector<8x128xf32>
    %222 = arith.negf %221 : vector<8x128xf32>
    %223 = math.exp %222 : vector<8x128xf32>
    %cst_91 = arith.constant 1.000000e+00 : f32
    %224 = vector.broadcast %cst_91 : f32 to vector<8x128xf32>
    %225 = arith.addf %224, %223 : vector<8x128xf32>
    %226 = arith.divf %224, %225 : vector<8x128xf32>
    %227 = arith.mulf %218, %200 : vector<8x128xf32>
    %228 = arith.mulf %212, %220 : vector<8x128xf32>
    %229 = arith.addf %227, %228 : vector<8x128xf32>
    %230 = math.tanh %229 : vector<8x128xf32>
    %231 = arith.mulf %226, %230 : vector<8x128xf32>
    %c0_92 = arith.constant 0 : index
    %c0_93 = arith.constant 0 : index
    %232 = vector.load %arg6[%c0_92, %c0_93] : memref<8x128xf32, #tpu.memory_space<vmem>>, vector<8x128xf32>
    tpu.vector_store %arg6[%c0_92, %c0_93], %231 {strides = array<i32>} : memref<8x128xf32, #tpu.memory_space<vmem>>, vector<8x128xf32>,
    %c0_94 = arith.constant 0 : index
    %c0_95 = arith.constant 0 : index
    %233 = vector.load %arg7[%c0_94, %c0_95] : memref<8x128xf32, #tpu.memory_space<vmem>>, vector<8x128xf32>
    tpu.vector_store %arg7[%c0_94, %c0_95], %229 {strides = array<i32>} : memref<8x128xf32, #tpu.memory_space<vmem>>, vector<8x128xf32>,
    %234 = arith.index_cast %c5_i32 : i32 to index
    %c0_96 = arith.constant 0 : index
    %c0_97 = arith.constant 0 : index
    %235 = vector.load %arg3[%234, %c0_96, %c0_97] : memref<8x8x128xf32, #tpu.memory_space<vmem>>, vector<1x8x128xf32>
    %236 = vector.shape_cast %235 : vector<1x8x128xf32> to vector<8x128xf32>
    %237 = vector.shape_cast %231 : vector<8x128xf32> to vector<1x8x128xf32>
    tpu.vector_store %arg3[%234, %c0_96, %c0_97], %237 {strides = array<i32>} : memref<8x8x128xf32, #tpu.memory_space<vmem>>, vector<1x8x128xf32>,
    %c6_i32 = arith.constant 6 : i32
    %c0_98 = arith.constant 0 : index
    %c0_99 = arith.constant 0 : index
    %238 = vector.load %arg6[%c0_98, %c0_99] : memref<8x128xf32, #tpu.memory_space<vmem>>, vector<8x128xf32>
    %c0_100 = arith.constant 0 : index
    %c0_101 = arith.constant 0 : index
    %239 = vector.load %arg7[%c0_100, %c0_101] : memref<8x128xf32, #tpu.memory_space<vmem>>, vector<8x128xf32>
    %240 = arith.index_cast %c6_i32 : i32 to index
    %c0_102 = arith.constant 0 : index
    %c0_103 = arith.constant 0 : index
    %241 = vector.load %arg1[%240, %c0_102, %c0_103] : memref<8x8x512xf32, #tpu.memory_space<vmem>>, vector<1x8x512xf32>
    %242 = vector.shape_cast %241 : vector<1x8x512xf32> to vector<8x512xf32>
    %243 = arith.truncf %238 : vector<8x128xf32> to vector<8x128xbf16>
    %cst_104 = arith.constant dense<0.000000e+00> : vector<8x512xf32>
    %244 = tpu.matmul %243, %3, %cst_104 {dimension_numbers = #tpu.dot_dimension_numbers<[1], [0], [0], [1], [0, 0, 1, 1], [], []>} : vector<8x128xbf16>, vector<128x512xbf16>, vector<8x512xf32> -> vector<8x512xf32>
    %245 = arith.addf %242, %244 : vector<8x512xf32>
    %246 = vector.extract_strided_slice %245 {offsets = [0, 0], sizes = [8, 128], strides = [1, 1]} : vector<8x512xf32> to vector<8x128xf32>
    %247 = arith.negf %246 : vector<8x128xf32>
    %248 = math.exp %247 : vector<8x128xf32>
    %cst_105 = arith.constant 1.000000e+00 : f32
    %249 = vector.broadcast %cst_105 : f32 to vector<8x128xf32>
    %250 = arith.addf %249, %248 : vector<8x128xf32>
    %251 = arith.divf %249, %250 : vector<8x128xf32>
    %252 = vector.extract_strided_slice %245 {offsets = [0, 128], sizes = [8, 128], strides = [1, 1]} : vector<8x512xf32> to vector<8x128xf32>
    %253 = arith.negf %252 : vector<8x128xf32>
    %254 = math.exp %253 : vector<8x128xf32>
    %cst_106 = arith.constant 1.000000e+00 : f32
    %255 = vector.broadcast %cst_106 : f32 to vector<8x128xf32>
    %256 = arith.addf %255, %254 : vector<8x128xf32>
    %257 = arith.divf %255, %256 : vector<8x128xf32>
    %258 = vector.extract_strided_slice %245 {offsets = [0, 256], sizes = [8, 128], strides = [1, 1]} : vector<8x512xf32> to vector<8x128xf32>
    %259 = math.tanh %258 : vector<8x128xf32>
    %260 = vector.extract_strided_slice %245 {offsets = [0, 384], sizes = [8, 128], strides = [1, 1]} : vector<8x512xf32> to vector<8x128xf32>
    %261 = arith.negf %260 : vector<8x128xf32>
    %262 = math.exp %261 : vector<8x128xf32>
    %cst_107 = arith.constant 1.000000e+00 : f32
    %263 = vector.broadcast %cst_107 : f32 to vector<8x128xf32>
    %264 = arith.addf %263, %262 : vector<8x128xf32>
    %265 = arith.divf %263, %264 : vector<8x128xf32>
    %266 = arith.mulf %257, %239 : vector<8x128xf32>
    %267 = arith.mulf %251, %259 : vector<8x128xf32>
    %268 = arith.addf %266, %267 : vector<8x128xf32>
    %269 = math.tanh %268 : vector<8x128xf32>
    %270 = arith.mulf %265, %269 : vector<8x128xf32>
    %c0_108 = arith.constant 0 : index
    %c0_109 = arith.constant 0 : index
    %271 = vector.load %arg6[%c0_108, %c0_109] : memref<8x128xf32, #tpu.memory_space<vmem>>, vector<8x128xf32>
    tpu.vector_store %arg6[%c0_108, %c0_109], %270 {strides = array<i32>} : memref<8x128xf32, #tpu.memory_space<vmem>>, vector<8x128xf32>,
    %c0_110 = arith.constant 0 : index
    %c0_111 = arith.constant 0 : index
    %272 = vector.load %arg7[%c0_110, %c0_111] : memref<8x128xf32, #tpu.memory_space<vmem>>, vector<8x128xf32>
    tpu.vector_store %arg7[%c0_110, %c0_111], %268 {strides = array<i32>} : memref<8x128xf32, #tpu.memory_space<vmem>>, vector<8x128xf32>,
    %273 = arith.index_cast %c6_i32 : i32 to index
    %c0_112 = arith.constant 0 : index
    %c0_113 = arith.constant 0 : index
    %274 = vector.load %arg3[%273, %c0_112, %c0_113] : memref<8x8x128xf32, #tpu.memory_space<vmem>>, vector<1x8x128xf32>
    %275 = vector.shape_cast %274 : vector<1x8x128xf32> to vector<8x128xf32>
    %276 = vector.shape_cast %270 : vector<8x128xf32> to vector<1x8x128xf32>
    tpu.vector_store %arg3[%273, %c0_112, %c0_113], %276 {strides = array<i32>} : memref<8x8x128xf32, #tpu.memory_space<vmem>>, vector<1x8x128xf32>,
    %c7_i32 = arith.constant 7 : i32
    %c0_114 = arith.constant 0 : index
    %c0_115 = arith.constant 0 : index
    %277 = vector.load %arg6[%c0_114, %c0_115] : memref<8x128xf32, #tpu.memory_space<vmem>>, vector<8x128xf32>
    %c0_116 = arith.constant 0 : index
    %c0_117 = arith.constant 0 : index
    %278 = vector.load %arg7[%c0_116, %c0_117] : memref<8x128xf32, #tpu.memory_space<vmem>>, vector<8x128xf32>
    %279 = arith.index_cast %c7_i32 : i32 to index
    %c0_118 = arith.constant 0 : index
    %c0_119 = arith.constant 0 : index
    %280 = vector.load %arg1[%279, %c0_118, %c0_119] : memref<8x8x512xf32, #tpu.memory_space<vmem>>, vector<1x8x512xf32>
    %281 = vector.shape_cast %280 : vector<1x8x512xf32> to vector<8x512xf32>
    %282 = arith.truncf %277 : vector<8x128xf32> to vector<8x128xbf16>
    %cst_120 = arith.constant dense<0.000000e+00> : vector<8x512xf32>
    %283 = tpu.matmul %282, %3, %cst_120 {dimension_numbers = #tpu.dot_dimension_numbers<[1], [0], [0], [1], [0, 0, 1, 1], [], []>} : vector<8x128xbf16>, vector<128x512xbf16>, vector<8x512xf32> -> vector<8x512xf32>
    %284 = arith.addf %281, %283 : vector<8x512xf32>
    %285 = vector.extract_strided_slice %284 {offsets = [0, 0], sizes = [8, 128], strides = [1, 1]} : vector<8x512xf32> to vector<8x128xf32>
    %286 = arith.negf %285 : vector<8x128xf32>
    %287 = math.exp %286 : vector<8x128xf32>
    %cst_121 = arith.constant 1.000000e+00 : f32
    %288 = vector.broadcast %cst_121 : f32 to vector<8x128xf32>
    %289 = arith.addf %288, %287 : vector<8x128xf32>
    %290 = arith.divf %288, %289 : vector<8x128xf32>
    %291 = vector.extract_strided_slice %284 {offsets = [0, 128], sizes = [8, 128], strides = [1, 1]} : vector<8x512xf32> to vector<8x128xf32>
    %292 = arith.negf %291 : vector<8x128xf32>
    %293 = math.exp %292 : vector<8x128xf32>
    %cst_122 = arith.constant 1.000000e+00 : f32
    %294 = vector.broadcast %cst_122 : f32 to vector<8x128xf32>
    %295 = arith.addf %294, %293 : vector<8x128xf32>
    %296 = arith.divf %294, %295 : vector<8x128xf32>
    %297 = vector.extract_strided_slice %284 {offsets = [0, 256], sizes = [8, 128], strides = [1, 1]} : vector<8x512xf32> to vector<8x128xf32>
    %298 = math.tanh %297 : vector<8x128xf32>
    %299 = vector.extract_strided_slice %284 {offsets = [0, 384], sizes = [8, 128], strides = [1, 1]} : vector<8x512xf32> to vector<8x128xf32>
    %300 = arith.negf %299 : vector<8x128xf32>
    %301 = math.exp %300 : vector<8x128xf32>
    %cst_123 = arith.constant 1.000000e+00 : f32
    %302 = vector.broadcast %cst_123 : f32 to vector<8x128xf32>
    %303 = arith.addf %302, %301 : vector<8x128xf32>
    %304 = arith.divf %302, %303 : vector<8x128xf32>
    %305 = arith.mulf %296, %278 : vector<8x128xf32>
    %306 = arith.mulf %290, %298 : vector<8x128xf32>
    %307 = arith.addf %305, %306 : vector<8x128xf32>
    %308 = math.tanh %307 : vector<8x128xf32>
    %309 = arith.mulf %304, %308 : vector<8x128xf32>
    %c0_124 = arith.constant 0 : index
    %c0_125 = arith.constant 0 : index
    %310 = vector.load %arg6[%c0_124, %c0_125] : memref<8x128xf32, #tpu.memory_space<vmem>>, vector<8x128xf32>
    tpu.vector_store %arg6[%c0_124, %c0_125], %309 {strides = array<i32>} : memref<8x128xf32, #tpu.memory_space<vmem>>, vector<8x128xf32>,
    %c0_126 = arith.constant 0 : index
    %c0_127 = arith.constant 0 : index
    %311 = vector.load %arg7[%c0_126, %c0_127] : memref<8x128xf32, #tpu.memory_space<vmem>>, vector<8x128xf32>
    tpu.vector_store %arg7[%c0_126, %c0_127], %307 {strides = array<i32>} : memref<8x128xf32, #tpu.memory_space<vmem>>, vector<8x128xf32>,
    %312 = arith.index_cast %c7_i32 : i32 to index
    %c0_128 = arith.constant 0 : index
    %c0_129 = arith.constant 0 : index
    %313 = vector.load %arg3[%312, %c0_128, %c0_129] : memref<8x8x128xf32, #tpu.memory_space<vmem>>, vector<1x8x128xf32>
    %314 = vector.shape_cast %313 : vector<1x8x128xf32> to vector<8x128xf32>
    %315 = vector.shape_cast %309 : vector<8x128xf32> to vector<1x8x128xf32>
    tpu.vector_store %arg3[%312, %c0_128, %c0_129], %315 {strides = array<i32>} : memref<8x8x128xf32, #tpu.memory_space<vmem>>, vector<1x8x128xf32>,
    %c8_i32 = arith.constant 8 : i32
    %c0_i32_130 = arith.constant 0 : i32
    %316 = arith.cmpi eq, %arg0, %c0_i32_130 : i32
    %317 = arith.extui %316 : i1 to i32
    %c0_i32_131 = arith.constant 0 : i32
    %318 = arith.cmpi ne, %317, %c0_i32_131 : i32
    scf.if %318 {
      %c0_132 = arith.constant 0 : index
      %c0_133 = arith.constant 0 : index
      %319 = vector.load %arg6[%c0_132, %c0_133] : memref<8x128xf32, #tpu.memory_space<vmem>>, vector<8x128xf32>
      %c0_134 = arith.constant 0 : index
      %c0_135 = arith.constant 0 : index
      %320 = vector.load %arg4[%c0_134, %c0_135] : memref<8x128xf32, #tpu.memory_space<vmem>>, vector<8x128xf32>
      tpu.vector_store %arg4[%c0_134, %c0_135], %319 {strides = array<i32>} : memref<8x128xf32, #tpu.memory_space<vmem>>, vector<8x128xf32>,
      %c0_136 = arith.constant 0 : index
      %c0_137 = arith.constant 0 : index
      %321 = vector.load %arg7[%c0_136, %c0_137] : memref<8x128xf32, #tpu.memory_space<vmem>>, vector<8x128xf32>
      %c0_138 = arith.constant 0 : index
      %c0_139 = arith.constant 0 : index
      %322 = vector.load %arg5[%c0_138, %c0_139] : memref<8x128xf32, #tpu.memory_space<vmem>>, vector<8x128xf32>
      tpu.vector_store %arg5[%c0_138, %c0_139], %321 {strides = array<i32>} : memref<8x128xf32, #tpu.memory_space<vmem>>, vector<8x128xf32>,
    } else {
    }
    return
  }
  func.func @transform_0(%arg0: i32) -> (i32, i32, i32) {
    %c0_i32 = arith.constant 0 : i32
    %c0_i32_0 = arith.constant 0 : i32
    %c0_i32_1 = arith.constant 0 : i32
    return %arg0, %c0_i32, %c0_i32_0 : i32, i32, i32
  }
  func.func @transform_1(%arg0: i32) -> (i32, i32) {
    %c0_i32 = arith.constant 0 : i32
    %c0_i32_0 = arith.constant 0 : i32
    %c0_i32_1 = arith.constant 0 : i32
    return %c0_i32, %c0_i32_0 : i32, i32
  }
  func.func @transform_2(%arg0: i32) -> (i32, i32, i32) {
    %c0_i32 = arith.constant 0 : i32
    %c0_i32_0 = arith.constant 0 : i32
    %c0_i32_1 = arith.constant 0 : i32
    return %arg0, %c0_i32, %c0_i32_0 : i32, i32, i32
  }
  func.func @transform_3(%arg0: i32) -> (i32, i32) {
    %c0_i32 = arith.constant 0 : i32
    %c0_i32_0 = arith.constant 0 : i32
    %c0_i32_1 = arith.constant 0 : i32
    return %c0_i32, %c0_i32_0 : i32, i32
  }
  func.func @transform_4(%arg0: i32) -> (i32, i32) {
    %c0_i32 = arith.constant 0 : i32
    %c0_i32_0 = arith.constant 0 : i32
    %c0_i32_1 = arith.constant 0 : i32
    return %c0_i32, %c0_i32_0 : i32, i32
  }
}

module attributes {stable_mosaic.version = 11 : i64} {
  func.func @_lstm_chunk_kernel(%arg0: i32, %arg1: memref<8x8x512xf32, #tpu.memory_space<vmem>>, %arg2: memref<128x512xbf16, #tpu.memory_space<vmem>>, %arg3: memref<8x8x128xf32, #tpu.memory_space<vmem>>, %arg4: memref<8x128xf32, #tpu.memory_space<vmem>>, %arg5: memref<8x128xf32, #tpu.memory_space<vmem>>, %arg6: memref<8x128xf32, #tpu.memory_space<vmem>>, %arg7: memref<8x128xf32, #tpu.memory_space<vmem>>) attributes {dimension_semantics = [#tpu.dimension_semantics<arbitrary>], iteration_bounds = array<i64: 1>, scalar_prefetch = 0 : i64, scratch_operands = 2 : i64, tpu.core_type = #tpu.core_type<tc>, window_params = [{transform_indices = @transform_0, window_bounds = array<i64: 8, 8, 512>}, {pipeline_mode = #tpu.pipeline_mode<synchronous>, transform_indices = @transform_1, window_bounds = array<i64: 128, 512>}, {transform_indices = @transform_2, window_bounds = array<i64: 8, 8, 128>}, {pipeline_mode = #tpu.pipeline_mode<synchronous>, transform_indices = @transform_3, window_bounds = array<i64: 8, 128>}, {pipeline_mode = #tpu.pipeline_mode<synchronous>, transform_indices = @transform_4, window_bounds = array<i64: 8, 128>}]} {
    %c0_i32 = arith.constant 0 : i32
    %0 = arith.cmpi eq, %arg0, %c0_i32 : i32
    %1 = arith.extui %0 : i1 to i32
    %c0_i32_0 = arith.constant 0 : i32
    %2 = arith.cmpi ne, %1, %c0_i32_0 : i32
    scf.if %2 {
      %cst_132 = arith.constant 0.000000e+00 : f32
      %319 = vector.broadcast %cst_132 : f32 to vector<8x128xf32>
      %c0_133 = arith.constant 0 : index
      %c0_134 = arith.constant 0 : index
      %320 = vector.load %arg6[%c0_133, %c0_134] : memref<8x128xf32, #tpu.memory_space<vmem>>, vector<8x128xf32>
      tpu.vector_store %arg6[%c0_133, %c0_134], %319 {strides = array<i32>} : memref<8x128xf32, #tpu.memory_space<vmem>>, vector<8x128xf32>,
      %cst_135 = arith.constant 0.000000e+00 : f32
      %321 = vector.broadcast %cst_135 : f32 to vector<8x128xf32>
      %c0_136 = arith.constant 0 : index
      %c0_137 = arith.constant 0 : index
      %322 = vector.load %arg7[%c0_136, %c0_137] : memref<8x128xf32, #tpu.memory_space<vmem>>, vector<8x128xf32>
      tpu.vector_store %arg7[%c0_136, %c0_137], %321 {strides = array<i32>} : memref<8x128xf32, #tpu.memory_space<vmem>>, vector<8x128xf32>,
    } else {
    }
    %c0 = arith.constant 0 : index
    %c0_1 = arith.constant 0 : index
    %3 = vector.load %arg2[%c0, %c0_1] : memref<128x512xbf16, #tpu.memory_space<vmem>>, vector<128x512xbf16>
    %c0_i32_2 = arith.constant 0 : i32
    %c0_3 = arith.constant 0 : index
    %c0_4 = arith.constant 0 : index
    %4 = vector.load %arg6[%c0_3, %c0_4] : memref<8x128xf32, #tpu.memory_space<vmem>>, vector<8x128xf32>
    %c0_5 = arith.constant 0 : index
    %c0_6 = arith.constant 0 : index
    %5 = vector.load %arg7[%c0_5, %c0_6] : memref<8x128xf32, #tpu.memory_space<vmem>>, vector<8x128xf32>
    %6 = arith.index_cast %c0_i32_2 : i32 to index
    %c0_7 = arith.constant 0 : index
    %c0_8 = arith.constant 0 : index
    %7 = vector.load %arg1[%6, %c0_7, %c0_8] : memref<8x8x512xf32, #tpu.memory_space<vmem>>, vector<1x8x512xf32>
    %8 = vector.shape_cast %7 : vector<1x8x512xf32> to vector<8x512xf32>
    %9 = arith.truncf %4 : vector<8x128xf32> to vector<8x128xbf16>
    %cst = arith.constant dense<0.000000e+00> : vector<8x512xf32>
    %10 = tpu.matmul %9, %3, %cst {dimension_numbers = #tpu.dot_dimension_numbers<[1], [0], [0], [1], [0, 0, 1, 1], [], []>} : vector<8x128xbf16>, vector<128x512xbf16>, vector<8x512xf32> -> vector<8x512xf32>
    %11 = arith.addf %8, %10 : vector<8x512xf32>
    %12 = vector.extract_strided_slice %11 {offsets = [0, 0], sizes = [8, 128], strides = [1, 1]} : vector<8x512xf32> to vector<8x128xf32>
    %13 = arith.negf %12 : vector<8x128xf32>
    %14 = math.exp %13 : vector<8x128xf32>
    %cst_9 = arith.constant 1.000000e+00 : f32
    %15 = vector.broadcast %cst_9 : f32 to vector<8x128xf32>
    %16 = arith.addf %15, %14 : vector<8x128xf32>
    %17 = arith.divf %15, %16 : vector<8x128xf32>
    %18 = vector.extract_strided_slice %11 {offsets = [0, 128], sizes = [8, 128], strides = [1, 1]} : vector<8x512xf32> to vector<8x128xf32>
    %19 = arith.negf %18 : vector<8x128xf32>
    %20 = math.exp %19 : vector<8x128xf32>
    %cst_10 = arith.constant 1.000000e+00 : f32
    %21 = vector.broadcast %cst_10 : f32 to vector<8x128xf32>
    %22 = arith.addf %21, %20 : vector<8x128xf32>
    %23 = arith.divf %21, %22 : vector<8x128xf32>
    %24 = vector.extract_strided_slice %11 {offsets = [0, 256], sizes = [8, 128], strides = [1, 1]} : vector<8x512xf32> to vector<8x128xf32>
    %25 = math.tanh %24 : vector<8x128xf32>
    %26 = vector.extract_strided_slice %11 {offsets = [0, 384], sizes = [8, 128], strides = [1, 1]} : vector<8x512xf32> to vector<8x128xf32>
    %27 = arith.negf %26 : vector<8x128xf32>
    %28 = math.exp %27 : vector<8x128xf32>
    %cst_11 = arith.constant 1.000000e+00 : f32
    %29 = vector.broadcast %cst_11 : f32 to vector<8x128xf32>
    %30 = arith.addf %29, %28 : vector<8x128xf32>
    %31 = arith.divf %29, %30 : vector<8x128xf32>
    %32 = arith.mulf %23, %5 : vector<8x128xf32>
    %33 = arith.mulf %17, %25 : vector<8x128xf32>
    %34 = arith.addf %32, %33 : vector<8x128xf32>
    %35 = math.tanh %34 : vector<8x128xf32>
    %36 = arith.mulf %31, %35 : vector<8x128xf32>
    %c0_12 = arith.constant 0 : index
    %c0_13 = arith.constant 0 : index
    %37 = vector.load %arg6[%c0_12, %c0_13] : memref<8x128xf32, #tpu.memory_space<vmem>>, vector<8x128xf32>
    tpu.vector_store %arg6[%c0_12, %c0_13], %36 {strides = array<i32>} : memref<8x128xf32, #tpu.memory_space<vmem>>, vector<8x128xf32>,
    %c0_14 = arith.constant 0 : index
    %c0_15 = arith.constant 0 : index
    %38 = vector.load %arg7[%c0_14, %c0_15] : memref<8x128xf32, #tpu.memory_space<vmem>>, vector<8x128xf32>
    tpu.vector_store %arg7[%c0_14, %c0_15], %34 {strides = array<i32>} : memref<8x128xf32, #tpu.memory_space<vmem>>, vector<8x128xf32>,
    %39 = arith.index_cast %c0_i32_2 : i32 to index
    %c0_16 = arith.constant 0 : index
    %c0_17 = arith.constant 0 : index
    %40 = vector.load %arg3[%39, %c0_16, %c0_17] : memref<8x8x128xf32, #tpu.memory_space<vmem>>, vector<1x8x128xf32>
    %41 = vector.shape_cast %40 : vector<1x8x128xf32> to vector<8x128xf32>
    %42 = vector.shape_cast %36 : vector<8x128xf32> to vector<1x8x128xf32>
    tpu.vector_store %arg3[%39, %c0_16, %c0_17], %42 {strides = array<i32>} : memref<8x8x128xf32, #tpu.memory_space<vmem>>, vector<1x8x128xf32>,
    %c1_i32 = arith.constant 1 : i32
    %c0_18 = arith.constant 0 : index
    %c0_19 = arith.constant 0 : index
    %43 = vector.load %arg6[%c0_18, %c0_19] : memref<8x128xf32, #tpu.memory_space<vmem>>, vector<8x128xf32>
    %c0_20 = arith.constant 0 : index
    %c0_21 = arith.constant 0 : index
    %44 = vector.load %arg7[%c0_20, %c0_21] : memref<8x128xf32, #tpu.memory_space<vmem>>, vector<8x128xf32>
    %45 = arith.index_cast %c1_i32 : i32 to index
    %c0_22 = arith.constant 0 : index
    %c0_23 = arith.constant 0 : index
    %46 = vector.load %arg1[%45, %c0_22, %c0_23] : memref<8x8x512xf32, #tpu.memory_space<vmem>>, vector<1x8x512xf32>
    %47 = vector.shape_cast %46 : vector<1x8x512xf32> to vector<8x512xf32>
    %48 = arith.truncf %43 : vector<8x128xf32> to vector<8x128xbf16>
    %cst_24 = arith.constant dense<0.000000e+00> : vector<8x512xf32>
    %49 = tpu.matmul %48, %3, %cst_24 {dimension_numbers = #tpu.dot_dimension_numbers<[1], [0], [0], [1], [0, 0, 1, 1], [], []>} : vector<8x128xbf16>, vector<128x512xbf16>, vector<8x512xf32> -> vector<8x512xf32>
    %50 = arith.addf %47, %49 : vector<8x512xf32>
    %51 = vector.extract_strided_slice %50 {offsets = [0, 0], sizes = [8, 128], strides = [1, 1]} : vector<8x512xf32> to vector<8x128xf32>
    %52 = arith.negf %51 : vector<8x128xf32>
    %53 = math.exp %52 : vector<8x128xf32>
    %cst_25 = arith.constant 1.000000e+00 : f32
    %54 = vector.broadcast %cst_25 : f32 to vector<8x128xf32>
    %55 = arith.addf %54, %53 : vector<8x128xf32>
    %56 = arith.divf %54, %55 : vector<8x128xf32>
    %57 = vector.extract_strided_slice %50 {offsets = [0, 128], sizes = [8, 128], strides = [1, 1]} : vector<8x512xf32> to vector<8x128xf32>
    %58 = arith.negf %57 : vector<8x128xf32>
    %59 = math.exp %58 : vector<8x128xf32>
    %cst_26 = arith.constant 1.000000e+00 : f32
    %60 = vector.broadcast %cst_26 : f32 to vector<8x128xf32>
    %61 = arith.addf %60, %59 : vector<8x128xf32>
    %62 = arith.divf %60, %61 : vector<8x128xf32>
    %63 = vector.extract_strided_slice %50 {offsets = [0, 256], sizes = [8, 128], strides = [1, 1]} : vector<8x512xf32> to vector<8x128xf32>
    %64 = math.tanh %63 : vector<8x128xf32>
    %65 = vector.extract_strided_slice %50 {offsets = [0, 384], sizes = [8, 128], strides = [1, 1]} : vector<8x512xf32> to vector<8x128xf32>
    %66 = arith.negf %65 : vector<8x128xf32>
    %67 = math.exp %66 : vector<8x128xf32>
    %cst_27 = arith.constant 1.000000e+00 : f32
    %68 = vector.broadcast %cst_27 : f32 to vector<8x128xf32>
    %69 = arith.addf %68, %67 : vector<8x128xf32>
    %70 = arith.divf %68, %69 : vector<8x128xf32>
    %71 = arith.mulf %62, %44 : vector<8x128xf32>
    %72 = arith.mulf %56, %64 : vector<8x128xf32>
    %73 = arith.addf %71, %72 : vector<8x128xf32>
    %74 = math.tanh %73 : vector<8x128xf32>
    %75 = arith.mulf %70, %74 : vector<8x128xf32>
    %c0_28 = arith.constant 0 : index
    %c0_29 = arith.constant 0 : index
    %76 = vector.load %arg6[%c0_28, %c0_29] : memref<8x128xf32, #tpu.memory_space<vmem>>, vector<8x128xf32>
    tpu.vector_store %arg6[%c0_28, %c0_29], %75 {strides = array<i32>} : memref<8x128xf32, #tpu.memory_space<vmem>>, vector<8x128xf32>,
    %c0_30 = arith.constant 0 : index
    %c0_31 = arith.constant 0 : index
    %77 = vector.load %arg7[%c0_30, %c0_31] : memref<8x128xf32, #tpu.memory_space<vmem>>, vector<8x128xf32>
    tpu.vector_store %arg7[%c0_30, %c0_31], %73 {strides = array<i32>} : memref<8x128xf32, #tpu.memory_space<vmem>>, vector<8x128xf32>,
    %78 = arith.index_cast %c1_i32 : i32 to index
    %c0_32 = arith.constant 0 : index
    %c0_33 = arith.constant 0 : index
    %79 = vector.load %arg3[%78, %c0_32, %c0_33] : memref<8x8x128xf32, #tpu.memory_space<vmem>>, vector<1x8x128xf32>
    %80 = vector.shape_cast %79 : vector<1x8x128xf32> to vector<8x128xf32>
    %81 = vector.shape_cast %75 : vector<8x128xf32> to vector<1x8x128xf32>
    tpu.vector_store %arg3[%78, %c0_32, %c0_33], %81 {strides = array<i32>} : memref<8x8x128xf32, #tpu.memory_space<vmem>>, vector<1x8x128xf32>,
    %c2_i32 = arith.constant 2 : i32
    %c0_34 = arith.constant 0 : index
    %c0_35 = arith.constant 0 : index
    %82 = vector.load %arg6[%c0_34, %c0_35] : memref<8x128xf32, #tpu.memory_space<vmem>>, vector<8x128xf32>
    %c0_36 = arith.constant 0 : index
    %c0_37 = arith.constant 0 : index
    %83 = vector.load %arg7[%c0_36, %c0_37] : memref<8x128xf32, #tpu.memory_space<vmem>>, vector<8x128xf32>
    %84 = arith.index_cast %c2_i32 : i32 to index
    %c0_38 = arith.constant 0 : index
    %c0_39 = arith.constant 0 : index
    %85 = vector.load %arg1[%84, %c0_38, %c0_39] : memref<8x8x512xf32, #tpu.memory_space<vmem>>, vector<1x8x512xf32>
    %86 = vector.shape_cast %85 : vector<1x8x512xf32> to vector<8x512xf32>
    %87 = arith.truncf %82 : vector<8x128xf32> to vector<8x128xbf16>
    %cst_40 = arith.constant dense<0.000000e+00> : vector<8x512xf32>
    %88 = tpu.matmul %87, %3, %cst_40 {dimension_numbers = #tpu.dot_dimension_numbers<[1], [0], [0], [1], [0, 0, 1, 1], [], []>} : vector<8x128xbf16>, vector<128x512xbf16>, vector<8x512xf32> -> vector<8x512xf32>
    %89 = arith.addf %86, %88 : vector<8x512xf32>
    %90 = vector.extract_strided_slice %89 {offsets = [0, 0], sizes = [8, 128], strides = [1, 1]} : vector<8x512xf32> to vector<8x128xf32>
    %91 = arith.negf %90 : vector<8x128xf32>
    %92 = math.exp %91 : vector<8x128xf32>
    %cst_41 = arith.constant 1.000000e+00 : f32
    %93 = vector.broadcast %cst_41 : f32 to vector<8x128xf32>
    %94 = arith.addf %93, %92 : vector<8x128xf32>
    %95 = arith.divf %93, %94 : vector<8x128xf32>
    %96 = vector.extract_strided_slice %89 {offsets = [0, 128], sizes = [8, 128], strides = [1, 1]} : vector<8x512xf32> to vector<8x128xf32>
    %97 = arith.negf %96 : vector<8x128xf32>
    %98 = math.exp %97 : vector<8x128xf32>
    %cst_42 = arith.constant 1.000000e+00 : f32
    %99 = vector.broadcast %cst_42 : f32 to vector<8x128xf32>
    %100 = arith.addf %99, %98 : vector<8x128xf32>
    %101 = arith.divf %99, %100 : vector<8x128xf32>
    %102 = vector.extract_strided_slice %89 {offsets = [0, 256], sizes = [8, 128], strides = [1, 1]} : vector<8x512xf32> to vector<8x128xf32>
    %103 = math.tanh %102 : vector<8x128xf32>
    %104 = vector.extract_strided_slice %89 {offsets = [0, 384], sizes = [8, 128], strides = [1, 1]} : vector<8x512xf32> to vector<8x128xf32>
    %105 = arith.negf %104 : vector<8x128xf32>
    %106 = math.exp %105 : vector<8x128xf32>
    %cst_43 = arith.constant 1.000000e+00 : f32
    %107 = vector.broadcast %cst_43 : f32 to vector<8x128xf32>
    %108 = arith.addf %107, %106 : vector<8x128xf32>
    %109 = arith.divf %107, %108 : vector<8x128xf32>
    %110 = arith.mulf %101, %83 : vector<8x128xf32>
    %111 = arith.mulf %95, %103 : vector<8x128xf32>
    %112 = arith.addf %110, %111 : vector<8x128xf32>
    %113 = math.tanh %112 : vector<8x128xf32>
    %114 = arith.mulf %109, %113 : vector<8x128xf32>
    %c0_44 = arith.constant 0 : index
    %c0_45 = arith.constant 0 : index
    %115 = vector.load %arg6[%c0_44, %c0_45] : memref<8x128xf32, #tpu.memory_space<vmem>>, vector<8x128xf32>
    tpu.vector_store %arg6[%c0_44, %c0_45], %114 {strides = array<i32>} : memref<8x128xf32, #tpu.memory_space<vmem>>, vector<8x128xf32>,
    %c0_46 = arith.constant 0 : index
    %c0_47 = arith.constant 0 : index
    %116 = vector.load %arg7[%c0_46, %c0_47] : memref<8x128xf32, #tpu.memory_space<vmem>>, vector<8x128xf32>
    tpu.vector_store %arg7[%c0_46, %c0_47], %112 {strides = array<i32>} : memref<8x128xf32, #tpu.memory_space<vmem>>, vector<8x128xf32>,
    %117 = arith.index_cast %c2_i32 : i32 to index
    %c0_48 = arith.constant 0 : index
    %c0_49 = arith.constant 0 : index
    %118 = vector.load %arg3[%117, %c0_48, %c0_49] : memref<8x8x128xf32, #tpu.memory_space<vmem>>, vector<1x8x128xf32>
    %119 = vector.shape_cast %118 : vector<1x8x128xf32> to vector<8x128xf32>
    %120 = vector.shape_cast %114 : vector<8x128xf32> to vector<1x8x128xf32>
    tpu.vector_store %arg3[%117, %c0_48, %c0_49], %120 {strides = array<i32>} : memref<8x8x128xf32, #tpu.memory_space<vmem>>, vector<1x8x128xf32>,
    %c3_i32 = arith.constant 3 : i32
    %c0_50 = arith.constant 0 : index
    %c0_51 = arith.constant 0 : index
    %121 = vector.load %arg6[%c0_50, %c0_51] : memref<8x128xf32, #tpu.memory_space<vmem>>, vector<8x128xf32>
    %c0_52 = arith.constant 0 : index
    %c0_53 = arith.constant 0 : index
    %122 = vector.load %arg7[%c0_52, %c0_53] : memref<8x128xf32, #tpu.memory_space<vmem>>, vector<8x128xf32>
    %123 = arith.index_cast %c3_i32 : i32 to index
    %c0_54 = arith.constant 0 : index
    %c0_55 = arith.constant 0 : index
    %124 = vector.load %arg1[%123, %c0_54, %c0_55] : memref<8x8x512xf32, #tpu.memory_space<vmem>>, vector<1x8x512xf32>
    %125 = vector.shape_cast %124 : vector<1x8x512xf32> to vector<8x512xf32>
    %126 = arith.truncf %121 : vector<8x128xf32> to vector<8x128xbf16>
    %cst_56 = arith.constant dense<0.000000e+00> : vector<8x512xf32>
    %127 = tpu.matmul %126, %3, %cst_56 {dimension_numbers = #tpu.dot_dimension_numbers<[1], [0], [0], [1], [0, 0, 1, 1], [], []>} : vector<8x128xbf16>, vector<128x512xbf16>, vector<8x512xf32> -> vector<8x512xf32>
    %128 = arith.addf %125, %127 : vector<8x512xf32>
    %129 = vector.extract_strided_slice %128 {offsets = [0, 0], sizes = [8, 128], strides = [1, 1]} : vector<8x512xf32> to vector<8x128xf32>
    %130 = arith.negf %129 : vector<8x128xf32>
    %131 = math.exp %130 : vector<8x128xf32>
    %cst_57 = arith.constant 1.000000e+00 : f32
    %132 = vector.broadcast %cst_57 : f32 to vector<8x128xf32>
    %133 = arith.addf %132, %131 : vector<8x128xf32>
    %134 = arith.divf %132, %133 : vector<8x128xf32>
    %135 = vector.extract_strided_slice %128 {offsets = [0, 128], sizes = [8, 128], strides = [1, 1]} : vector<8x512xf32> to vector<8x128xf32>
    %136 = arith.negf %135 : vector<8x128xf32>
    %137 = math.exp %136 : vector<8x128xf32>
    %cst_58 = arith.constant 1.000000e+00 : f32
    %138 = vector.broadcast %cst_58 : f32 to vector<8x128xf32>
    %139 = arith.addf %138, %137 : vector<8x128xf32>
    %140 = arith.divf %138, %139 : vector<8x128xf32>
    %141 = vector.extract_strided_slice %128 {offsets = [0, 256], sizes = [8, 128], strides = [1, 1]} : vector<8x512xf32> to vector<8x128xf32>
    %142 = math.tanh %141 : vector<8x128xf32>
    %143 = vector.extract_strided_slice %128 {offsets = [0, 384], sizes = [8, 128], strides = [1, 1]} : vector<8x512xf32> to vector<8x128xf32>
    %144 = arith.negf %143 : vector<8x128xf32>
    %145 = math.exp %144 : vector<8x128xf32>
    %cst_59 = arith.constant 1.000000e+00 : f32
    %146 = vector.broadcast %cst_59 : f32 to vector<8x128xf32>
    %147 = arith.addf %146, %145 : vector<8x128xf32>
    %148 = arith.divf %146, %147 : vector<8x128xf32>
    %149 = arith.mulf %140, %122 : vector<8x128xf32>
    %150 = arith.mulf %134, %142 : vector<8x128xf32>
    %151 = arith.addf %149, %150 : vector<8x128xf32>
    %152 = math.tanh %151 : vector<8x128xf32>
    %153 = arith.mulf %148, %152 : vector<8x128xf32>
    %c0_60 = arith.constant 0 : index
    %c0_61 = arith.constant 0 : index
    %154 = vector.load %arg6[%c0_60, %c0_61] : memref<8x128xf32, #tpu.memory_space<vmem>>, vector<8x128xf32>
    tpu.vector_store %arg6[%c0_60, %c0_61], %153 {strides = array<i32>} : memref<8x128xf32, #tpu.memory_space<vmem>>, vector<8x128xf32>,
    %c0_62 = arith.constant 0 : index
    %c0_63 = arith.constant 0 : index
    %155 = vector.load %arg7[%c0_62, %c0_63] : memref<8x128xf32, #tpu.memory_space<vmem>>, vector<8x128xf32>
    tpu.vector_store %arg7[%c0_62, %c0_63], %151 {strides = array<i32>} : memref<8x128xf32, #tpu.memory_space<vmem>>, vector<8x128xf32>,
    %156 = arith.index_cast %c3_i32 : i32 to index
    %c0_64 = arith.constant 0 : index
    %c0_65 = arith.constant 0 : index
    %157 = vector.load %arg3[%156, %c0_64, %c0_65] : memref<8x8x128xf32, #tpu.memory_space<vmem>>, vector<1x8x128xf32>
    %158 = vector.shape_cast %157 : vector<1x8x128xf32> to vector<8x128xf32>
    %159 = vector.shape_cast %153 : vector<8x128xf32> to vector<1x8x128xf32>
    tpu.vector_store %arg3[%156, %c0_64, %c0_65], %159 {strides = array<i32>} : memref<8x8x128xf32, #tpu.memory_space<vmem>>, vector<1x8x128xf32>,
    %c4_i32 = arith.constant 4 : i32
    %c0_66 = arith.constant 0 : index
    %c0_67 = arith.constant 0 : index
    %160 = vector.load %arg6[%c0_66, %c0_67] : memref<8x128xf32, #tpu.memory_space<vmem>>, vector<8x128xf32>
    %c0_68 = arith.constant 0 : index
    %c0_69 = arith.constant 0 : index
    %161 = vector.load %arg7[%c0_68, %c0_69] : memref<8x128xf32, #tpu.memory_space<vmem>>, vector<8x128xf32>
    %162 = arith.index_cast %c4_i32 : i32 to index
    %c0_70 = arith.constant 0 : index
    %c0_71 = arith.constant 0 : index
    %163 = vector.load %arg1[%162, %c0_70, %c0_71] : memref<8x8x512xf32, #tpu.memory_space<vmem>>, vector<1x8x512xf32>
    %164 = vector.shape_cast %163 : vector<1x8x512xf32> to vector<8x512xf32>
    %165 = arith.truncf %160 : vector<8x128xf32> to vector<8x128xbf16>
    %cst_72 = arith.constant dense<0.000000e+00> : vector<8x512xf32>
    %166 = tpu.matmul %165, %3, %cst_72 {dimension_numbers = #tpu.dot_dimension_numbers<[1], [0], [0], [1], [0, 0, 1, 1], [], []>} : vector<8x128xbf16>, vector<128x512xbf16>, vector<8x512xf32> -> vector<8x512xf32>
    %167 = arith.addf %164, %166 : vector<8x512xf32>
    %168 = vector.extract_strided_slice %167 {offsets = [0, 0], sizes = [8, 128], strides = [1, 1]} : vector<8x512xf32> to vector<8x128xf32>
    %169 = arith.negf %168 : vector<8x128xf32>
    %170 = math.exp %169 : vector<8x128xf32>
    %cst_73 = arith.constant 1.000000e+00 : f32
    %171 = vector.broadcast %cst_73 : f32 to vector<8x128xf32>
    %172 = arith.addf %171, %170 : vector<8x128xf32>
    %173 = arith.divf %171, %172 : vector<8x128xf32>
    %174 = vector.extract_strided_slice %167 {offsets = [0, 128], sizes = [8, 128], strides = [1, 1]} : vector<8x512xf32> to vector<8x128xf32>
    %175 = arith.negf %174 : vector<8x128xf32>
    %176 = math.exp %175 : vector<8x128xf32>
    %cst_74 = arith.constant 1.000000e+00 : f32
    %177 = vector.broadcast %cst_74 : f32 to vector<8x128xf32>
    %178 = arith.addf %177, %176 : vector<8x128xf32>
    %179 = arith.divf %177, %178 : vector<8x128xf32>
    %180 = vector.extract_strided_slice %167 {offsets = [0, 256], sizes = [8, 128], strides = [1, 1]} : vector<8x512xf32> to vector<8x128xf32>
    %181 = math.tanh %180 : vector<8x128xf32>
    %182 = vector.extract_strided_slice %167 {offsets = [0, 384], sizes = [8, 128], strides = [1, 1]} : vector<8x512xf32> to vector<8x128xf32>
    %183 = arith.negf %182 : vector<8x128xf32>
    %184 = math.exp %183 : vector<8x128xf32>
    %cst_75 = arith.constant 1.000000e+00 : f32
    %185 = vector.broadcast %cst_75 : f32 to vector<8x128xf32>
    %186 = arith.addf %185, %184 : vector<8x128xf32>
    %187 = arith.divf %185, %186 : vector<8x128xf32>
    %188 = arith.mulf %179, %161 : vector<8x128xf32>
    %189 = arith.mulf %173, %181 : vector<8x128xf32>
    %190 = arith.addf %188, %189 : vector<8x128xf32>
    %191 = math.tanh %190 : vector<8x128xf32>
    %192 = arith.mulf %187, %191 : vector<8x128xf32>
    %c0_76 = arith.constant 0 : index
    %c0_77 = arith.constant 0 : index
    %193 = vector.load %arg6[%c0_76, %c0_77] : memref<8x128xf32, #tpu.memory_space<vmem>>, vector<8x128xf32>
    tpu.vector_store %arg6[%c0_76, %c0_77], %192 {strides = array<i32>} : memref<8x128xf32, #tpu.memory_space<vmem>>, vector<8x128xf32>,
    %c0_78 = arith.constant 0 : index
    %c0_79 = arith.constant 0 : index
    %194 = vector.load %arg7[%c0_78, %c0_79] : memref<8x128xf32, #tpu.memory_space<vmem>>, vector<8x128xf32>
    tpu.vector_store %arg7[%c0_78, %c0_79], %190 {strides = array<i32>} : memref<8x128xf32, #tpu.memory_space<vmem>>, vector<8x128xf32>,
    %195 = arith.index_cast %c4_i32 : i32 to index
    %c0_80 = arith.constant 0 : index
    %c0_81 = arith.constant 0 : index
    %196 = vector.load %arg3[%195, %c0_80, %c0_81] : memref<8x8x128xf32, #tpu.memory_space<vmem>>, vector<1x8x128xf32>
    %197 = vector.shape_cast %196 : vector<1x8x128xf32> to vector<8x128xf32>
    %198 = vector.shape_cast %192 : vector<8x128xf32> to vector<1x8x128xf32>
    tpu.vector_store %arg3[%195, %c0_80, %c0_81], %198 {strides = array<i32>} : memref<8x8x128xf32, #tpu.memory_space<vmem>>, vector<1x8x128xf32>,
    %c5_i32 = arith.constant 5 : i32
    %c0_82 = arith.constant 0 : index
    %c0_83 = arith.constant 0 : index
    %199 = vector.load %arg6[%c0_82, %c0_83] : memref<8x128xf32, #tpu.memory_space<vmem>>, vector<8x128xf32>
    %c0_84 = arith.constant 0 : index
    %c0_85 = arith.constant 0 : index
    %200 = vector.load %arg7[%c0_84, %c0_85] : memref<8x128xf32, #tpu.memory_space<vmem>>, vector<8x128xf32>
    %201 = arith.index_cast %c5_i32 : i32 to index
    %c0_86 = arith.constant 0 : index
    %c0_87 = arith.constant 0 : index
    %202 = vector.load %arg1[%201, %c0_86, %c0_87] : memref<8x8x512xf32, #tpu.memory_space<vmem>>, vector<1x8x512xf32>
    %203 = vector.shape_cast %202 : vector<1x8x512xf32> to vector<8x512xf32>
    %204 = arith.truncf %199 : vector<8x128xf32> to vector<8x128xbf16>
    %cst_88 = arith.constant dense<0.000000e+00> : vector<8x512xf32>
    %205 = tpu.matmul %204, %3, %cst_88 {dimension_numbers = #tpu.dot_dimension_numbers<[1], [0], [0], [1], [0, 0, 1, 1], [], []>} : vector<8x128xbf16>, vector<128x512xbf16>, vector<8x512xf32> -> vector<8x512xf32>
    %206 = arith.addf %203, %205 : vector<8x512xf32>
    %207 = vector.extract_strided_slice %206 {offsets = [0, 0], sizes = [8, 128], strides = [1, 1]} : vector<8x512xf32> to vector<8x128xf32>
    %208 = arith.negf %207 : vector<8x128xf32>
    %209 = math.exp %208 : vector<8x128xf32>
    %cst_89 = arith.constant 1.000000e+00 : f32
    %210 = vector.broadcast %cst_89 : f32 to vector<8x128xf32>
    %211 = arith.addf %210, %209 : vector<8x128xf32>
    %212 = arith.divf %210, %211 : vector<8x128xf32>
    %213 = vector.extract_strided_slice %206 {offsets = [0, 128], sizes = [8, 128], strides = [1, 1]} : vector<8x512xf32> to vector<8x128xf32>
    %214 = arith.negf %213 : vector<8x128xf32>
    %215 = math.exp %214 : vector<8x128xf32>
    %cst_90 = arith.constant 1.000000e+00 : f32
    %216 = vector.broadcast %cst_90 : f32 to vector<8x128xf32>
    %217 = arith.addf %216, %215 : vector<8x128xf32>
    %218 = arith.divf %216, %217 : vector<8x128xf32>
    %219 = vector.extract_strided_slice %206 {offsets = [0, 256], sizes = [8, 128], strides = [1, 1]} : vector<8x512xf32> to vector<8x128xf32>
    %220 = math.tanh %219 : vector<8x128xf32>
    %221 = vector.extract_strided_slice %206 {offsets = [0, 384], sizes = [8, 128], strides = [1, 1]} : vector<8x512xf32> to vector<8x128xf32>
    %222 = arith.negf %221 : vector<8x128xf32>
    %223 = math.exp %222 : vector<8x128xf32>
    %cst_91 = arith.constant 1.000000e+00 : f32
    %224 = vector.broadcast %cst_91 : f32 to vector<8x128xf32>
    %225 = arith.addf %224, %223 : vector<8x128xf32>
    %226 = arith.divf %224, %225 : vector<8x128xf32>
    %227 = arith.mulf %218, %200 : vector<8x128xf32>
    %228 = arith.mulf %212, %220 : vector<8x128xf32>
    %229 = arith.addf %227, %228 : vector<8x128xf32>
    %230 = math.tanh %229 : vector<8x128xf32>
    %231 = arith.mulf %226, %230 : vector<8x128xf32>
    %c0_92 = arith.constant 0 : index
    %c0_93 = arith.constant 0 : index
    %232 = vector.load %arg6[%c0_92, %c0_93] : memref<8x128xf32, #tpu.memory_space<vmem>>, vector<8x128xf32>
    tpu.vector_store %arg6[%c0_92, %c0_93], %231 {strides = array<i32>} : memref<8x128xf32, #tpu.memory_space<vmem>>, vector<8x128xf32>,
    %c0_94 = arith.constant 0 : index
    %c0_95 = arith.constant 0 : index
    %233 = vector.load %arg7[%c0_94, %c0_95] : memref<8x128xf32, #tpu.memory_space<vmem>>, vector<8x128xf32>
    tpu.vector_store %arg7[%c0_94, %c0_95], %229 {strides = array<i32>} : memref<8x128xf32, #tpu.memory_space<vmem>>, vector<8x128xf32>,
    %234 = arith.index_cast %c5_i32 : i32 to index
    %c0_96 = arith.constant 0 : index
    %c0_97 = arith.constant 0 : index
    %235 = vector.load %arg3[%234, %c0_96, %c0_97] : memref<8x8x128xf32, #tpu.memory_space<vmem>>, vector<1x8x128xf32>
    %236 = vector.shape_cast %235 : vector<1x8x128xf32> to vector<8x128xf32>
    %237 = vector.shape_cast %231 : vector<8x128xf32> to vector<1x8x128xf32>
    tpu.vector_store %arg3[%234, %c0_96, %c0_97], %237 {strides = array<i32>} : memref<8x8x128xf32, #tpu.memory_space<vmem>>, vector<1x8x128xf32>,
    %c6_i32 = arith.constant 6 : i32
    %c0_98 = arith.constant 0 : index
    %c0_99 = arith.constant 0 : index
    %238 = vector.load %arg6[%c0_98, %c0_99] : memref<8x128xf32, #tpu.memory_space<vmem>>, vector<8x128xf32>
    %c0_100 = arith.constant 0 : index
    %c0_101 = arith.constant 0 : index
    %239 = vector.load %arg7[%c0_100, %c0_101] : memref<8x128xf32, #tpu.memory_space<vmem>>, vector<8x128xf32>
    %240 = arith.index_cast %c6_i32 : i32 to index
    %c0_102 = arith.constant 0 : index
    %c0_103 = arith.constant 0 : index
    %241 = vector.load %arg1[%240, %c0_102, %c0_103] : memref<8x8x512xf32, #tpu.memory_space<vmem>>, vector<1x8x512xf32>
    %242 = vector.shape_cast %241 : vector<1x8x512xf32> to vector<8x512xf32>
    %243 = arith.truncf %238 : vector<8x128xf32> to vector<8x128xbf16>
    %cst_104 = arith.constant dense<0.000000e+00> : vector<8x512xf32>
    %244 = tpu.matmul %243, %3, %cst_104 {dimension_numbers = #tpu.dot_dimension_numbers<[1], [0], [0], [1], [0, 0, 1, 1], [], []>} : vector<8x128xbf16>, vector<128x512xbf16>, vector<8x512xf32> -> vector<8x512xf32>
    %245 = arith.addf %242, %244 : vector<8x512xf32>
    %246 = vector.extract_strided_slice %245 {offsets = [0, 0], sizes = [8, 128], strides = [1, 1]} : vector<8x512xf32> to vector<8x128xf32>
    %247 = arith.negf %246 : vector<8x128xf32>
    %248 = math.exp %247 : vector<8x128xf32>
    %cst_105 = arith.constant 1.000000e+00 : f32
    %249 = vector.broadcast %cst_105 : f32 to vector<8x128xf32>
    %250 = arith.addf %249, %248 : vector<8x128xf32>
    %251 = arith.divf %249, %250 : vector<8x128xf32>
    %252 = vector.extract_strided_slice %245 {offsets = [0, 128], sizes = [8, 128], strides = [1, 1]} : vector<8x512xf32> to vector<8x128xf32>
    %253 = arith.negf %252 : vector<8x128xf32>
    %254 = math.exp %253 : vector<8x128xf32>
    %cst_106 = arith.constant 1.000000e+00 : f32
    %255 = vector.broadcast %cst_106 : f32 to vector<8x128xf32>
    %256 = arith.addf %255, %254 : vector<8x128xf32>
    %257 = arith.divf %255, %256 : vector<8x128xf32>
    %258 = vector.extract_strided_slice %245 {offsets = [0, 256], sizes = [8, 128], strides = [1, 1]} : vector<8x512xf32> to vector<8x128xf32>
    %259 = math.tanh %258 : vector<8x128xf32>
    %260 = vector.extract_strided_slice %245 {offsets = [0, 384], sizes = [8, 128], strides = [1, 1]} : vector<8x512xf32> to vector<8x128xf32>
    %261 = arith.negf %260 : vector<8x128xf32>
    %262 = math.exp %261 : vector<8x128xf32>
    %cst_107 = arith.constant 1.000000e+00 : f32
    %263 = vector.broadcast %cst_107 : f32 to vector<8x128xf32>
    %264 = arith.addf %263, %262 : vector<8x128xf32>
    %265 = arith.divf %263, %264 : vector<8x128xf32>
    %266 = arith.mulf %257, %239 : vector<8x128xf32>
    %267 = arith.mulf %251, %259 : vector<8x128xf32>
    %268 = arith.addf %266, %267 : vector<8x128xf32>
    %269 = math.tanh %268 : vector<8x128xf32>
    %270 = arith.mulf %265, %269 : vector<8x128xf32>
    %c0_108 = arith.constant 0 : index
    %c0_109 = arith.constant 0 : index
    %271 = vector.load %arg6[%c0_108, %c0_109] : memref<8x128xf32, #tpu.memory_space<vmem>>, vector<8x128xf32>
    tpu.vector_store %arg6[%c0_108, %c0_109], %270 {strides = array<i32>} : memref<8x128xf32, #tpu.memory_space<vmem>>, vector<8x128xf32>,
    %c0_110 = arith.constant 0 : index
    %c0_111 = arith.constant 0 : index
    %272 = vector.load %arg7[%c0_110, %c0_111] : memref<8x128xf32, #tpu.memory_space<vmem>>, vector<8x128xf32>
    tpu.vector_store %arg7[%c0_110, %c0_111], %268 {strides = array<i32>} : memref<8x128xf32, #tpu.memory_space<vmem>>, vector<8x128xf32>,
    %273 = arith.index_cast %c6_i32 : i32 to index
    %c0_112 = arith.constant 0 : index
    %c0_113 = arith.constant 0 : index
    %274 = vector.load %arg3[%273, %c0_112, %c0_113] : memref<8x8x128xf32, #tpu.memory_space<vmem>>, vector<1x8x128xf32>
    %275 = vector.shape_cast %274 : vector<1x8x128xf32> to vector<8x128xf32>
    %276 = vector.shape_cast %270 : vector<8x128xf32> to vector<1x8x128xf32>
    tpu.vector_store %arg3[%273, %c0_112, %c0_113], %276 {strides = array<i32>} : memref<8x8x128xf32, #tpu.memory_space<vmem>>, vector<1x8x128xf32>,
    %c7_i32 = arith.constant 7 : i32
    %c0_114 = arith.constant 0 : index
    %c0_115 = arith.constant 0 : index
    %277 = vector.load %arg6[%c0_114, %c0_115] : memref<8x128xf32, #tpu.memory_space<vmem>>, vector<8x128xf32>
    %c0_116 = arith.constant 0 : index
    %c0_117 = arith.constant 0 : index
    %278 = vector.load %arg7[%c0_116, %c0_117] : memref<8x128xf32, #tpu.memory_space<vmem>>, vector<8x128xf32>
    %279 = arith.index_cast %c7_i32 : i32 to index
    %c0_118 = arith.constant 0 : index
    %c0_119 = arith.constant 0 : index
    %280 = vector.load %arg1[%279, %c0_118, %c0_119] : memref<8x8x512xf32, #tpu.memory_space<vmem>>, vector<1x8x512xf32>
    %281 = vector.shape_cast %280 : vector<1x8x512xf32> to vector<8x512xf32>
    %282 = arith.truncf %277 : vector<8x128xf32> to vector<8x128xbf16>
    %cst_120 = arith.constant dense<0.000000e+00> : vector<8x512xf32>
    %283 = tpu.matmul %282, %3, %cst_120 {dimension_numbers = #tpu.dot_dimension_numbers<[1], [0], [0], [1], [0, 0, 1, 1], [], []>} : vector<8x128xbf16>, vector<128x512xbf16>, vector<8x512xf32> -> vector<8x512xf32>
    %284 = arith.addf %281, %283 : vector<8x512xf32>
    %285 = vector.extract_strided_slice %284 {offsets = [0, 0], sizes = [8, 128], strides = [1, 1]} : vector<8x512xf32> to vector<8x128xf32>
    %286 = arith.negf %285 : vector<8x128xf32>
    %287 = math.exp %286 : vector<8x128xf32>
    %cst_121 = arith.constant 1.000000e+00 : f32
    %288 = vector.broadcast %cst_121 : f32 to vector<8x128xf32>
    %289 = arith.addf %288, %287 : vector<8x128xf32>
    %290 = arith.divf %288, %289 : vector<8x128xf32>
    %291 = vector.extract_strided_slice %284 {offsets = [0, 128], sizes = [8, 128], strides = [1, 1]} : vector<8x512xf32> to vector<8x128xf32>
    %292 = arith.negf %291 : vector<8x128xf32>
    %293 = math.exp %292 : vector<8x128xf32>
    %cst_122 = arith.constant 1.000000e+00 : f32
    %294 = vector.broadcast %cst_122 : f32 to vector<8x128xf32>
    %295 = arith.addf %294, %293 : vector<8x128xf32>
    %296 = arith.divf %294, %295 : vector<8x128xf32>
    %297 = vector.extract_strided_slice %284 {offsets = [0, 256], sizes = [8, 128], strides = [1, 1]} : vector<8x512xf32> to vector<8x128xf32>
    %298 = math.tanh %297 : vector<8x128xf32>
    %299 = vector.extract_strided_slice %284 {offsets = [0, 384], sizes = [8, 128], strides = [1, 1]} : vector<8x512xf32> to vector<8x128xf32>
    %300 = arith.negf %299 : vector<8x128xf32>
    %301 = math.exp %300 : vector<8x128xf32>
    %cst_123 = arith.constant 1.000000e+00 : f32
    %302 = vector.broadcast %cst_123 : f32 to vector<8x128xf32>
    %303 = arith.addf %302, %301 : vector<8x128xf32>
    %304 = arith.divf %302, %303 : vector<8x128xf32>
    %305 = arith.mulf %296, %278 : vector<8x128xf32>
    %306 = arith.mulf %290, %298 : vector<8x128xf32>
    %307 = arith.addf %305, %306 : vector<8x128xf32>
    %308 = math.tanh %307 : vector<8x128xf32>
    %309 = arith.mulf %304, %308 : vector<8x128xf32>
    %c0_124 = arith.constant 0 : index
    %c0_125 = arith.constant 0 : index
    %310 = vector.load %arg6[%c0_124, %c0_125] : memref<8x128xf32, #tpu.memory_space<vmem>>, vector<8x128xf32>
    tpu.vector_store %arg6[%c0_124, %c0_125], %309 {strides = array<i32>} : memref<8x128xf32, #tpu.memory_space<vmem>>, vector<8x128xf32>,
    %c0_126 = arith.constant 0 : index
    %c0_127 = arith.constant 0 : index
    %311 = vector.load %arg7[%c0_126, %c0_127] : memref<8x128xf32, #tpu.memory_space<vmem>>, vector<8x128xf32>
    tpu.vector_store %arg7[%c0_126, %c0_127], %307 {strides = array<i32>} : memref<8x128xf32, #tpu.memory_space<vmem>>, vector<8x128xf32>,
    %312 = arith.index_cast %c7_i32 : i32 to index
    %c0_128 = arith.constant 0 : index
    %c0_129 = arith.constant 0 : index
    %313 = vector.load %arg3[%312, %c0_128, %c0_129] : memref<8x8x128xf32, #tpu.memory_space<vmem>>, vector<1x8x128xf32>
    %314 = vector.shape_cast %313 : vector<1x8x128xf32> to vector<8x128xf32>
    %315 = vector.shape_cast %309 : vector<8x128xf32> to vector<1x8x128xf32>
    tpu.vector_store %arg3[%312, %c0_128, %c0_129], %315 {strides = array<i32>} : memref<8x8x128xf32, #tpu.memory_space<vmem>>, vector<1x8x128xf32>,
    %c8_i32 = arith.constant 8 : i32
    %c0_i32_130 = arith.constant 0 : i32
    %316 = arith.cmpi eq, %arg0, %c0_i32_130 : i32
    %317 = arith.extui %316 : i1 to i32
    %c0_i32_131 = arith.constant 0 : i32
    %318 = arith.cmpi ne, %317, %c0_i32_131 : i32
    scf.if %318 {
      %c0_132 = arith.constant 0 : index
      %c0_133 = arith.constant 0 : index
      %319 = vector.load %arg6[%c0_132, %c0_133] : memref<8x128xf32, #tpu.memory_space<vmem>>, vector<8x128xf32>
      %c0_134 = arith.constant 0 : index
      %c0_135 = arith.constant 0 : index
      %320 = vector.load %arg4[%c0_134, %c0_135] : memref<8x128xf32, #tpu.memory_space<vmem>>, vector<8x128xf32>
      tpu.vector_store %arg4[%c0_134, %c0_135], %319 {strides = array<i32>} : memref<8x128xf32, #tpu.memory_space<vmem>>, vector<8x128xf32>,
      %c0_136 = arith.constant 0 : index
      %c0_137 = arith.constant 0 : index
      %321 = vector.load %arg7[%c0_136, %c0_137] : memref<8x128xf32, #tpu.memory_space<vmem>>, vector<8x128xf32>
      %c0_138 = arith.constant 0 : index
      %c0_139 = arith.constant 0 : index
      %322 = vector.load %arg5[%c0_138, %c0_139] : memref<8x128xf32, #tpu.memory_space<vmem>>, vector<8x128xf32>
      tpu.vector_store %arg5[%c0_138, %c0_139], %321 {strides = array<i32>} : memref<8x128xf32, #tpu.memory_space<vmem>>, vector<8x128xf32>,
    } else {
    }
    return
  }
  func.func @transform_0(%arg0: i32) -> (i32, i32, i32) {
    %c0_i32 = arith.constant 0 : i32
    %c0_i32_0 = arith.constant 0 : i32
    %c0_i32_1 = arith.constant 0 : i32
    return %arg0, %c0_i32, %c0_i32_0 : i32, i32, i32
  }
  func.func @transform_1(%arg0: i32) -> (i32, i32) {
    %c0_i32 = arith.constant 0 : i32
    %c0_i32_0 = arith.constant 0 : i32
    %c0_i32_1 = arith.constant 0 : i32
    return %c0_i32, %c0_i32_0 : i32, i32
  }
  func.func @transform_2(%arg0: i32) -> (i32, i32, i32) {
    %c0_i32 = arith.constant 0 : i32
    %c0_i32_0 = arith.constant 0 : i32
    %c0_i32_1 = arith.constant 0 : i32
    return %arg0, %c0_i32, %c0_i32_0 : i32, i32, i32
  }
  func.func @transform_3(%arg0: i32) -> (i32, i32) {
    %c0_i32 = arith.constant 0 : i32
    %c0_i32_0 = arith.constant 0 : i32
    %c0_i32_1 = arith.constant 0 : i32
    return %c0_i32, %c0_i32_0 : i32, i32
  }
  func.func @transform_4(%arg0: i32) -> (i32, i32) {
    %c0_i32 = arith.constant 0 : i32
    %c0_i32_0 = arith.constant 0 : i32
    %c0_i32_1 = arith.constant 0 : i32
    return %c0_i32, %c0_i32_0 : i32, i32
  }
}

module attributes {stable_mosaic.version = 11 : i64} {
  func.func @_lstm_chunk_kernel(%arg0: i32, %arg1: memref<16x8x512xf32, #tpu.memory_space<vmem>>, %arg2: memref<128x512xbf16, #tpu.memory_space<vmem>>, %arg3: memref<16x8x128xf32, #tpu.memory_space<vmem>>, %arg4: memref<8x128xf32, #tpu.memory_space<vmem>>, %arg5: memref<8x128xf32, #tpu.memory_space<vmem>>, %arg6: memref<8x128xf32, #tpu.memory_space<vmem>>, %arg7: memref<8x128xf32, #tpu.memory_space<vmem>>) attributes {dimension_semantics = [#tpu.dimension_semantics<arbitrary>], iteration_bounds = array<i64: 1>, scalar_prefetch = 0 : i64, scratch_operands = 2 : i64, tpu.core_type = #tpu.core_type<tc>, window_params = [{transform_indices = @transform_0, window_bounds = array<i64: 16, 8, 512>}, {pipeline_mode = #tpu.pipeline_mode<synchronous>, transform_indices = @transform_1, window_bounds = array<i64: 128, 512>}, {transform_indices = @transform_2, window_bounds = array<i64: 16, 8, 128>}, {pipeline_mode = #tpu.pipeline_mode<synchronous>, transform_indices = @transform_3, window_bounds = array<i64: 8, 128>}, {pipeline_mode = #tpu.pipeline_mode<synchronous>, transform_indices = @transform_4, window_bounds = array<i64: 8, 128>}]} {
    %c0_i32 = arith.constant 0 : i32
    %0 = arith.cmpi eq, %arg0, %c0_i32 : i32
    %1 = arith.extui %0 : i1 to i32
    %c0_i32_0 = arith.constant 0 : i32
    %2 = arith.cmpi ne, %1, %c0_i32_0 : i32
    scf.if %2 {
      %cst_260 = arith.constant 0.000000e+00 : f32
      %631 = vector.broadcast %cst_260 : f32 to vector<8x128xf32>
      %c0_261 = arith.constant 0 : index
      %c0_262 = arith.constant 0 : index
      %632 = vector.load %arg6[%c0_261, %c0_262] : memref<8x128xf32, #tpu.memory_space<vmem>>, vector<8x128xf32>
      tpu.vector_store %arg6[%c0_261, %c0_262], %631 {strides = array<i32>} : memref<8x128xf32, #tpu.memory_space<vmem>>, vector<8x128xf32>,
      %cst_263 = arith.constant 0.000000e+00 : f32
      %633 = vector.broadcast %cst_263 : f32 to vector<8x128xf32>
      %c0_264 = arith.constant 0 : index
      %c0_265 = arith.constant 0 : index
      %634 = vector.load %arg7[%c0_264, %c0_265] : memref<8x128xf32, #tpu.memory_space<vmem>>, vector<8x128xf32>
      tpu.vector_store %arg7[%c0_264, %c0_265], %633 {strides = array<i32>} : memref<8x128xf32, #tpu.memory_space<vmem>>, vector<8x128xf32>,
    } else {
    }
    %c0 = arith.constant 0 : index
    %c0_1 = arith.constant 0 : index
    %3 = vector.load %arg2[%c0, %c0_1] : memref<128x512xbf16, #tpu.memory_space<vmem>>, vector<128x512xbf16>
    %c0_i32_2 = arith.constant 0 : i32
    %c0_3 = arith.constant 0 : index
    %c0_4 = arith.constant 0 : index
    %4 = vector.load %arg6[%c0_3, %c0_4] : memref<8x128xf32, #tpu.memory_space<vmem>>, vector<8x128xf32>
    %c0_5 = arith.constant 0 : index
    %c0_6 = arith.constant 0 : index
    %5 = vector.load %arg7[%c0_5, %c0_6] : memref<8x128xf32, #tpu.memory_space<vmem>>, vector<8x128xf32>
    %6 = arith.index_cast %c0_i32_2 : i32 to index
    %c0_7 = arith.constant 0 : index
    %c0_8 = arith.constant 0 : index
    %7 = vector.load %arg1[%6, %c0_7, %c0_8] : memref<16x8x512xf32, #tpu.memory_space<vmem>>, vector<1x8x512xf32>
    %8 = vector.shape_cast %7 : vector<1x8x512xf32> to vector<8x512xf32>
    %9 = arith.truncf %4 : vector<8x128xf32> to vector<8x128xbf16>
    %cst = arith.constant dense<0.000000e+00> : vector<8x512xf32>
    %10 = tpu.matmul %9, %3, %cst {dimension_numbers = #tpu.dot_dimension_numbers<[1], [0], [0], [1], [0, 0, 1, 1], [], []>} : vector<8x128xbf16>, vector<128x512xbf16>, vector<8x512xf32> -> vector<8x512xf32>
    %11 = arith.addf %8, %10 : vector<8x512xf32>
    %12 = vector.extract_strided_slice %11 {offsets = [0, 0], sizes = [8, 128], strides = [1, 1]} : vector<8x512xf32> to vector<8x128xf32>
    %13 = arith.negf %12 : vector<8x128xf32>
    %14 = math.exp %13 : vector<8x128xf32>
    %cst_9 = arith.constant 1.000000e+00 : f32
    %15 = vector.broadcast %cst_9 : f32 to vector<8x128xf32>
    %16 = arith.addf %15, %14 : vector<8x128xf32>
    %17 = arith.divf %15, %16 : vector<8x128xf32>
    %18 = vector.extract_strided_slice %11 {offsets = [0, 128], sizes = [8, 128], strides = [1, 1]} : vector<8x512xf32> to vector<8x128xf32>
    %19 = arith.negf %18 : vector<8x128xf32>
    %20 = math.exp %19 : vector<8x128xf32>
    %cst_10 = arith.constant 1.000000e+00 : f32
    %21 = vector.broadcast %cst_10 : f32 to vector<8x128xf32>
    %22 = arith.addf %21, %20 : vector<8x128xf32>
    %23 = arith.divf %21, %22 : vector<8x128xf32>
    %24 = vector.extract_strided_slice %11 {offsets = [0, 256], sizes = [8, 128], strides = [1, 1]} : vector<8x512xf32> to vector<8x128xf32>
    %25 = math.tanh %24 : vector<8x128xf32>
    %26 = vector.extract_strided_slice %11 {offsets = [0, 384], sizes = [8, 128], strides = [1, 1]} : vector<8x512xf32> to vector<8x128xf32>
    %27 = arith.negf %26 : vector<8x128xf32>
    %28 = math.exp %27 : vector<8x128xf32>
    %cst_11 = arith.constant 1.000000e+00 : f32
    %29 = vector.broadcast %cst_11 : f32 to vector<8x128xf32>
    %30 = arith.addf %29, %28 : vector<8x128xf32>
    %31 = arith.divf %29, %30 : vector<8x128xf32>
    %32 = arith.mulf %23, %5 : vector<8x128xf32>
    %33 = arith.mulf %17, %25 : vector<8x128xf32>
    %34 = arith.addf %32, %33 : vector<8x128xf32>
    %35 = math.tanh %34 : vector<8x128xf32>
    %36 = arith.mulf %31, %35 : vector<8x128xf32>
    %c0_12 = arith.constant 0 : index
    %c0_13 = arith.constant 0 : index
    %37 = vector.load %arg6[%c0_12, %c0_13] : memref<8x128xf32, #tpu.memory_space<vmem>>, vector<8x128xf32>
    tpu.vector_store %arg6[%c0_12, %c0_13], %36 {strides = array<i32>} : memref<8x128xf32, #tpu.memory_space<vmem>>, vector<8x128xf32>,
    %c0_14 = arith.constant 0 : index
    %c0_15 = arith.constant 0 : index
    %38 = vector.load %arg7[%c0_14, %c0_15] : memref<8x128xf32, #tpu.memory_space<vmem>>, vector<8x128xf32>
    tpu.vector_store %arg7[%c0_14, %c0_15], %34 {strides = array<i32>} : memref<8x128xf32, #tpu.memory_space<vmem>>, vector<8x128xf32>,
    %39 = arith.index_cast %c0_i32_2 : i32 to index
    %c0_16 = arith.constant 0 : index
    %c0_17 = arith.constant 0 : index
    %40 = vector.load %arg3[%39, %c0_16, %c0_17] : memref<16x8x128xf32, #tpu.memory_space<vmem>>, vector<1x8x128xf32>
    %41 = vector.shape_cast %40 : vector<1x8x128xf32> to vector<8x128xf32>
    %42 = vector.shape_cast %36 : vector<8x128xf32> to vector<1x8x128xf32>
    tpu.vector_store %arg3[%39, %c0_16, %c0_17], %42 {strides = array<i32>} : memref<16x8x128xf32, #tpu.memory_space<vmem>>, vector<1x8x128xf32>,
    %c1_i32 = arith.constant 1 : i32
    %c0_18 = arith.constant 0 : index
    %c0_19 = arith.constant 0 : index
    %43 = vector.load %arg6[%c0_18, %c0_19] : memref<8x128xf32, #tpu.memory_space<vmem>>, vector<8x128xf32>
    %c0_20 = arith.constant 0 : index
    %c0_21 = arith.constant 0 : index
    %44 = vector.load %arg7[%c0_20, %c0_21] : memref<8x128xf32, #tpu.memory_space<vmem>>, vector<8x128xf32>
    %45 = arith.index_cast %c1_i32 : i32 to index
    %c0_22 = arith.constant 0 : index
    %c0_23 = arith.constant 0 : index
    %46 = vector.load %arg1[%45, %c0_22, %c0_23] : memref<16x8x512xf32, #tpu.memory_space<vmem>>, vector<1x8x512xf32>
    %47 = vector.shape_cast %46 : vector<1x8x512xf32> to vector<8x512xf32>
    %48 = arith.truncf %43 : vector<8x128xf32> to vector<8x128xbf16>
    %cst_24 = arith.constant dense<0.000000e+00> : vector<8x512xf32>
    %49 = tpu.matmul %48, %3, %cst_24 {dimension_numbers = #tpu.dot_dimension_numbers<[1], [0], [0], [1], [0, 0, 1, 1], [], []>} : vector<8x128xbf16>, vector<128x512xbf16>, vector<8x512xf32> -> vector<8x512xf32>
    %50 = arith.addf %47, %49 : vector<8x512xf32>
    %51 = vector.extract_strided_slice %50 {offsets = [0, 0], sizes = [8, 128], strides = [1, 1]} : vector<8x512xf32> to vector<8x128xf32>
    %52 = arith.negf %51 : vector<8x128xf32>
    %53 = math.exp %52 : vector<8x128xf32>
    %cst_25 = arith.constant 1.000000e+00 : f32
    %54 = vector.broadcast %cst_25 : f32 to vector<8x128xf32>
    %55 = arith.addf %54, %53 : vector<8x128xf32>
    %56 = arith.divf %54, %55 : vector<8x128xf32>
    %57 = vector.extract_strided_slice %50 {offsets = [0, 128], sizes = [8, 128], strides = [1, 1]} : vector<8x512xf32> to vector<8x128xf32>
    %58 = arith.negf %57 : vector<8x128xf32>
    %59 = math.exp %58 : vector<8x128xf32>
    %cst_26 = arith.constant 1.000000e+00 : f32
    %60 = vector.broadcast %cst_26 : f32 to vector<8x128xf32>
    %61 = arith.addf %60, %59 : vector<8x128xf32>
    %62 = arith.divf %60, %61 : vector<8x128xf32>
    %63 = vector.extract_strided_slice %50 {offsets = [0, 256], sizes = [8, 128], strides = [1, 1]} : vector<8x512xf32> to vector<8x128xf32>
    %64 = math.tanh %63 : vector<8x128xf32>
    %65 = vector.extract_strided_slice %50 {offsets = [0, 384], sizes = [8, 128], strides = [1, 1]} : vector<8x512xf32> to vector<8x128xf32>
    %66 = arith.negf %65 : vector<8x128xf32>
    %67 = math.exp %66 : vector<8x128xf32>
    %cst_27 = arith.constant 1.000000e+00 : f32
    %68 = vector.broadcast %cst_27 : f32 to vector<8x128xf32>
    %69 = arith.addf %68, %67 : vector<8x128xf32>
    %70 = arith.divf %68, %69 : vector<8x128xf32>
    %71 = arith.mulf %62, %44 : vector<8x128xf32>
    %72 = arith.mulf %56, %64 : vector<8x128xf32>
    %73 = arith.addf %71, %72 : vector<8x128xf32>
    %74 = math.tanh %73 : vector<8x128xf32>
    %75 = arith.mulf %70, %74 : vector<8x128xf32>
    %c0_28 = arith.constant 0 : index
    %c0_29 = arith.constant 0 : index
    %76 = vector.load %arg6[%c0_28, %c0_29] : memref<8x128xf32, #tpu.memory_space<vmem>>, vector<8x128xf32>
    tpu.vector_store %arg6[%c0_28, %c0_29], %75 {strides = array<i32>} : memref<8x128xf32, #tpu.memory_space<vmem>>, vector<8x128xf32>,
    %c0_30 = arith.constant 0 : index
    %c0_31 = arith.constant 0 : index
    %77 = vector.load %arg7[%c0_30, %c0_31] : memref<8x128xf32, #tpu.memory_space<vmem>>, vector<8x128xf32>
    tpu.vector_store %arg7[%c0_30, %c0_31], %73 {strides = array<i32>} : memref<8x128xf32, #tpu.memory_space<vmem>>, vector<8x128xf32>,
    %78 = arith.index_cast %c1_i32 : i32 to index
    %c0_32 = arith.constant 0 : index
    %c0_33 = arith.constant 0 : index
    %79 = vector.load %arg3[%78, %c0_32, %c0_33] : memref<16x8x128xf32, #tpu.memory_space<vmem>>, vector<1x8x128xf32>
    %80 = vector.shape_cast %79 : vector<1x8x128xf32> to vector<8x128xf32>
    %81 = vector.shape_cast %75 : vector<8x128xf32> to vector<1x8x128xf32>
    tpu.vector_store %arg3[%78, %c0_32, %c0_33], %81 {strides = array<i32>} : memref<16x8x128xf32, #tpu.memory_space<vmem>>, vector<1x8x128xf32>,
    %c2_i32 = arith.constant 2 : i32
    %c0_34 = arith.constant 0 : index
    %c0_35 = arith.constant 0 : index
    %82 = vector.load %arg6[%c0_34, %c0_35] : memref<8x128xf32, #tpu.memory_space<vmem>>, vector<8x128xf32>
    %c0_36 = arith.constant 0 : index
    %c0_37 = arith.constant 0 : index
    %83 = vector.load %arg7[%c0_36, %c0_37] : memref<8x128xf32, #tpu.memory_space<vmem>>, vector<8x128xf32>
    %84 = arith.index_cast %c2_i32 : i32 to index
    %c0_38 = arith.constant 0 : index
    %c0_39 = arith.constant 0 : index
    %85 = vector.load %arg1[%84, %c0_38, %c0_39] : memref<16x8x512xf32, #tpu.memory_space<vmem>>, vector<1x8x512xf32>
    %86 = vector.shape_cast %85 : vector<1x8x512xf32> to vector<8x512xf32>
    %87 = arith.truncf %82 : vector<8x128xf32> to vector<8x128xbf16>
    %cst_40 = arith.constant dense<0.000000e+00> : vector<8x512xf32>
    %88 = tpu.matmul %87, %3, %cst_40 {dimension_numbers = #tpu.dot_dimension_numbers<[1], [0], [0], [1], [0, 0, 1, 1], [], []>} : vector<8x128xbf16>, vector<128x512xbf16>, vector<8x512xf32> -> vector<8x512xf32>
    %89 = arith.addf %86, %88 : vector<8x512xf32>
    %90 = vector.extract_strided_slice %89 {offsets = [0, 0], sizes = [8, 128], strides = [1, 1]} : vector<8x512xf32> to vector<8x128xf32>
    %91 = arith.negf %90 : vector<8x128xf32>
    %92 = math.exp %91 : vector<8x128xf32>
    %cst_41 = arith.constant 1.000000e+00 : f32
    %93 = vector.broadcast %cst_41 : f32 to vector<8x128xf32>
    %94 = arith.addf %93, %92 : vector<8x128xf32>
    %95 = arith.divf %93, %94 : vector<8x128xf32>
    %96 = vector.extract_strided_slice %89 {offsets = [0, 128], sizes = [8, 128], strides = [1, 1]} : vector<8x512xf32> to vector<8x128xf32>
    %97 = arith.negf %96 : vector<8x128xf32>
    %98 = math.exp %97 : vector<8x128xf32>
    %cst_42 = arith.constant 1.000000e+00 : f32
    %99 = vector.broadcast %cst_42 : f32 to vector<8x128xf32>
    %100 = arith.addf %99, %98 : vector<8x128xf32>
    %101 = arith.divf %99, %100 : vector<8x128xf32>
    %102 = vector.extract_strided_slice %89 {offsets = [0, 256], sizes = [8, 128], strides = [1, 1]} : vector<8x512xf32> to vector<8x128xf32>
    %103 = math.tanh %102 : vector<8x128xf32>
    %104 = vector.extract_strided_slice %89 {offsets = [0, 384], sizes = [8, 128], strides = [1, 1]} : vector<8x512xf32> to vector<8x128xf32>
    %105 = arith.negf %104 : vector<8x128xf32>
    %106 = math.exp %105 : vector<8x128xf32>
    %cst_43 = arith.constant 1.000000e+00 : f32
    %107 = vector.broadcast %cst_43 : f32 to vector<8x128xf32>
    %108 = arith.addf %107, %106 : vector<8x128xf32>
    %109 = arith.divf %107, %108 : vector<8x128xf32>
    %110 = arith.mulf %101, %83 : vector<8x128xf32>
    %111 = arith.mulf %95, %103 : vector<8x128xf32>
    %112 = arith.addf %110, %111 : vector<8x128xf32>
    %113 = math.tanh %112 : vector<8x128xf32>
    %114 = arith.mulf %109, %113 : vector<8x128xf32>
    %c0_44 = arith.constant 0 : index
    %c0_45 = arith.constant 0 : index
    %115 = vector.load %arg6[%c0_44, %c0_45] : memref<8x128xf32, #tpu.memory_space<vmem>>, vector<8x128xf32>
    tpu.vector_store %arg6[%c0_44, %c0_45], %114 {strides = array<i32>} : memref<8x128xf32, #tpu.memory_space<vmem>>, vector<8x128xf32>,
    %c0_46 = arith.constant 0 : index
    %c0_47 = arith.constant 0 : index
    %116 = vector.load %arg7[%c0_46, %c0_47] : memref<8x128xf32, #tpu.memory_space<vmem>>, vector<8x128xf32>
    tpu.vector_store %arg7[%c0_46, %c0_47], %112 {strides = array<i32>} : memref<8x128xf32, #tpu.memory_space<vmem>>, vector<8x128xf32>,
    %117 = arith.index_cast %c2_i32 : i32 to index
    %c0_48 = arith.constant 0 : index
    %c0_49 = arith.constant 0 : index
    %118 = vector.load %arg3[%117, %c0_48, %c0_49] : memref<16x8x128xf32, #tpu.memory_space<vmem>>, vector<1x8x128xf32>
    %119 = vector.shape_cast %118 : vector<1x8x128xf32> to vector<8x128xf32>
    %120 = vector.shape_cast %114 : vector<8x128xf32> to vector<1x8x128xf32>
    tpu.vector_store %arg3[%117, %c0_48, %c0_49], %120 {strides = array<i32>} : memref<16x8x128xf32, #tpu.memory_space<vmem>>, vector<1x8x128xf32>,
    %c3_i32 = arith.constant 3 : i32
    %c0_50 = arith.constant 0 : index
    %c0_51 = arith.constant 0 : index
    %121 = vector.load %arg6[%c0_50, %c0_51] : memref<8x128xf32, #tpu.memory_space<vmem>>, vector<8x128xf32>
    %c0_52 = arith.constant 0 : index
    %c0_53 = arith.constant 0 : index
    %122 = vector.load %arg7[%c0_52, %c0_53] : memref<8x128xf32, #tpu.memory_space<vmem>>, vector<8x128xf32>
    %123 = arith.index_cast %c3_i32 : i32 to index
    %c0_54 = arith.constant 0 : index
    %c0_55 = arith.constant 0 : index
    %124 = vector.load %arg1[%123, %c0_54, %c0_55] : memref<16x8x512xf32, #tpu.memory_space<vmem>>, vector<1x8x512xf32>
    %125 = vector.shape_cast %124 : vector<1x8x512xf32> to vector<8x512xf32>
    %126 = arith.truncf %121 : vector<8x128xf32> to vector<8x128xbf16>
    %cst_56 = arith.constant dense<0.000000e+00> : vector<8x512xf32>
    %127 = tpu.matmul %126, %3, %cst_56 {dimension_numbers = #tpu.dot_dimension_numbers<[1], [0], [0], [1], [0, 0, 1, 1], [], []>} : vector<8x128xbf16>, vector<128x512xbf16>, vector<8x512xf32> -> vector<8x512xf32>
    %128 = arith.addf %125, %127 : vector<8x512xf32>
    %129 = vector.extract_strided_slice %128 {offsets = [0, 0], sizes = [8, 128], strides = [1, 1]} : vector<8x512xf32> to vector<8x128xf32>
    %130 = arith.negf %129 : vector<8x128xf32>
    %131 = math.exp %130 : vector<8x128xf32>
    %cst_57 = arith.constant 1.000000e+00 : f32
    %132 = vector.broadcast %cst_57 : f32 to vector<8x128xf32>
    %133 = arith.addf %132, %131 : vector<8x128xf32>
    %134 = arith.divf %132, %133 : vector<8x128xf32>
    %135 = vector.extract_strided_slice %128 {offsets = [0, 128], sizes = [8, 128], strides = [1, 1]} : vector<8x512xf32> to vector<8x128xf32>
    %136 = arith.negf %135 : vector<8x128xf32>
    %137 = math.exp %136 : vector<8x128xf32>
    %cst_58 = arith.constant 1.000000e+00 : f32
    %138 = vector.broadcast %cst_58 : f32 to vector<8x128xf32>
    %139 = arith.addf %138, %137 : vector<8x128xf32>
    %140 = arith.divf %138, %139 : vector<8x128xf32>
    %141 = vector.extract_strided_slice %128 {offsets = [0, 256], sizes = [8, 128], strides = [1, 1]} : vector<8x512xf32> to vector<8x128xf32>
    %142 = math.tanh %141 : vector<8x128xf32>
    %143 = vector.extract_strided_slice %128 {offsets = [0, 384], sizes = [8, 128], strides = [1, 1]} : vector<8x512xf32> to vector<8x128xf32>
    %144 = arith.negf %143 : vector<8x128xf32>
    %145 = math.exp %144 : vector<8x128xf32>
    %cst_59 = arith.constant 1.000000e+00 : f32
    %146 = vector.broadcast %cst_59 : f32 to vector<8x128xf32>
    %147 = arith.addf %146, %145 : vector<8x128xf32>
    %148 = arith.divf %146, %147 : vector<8x128xf32>
    %149 = arith.mulf %140, %122 : vector<8x128xf32>
    %150 = arith.mulf %134, %142 : vector<8x128xf32>
    %151 = arith.addf %149, %150 : vector<8x128xf32>
    %152 = math.tanh %151 : vector<8x128xf32>
    %153 = arith.mulf %148, %152 : vector<8x128xf32>
    %c0_60 = arith.constant 0 : index
    %c0_61 = arith.constant 0 : index
    %154 = vector.load %arg6[%c0_60, %c0_61] : memref<8x128xf32, #tpu.memory_space<vmem>>, vector<8x128xf32>
    tpu.vector_store %arg6[%c0_60, %c0_61], %153 {strides = array<i32>} : memref<8x128xf32, #tpu.memory_space<vmem>>, vector<8x128xf32>,
    %c0_62 = arith.constant 0 : index
    %c0_63 = arith.constant 0 : index
    %155 = vector.load %arg7[%c0_62, %c0_63] : memref<8x128xf32, #tpu.memory_space<vmem>>, vector<8x128xf32>
    tpu.vector_store %arg7[%c0_62, %c0_63], %151 {strides = array<i32>} : memref<8x128xf32, #tpu.memory_space<vmem>>, vector<8x128xf32>,
    %156 = arith.index_cast %c3_i32 : i32 to index
    %c0_64 = arith.constant 0 : index
    %c0_65 = arith.constant 0 : index
    %157 = vector.load %arg3[%156, %c0_64, %c0_65] : memref<16x8x128xf32, #tpu.memory_space<vmem>>, vector<1x8x128xf32>
    %158 = vector.shape_cast %157 : vector<1x8x128xf32> to vector<8x128xf32>
    %159 = vector.shape_cast %153 : vector<8x128xf32> to vector<1x8x128xf32>
    tpu.vector_store %arg3[%156, %c0_64, %c0_65], %159 {strides = array<i32>} : memref<16x8x128xf32, #tpu.memory_space<vmem>>, vector<1x8x128xf32>,
    %c4_i32 = arith.constant 4 : i32
    %c0_66 = arith.constant 0 : index
    %c0_67 = arith.constant 0 : index
    %160 = vector.load %arg6[%c0_66, %c0_67] : memref<8x128xf32, #tpu.memory_space<vmem>>, vector<8x128xf32>
    %c0_68 = arith.constant 0 : index
    %c0_69 = arith.constant 0 : index
    %161 = vector.load %arg7[%c0_68, %c0_69] : memref<8x128xf32, #tpu.memory_space<vmem>>, vector<8x128xf32>
    %162 = arith.index_cast %c4_i32 : i32 to index
    %c0_70 = arith.constant 0 : index
    %c0_71 = arith.constant 0 : index
    %163 = vector.load %arg1[%162, %c0_70, %c0_71] : memref<16x8x512xf32, #tpu.memory_space<vmem>>, vector<1x8x512xf32>
    %164 = vector.shape_cast %163 : vector<1x8x512xf32> to vector<8x512xf32>
    %165 = arith.truncf %160 : vector<8x128xf32> to vector<8x128xbf16>
    %cst_72 = arith.constant dense<0.000000e+00> : vector<8x512xf32>
    %166 = tpu.matmul %165, %3, %cst_72 {dimension_numbers = #tpu.dot_dimension_numbers<[1], [0], [0], [1], [0, 0, 1, 1], [], []>} : vector<8x128xbf16>, vector<128x512xbf16>, vector<8x512xf32> -> vector<8x512xf32>
    %167 = arith.addf %164, %166 : vector<8x512xf32>
    %168 = vector.extract_strided_slice %167 {offsets = [0, 0], sizes = [8, 128], strides = [1, 1]} : vector<8x512xf32> to vector<8x128xf32>
    %169 = arith.negf %168 : vector<8x128xf32>
    %170 = math.exp %169 : vector<8x128xf32>
    %cst_73 = arith.constant 1.000000e+00 : f32
    %171 = vector.broadcast %cst_73 : f32 to vector<8x128xf32>
    %172 = arith.addf %171, %170 : vector<8x128xf32>
    %173 = arith.divf %171, %172 : vector<8x128xf32>
    %174 = vector.extract_strided_slice %167 {offsets = [0, 128], sizes = [8, 128], strides = [1, 1]} : vector<8x512xf32> to vector<8x128xf32>
    %175 = arith.negf %174 : vector<8x128xf32>
    %176 = math.exp %175 : vector<8x128xf32>
    %cst_74 = arith.constant 1.000000e+00 : f32
    %177 = vector.broadcast %cst_74 : f32 to vector<8x128xf32>
    %178 = arith.addf %177, %176 : vector<8x128xf32>
    %179 = arith.divf %177, %178 : vector<8x128xf32>
    %180 = vector.extract_strided_slice %167 {offsets = [0, 256], sizes = [8, 128], strides = [1, 1]} : vector<8x512xf32> to vector<8x128xf32>
    %181 = math.tanh %180 : vector<8x128xf32>
    %182 = vector.extract_strided_slice %167 {offsets = [0, 384], sizes = [8, 128], strides = [1, 1]} : vector<8x512xf32> to vector<8x128xf32>
    %183 = arith.negf %182 : vector<8x128xf32>
    %184 = math.exp %183 : vector<8x128xf32>
    %cst_75 = arith.constant 1.000000e+00 : f32
    %185 = vector.broadcast %cst_75 : f32 to vector<8x128xf32>
    %186 = arith.addf %185, %184 : vector<8x128xf32>
    %187 = arith.divf %185, %186 : vector<8x128xf32>
    %188 = arith.mulf %179, %161 : vector<8x128xf32>
    %189 = arith.mulf %173, %181 : vector<8x128xf32>
    %190 = arith.addf %188, %189 : vector<8x128xf32>
    %191 = math.tanh %190 : vector<8x128xf32>
    %192 = arith.mulf %187, %191 : vector<8x128xf32>
    %c0_76 = arith.constant 0 : index
    %c0_77 = arith.constant 0 : index
    %193 = vector.load %arg6[%c0_76, %c0_77] : memref<8x128xf32, #tpu.memory_space<vmem>>, vector<8x128xf32>
    tpu.vector_store %arg6[%c0_76, %c0_77], %192 {strides = array<i32>} : memref<8x128xf32, #tpu.memory_space<vmem>>, vector<8x128xf32>,
    %c0_78 = arith.constant 0 : index
    %c0_79 = arith.constant 0 : index
    %194 = vector.load %arg7[%c0_78, %c0_79] : memref<8x128xf32, #tpu.memory_space<vmem>>, vector<8x128xf32>
    tpu.vector_store %arg7[%c0_78, %c0_79], %190 {strides = array<i32>} : memref<8x128xf32, #tpu.memory_space<vmem>>, vector<8x128xf32>,
    %195 = arith.index_cast %c4_i32 : i32 to index
    %c0_80 = arith.constant 0 : index
    %c0_81 = arith.constant 0 : index
    %196 = vector.load %arg3[%195, %c0_80, %c0_81] : memref<16x8x128xf32, #tpu.memory_space<vmem>>, vector<1x8x128xf32>
    %197 = vector.shape_cast %196 : vector<1x8x128xf32> to vector<8x128xf32>
    %198 = vector.shape_cast %192 : vector<8x128xf32> to vector<1x8x128xf32>
    tpu.vector_store %arg3[%195, %c0_80, %c0_81], %198 {strides = array<i32>} : memref<16x8x128xf32, #tpu.memory_space<vmem>>, vector<1x8x128xf32>,
    %c5_i32 = arith.constant 5 : i32
    %c0_82 = arith.constant 0 : index
    %c0_83 = arith.constant 0 : index
    %199 = vector.load %arg6[%c0_82, %c0_83] : memref<8x128xf32, #tpu.memory_space<vmem>>, vector<8x128xf32>
    %c0_84 = arith.constant 0 : index
    %c0_85 = arith.constant 0 : index
    %200 = vector.load %arg7[%c0_84, %c0_85] : memref<8x128xf32, #tpu.memory_space<vmem>>, vector<8x128xf32>
    %201 = arith.index_cast %c5_i32 : i32 to index
    %c0_86 = arith.constant 0 : index
    %c0_87 = arith.constant 0 : index
    %202 = vector.load %arg1[%201, %c0_86, %c0_87] : memref<16x8x512xf32, #tpu.memory_space<vmem>>, vector<1x8x512xf32>
    %203 = vector.shape_cast %202 : vector<1x8x512xf32> to vector<8x512xf32>
    %204 = arith.truncf %199 : vector<8x128xf32> to vector<8x128xbf16>
    %cst_88 = arith.constant dense<0.000000e+00> : vector<8x512xf32>
    %205 = tpu.matmul %204, %3, %cst_88 {dimension_numbers = #tpu.dot_dimension_numbers<[1], [0], [0], [1], [0, 0, 1, 1], [], []>} : vector<8x128xbf16>, vector<128x512xbf16>, vector<8x512xf32> -> vector<8x512xf32>
    %206 = arith.addf %203, %205 : vector<8x512xf32>
    %207 = vector.extract_strided_slice %206 {offsets = [0, 0], sizes = [8, 128], strides = [1, 1]} : vector<8x512xf32> to vector<8x128xf32>
    %208 = arith.negf %207 : vector<8x128xf32>
    %209 = math.exp %208 : vector<8x128xf32>
    %cst_89 = arith.constant 1.000000e+00 : f32
    %210 = vector.broadcast %cst_89 : f32 to vector<8x128xf32>
    %211 = arith.addf %210, %209 : vector<8x128xf32>
    %212 = arith.divf %210, %211 : vector<8x128xf32>
    %213 = vector.extract_strided_slice %206 {offsets = [0, 128], sizes = [8, 128], strides = [1, 1]} : vector<8x512xf32> to vector<8x128xf32>
    %214 = arith.negf %213 : vector<8x128xf32>
    %215 = math.exp %214 : vector<8x128xf32>
    %cst_90 = arith.constant 1.000000e+00 : f32
    %216 = vector.broadcast %cst_90 : f32 to vector<8x128xf32>
    %217 = arith.addf %216, %215 : vector<8x128xf32>
    %218 = arith.divf %216, %217 : vector<8x128xf32>
    %219 = vector.extract_strided_slice %206 {offsets = [0, 256], sizes = [8, 128], strides = [1, 1]} : vector<8x512xf32> to vector<8x128xf32>
    %220 = math.tanh %219 : vector<8x128xf32>
    %221 = vector.extract_strided_slice %206 {offsets = [0, 384], sizes = [8, 128], strides = [1, 1]} : vector<8x512xf32> to vector<8x128xf32>
    %222 = arith.negf %221 : vector<8x128xf32>
    %223 = math.exp %222 : vector<8x128xf32>
    %cst_91 = arith.constant 1.000000e+00 : f32
    %224 = vector.broadcast %cst_91 : f32 to vector<8x128xf32>
    %225 = arith.addf %224, %223 : vector<8x128xf32>
    %226 = arith.divf %224, %225 : vector<8x128xf32>
    %227 = arith.mulf %218, %200 : vector<8x128xf32>
    %228 = arith.mulf %212, %220 : vector<8x128xf32>
    %229 = arith.addf %227, %228 : vector<8x128xf32>
    %230 = math.tanh %229 : vector<8x128xf32>
    %231 = arith.mulf %226, %230 : vector<8x128xf32>
    %c0_92 = arith.constant 0 : index
    %c0_93 = arith.constant 0 : index
    %232 = vector.load %arg6[%c0_92, %c0_93] : memref<8x128xf32, #tpu.memory_space<vmem>>, vector<8x128xf32>
    tpu.vector_store %arg6[%c0_92, %c0_93], %231 {strides = array<i32>} : memref<8x128xf32, #tpu.memory_space<vmem>>, vector<8x128xf32>,
    %c0_94 = arith.constant 0 : index
    %c0_95 = arith.constant 0 : index
    %233 = vector.load %arg7[%c0_94, %c0_95] : memref<8x128xf32, #tpu.memory_space<vmem>>, vector<8x128xf32>
    tpu.vector_store %arg7[%c0_94, %c0_95], %229 {strides = array<i32>} : memref<8x128xf32, #tpu.memory_space<vmem>>, vector<8x128xf32>,
    %234 = arith.index_cast %c5_i32 : i32 to index
    %c0_96 = arith.constant 0 : index
    %c0_97 = arith.constant 0 : index
    %235 = vector.load %arg3[%234, %c0_96, %c0_97] : memref<16x8x128xf32, #tpu.memory_space<vmem>>, vector<1x8x128xf32>
    %236 = vector.shape_cast %235 : vector<1x8x128xf32> to vector<8x128xf32>
    %237 = vector.shape_cast %231 : vector<8x128xf32> to vector<1x8x128xf32>
    tpu.vector_store %arg3[%234, %c0_96, %c0_97], %237 {strides = array<i32>} : memref<16x8x128xf32, #tpu.memory_space<vmem>>, vector<1x8x128xf32>,
    %c6_i32 = arith.constant 6 : i32
    %c0_98 = arith.constant 0 : index
    %c0_99 = arith.constant 0 : index
    %238 = vector.load %arg6[%c0_98, %c0_99] : memref<8x128xf32, #tpu.memory_space<vmem>>, vector<8x128xf32>
    %c0_100 = arith.constant 0 : index
    %c0_101 = arith.constant 0 : index
    %239 = vector.load %arg7[%c0_100, %c0_101] : memref<8x128xf32, #tpu.memory_space<vmem>>, vector<8x128xf32>
    %240 = arith.index_cast %c6_i32 : i32 to index
    %c0_102 = arith.constant 0 : index
    %c0_103 = arith.constant 0 : index
    %241 = vector.load %arg1[%240, %c0_102, %c0_103] : memref<16x8x512xf32, #tpu.memory_space<vmem>>, vector<1x8x512xf32>
    %242 = vector.shape_cast %241 : vector<1x8x512xf32> to vector<8x512xf32>
    %243 = arith.truncf %238 : vector<8x128xf32> to vector<8x128xbf16>
    %cst_104 = arith.constant dense<0.000000e+00> : vector<8x512xf32>
    %244 = tpu.matmul %243, %3, %cst_104 {dimension_numbers = #tpu.dot_dimension_numbers<[1], [0], [0], [1], [0, 0, 1, 1], [], []>} : vector<8x128xbf16>, vector<128x512xbf16>, vector<8x512xf32> -> vector<8x512xf32>
    %245 = arith.addf %242, %244 : vector<8x512xf32>
    %246 = vector.extract_strided_slice %245 {offsets = [0, 0], sizes = [8, 128], strides = [1, 1]} : vector<8x512xf32> to vector<8x128xf32>
    %247 = arith.negf %246 : vector<8x128xf32>
    %248 = math.exp %247 : vector<8x128xf32>
    %cst_105 = arith.constant 1.000000e+00 : f32
    %249 = vector.broadcast %cst_105 : f32 to vector<8x128xf32>
    %250 = arith.addf %249, %248 : vector<8x128xf32>
    %251 = arith.divf %249, %250 : vector<8x128xf32>
    %252 = vector.extract_strided_slice %245 {offsets = [0, 128], sizes = [8, 128], strides = [1, 1]} : vector<8x512xf32> to vector<8x128xf32>
    %253 = arith.negf %252 : vector<8x128xf32>
    %254 = math.exp %253 : vector<8x128xf32>
    %cst_106 = arith.constant 1.000000e+00 : f32
    %255 = vector.broadcast %cst_106 : f32 to vector<8x128xf32>
    %256 = arith.addf %255, %254 : vector<8x128xf32>
    %257 = arith.divf %255, %256 : vector<8x128xf32>
    %258 = vector.extract_strided_slice %245 {offsets = [0, 256], sizes = [8, 128], strides = [1, 1]} : vector<8x512xf32> to vector<8x128xf32>
    %259 = math.tanh %258 : vector<8x128xf32>
    %260 = vector.extract_strided_slice %245 {offsets = [0, 384], sizes = [8, 128], strides = [1, 1]} : vector<8x512xf32> to vector<8x128xf32>
    %261 = arith.negf %260 : vector<8x128xf32>
    %262 = math.exp %261 : vector<8x128xf32>
    %cst_107 = arith.constant 1.000000e+00 : f32
    %263 = vector.broadcast %cst_107 : f32 to vector<8x128xf32>
    %264 = arith.addf %263, %262 : vector<8x128xf32>
    %265 = arith.divf %263, %264 : vector<8x128xf32>
    %266 = arith.mulf %257, %239 : vector<8x128xf32>
    %267 = arith.mulf %251, %259 : vector<8x128xf32>
    %268 = arith.addf %266, %267 : vector<8x128xf32>
    %269 = math.tanh %268 : vector<8x128xf32>
    %270 = arith.mulf %265, %269 : vector<8x128xf32>
    %c0_108 = arith.constant 0 : index
    %c0_109 = arith.constant 0 : index
    %271 = vector.load %arg6[%c0_108, %c0_109] : memref<8x128xf32, #tpu.memory_space<vmem>>, vector<8x128xf32>
    tpu.vector_store %arg6[%c0_108, %c0_109], %270 {strides = array<i32>} : memref<8x128xf32, #tpu.memory_space<vmem>>, vector<8x128xf32>,
    %c0_110 = arith.constant 0 : index
    %c0_111 = arith.constant 0 : index
    %272 = vector.load %arg7[%c0_110, %c0_111] : memref<8x128xf32, #tpu.memory_space<vmem>>, vector<8x128xf32>
    tpu.vector_store %arg7[%c0_110, %c0_111], %268 {strides = array<i32>} : memref<8x128xf32, #tpu.memory_space<vmem>>, vector<8x128xf32>,
    %273 = arith.index_cast %c6_i32 : i32 to index
    %c0_112 = arith.constant 0 : index
    %c0_113 = arith.constant 0 : index
    %274 = vector.load %arg3[%273, %c0_112, %c0_113] : memref<16x8x128xf32, #tpu.memory_space<vmem>>, vector<1x8x128xf32>
    %275 = vector.shape_cast %274 : vector<1x8x128xf32> to vector<8x128xf32>
    %276 = vector.shape_cast %270 : vector<8x128xf32> to vector<1x8x128xf32>
    tpu.vector_store %arg3[%273, %c0_112, %c0_113], %276 {strides = array<i32>} : memref<16x8x128xf32, #tpu.memory_space<vmem>>, vector<1x8x128xf32>,
    %c7_i32 = arith.constant 7 : i32
    %c0_114 = arith.constant 0 : index
    %c0_115 = arith.constant 0 : index
    %277 = vector.load %arg6[%c0_114, %c0_115] : memref<8x128xf32, #tpu.memory_space<vmem>>, vector<8x128xf32>
    %c0_116 = arith.constant 0 : index
    %c0_117 = arith.constant 0 : index
    %278 = vector.load %arg7[%c0_116, %c0_117] : memref<8x128xf32, #tpu.memory_space<vmem>>, vector<8x128xf32>
    %279 = arith.index_cast %c7_i32 : i32 to index
    %c0_118 = arith.constant 0 : index
    %c0_119 = arith.constant 0 : index
    %280 = vector.load %arg1[%279, %c0_118, %c0_119] : memref<16x8x512xf32, #tpu.memory_space<vmem>>, vector<1x8x512xf32>
    %281 = vector.shape_cast %280 : vector<1x8x512xf32> to vector<8x512xf32>
    %282 = arith.truncf %277 : vector<8x128xf32> to vector<8x128xbf16>
    %cst_120 = arith.constant dense<0.000000e+00> : vector<8x512xf32>
    %283 = tpu.matmul %282, %3, %cst_120 {dimension_numbers = #tpu.dot_dimension_numbers<[1], [0], [0], [1], [0, 0, 1, 1], [], []>} : vector<8x128xbf16>, vector<128x512xbf16>, vector<8x512xf32> -> vector<8x512xf32>
    %284 = arith.addf %281, %283 : vector<8x512xf32>
    %285 = vector.extract_strided_slice %284 {offsets = [0, 0], sizes = [8, 128], strides = [1, 1]} : vector<8x512xf32> to vector<8x128xf32>
    %286 = arith.negf %285 : vector<8x128xf32>
    %287 = math.exp %286 : vector<8x128xf32>
    %cst_121 = arith.constant 1.000000e+00 : f32
    %288 = vector.broadcast %cst_121 : f32 to vector<8x128xf32>
    %289 = arith.addf %288, %287 : vector<8x128xf32>
    %290 = arith.divf %288, %289 : vector<8x128xf32>
    %291 = vector.extract_strided_slice %284 {offsets = [0, 128], sizes = [8, 128], strides = [1, 1]} : vector<8x512xf32> to vector<8x128xf32>
    %292 = arith.negf %291 : vector<8x128xf32>
    %293 = math.exp %292 : vector<8x128xf32>
    %cst_122 = arith.constant 1.000000e+00 : f32
    %294 = vector.broadcast %cst_122 : f32 to vector<8x128xf32>
    %295 = arith.addf %294, %293 : vector<8x128xf32>
    %296 = arith.divf %294, %295 : vector<8x128xf32>
    %297 = vector.extract_strided_slice %284 {offsets = [0, 256], sizes = [8, 128], strides = [1, 1]} : vector<8x512xf32> to vector<8x128xf32>
    %298 = math.tanh %297 : vector<8x128xf32>
    %299 = vector.extract_strided_slice %284 {offsets = [0, 384], sizes = [8, 128], strides = [1, 1]} : vector<8x512xf32> to vector<8x128xf32>
    %300 = arith.negf %299 : vector<8x128xf32>
    %301 = math.exp %300 : vector<8x128xf32>
    %cst_123 = arith.constant 1.000000e+00 : f32
    %302 = vector.broadcast %cst_123 : f32 to vector<8x128xf32>
    %303 = arith.addf %302, %301 : vector<8x128xf32>
    %304 = arith.divf %302, %303 : vector<8x128xf32>
    %305 = arith.mulf %296, %278 : vector<8x128xf32>
    %306 = arith.mulf %290, %298 : vector<8x128xf32>
    %307 = arith.addf %305, %306 : vector<8x128xf32>
    %308 = math.tanh %307 : vector<8x128xf32>
    %309 = arith.mulf %304, %308 : vector<8x128xf32>
    %c0_124 = arith.constant 0 : index
    %c0_125 = arith.constant 0 : index
    %310 = vector.load %arg6[%c0_124, %c0_125] : memref<8x128xf32, #tpu.memory_space<vmem>>, vector<8x128xf32>
    tpu.vector_store %arg6[%c0_124, %c0_125], %309 {strides = array<i32>} : memref<8x128xf32, #tpu.memory_space<vmem>>, vector<8x128xf32>,
    %c0_126 = arith.constant 0 : index
    %c0_127 = arith.constant 0 : index
    %311 = vector.load %arg7[%c0_126, %c0_127] : memref<8x128xf32, #tpu.memory_space<vmem>>, vector<8x128xf32>
    tpu.vector_store %arg7[%c0_126, %c0_127], %307 {strides = array<i32>} : memref<8x128xf32, #tpu.memory_space<vmem>>, vector<8x128xf32>,
    %312 = arith.index_cast %c7_i32 : i32 to index
    %c0_128 = arith.constant 0 : index
    %c0_129 = arith.constant 0 : index
    %313 = vector.load %arg3[%312, %c0_128, %c0_129] : memref<16x8x128xf32, #tpu.memory_space<vmem>>, vector<1x8x128xf32>
    %314 = vector.shape_cast %313 : vector<1x8x128xf32> to vector<8x128xf32>
    %315 = vector.shape_cast %309 : vector<8x128xf32> to vector<1x8x128xf32>
    tpu.vector_store %arg3[%312, %c0_128, %c0_129], %315 {strides = array<i32>} : memref<16x8x128xf32, #tpu.memory_space<vmem>>, vector<1x8x128xf32>,
    %c8_i32 = arith.constant 8 : i32
    %c0_130 = arith.constant 0 : index
    %c0_131 = arith.constant 0 : index
    %316 = vector.load %arg6[%c0_130, %c0_131] : memref<8x128xf32, #tpu.memory_space<vmem>>, vector<8x128xf32>
    %c0_132 = arith.constant 0 : index
    %c0_133 = arith.constant 0 : index
    %317 = vector.load %arg7[%c0_132, %c0_133] : memref<8x128xf32, #tpu.memory_space<vmem>>, vector<8x128xf32>
    %318 = arith.index_cast %c8_i32 : i32 to index
    %c0_134 = arith.constant 0 : index
    %c0_135 = arith.constant 0 : index
    %319 = vector.load %arg1[%318, %c0_134, %c0_135] : memref<16x8x512xf32, #tpu.memory_space<vmem>>, vector<1x8x512xf32>
    %320 = vector.shape_cast %319 : vector<1x8x512xf32> to vector<8x512xf32>
    %321 = arith.truncf %316 : vector<8x128xf32> to vector<8x128xbf16>
    %cst_136 = arith.constant dense<0.000000e+00> : vector<8x512xf32>
    %322 = tpu.matmul %321, %3, %cst_136 {dimension_numbers = #tpu.dot_dimension_numbers<[1], [0], [0], [1], [0, 0, 1, 1], [], []>} : vector<8x128xbf16>, vector<128x512xbf16>, vector<8x512xf32> -> vector<8x512xf32>
    %323 = arith.addf %320, %322 : vector<8x512xf32>
    %324 = vector.extract_strided_slice %323 {offsets = [0, 0], sizes = [8, 128], strides = [1, 1]} : vector<8x512xf32> to vector<8x128xf32>
    %325 = arith.negf %324 : vector<8x128xf32>
    %326 = math.exp %325 : vector<8x128xf32>
    %cst_137 = arith.constant 1.000000e+00 : f32
    %327 = vector.broadcast %cst_137 : f32 to vector<8x128xf32>
    %328 = arith.addf %327, %326 : vector<8x128xf32>
    %329 = arith.divf %327, %328 : vector<8x128xf32>
    %330 = vector.extract_strided_slice %323 {offsets = [0, 128], sizes = [8, 128], strides = [1, 1]} : vector<8x512xf32> to vector<8x128xf32>
    %331 = arith.negf %330 : vector<8x128xf32>
    %332 = math.exp %331 : vector<8x128xf32>
    %cst_138 = arith.constant 1.000000e+00 : f32
    %333 = vector.broadcast %cst_138 : f32 to vector<8x128xf32>
    %334 = arith.addf %333, %332 : vector<8x128xf32>
    %335 = arith.divf %333, %334 : vector<8x128xf32>
    %336 = vector.extract_strided_slice %323 {offsets = [0, 256], sizes = [8, 128], strides = [1, 1]} : vector<8x512xf32> to vector<8x128xf32>
    %337 = math.tanh %336 : vector<8x128xf32>
    %338 = vector.extract_strided_slice %323 {offsets = [0, 384], sizes = [8, 128], strides = [1, 1]} : vector<8x512xf32> to vector<8x128xf32>
    %339 = arith.negf %338 : vector<8x128xf32>
    %340 = math.exp %339 : vector<8x128xf32>
    %cst_139 = arith.constant 1.000000e+00 : f32
    %341 = vector.broadcast %cst_139 : f32 to vector<8x128xf32>
    %342 = arith.addf %341, %340 : vector<8x128xf32>
    %343 = arith.divf %341, %342 : vector<8x128xf32>
    %344 = arith.mulf %335, %317 : vector<8x128xf32>
    %345 = arith.mulf %329, %337 : vector<8x128xf32>
    %346 = arith.addf %344, %345 : vector<8x128xf32>
    %347 = math.tanh %346 : vector<8x128xf32>
    %348 = arith.mulf %343, %347 : vector<8x128xf32>
    %c0_140 = arith.constant 0 : index
    %c0_141 = arith.constant 0 : index
    %349 = vector.load %arg6[%c0_140, %c0_141] : memref<8x128xf32, #tpu.memory_space<vmem>>, vector<8x128xf32>
    tpu.vector_store %arg6[%c0_140, %c0_141], %348 {strides = array<i32>} : memref<8x128xf32, #tpu.memory_space<vmem>>, vector<8x128xf32>,
    %c0_142 = arith.constant 0 : index
    %c0_143 = arith.constant 0 : index
    %350 = vector.load %arg7[%c0_142, %c0_143] : memref<8x128xf32, #tpu.memory_space<vmem>>, vector<8x128xf32>
    tpu.vector_store %arg7[%c0_142, %c0_143], %346 {strides = array<i32>} : memref<8x128xf32, #tpu.memory_space<vmem>>, vector<8x128xf32>,
    %351 = arith.index_cast %c8_i32 : i32 to index
    %c0_144 = arith.constant 0 : index
    %c0_145 = arith.constant 0 : index
    %352 = vector.load %arg3[%351, %c0_144, %c0_145] : memref<16x8x128xf32, #tpu.memory_space<vmem>>, vector<1x8x128xf32>
    %353 = vector.shape_cast %352 : vector<1x8x128xf32> to vector<8x128xf32>
    %354 = vector.shape_cast %348 : vector<8x128xf32> to vector<1x8x128xf32>
    tpu.vector_store %arg3[%351, %c0_144, %c0_145], %354 {strides = array<i32>} : memref<16x8x128xf32, #tpu.memory_space<vmem>>, vector<1x8x128xf32>,
    %c9_i32 = arith.constant 9 : i32
    %c0_146 = arith.constant 0 : index
    %c0_147 = arith.constant 0 : index
    %355 = vector.load %arg6[%c0_146, %c0_147] : memref<8x128xf32, #tpu.memory_space<vmem>>, vector<8x128xf32>
    %c0_148 = arith.constant 0 : index
    %c0_149 = arith.constant 0 : index
    %356 = vector.load %arg7[%c0_148, %c0_149] : memref<8x128xf32, #tpu.memory_space<vmem>>, vector<8x128xf32>
    %357 = arith.index_cast %c9_i32 : i32 to index
    %c0_150 = arith.constant 0 : index
    %c0_151 = arith.constant 0 : index
    %358 = vector.load %arg1[%357, %c0_150, %c0_151] : memref<16x8x512xf32, #tpu.memory_space<vmem>>, vector<1x8x512xf32>
    %359 = vector.shape_cast %358 : vector<1x8x512xf32> to vector<8x512xf32>
    %360 = arith.truncf %355 : vector<8x128xf32> to vector<8x128xbf16>
    %cst_152 = arith.constant dense<0.000000e+00> : vector<8x512xf32>
    %361 = tpu.matmul %360, %3, %cst_152 {dimension_numbers = #tpu.dot_dimension_numbers<[1], [0], [0], [1], [0, 0, 1, 1], [], []>} : vector<8x128xbf16>, vector<128x512xbf16>, vector<8x512xf32> -> vector<8x512xf32>
    %362 = arith.addf %359, %361 : vector<8x512xf32>
    %363 = vector.extract_strided_slice %362 {offsets = [0, 0], sizes = [8, 128], strides = [1, 1]} : vector<8x512xf32> to vector<8x128xf32>
    %364 = arith.negf %363 : vector<8x128xf32>
    %365 = math.exp %364 : vector<8x128xf32>
    %cst_153 = arith.constant 1.000000e+00 : f32
    %366 = vector.broadcast %cst_153 : f32 to vector<8x128xf32>
    %367 = arith.addf %366, %365 : vector<8x128xf32>
    %368 = arith.divf %366, %367 : vector<8x128xf32>
    %369 = vector.extract_strided_slice %362 {offsets = [0, 128], sizes = [8, 128], strides = [1, 1]} : vector<8x512xf32> to vector<8x128xf32>
    %370 = arith.negf %369 : vector<8x128xf32>
    %371 = math.exp %370 : vector<8x128xf32>
    %cst_154 = arith.constant 1.000000e+00 : f32
    %372 = vector.broadcast %cst_154 : f32 to vector<8x128xf32>
    %373 = arith.addf %372, %371 : vector<8x128xf32>
    %374 = arith.divf %372, %373 : vector<8x128xf32>
    %375 = vector.extract_strided_slice %362 {offsets = [0, 256], sizes = [8, 128], strides = [1, 1]} : vector<8x512xf32> to vector<8x128xf32>
    %376 = math.tanh %375 : vector<8x128xf32>
    %377 = vector.extract_strided_slice %362 {offsets = [0, 384], sizes = [8, 128], strides = [1, 1]} : vector<8x512xf32> to vector<8x128xf32>
    %378 = arith.negf %377 : vector<8x128xf32>
    %379 = math.exp %378 : vector<8x128xf32>
    %cst_155 = arith.constant 1.000000e+00 : f32
    %380 = vector.broadcast %cst_155 : f32 to vector<8x128xf32>
    %381 = arith.addf %380, %379 : vector<8x128xf32>
    %382 = arith.divf %380, %381 : vector<8x128xf32>
    %383 = arith.mulf %374, %356 : vector<8x128xf32>
    %384 = arith.mulf %368, %376 : vector<8x128xf32>
    %385 = arith.addf %383, %384 : vector<8x128xf32>
    %386 = math.tanh %385 : vector<8x128xf32>
    %387 = arith.mulf %382, %386 : vector<8x128xf32>
    %c0_156 = arith.constant 0 : index
    %c0_157 = arith.constant 0 : index
    %388 = vector.load %arg6[%c0_156, %c0_157] : memref<8x128xf32, #tpu.memory_space<vmem>>, vector<8x128xf32>
    tpu.vector_store %arg6[%c0_156, %c0_157], %387 {strides = array<i32>} : memref<8x128xf32, #tpu.memory_space<vmem>>, vector<8x128xf32>,
    %c0_158 = arith.constant 0 : index
    %c0_159 = arith.constant 0 : index
    %389 = vector.load %arg7[%c0_158, %c0_159] : memref<8x128xf32, #tpu.memory_space<vmem>>, vector<8x128xf32>
    tpu.vector_store %arg7[%c0_158, %c0_159], %385 {strides = array<i32>} : memref<8x128xf32, #tpu.memory_space<vmem>>, vector<8x128xf32>,
    %390 = arith.index_cast %c9_i32 : i32 to index
    %c0_160 = arith.constant 0 : index
    %c0_161 = arith.constant 0 : index
    %391 = vector.load %arg3[%390, %c0_160, %c0_161] : memref<16x8x128xf32, #tpu.memory_space<vmem>>, vector<1x8x128xf32>
    %392 = vector.shape_cast %391 : vector<1x8x128xf32> to vector<8x128xf32>
    %393 = vector.shape_cast %387 : vector<8x128xf32> to vector<1x8x128xf32>
    tpu.vector_store %arg3[%390, %c0_160, %c0_161], %393 {strides = array<i32>} : memref<16x8x128xf32, #tpu.memory_space<vmem>>, vector<1x8x128xf32>,
    %c10_i32 = arith.constant 10 : i32
    %c0_162 = arith.constant 0 : index
    %c0_163 = arith.constant 0 : index
    %394 = vector.load %arg6[%c0_162, %c0_163] : memref<8x128xf32, #tpu.memory_space<vmem>>, vector<8x128xf32>
    %c0_164 = arith.constant 0 : index
    %c0_165 = arith.constant 0 : index
    %395 = vector.load %arg7[%c0_164, %c0_165] : memref<8x128xf32, #tpu.memory_space<vmem>>, vector<8x128xf32>
    %396 = arith.index_cast %c10_i32 : i32 to index
    %c0_166 = arith.constant 0 : index
    %c0_167 = arith.constant 0 : index
    %397 = vector.load %arg1[%396, %c0_166, %c0_167] : memref<16x8x512xf32, #tpu.memory_space<vmem>>, vector<1x8x512xf32>
    %398 = vector.shape_cast %397 : vector<1x8x512xf32> to vector<8x512xf32>
    %399 = arith.truncf %394 : vector<8x128xf32> to vector<8x128xbf16>
    %cst_168 = arith.constant dense<0.000000e+00> : vector<8x512xf32>
    %400 = tpu.matmul %399, %3, %cst_168 {dimension_numbers = #tpu.dot_dimension_numbers<[1], [0], [0], [1], [0, 0, 1, 1], [], []>} : vector<8x128xbf16>, vector<128x512xbf16>, vector<8x512xf32> -> vector<8x512xf32>
    %401 = arith.addf %398, %400 : vector<8x512xf32>
    %402 = vector.extract_strided_slice %401 {offsets = [0, 0], sizes = [8, 128], strides = [1, 1]} : vector<8x512xf32> to vector<8x128xf32>
    %403 = arith.negf %402 : vector<8x128xf32>
    %404 = math.exp %403 : vector<8x128xf32>
    %cst_169 = arith.constant 1.000000e+00 : f32
    %405 = vector.broadcast %cst_169 : f32 to vector<8x128xf32>
    %406 = arith.addf %405, %404 : vector<8x128xf32>
    %407 = arith.divf %405, %406 : vector<8x128xf32>
    %408 = vector.extract_strided_slice %401 {offsets = [0, 128], sizes = [8, 128], strides = [1, 1]} : vector<8x512xf32> to vector<8x128xf32>
    %409 = arith.negf %408 : vector<8x128xf32>
    %410 = math.exp %409 : vector<8x128xf32>
    %cst_170 = arith.constant 1.000000e+00 : f32
    %411 = vector.broadcast %cst_170 : f32 to vector<8x128xf32>
    %412 = arith.addf %411, %410 : vector<8x128xf32>
    %413 = arith.divf %411, %412 : vector<8x128xf32>
    %414 = vector.extract_strided_slice %401 {offsets = [0, 256], sizes = [8, 128], strides = [1, 1]} : vector<8x512xf32> to vector<8x128xf32>
    %415 = math.tanh %414 : vector<8x128xf32>
    %416 = vector.extract_strided_slice %401 {offsets = [0, 384], sizes = [8, 128], strides = [1, 1]} : vector<8x512xf32> to vector<8x128xf32>
    %417 = arith.negf %416 : vector<8x128xf32>
    %418 = math.exp %417 : vector<8x128xf32>
    %cst_171 = arith.constant 1.000000e+00 : f32
    %419 = vector.broadcast %cst_171 : f32 to vector<8x128xf32>
    %420 = arith.addf %419, %418 : vector<8x128xf32>
    %421 = arith.divf %419, %420 : vector<8x128xf32>
    %422 = arith.mulf %413, %395 : vector<8x128xf32>
    %423 = arith.mulf %407, %415 : vector<8x128xf32>
    %424 = arith.addf %422, %423 : vector<8x128xf32>
    %425 = math.tanh %424 : vector<8x128xf32>
    %426 = arith.mulf %421, %425 : vector<8x128xf32>
    %c0_172 = arith.constant 0 : index
    %c0_173 = arith.constant 0 : index
    %427 = vector.load %arg6[%c0_172, %c0_173] : memref<8x128xf32, #tpu.memory_space<vmem>>, vector<8x128xf32>
    tpu.vector_store %arg6[%c0_172, %c0_173], %426 {strides = array<i32>} : memref<8x128xf32, #tpu.memory_space<vmem>>, vector<8x128xf32>,
    %c0_174 = arith.constant 0 : index
    %c0_175 = arith.constant 0 : index
    %428 = vector.load %arg7[%c0_174, %c0_175] : memref<8x128xf32, #tpu.memory_space<vmem>>, vector<8x128xf32>
    tpu.vector_store %arg7[%c0_174, %c0_175], %424 {strides = array<i32>} : memref<8x128xf32, #tpu.memory_space<vmem>>, vector<8x128xf32>,
    %429 = arith.index_cast %c10_i32 : i32 to index
    %c0_176 = arith.constant 0 : index
    %c0_177 = arith.constant 0 : index
    %430 = vector.load %arg3[%429, %c0_176, %c0_177] : memref<16x8x128xf32, #tpu.memory_space<vmem>>, vector<1x8x128xf32>
    %431 = vector.shape_cast %430 : vector<1x8x128xf32> to vector<8x128xf32>
    %432 = vector.shape_cast %426 : vector<8x128xf32> to vector<1x8x128xf32>
    tpu.vector_store %arg3[%429, %c0_176, %c0_177], %432 {strides = array<i32>} : memref<16x8x128xf32, #tpu.memory_space<vmem>>, vector<1x8x128xf32>,
    %c11_i32 = arith.constant 11 : i32
    %c0_178 = arith.constant 0 : index
    %c0_179 = arith.constant 0 : index
    %433 = vector.load %arg6[%c0_178, %c0_179] : memref<8x128xf32, #tpu.memory_space<vmem>>, vector<8x128xf32>
    %c0_180 = arith.constant 0 : index
    %c0_181 = arith.constant 0 : index
    %434 = vector.load %arg7[%c0_180, %c0_181] : memref<8x128xf32, #tpu.memory_space<vmem>>, vector<8x128xf32>
    %435 = arith.index_cast %c11_i32 : i32 to index
    %c0_182 = arith.constant 0 : index
    %c0_183 = arith.constant 0 : index
    %436 = vector.load %arg1[%435, %c0_182, %c0_183] : memref<16x8x512xf32, #tpu.memory_space<vmem>>, vector<1x8x512xf32>
    %437 = vector.shape_cast %436 : vector<1x8x512xf32> to vector<8x512xf32>
    %438 = arith.truncf %433 : vector<8x128xf32> to vector<8x128xbf16>
    %cst_184 = arith.constant dense<0.000000e+00> : vector<8x512xf32>
    %439 = tpu.matmul %438, %3, %cst_184 {dimension_numbers = #tpu.dot_dimension_numbers<[1], [0], [0], [1], [0, 0, 1, 1], [], []>} : vector<8x128xbf16>, vector<128x512xbf16>, vector<8x512xf32> -> vector<8x512xf32>
    %440 = arith.addf %437, %439 : vector<8x512xf32>
    %441 = vector.extract_strided_slice %440 {offsets = [0, 0], sizes = [8, 128], strides = [1, 1]} : vector<8x512xf32> to vector<8x128xf32>
    %442 = arith.negf %441 : vector<8x128xf32>
    %443 = math.exp %442 : vector<8x128xf32>
    %cst_185 = arith.constant 1.000000e+00 : f32
    %444 = vector.broadcast %cst_185 : f32 to vector<8x128xf32>
    %445 = arith.addf %444, %443 : vector<8x128xf32>
    %446 = arith.divf %444, %445 : vector<8x128xf32>
    %447 = vector.extract_strided_slice %440 {offsets = [0, 128], sizes = [8, 128], strides = [1, 1]} : vector<8x512xf32> to vector<8x128xf32>
    %448 = arith.negf %447 : vector<8x128xf32>
    %449 = math.exp %448 : vector<8x128xf32>
    %cst_186 = arith.constant 1.000000e+00 : f32
    %450 = vector.broadcast %cst_186 : f32 to vector<8x128xf32>
    %451 = arith.addf %450, %449 : vector<8x128xf32>
    %452 = arith.divf %450, %451 : vector<8x128xf32>
    %453 = vector.extract_strided_slice %440 {offsets = [0, 256], sizes = [8, 128], strides = [1, 1]} : vector<8x512xf32> to vector<8x128xf32>
    %454 = math.tanh %453 : vector<8x128xf32>
    %455 = vector.extract_strided_slice %440 {offsets = [0, 384], sizes = [8, 128], strides = [1, 1]} : vector<8x512xf32> to vector<8x128xf32>
    %456 = arith.negf %455 : vector<8x128xf32>
    %457 = math.exp %456 : vector<8x128xf32>
    %cst_187 = arith.constant 1.000000e+00 : f32
    %458 = vector.broadcast %cst_187 : f32 to vector<8x128xf32>
    %459 = arith.addf %458, %457 : vector<8x128xf32>
    %460 = arith.divf %458, %459 : vector<8x128xf32>
    %461 = arith.mulf %452, %434 : vector<8x128xf32>
    %462 = arith.mulf %446, %454 : vector<8x128xf32>
    %463 = arith.addf %461, %462 : vector<8x128xf32>
    %464 = math.tanh %463 : vector<8x128xf32>
    %465 = arith.mulf %460, %464 : vector<8x128xf32>
    %c0_188 = arith.constant 0 : index
    %c0_189 = arith.constant 0 : index
    %466 = vector.load %arg6[%c0_188, %c0_189] : memref<8x128xf32, #tpu.memory_space<vmem>>, vector<8x128xf32>
    tpu.vector_store %arg6[%c0_188, %c0_189], %465 {strides = array<i32>} : memref<8x128xf32, #tpu.memory_space<vmem>>, vector<8x128xf32>,
    %c0_190 = arith.constant 0 : index
    %c0_191 = arith.constant 0 : index
    %467 = vector.load %arg7[%c0_190, %c0_191] : memref<8x128xf32, #tpu.memory_space<vmem>>, vector<8x128xf32>
    tpu.vector_store %arg7[%c0_190, %c0_191], %463 {strides = array<i32>} : memref<8x128xf32, #tpu.memory_space<vmem>>, vector<8x128xf32>,
    %468 = arith.index_cast %c11_i32 : i32 to index
    %c0_192 = arith.constant 0 : index
    %c0_193 = arith.constant 0 : index
    %469 = vector.load %arg3[%468, %c0_192, %c0_193] : memref<16x8x128xf32, #tpu.memory_space<vmem>>, vector<1x8x128xf32>
    %470 = vector.shape_cast %469 : vector<1x8x128xf32> to vector<8x128xf32>
    %471 = vector.shape_cast %465 : vector<8x128xf32> to vector<1x8x128xf32>
    tpu.vector_store %arg3[%468, %c0_192, %c0_193], %471 {strides = array<i32>} : memref<16x8x128xf32, #tpu.memory_space<vmem>>, vector<1x8x128xf32>,
    %c12_i32 = arith.constant 12 : i32
    %c0_194 = arith.constant 0 : index
    %c0_195 = arith.constant 0 : index
    %472 = vector.load %arg6[%c0_194, %c0_195] : memref<8x128xf32, #tpu.memory_space<vmem>>, vector<8x128xf32>
    %c0_196 = arith.constant 0 : index
    %c0_197 = arith.constant 0 : index
    %473 = vector.load %arg7[%c0_196, %c0_197] : memref<8x128xf32, #tpu.memory_space<vmem>>, vector<8x128xf32>
    %474 = arith.index_cast %c12_i32 : i32 to index
    %c0_198 = arith.constant 0 : index
    %c0_199 = arith.constant 0 : index
    %475 = vector.load %arg1[%474, %c0_198, %c0_199] : memref<16x8x512xf32, #tpu.memory_space<vmem>>, vector<1x8x512xf32>
    %476 = vector.shape_cast %475 : vector<1x8x512xf32> to vector<8x512xf32>
    %477 = arith.truncf %472 : vector<8x128xf32> to vector<8x128xbf16>
    %cst_200 = arith.constant dense<0.000000e+00> : vector<8x512xf32>
    %478 = tpu.matmul %477, %3, %cst_200 {dimension_numbers = #tpu.dot_dimension_numbers<[1], [0], [0], [1], [0, 0, 1, 1], [], []>} : vector<8x128xbf16>, vector<128x512xbf16>, vector<8x512xf32> -> vector<8x512xf32>
    %479 = arith.addf %476, %478 : vector<8x512xf32>
    %480 = vector.extract_strided_slice %479 {offsets = [0, 0], sizes = [8, 128], strides = [1, 1]} : vector<8x512xf32> to vector<8x128xf32>
    %481 = arith.negf %480 : vector<8x128xf32>
    %482 = math.exp %481 : vector<8x128xf32>
    %cst_201 = arith.constant 1.000000e+00 : f32
    %483 = vector.broadcast %cst_201 : f32 to vector<8x128xf32>
    %484 = arith.addf %483, %482 : vector<8x128xf32>
    %485 = arith.divf %483, %484 : vector<8x128xf32>
    %486 = vector.extract_strided_slice %479 {offsets = [0, 128], sizes = [8, 128], strides = [1, 1]} : vector<8x512xf32> to vector<8x128xf32>
    %487 = arith.negf %486 : vector<8x128xf32>
    %488 = math.exp %487 : vector<8x128xf32>
    %cst_202 = arith.constant 1.000000e+00 : f32
    %489 = vector.broadcast %cst_202 : f32 to vector<8x128xf32>
    %490 = arith.addf %489, %488 : vector<8x128xf32>
    %491 = arith.divf %489, %490 : vector<8x128xf32>
    %492 = vector.extract_strided_slice %479 {offsets = [0, 256], sizes = [8, 128], strides = [1, 1]} : vector<8x512xf32> to vector<8x128xf32>
    %493 = math.tanh %492 : vector<8x128xf32>
    %494 = vector.extract_strided_slice %479 {offsets = [0, 384], sizes = [8, 128], strides = [1, 1]} : vector<8x512xf32> to vector<8x128xf32>
    %495 = arith.negf %494 : vector<8x128xf32>
    %496 = math.exp %495 : vector<8x128xf32>
    %cst_203 = arith.constant 1.000000e+00 : f32
    %497 = vector.broadcast %cst_203 : f32 to vector<8x128xf32>
    %498 = arith.addf %497, %496 : vector<8x128xf32>
    %499 = arith.divf %497, %498 : vector<8x128xf32>
    %500 = arith.mulf %491, %473 : vector<8x128xf32>
    %501 = arith.mulf %485, %493 : vector<8x128xf32>
    %502 = arith.addf %500, %501 : vector<8x128xf32>
    %503 = math.tanh %502 : vector<8x128xf32>
    %504 = arith.mulf %499, %503 : vector<8x128xf32>
    %c0_204 = arith.constant 0 : index
    %c0_205 = arith.constant 0 : index
    %505 = vector.load %arg6[%c0_204, %c0_205] : memref<8x128xf32, #tpu.memory_space<vmem>>, vector<8x128xf32>
    tpu.vector_store %arg6[%c0_204, %c0_205], %504 {strides = array<i32>} : memref<8x128xf32, #tpu.memory_space<vmem>>, vector<8x128xf32>,
    %c0_206 = arith.constant 0 : index
    %c0_207 = arith.constant 0 : index
    %506 = vector.load %arg7[%c0_206, %c0_207] : memref<8x128xf32, #tpu.memory_space<vmem>>, vector<8x128xf32>
    tpu.vector_store %arg7[%c0_206, %c0_207], %502 {strides = array<i32>} : memref<8x128xf32, #tpu.memory_space<vmem>>, vector<8x128xf32>,
    %507 = arith.index_cast %c12_i32 : i32 to index
    %c0_208 = arith.constant 0 : index
    %c0_209 = arith.constant 0 : index
    %508 = vector.load %arg3[%507, %c0_208, %c0_209] : memref<16x8x128xf32, #tpu.memory_space<vmem>>, vector<1x8x128xf32>
    %509 = vector.shape_cast %508 : vector<1x8x128xf32> to vector<8x128xf32>
    %510 = vector.shape_cast %504 : vector<8x128xf32> to vector<1x8x128xf32>
    tpu.vector_store %arg3[%507, %c0_208, %c0_209], %510 {strides = array<i32>} : memref<16x8x128xf32, #tpu.memory_space<vmem>>, vector<1x8x128xf32>,
    %c13_i32 = arith.constant 13 : i32
    %c0_210 = arith.constant 0 : index
    %c0_211 = arith.constant 0 : index
    %511 = vector.load %arg6[%c0_210, %c0_211] : memref<8x128xf32, #tpu.memory_space<vmem>>, vector<8x128xf32>
    %c0_212 = arith.constant 0 : index
    %c0_213 = arith.constant 0 : index
    %512 = vector.load %arg7[%c0_212, %c0_213] : memref<8x128xf32, #tpu.memory_space<vmem>>, vector<8x128xf32>
    %513 = arith.index_cast %c13_i32 : i32 to index
    %c0_214 = arith.constant 0 : index
    %c0_215 = arith.constant 0 : index
    %514 = vector.load %arg1[%513, %c0_214, %c0_215] : memref<16x8x512xf32, #tpu.memory_space<vmem>>, vector<1x8x512xf32>
    %515 = vector.shape_cast %514 : vector<1x8x512xf32> to vector<8x512xf32>
    %516 = arith.truncf %511 : vector<8x128xf32> to vector<8x128xbf16>
    %cst_216 = arith.constant dense<0.000000e+00> : vector<8x512xf32>
    %517 = tpu.matmul %516, %3, %cst_216 {dimension_numbers = #tpu.dot_dimension_numbers<[1], [0], [0], [1], [0, 0, 1, 1], [], []>} : vector<8x128xbf16>, vector<128x512xbf16>, vector<8x512xf32> -> vector<8x512xf32>
    %518 = arith.addf %515, %517 : vector<8x512xf32>
    %519 = vector.extract_strided_slice %518 {offsets = [0, 0], sizes = [8, 128], strides = [1, 1]} : vector<8x512xf32> to vector<8x128xf32>
    %520 = arith.negf %519 : vector<8x128xf32>
    %521 = math.exp %520 : vector<8x128xf32>
    %cst_217 = arith.constant 1.000000e+00 : f32
    %522 = vector.broadcast %cst_217 : f32 to vector<8x128xf32>
    %523 = arith.addf %522, %521 : vector<8x128xf32>
    %524 = arith.divf %522, %523 : vector<8x128xf32>
    %525 = vector.extract_strided_slice %518 {offsets = [0, 128], sizes = [8, 128], strides = [1, 1]} : vector<8x512xf32> to vector<8x128xf32>
    %526 = arith.negf %525 : vector<8x128xf32>
    %527 = math.exp %526 : vector<8x128xf32>
    %cst_218 = arith.constant 1.000000e+00 : f32
    %528 = vector.broadcast %cst_218 : f32 to vector<8x128xf32>
    %529 = arith.addf %528, %527 : vector<8x128xf32>
    %530 = arith.divf %528, %529 : vector<8x128xf32>
    %531 = vector.extract_strided_slice %518 {offsets = [0, 256], sizes = [8, 128], strides = [1, 1]} : vector<8x512xf32> to vector<8x128xf32>
    %532 = math.tanh %531 : vector<8x128xf32>
    %533 = vector.extract_strided_slice %518 {offsets = [0, 384], sizes = [8, 128], strides = [1, 1]} : vector<8x512xf32> to vector<8x128xf32>
    %534 = arith.negf %533 : vector<8x128xf32>
    %535 = math.exp %534 : vector<8x128xf32>
    %cst_219 = arith.constant 1.000000e+00 : f32
    %536 = vector.broadcast %cst_219 : f32 to vector<8x128xf32>
    %537 = arith.addf %536, %535 : vector<8x128xf32>
    %538 = arith.divf %536, %537 : vector<8x128xf32>
    %539 = arith.mulf %530, %512 : vector<8x128xf32>
    %540 = arith.mulf %524, %532 : vector<8x128xf32>
    %541 = arith.addf %539, %540 : vector<8x128xf32>
    %542 = math.tanh %541 : vector<8x128xf32>
    %543 = arith.mulf %538, %542 : vector<8x128xf32>
    %c0_220 = arith.constant 0 : index
    %c0_221 = arith.constant 0 : index
    %544 = vector.load %arg6[%c0_220, %c0_221] : memref<8x128xf32, #tpu.memory_space<vmem>>, vector<8x128xf32>
    tpu.vector_store %arg6[%c0_220, %c0_221], %543 {strides = array<i32>} : memref<8x128xf32, #tpu.memory_space<vmem>>, vector<8x128xf32>,
    %c0_222 = arith.constant 0 : index
    %c0_223 = arith.constant 0 : index
    %545 = vector.load %arg7[%c0_222, %c0_223] : memref<8x128xf32, #tpu.memory_space<vmem>>, vector<8x128xf32>
    tpu.vector_store %arg7[%c0_222, %c0_223], %541 {strides = array<i32>} : memref<8x128xf32, #tpu.memory_space<vmem>>, vector<8x128xf32>,
    %546 = arith.index_cast %c13_i32 : i32 to index
    %c0_224 = arith.constant 0 : index
    %c0_225 = arith.constant 0 : index
    %547 = vector.load %arg3[%546, %c0_224, %c0_225] : memref<16x8x128xf32, #tpu.memory_space<vmem>>, vector<1x8x128xf32>
    %548 = vector.shape_cast %547 : vector<1x8x128xf32> to vector<8x128xf32>
    %549 = vector.shape_cast %543 : vector<8x128xf32> to vector<1x8x128xf32>
    tpu.vector_store %arg3[%546, %c0_224, %c0_225], %549 {strides = array<i32>} : memref<16x8x128xf32, #tpu.memory_space<vmem>>, vector<1x8x128xf32>,
    %c14_i32 = arith.constant 14 : i32
    %c0_226 = arith.constant 0 : index
    %c0_227 = arith.constant 0 : index
    %550 = vector.load %arg6[%c0_226, %c0_227] : memref<8x128xf32, #tpu.memory_space<vmem>>, vector<8x128xf32>
    %c0_228 = arith.constant 0 : index
    %c0_229 = arith.constant 0 : index
    %551 = vector.load %arg7[%c0_228, %c0_229] : memref<8x128xf32, #tpu.memory_space<vmem>>, vector<8x128xf32>
    %552 = arith.index_cast %c14_i32 : i32 to index
    %c0_230 = arith.constant 0 : index
    %c0_231 = arith.constant 0 : index
    %553 = vector.load %arg1[%552, %c0_230, %c0_231] : memref<16x8x512xf32, #tpu.memory_space<vmem>>, vector<1x8x512xf32>
    %554 = vector.shape_cast %553 : vector<1x8x512xf32> to vector<8x512xf32>
    %555 = arith.truncf %550 : vector<8x128xf32> to vector<8x128xbf16>
    %cst_232 = arith.constant dense<0.000000e+00> : vector<8x512xf32>
    %556 = tpu.matmul %555, %3, %cst_232 {dimension_numbers = #tpu.dot_dimension_numbers<[1], [0], [0], [1], [0, 0, 1, 1], [], []>} : vector<8x128xbf16>, vector<128x512xbf16>, vector<8x512xf32> -> vector<8x512xf32>
    %557 = arith.addf %554, %556 : vector<8x512xf32>
    %558 = vector.extract_strided_slice %557 {offsets = [0, 0], sizes = [8, 128], strides = [1, 1]} : vector<8x512xf32> to vector<8x128xf32>
    %559 = arith.negf %558 : vector<8x128xf32>
    %560 = math.exp %559 : vector<8x128xf32>
    %cst_233 = arith.constant 1.000000e+00 : f32
    %561 = vector.broadcast %cst_233 : f32 to vector<8x128xf32>
    %562 = arith.addf %561, %560 : vector<8x128xf32>
    %563 = arith.divf %561, %562 : vector<8x128xf32>
    %564 = vector.extract_strided_slice %557 {offsets = [0, 128], sizes = [8, 128], strides = [1, 1]} : vector<8x512xf32> to vector<8x128xf32>
    %565 = arith.negf %564 : vector<8x128xf32>
    %566 = math.exp %565 : vector<8x128xf32>
    %cst_234 = arith.constant 1.000000e+00 : f32
    %567 = vector.broadcast %cst_234 : f32 to vector<8x128xf32>
    %568 = arith.addf %567, %566 : vector<8x128xf32>
    %569 = arith.divf %567, %568 : vector<8x128xf32>
    %570 = vector.extract_strided_slice %557 {offsets = [0, 256], sizes = [8, 128], strides = [1, 1]} : vector<8x512xf32> to vector<8x128xf32>
    %571 = math.tanh %570 : vector<8x128xf32>
    %572 = vector.extract_strided_slice %557 {offsets = [0, 384], sizes = [8, 128], strides = [1, 1]} : vector<8x512xf32> to vector<8x128xf32>
    %573 = arith.negf %572 : vector<8x128xf32>
    %574 = math.exp %573 : vector<8x128xf32>
    %cst_235 = arith.constant 1.000000e+00 : f32
    %575 = vector.broadcast %cst_235 : f32 to vector<8x128xf32>
    %576 = arith.addf %575, %574 : vector<8x128xf32>
    %577 = arith.divf %575, %576 : vector<8x128xf32>
    %578 = arith.mulf %569, %551 : vector<8x128xf32>
    %579 = arith.mulf %563, %571 : vector<8x128xf32>
    %580 = arith.addf %578, %579 : vector<8x128xf32>
    %581 = math.tanh %580 : vector<8x128xf32>
    %582 = arith.mulf %577, %581 : vector<8x128xf32>
    %c0_236 = arith.constant 0 : index
    %c0_237 = arith.constant 0 : index
    %583 = vector.load %arg6[%c0_236, %c0_237] : memref<8x128xf32, #tpu.memory_space<vmem>>, vector<8x128xf32>
    tpu.vector_store %arg6[%c0_236, %c0_237], %582 {strides = array<i32>} : memref<8x128xf32, #tpu.memory_space<vmem>>, vector<8x128xf32>,
    %c0_238 = arith.constant 0 : index
    %c0_239 = arith.constant 0 : index
    %584 = vector.load %arg7[%c0_238, %c0_239] : memref<8x128xf32, #tpu.memory_space<vmem>>, vector<8x128xf32>
    tpu.vector_store %arg7[%c0_238, %c0_239], %580 {strides = array<i32>} : memref<8x128xf32, #tpu.memory_space<vmem>>, vector<8x128xf32>,
    %585 = arith.index_cast %c14_i32 : i32 to index
    %c0_240 = arith.constant 0 : index
    %c0_241 = arith.constant 0 : index
    %586 = vector.load %arg3[%585, %c0_240, %c0_241] : memref<16x8x128xf32, #tpu.memory_space<vmem>>, vector<1x8x128xf32>
    %587 = vector.shape_cast %586 : vector<1x8x128xf32> to vector<8x128xf32>
    %588 = vector.shape_cast %582 : vector<8x128xf32> to vector<1x8x128xf32>
    tpu.vector_store %arg3[%585, %c0_240, %c0_241], %588 {strides = array<i32>} : memref<16x8x128xf32, #tpu.memory_space<vmem>>, vector<1x8x128xf32>,
    %c15_i32 = arith.constant 15 : i32
    %c0_242 = arith.constant 0 : index
    %c0_243 = arith.constant 0 : index
    %589 = vector.load %arg6[%c0_242, %c0_243] : memref<8x128xf32, #tpu.memory_space<vmem>>, vector<8x128xf32>
    %c0_244 = arith.constant 0 : index
    %c0_245 = arith.constant 0 : index
    %590 = vector.load %arg7[%c0_244, %c0_245] : memref<8x128xf32, #tpu.memory_space<vmem>>, vector<8x128xf32>
    %591 = arith.index_cast %c15_i32 : i32 to index
    %c0_246 = arith.constant 0 : index
    %c0_247 = arith.constant 0 : index
    %592 = vector.load %arg1[%591, %c0_246, %c0_247] : memref<16x8x512xf32, #tpu.memory_space<vmem>>, vector<1x8x512xf32>
    %593 = vector.shape_cast %592 : vector<1x8x512xf32> to vector<8x512xf32>
    %594 = arith.truncf %589 : vector<8x128xf32> to vector<8x128xbf16>
    %cst_248 = arith.constant dense<0.000000e+00> : vector<8x512xf32>
    %595 = tpu.matmul %594, %3, %cst_248 {dimension_numbers = #tpu.dot_dimension_numbers<[1], [0], [0], [1], [0, 0, 1, 1], [], []>} : vector<8x128xbf16>, vector<128x512xbf16>, vector<8x512xf32> -> vector<8x512xf32>
    %596 = arith.addf %593, %595 : vector<8x512xf32>
    %597 = vector.extract_strided_slice %596 {offsets = [0, 0], sizes = [8, 128], strides = [1, 1]} : vector<8x512xf32> to vector<8x128xf32>
    %598 = arith.negf %597 : vector<8x128xf32>
    %599 = math.exp %598 : vector<8x128xf32>
    %cst_249 = arith.constant 1.000000e+00 : f32
    %600 = vector.broadcast %cst_249 : f32 to vector<8x128xf32>
    %601 = arith.addf %600, %599 : vector<8x128xf32>
    %602 = arith.divf %600, %601 : vector<8x128xf32>
    %603 = vector.extract_strided_slice %596 {offsets = [0, 128], sizes = [8, 128], strides = [1, 1]} : vector<8x512xf32> to vector<8x128xf32>
    %604 = arith.negf %603 : vector<8x128xf32>
    %605 = math.exp %604 : vector<8x128xf32>
    %cst_250 = arith.constant 1.000000e+00 : f32
    %606 = vector.broadcast %cst_250 : f32 to vector<8x128xf32>
    %607 = arith.addf %606, %605 : vector<8x128xf32>
    %608 = arith.divf %606, %607 : vector<8x128xf32>
    %609 = vector.extract_strided_slice %596 {offsets = [0, 256], sizes = [8, 128], strides = [1, 1]} : vector<8x512xf32> to vector<8x128xf32>
    %610 = math.tanh %609 : vector<8x128xf32>
    %611 = vector.extract_strided_slice %596 {offsets = [0, 384], sizes = [8, 128], strides = [1, 1]} : vector<8x512xf32> to vector<8x128xf32>
    %612 = arith.negf %611 : vector<8x128xf32>
    %613 = math.exp %612 : vector<8x128xf32>
    %cst_251 = arith.constant 1.000000e+00 : f32
    %614 = vector.broadcast %cst_251 : f32 to vector<8x128xf32>
    %615 = arith.addf %614, %613 : vector<8x128xf32>
    %616 = arith.divf %614, %615 : vector<8x128xf32>
    %617 = arith.mulf %608, %590 : vector<8x128xf32>
    %618 = arith.mulf %602, %610 : vector<8x128xf32>
    %619 = arith.addf %617, %618 : vector<8x128xf32>
    %620 = math.tanh %619 : vector<8x128xf32>
    %621 = arith.mulf %616, %620 : vector<8x128xf32>
    %c0_252 = arith.constant 0 : index
    %c0_253 = arith.constant 0 : index
    %622 = vector.load %arg6[%c0_252, %c0_253] : memref<8x128xf32, #tpu.memory_space<vmem>>, vector<8x128xf32>
    tpu.vector_store %arg6[%c0_252, %c0_253], %621 {strides = array<i32>} : memref<8x128xf32, #tpu.memory_space<vmem>>, vector<8x128xf32>,
    %c0_254 = arith.constant 0 : index
    %c0_255 = arith.constant 0 : index
    %623 = vector.load %arg7[%c0_254, %c0_255] : memref<8x128xf32, #tpu.memory_space<vmem>>, vector<8x128xf32>
    tpu.vector_store %arg7[%c0_254, %c0_255], %619 {strides = array<i32>} : memref<8x128xf32, #tpu.memory_space<vmem>>, vector<8x128xf32>,
    %624 = arith.index_cast %c15_i32 : i32 to index
    %c0_256 = arith.constant 0 : index
    %c0_257 = arith.constant 0 : index
    %625 = vector.load %arg3[%624, %c0_256, %c0_257] : memref<16x8x128xf32, #tpu.memory_space<vmem>>, vector<1x8x128xf32>
    %626 = vector.shape_cast %625 : vector<1x8x128xf32> to vector<8x128xf32>
    %627 = vector.shape_cast %621 : vector<8x128xf32> to vector<1x8x128xf32>
    tpu.vector_store %arg3[%624, %c0_256, %c0_257], %627 {strides = array<i32>} : memref<16x8x128xf32, #tpu.memory_space<vmem>>, vector<1x8x128xf32>,
    %c16_i32 = arith.constant 16 : i32
    %c0_i32_258 = arith.constant 0 : i32
    %628 = arith.cmpi eq, %arg0, %c0_i32_258 : i32
    %629 = arith.extui %628 : i1 to i32
    %c0_i32_259 = arith.constant 0 : i32
    %630 = arith.cmpi ne, %629, %c0_i32_259 : i32
    scf.if %630 {
      %c0_260 = arith.constant 0 : index
      %c0_261 = arith.constant 0 : index
      %631 = vector.load %arg6[%c0_260, %c0_261] : memref<8x128xf32, #tpu.memory_space<vmem>>, vector<8x128xf32>
      %c0_262 = arith.constant 0 : index
      %c0_263 = arith.constant 0 : index
      %632 = vector.load %arg4[%c0_262, %c0_263] : memref<8x128xf32, #tpu.memory_space<vmem>>, vector<8x128xf32>
      tpu.vector_store %arg4[%c0_262, %c0_263], %631 {strides = array<i32>} : memref<8x128xf32, #tpu.memory_space<vmem>>, vector<8x128xf32>,
      %c0_264 = arith.constant 0 : index
      %c0_265 = arith.constant 0 : index
      %633 = vector.load %arg7[%c0_264, %c0_265] : memref<8x128xf32, #tpu.memory_space<vmem>>, vector<8x128xf32>
      %c0_266 = arith.constant 0 : index
      %c0_267 = arith.constant 0 : index
      %634 = vector.load %arg5[%c0_266, %c0_267] : memref<8x128xf32, #tpu.memory_space<vmem>>, vector<8x128xf32>
      tpu.vector_store %arg5[%c0_266, %c0_267], %633 {strides = array<i32>} : memref<8x128xf32, #tpu.memory_space<vmem>>, vector<8x128xf32>,
    } else {
    }
    return
  }
  func.func @transform_0(%arg0: i32) -> (i32, i32, i32) {
    %c0_i32 = arith.constant 0 : i32
    %c0_i32_0 = arith.constant 0 : i32
    %c0_i32_1 = arith.constant 0 : i32
    return %arg0, %c0_i32, %c0_i32_0 : i32, i32, i32
  }
  func.func @transform_1(%arg0: i32) -> (i32, i32) {
    %c0_i32 = arith.constant 0 : i32
    %c0_i32_0 = arith.constant 0 : i32
    %c0_i32_1 = arith.constant 0 : i32
    return %c0_i32, %c0_i32_0 : i32, i32
  }
  func.func @transform_2(%arg0: i32) -> (i32, i32, i32) {
    %c0_i32 = arith.constant 0 : i32
    %c0_i32_0 = arith.constant 0 : i32
    %c0_i32_1 = arith.constant 0 : i32
    return %arg0, %c0_i32, %c0_i32_0 : i32, i32, i32
  }
  func.func @transform_3(%arg0: i32) -> (i32, i32) {
    %c0_i32 = arith.constant 0 : i32
    %c0_i32_0 = arith.constant 0 : i32
    %c0_i32_1 = arith.constant 0 : i32
    return %c0_i32, %c0_i32_0 : i32, i32
  }
  func.func @transform_4(%arg0: i32) -> (i32, i32) {
    %c0_i32 = arith.constant 0 : i32
    %c0_i32_0 = arith.constant 0 : i32
    %c0_i32_1 = arith.constant 0 : i32
    return %c0_i32, %c0_i32_0 : i32, i32
  }
}

</mosaic_0001>

<llo_original>
// kernel: lstm_autoencoder_forward.4
$region0: #{lstm_autoencoder_forward.4}
  #allocation0 [shape = 'u32[]', space=smem, size = 0x4, offset = 0x4, fixed_abs, tag = 'smem constant byte address 0x4 - core index']
  #allocation1 [shape = 'u32[144,128]{1,0:T(1,128)}', space=vmem, size = 0x12000, scoped, tag = 'internal scratch']
  #allocation2 [shape = 'f32[8,128]{1,0:T(8,128)}', space=vmem, size = 0x1000, scoped, tag = 'scratch operand']
  #allocation3 [shape = 'f32[8,128]{1,0:T(8,128)}', space=vmem, size = 0x1000, scoped, tag = 'scratch operand']
  %s0 = inlined_call_operand.vmem [shape: f32[8,8,512], index: 0, kind: input, shape index: {}]
  %s1 = inlined_call_operand.vmem [shape: bf16[128,512], index: 1, kind: input, shape index: {}]
  %s2 = inlined_call_operand.vmem [shape: f32[8,8,128], index: 2, kind: output, shape index: {0}]
  %s3 = inlined_call_operand.vmem [shape: f32[8,128], index: 3, kind: output, shape index: {1}]
  %s4 = inlined_call_operand.hbm [shape: f32[8,128], index: 4, kind: output, shape index: {2}]
  %5 = xla_tuple %s2, %s3, %s4
  %s6 = sld [smem:[#allocation0]]
  $region42: #{lstm_autoencoder_forward.4} parent=0
    _
  %s8 = ssub.s32 1, %s6
  %s9 = scalar_select 0, %s8, %s6
  $region1: #{lstm_autoencoder_forward.4} parent=0
    #allocation4 [shape = 'u8[4096]{0}', space=vmem, size = 0x1000, scoped, tag = 'output window, operand 2, single buffered']
    #allocation5 [shape = 's32[1]{0}', space=sflag, size = 0x4, scoped, tag = 'scoped memory for lstm_autoencoder_forward.4']
    %10 = vsyncpa [#allocation5], 0
    // Predicated region
    $region2: #{lstm_autoencoder_forward.4} parent=1 // pred_check
      _
    $region3: #{lstm_autoencoder_forward.4} parent=1 // pred_check_branch
      %12 = sbr.rel (0) target = $region5
    $region4: #{lstm_autoencoder_forward.4} parent=1 // pred_region
      _
    $region5: #{lstm_autoencoder_forward.4} parent=1 // pred_fallthru
      _
    // Predicated region
    $region6: #{lstm_autoencoder_forward.4} parent=1 // pred_check
      _
    $region7: #{lstm_autoencoder_forward.4} parent=1 // pred_check_branch
      %14 = sbr.rel (0) target = $region9
    $region8: #{lstm_autoencoder_forward.4} parent=1 // pred_region
      _
    $region9: #{lstm_autoencoder_forward.4} parent=1 // pred_fallthru
      _
    %p16 = scmp.eq.s32.totalorder 0, 0
    // Predicated region
    $region10: #{lstm_autoencoder_forward.4} parent=1 // pred_check
      %p17 = pneg %p16
    $region11: #{lstm_autoencoder_forward.4} parent=1 // pred_check_branch
      %19 = sbr.rel (%p17) target = $region13
    $region12: #{lstm_autoencoder_forward.4} parent=1 // pred_region
      %20 = vst [vmem:[#allocation2] sm:$0xff] 0.0
      %21 = vst [vmem:[#allocation3] sm:$0xff] 0.0
    $region13: #{lstm_autoencoder_forward.4} parent=1 // pred_fallthru
      _
    %v22 = vld [vmem:[%s1] sm:$0xff]
    %v23 = vld [vmem:[%s1 + $0x8] sm:$0xff]
    %v24 = vld [vmem:[%s1 + $0x10] sm:$0xff]
    %v25 = vld [vmem:[%s1 + $0x18] sm:$0xff]
    %v26 = vld [vmem:[%s1 + $0x20] sm:$0xff]
    %v27 = vld [vmem:[%s1 + $0x28] sm:$0xff]
    %v28 = vld [vmem:[%s1 + $0x30] sm:$0xff]
    %v29 = vld [vmem:[%s1 + $0x38] sm:$0xff]
    %v30 = vld [vmem:[%s1 + $0x40] sm:$0xff]
    %v31 = vld [vmem:[%s1 + $0x48] sm:$0xff]
    %v32 = vld [vmem:[%s1 + $0x50] sm:$0xff]
    %v33 = vld [vmem:[%s1 + $0x58] sm:$0xff]
    %v34 = vld [vmem:[%s1 + $0x60] sm:$0xff]
    %v35 = vld [vmem:[%s1 + $0x68] sm:$0xff]
    %v36 = vld [vmem:[%s1 + $0x70] sm:$0xff]
    %v37 = vld [vmem:[%s1 + $0x78] sm:$0xff]
    %v38 = vld [vmem:[%s1 + $0x80] sm:$0xff]
    %v39 = vld [vmem:[%s1 + $0x88] sm:$0xff]
    %v40 = vld [vmem:[%s1 + $0x90] sm:$0xff]
    %v41 = vld [vmem:[%s1 + $0x98] sm:$0xff]
    %v42 = vld [vmem:[%s1 + $0xa0] sm:$0xff]
    %v43 = vld [vmem:[%s1 + $0xa8] sm:$0xff]
    %v44 = vld [vmem:[%s1 + $0xb0] sm:$0xff]
    %v45 = vld [vmem:[%s1 + $0xb8] sm:$0xff]
    %v46 = vld [vmem:[%s1 + $0xc0] sm:$0xff]
    %v47 = vld [vmem:[%s1 + $0xc8] sm:$0xff]
    %v48 = vld [vmem:[%s1 + $0xd0] sm:$0xff]
    %v49 = vld [vmem:[%s1 + $0xd8] sm:$0xff]
    %v50 = vld [vmem:[%s1 + $0xe0] sm:$0xff]
    %v51 = vld [vmem:[%s1 + $0xe8] sm:$0xff]
    %v52 = vld [vmem:[%s1 + $0xf0] sm:$0xff]
    %v53 = vld [vmem:[%s1 + $0xf8] sm:$0xff]
    %v54 = vld [vmem:[#allocation2] sm:$0xff]
    %v55 = vld [vmem:[#allocation3] sm:$0xff]
    %v56 = vld [vmem:[%s0] sm:$0xff]
    %v57 = vld [vmem:[%s0 + $0x8] sm:$0xff]
    %v58 = vld [vmem:[%s0 + $0x10] sm:$0xff]
    %v59 = vld [vmem:[%s0 + $0x18] sm:$0xff]
    %v60 = vpack.c.bf16 %v54, %v54
    %v93 = vunpack.c.l.b16 %v22
    %v94 = vunpack.c.h.b16 %v22
    %v95 = vunpack.c.l.b16 %v23
    %v96 = vunpack.c.h.b16 %v23
    %v97 = vunpack.c.l.b16 %v24
    %v98 = vunpack.c.h.b16 %v24
    %v99 = vunpack.c.l.b16 %v25
    %v100 = vunpack.c.h.b16 %v25
    %v101 = vunpack.c.l.b16 %v26
    %v102 = vunpack.c.h.b16 %v26
    %v103 = vunpack.c.l.b16 %v27
    %v104 = vunpack.c.h.b16 %v27
    %v105 = vunpack.c.l.b16 %v28
    %v106 = vunpack.c.h.b16 %v28
    %v107 = vunpack.c.l.b16 %v29
    %v108 = vunpack.c.h.b16 %v29
    %v109 = vunpack.c.l.b16 %v30
    %v110 = vunpack.c.h.b16 %v30
    %v111 = vunpack.c.l.b16 %v31
    %v112 = vunpack.c.h.b16 %v31
    %v113 = vunpack.c.l.b16 %v32
    %v114 = vunpack.c.h.b16 %v32
    %v115 = vunpack.c.l.b16 %v33
    %v116 = vunpack.c.h.b16 %v33
    %v117 = vunpack.c.l.b16 %v34
    %v118 = vunpack.c.h.b16 %v34
    %v119 = vunpack.c.l.b16 %v35
    %v120 = vunpack.c.h.b16 %v35
    %v121 = vunpack.c.l.b16 %v36
    %v122 = vunpack.c.h.b16 %v36
    %v123 = vunpack.c.l.b16 %v37
    %v124 = vunpack.c.h.b16 %v37
    %v125 = vunpack.c.l.b16 %v38
    %v126 = vunpack.c.h.b16 %v38
    %v127 = vunpack.c.l.b16 %v39
    %v128 = vunpack.c.h.b16 %v39
    %v129 = vunpack.c.l.b16 %v40
    %v130 = vunpack.c.h.b16 %v40
    %v131 = vunpack.c.l.b16 %v41
    %v132 = vunpack.c.h.b16 %v41
    %v133 = vunpack.c.l.b16 %v42
    %v134 = vunpack.c.h.b16 %v42
    %v135 = vunpack.c.l.b16 %v43
    %v136 = vunpack.c.h.b16 %v43
    %v137 = vunpack.c.l.b16 %v44
    %v138 = vunpack.c.h.b16 %v44
    %v139 = vunpack.c.l.b16 %v45
    %v140 = vunpack.c.h.b16 %v45
    %v141 = vunpack.c.l.b16 %v46
    %v142 = vunpack.c.h.b16 %v46
    %v143 = vunpack.c.l.b16 %v47
    %v144 = vunpack.c.h.b16 %v47
    %v145 = vunpack.c.l.b16 %v48
    %v146 = vunpack.c.h.b16 %v48
    %v147 = vunpack.c.l.b16 %v49
    %v148 = vunpack.c.h.b16 %v49
    %v149 = vunpack.c.l.b16 %v50
    %v150 = vunpack.c.h.b16 %v50
    %v151 = vunpack.c.l.b16 %v51
    %v152 = vunpack.c.h.b16 %v51
    %v153 = vunpack.c.l.b16 %v52
    %v154 = vunpack.c.h.b16 %v52
    %v155 = vunpack.c.l.b16 %v53
    %v156 = vunpack.c.h.b16 %v53
    %v157 = vpack.c.b16 %v97, %v93
    %v158 = vpack.c.b16 %v98, %v94
    %v159 = vpack.c.b16 %v99, %v95
    %v160 = vpack.c.b16 %v100, %v96
    %v161 = vpack.c.b16 %v105, %v101
    %v162 = vpack.c.b16 %v106, %v102
    %v163 = vpack.c.b16 %v107, %v103
    %v164 = vpack.c.b16 %v108, %v104
    %v165 = vpack.c.b16 %v113, %v109
    %v166 = vpack.c.b16 %v114, %v110
    %v167 = vpack.c.b16 %v115, %v111
    %v168 = vpack.c.b16 %v116, %v112
    %v169 = vpack.c.b16 %v121, %v117
    %v170 = vpack.c.b16 %v122, %v118
    %v171 = vpack.c.b16 %v123, %v119
    %v172 = vpack.c.b16 %v124, %v120
    %v173 = vpack.c.b16 %v129, %v125
    %v174 = vpack.c.b16 %v130, %v126
    %v175 = vpack.c.b16 %v131, %v127
    %v176 = vpack.c.b16 %v132, %v128
    %v177 = vpack.c.b16 %v137, %v133
    %v178 = vpack.c.b16 %v138, %v134
    %v179 = vpack.c.b16 %v139, %v135
    %v180 = vpack.c.b16 %v140, %v136
    %v181 = vpack.c.b16 %v145, %v141
    %v182 = vpack.c.b16 %v146, %v142
    %v183 = vpack.c.b16 %v147, %v143
    %v184 = vpack.c.b16 %v148, %v144
    %v185 = vpack.c.b16 %v153, %v149
    %v186 = vpack.c.b16 %v154, %v150
    %v187 = vpack.c.b16 %v155, %v151
    %v188 = vpack.c.b16 %v156, %v152
    %221 = vmatprep.subr.bf16.mxu0 %v158
    %222 = vmatpush1.bf16.msra.mxu0 %v157
    %223 = vmatprep.subr.bf16.mxu0 %v162
    %224 = vmatpush1.bf16.msra.mxu0 %v161
    %225 = vmatprep.subr.bf16.mxu0 %v166
    %226 = vmatpush1.bf16.msra.mxu0 %v165
    %227 = vmatprep.subr.bf16.mxu0 %v170
    %228 = vmatpush1.bf16.msra.mxu0 %v169
    %229 = vmatprep.subr.bf16.mxu0 %v174
    %230 = vmatpush1.bf16.msra.mxu0 %v173
    %231 = vmatprep.subr.bf16.mxu0 %v178
    %232 = vmatpush1.bf16.msra.mxu0 %v177
    %233 = vmatprep.subr.bf16.mxu0 %v182
    %234 = vmatpush1.bf16.msra.mxu0 %v181
    %235 = vmatprep.subr.bf16.mxu0 %v186
    %236 = vmatpush1.bf16.msra.mxu0 %v185
    %237 = vmatprep.subr.bf16.mxu0 0
    %238 = vmatpush1.bf16.msra.mxu0 0
    %239 = vmatprep.subr.bf16.mxu0 0
    %240 = vmatpush1.bf16.msra.mxu0 0
    %241 = vmatprep.subr.bf16.mxu0 0
    %242 = vmatpush1.bf16.msra.mxu0 0
    %243 = vmatprep.subr.bf16.mxu0 0
    %244 = vmatpush1.bf16.msra.mxu0 0
    %245 = vmatprep.subr.bf16.mxu0 0
    %246 = vmatpush1.bf16.msra.mxu0 0
    %247 = vmatprep.subr.bf16.mxu0 0
    %248 = vmatpush1.bf16.msra.mxu0 0
    %249 = vmatprep.subr.bf16.mxu0 0
    %250 = vmatpush1.bf16.msra.mxu0 0
    %251 = vmatprep.subr.bf16.mxu0 0
    %252 = vmatpush1.bf16.msra.mxu0 0
    %253 = vmatprep.mubr.bf16.mxu0 0
    %254 = vmatmul.mubr.bf16.gmra.mrb[0].mxu0 %v60
    %v255 = vpop.f32.mrb[0].mxu0
    %v256 = vadd.f32 0.0, %v255
    %v257 = vpop.f32.mrb[0].mxu0
    %v258 = vadd.f32 0.0, %v257
    %v259 = vpop.f32.mrb[0].mxu0
    %v260 = vpop.f32.mrb[0].mxu0
    %261 = vdwg.mxu0
    %262 = vmatprep.subr.bf16.mxu0 %v160
    %263 = vmatpush1.bf16.msra.mxu0 %v159
    %264 = vmatprep.subr.bf16.mxu0 %v164
    %265 = vmatpush1.bf16.msra.mxu0 %v163
    %266 = vmatprep.subr.bf16.mxu0 %v168
    %267 = vmatpush1.bf16.msra.mxu0 %v167
    %268 = vmatprep.subr.bf16.mxu0 %v172
    %269 = vmatpush1.bf16.msra.mxu0 %v171
    %270 = vmatprep.subr.bf16.mxu0 %v176
    %271 = vmatpush1.bf16.msra.mxu0 %v175
    %272 = vmatprep.subr.bf16.mxu0 %v180
    %273 = vmatpush1.bf16.msra.mxu0 %v179
    %274 = vmatprep.subr.bf16.mxu0 %v184
    %275 = vmatpush1.bf16.msra.mxu0 %v183
    %276 = vmatprep.subr.bf16.mxu0 %v188
    %277 = vmatpush1.bf16.msra.mxu0 %v187
    %278 = vmatprep.subr.bf16.mxu0 0
    %279 = vmatpush1.bf16.msra.mxu0 0
    %280 = vmatprep.subr.bf16.mxu0 0
    %281 = vmatpush1.bf16.msra.mxu0 0
    %282 = vmatprep.subr.bf16.mxu0 0
    %283 = vmatpush1.bf16.msra.mxu0 0
    %284 = vmatprep.subr.bf16.mxu0 0
    %285 = vmatpush1.bf16.msra.mxu0 0
    %286 = vmatprep.subr.bf16.mxu0 0
    %287 = vmatpush1.bf16.msra.mxu0 0
    %288 = vmatprep.subr.bf16.mxu0 0
    %289 = vmatpush1.bf16.msra.mxu0 0
    %290 = vmatprep.subr.bf16.mxu0 0
    %291 = vmatpush1.bf16.msra.mxu0 0
    %292 = vmatprep.subr.bf16.mxu0 0
    %293 = vmatpush1.bf16.msra.mxu0 0
    %294 = vmatprep.mubr.bf16.mxu0 0
    %295 = vmatmul.mubr.bf16.gmra.mrb[0].mxu0 %v60
    %v296 = vpop.f32.mrb[0].mxu0
    %v297 = vadd.f32 0.0, %v296
    %v298 = vpop.f32.mrb[0].mxu0
    %v299 = vadd.f32 0.0, %v298
    %v300 = vpop.f32.mrb[0].mxu0
    %v301 = vpop.f32.mrb[0].mxu0
    %302 = vdwg.mxu0
    %v303 = vadd.f32 %v56, %v256
    %v304 = vadd.f32 %v57, %v258
    %v305 = vadd.f32 %v58, %v297
    %v306 = vadd.f32 %v59, %v299
    %v307 = vxor.u32 %v303, 2147483648
    %v308 = vmul.f32 %v307, 1.442695
    %v309 = vpow.pop %v308
    %v310 = vadd.f32 %v309, 1.0
    %v311 = vrcp.pop %v310
    %v312 = vmul.f32 1.0, %v311
    %v313 = vxor.u32 %v304, 2147483648
    %v314 = vmul.f32 %v313, 1.442695
    %v315 = vpow.pop %v314
    %v316 = vadd.f32 %v315, 1.0
    %v317 = vrcp.pop %v316
    %v318 = vmul.f32 1.0, %v317
    %v319 = vtanh.pop %v305
    %v320 = vxor.u32 %v306, 2147483648
    %v321 = vmul.f32 %v320, 1.442695
    %v322 = vpow.pop %v321
    %v323 = vadd.f32 %v322, 1.0
    %v324 = vrcp.pop %v323
    %v325 = vmul.f32 1.0, %v324
    %v326 = vmul.f32 %v318, %v55
    %v327 = vmul.f32 %v312, %v319
    %v328 = vadd.f32 %v326, %v327
    %v329 = vtanh.pop %v328
    %v330 = vmul.f32 %v325, %v329
    %331 = vst [vmem:[#allocation2] sm:$0xff] %v330
    %332 = vst [vmem:[#allocation3] sm:$0xff] %v328
    %333 = vst [vmem:[%s2] sm:$0xff] %v330
    %v334 = vld [vmem:[#allocation2] sm:$0xff]
    %v335 = vld [vmem:[#allocation3] sm:$0xff]
    %s336 = scalar_lea.vmem %s0, 32
    %v337 = vld [vmem:[%s336] sm:$0xff]
    %v338 = vld [vmem:[%s336 + $0x8] sm:$0xff]
    %v339 = vld [vmem:[%s336 + $0x10] sm:$0xff]
    %v340 = vld [vmem:[%s336 + $0x18] sm:$0xff]
    %v341 = vpack.c.bf16 %v334, %v334
    %342 = vmatprep.subr.bf16.mxu0 %v158
    %343 = vmatpush1.bf16.msra.mxu0 %v157
    %344 = vmatprep.subr.bf16.mxu0 %v162
    %345 = vmatpush1.bf16.msra.mxu0 %v161
    %346 = vmatprep.subr.bf16.mxu0 %v166
    %347 = vmatpush1.bf16.msra.mxu0 %v165
    %348 = vmatprep.subr.bf16.mxu0 %v170
    %349 = vmatpush1.bf16.msra.mxu0 %v169
    %350 = vmatprep.subr.bf16.mxu0 %v174
    %351 = vmatpush1.bf16.msra.mxu0 %v173
    %352 = vmatprep.subr.bf16.mxu0 %v178
    %353 = vmatpush1.bf16.msra.mxu0 %v177
    %354 = vmatprep.subr.bf16.mxu0 %v182
    %355 = vmatpush1.bf16.msra.mxu0 %v181
    %356 = vmatprep.subr.bf16.mxu0 %v186
    %357 = vmatpush1.bf16.msra.mxu0 %v185
    %358 = vmatprep.subr.bf16.mxu0 0
    %359 = vmatpush1.bf16.msra.mxu0 0
    %360 = vmatprep.subr.bf16.mxu0 0
    %361 = vmatpush1.bf16.msra.mxu0 0
    %362 = vmatprep.subr.bf16.mxu0 0
    %363 = vmatpush1.bf16.msra.mxu0 0
    %364 = vmatprep.subr.bf16.mxu0 0
    %365 = vmatpush1.bf16.msra.mxu0 0
    %366 = vmatprep.subr.bf16.mxu0 0
    %367 = vmatpush1.bf16.msra.mxu0 0
    %368 = vmatprep.subr.bf16.mxu0 0
    %369 = vmatpush1.bf16.msra.mxu0 0
    %370 = vmatprep.subr.bf16.mxu0 0
    %371 = vmatpush1.bf16.msra.mxu0 0
    %372 = vmatprep.subr.bf16.mxu0 0
    %373 = vmatpush1.bf16.msra.mxu0 0
    %374 = vmatprep.mubr.bf16.mxu0 0
    %375 = vmatmul.mubr.bf16.gmra.mrb[0].mxu0 %v341
    %v376 = vpop.f32.mrb[0].mxu0
    %v377 = vadd.f32 0.0, %v376
    %v378 = vpop.f32.mrb[0].mxu0
    %v379 = vadd.f32 0.0, %v378
    %v380 = vpop.f32.mrb[0].mxu0
    %v381 = vpop.f32.mrb[0].mxu0
    %382 = vdwg.mxu0
    %383 = vmatprep.subr.bf16.mxu0 %v160
    %384 = vmatpush1.bf16.msra.mxu0 %v159
    %385 = vmatprep.subr.bf16.mxu0 %v164
    %386 = vmatpush1.bf16.msra.mxu0 %v163
    %387 = vmatprep.subr.bf16.mxu0 %v168
    %388 = vmatpush1.bf16.msra.mxu0 %v167
    %389 = vmatprep.subr.bf16.mxu0 %v172
    %390 = vmatpush1.bf16.msra.mxu0 %v171
    %391 = vmatprep.subr.bf16.mxu0 %v176
    %392 = vmatpush1.bf16.msra.mxu0 %v175
    %393 = vmatprep.subr.bf16.mxu0 %v180
    %394 = vmatpush1.bf16.msra.mxu0 %v179
    %395 = vmatprep.subr.bf16.mxu0 %v184
    %396 = vmatpush1.bf16.msra.mxu0 %v183
    %397 = vmatprep.subr.bf16.mxu0 %v188
    %398 = vmatpush1.bf16.msra.mxu0 %v187
    %399 = vmatprep.subr.bf16.mxu0 0
    %400 = vmatpush1.bf16.msra.mxu0 0
    %401 = vmatprep.subr.bf16.mxu0 0
    %402 = vmatpush1.bf16.msra.mxu0 0
    %403 = vmatprep.subr.bf16.mxu0 0
    %404 = vmatpush1.bf16.msra.mxu0 0
    %405 = vmatprep.subr.bf16.mxu0 0
    %406 = vmatpush1.bf16.msra.mxu0 0
    %407 = vmatprep.subr.bf16.mxu0 0
    %408 = vmatpush1.bf16.msra.mxu0 0
    %409 = vmatprep.subr.bf16.mxu0 0
    %410 = vmatpush1.bf16.msra.mxu0 0
    %411 = vmatprep.subr.bf16.mxu0 0
    %412 = vmatpush1.bf16.msra.mxu0 0
    %413 = vmatprep.subr.bf16.mxu0 0
    %414 = vmatpush1.bf16.msra.mxu0 0
    %415 = vmatprep.mubr.bf16.mxu0 0
    %416 = vmatmul.mubr.bf16.gmra.mrb[0].mxu0 %v341
    %v417 = vpop.f32.mrb[0].mxu0
    %v418 = vadd.f32 0.0, %v417
    %v419 = vpop.f32.mrb[0].mxu0
    %v420 = vadd.f32 0.0, %v419
    %v421 = vpop.f32.mrb[0].mxu0
    %v422 = vpop.f32.mrb[0].mxu0
    %423 = vdwg.mxu0
    %v424 = vadd.f32 %v337, %v377
    %v425 = vadd.f32 %v338, %v379
    %v426 = vadd.f32 %v339, %v418
    %v427 = vadd.f32 %v340, %v420
    %v428 = vxor.u32 %v424, 2147483648
    %v429 = vmul.f32 %v428, 1.442695
    %v430 = vpow.pop %v429
    %v431 = vadd.f32 %v430, 1.0
    %v432 = vrcp.pop %v431
    %v433 = vmul.f32 1.0, %v432
    %v434 = vxor.u32 %v425, 2147483648
    %v435 = vmul.f32 %v434, 1.442695
    %v436 = vpow.pop %v435
    %v437 = vadd.f32 %v436, 1.0
    %v438 = vrcp.pop %v437
    %v439 = vmul.f32 1.0, %v438
    %v440 = vtanh.pop %v426
    %v441 = vxor.u32 %v427, 2147483648
    %v442 = vmul.f32 %v441, 1.442695
    %v443 = vpow.pop %v442
    %v444 = vadd.f32 %v443, 1.0
    %v445 = vrcp.pop %v444
    %v446 = vmul.f32 1.0, %v445
    %v447 = vmul.f32 %v439, %v335
    %v448 = vmul.f32 %v433, %v440
    %v449 = vadd.f32 %v447, %v448
    %v450 = vtanh.pop %v449
    %v451 = vmul.f32 %v446, %v450
    %452 = vst [vmem:[#allocation2] sm:$0xff] %v451
    %453 = vst [vmem:[#allocation3] sm:$0xff] %v449
    %s454 = scalar_lea.vmem %s2, 8
    %455 = vst [vmem:[%s454] sm:$0xff] %v451
    %v456 = vld [vmem:[#allocation2] sm:$0xff]
    %v457 = vld [vmem:[#allocation3] sm:$0xff]
    %s458 = scalar_lea.vmem %s0, 64
    %v459 = vld [vmem:[%s458] sm:$0xff]
    %v460 = vld [vmem:[%s458 + $0x8] sm:$0xff]
    %v461 = vld [vmem:[%s458 + $0x10] sm:$0xff]
    %v462 = vld [vmem:[%s458 + $0x18] sm:$0xff]
    %v463 = vpack.c.bf16 %v456, %v456
    %464 = vmatprep.subr.bf16.mxu0 %v158
    %465 = vmatpush1.bf16.msra.mxu0 %v157
    %466 = vmatprep.subr.bf16.mxu0 %v162
    %467 = vmatpush1.bf16.msra.mxu0 %v161
    %468 = vmatprep.subr.bf16.mxu0 %v166
    %469 = vmatpush1.bf16.msra.mxu0 %v165
    %470 = vmatprep.subr.bf16.mxu0 %v170
    %471 = vmatpush1.bf16.msra.mxu0 %v169
    %472 = vmatprep.subr.bf16.mxu0 %v174
    %473 = vmatpush1.bf16.msra.mxu0 %v173
    %474 = vmatprep.subr.bf16.mxu0 %v178
    %475 = vmatpush1.bf16.msra.mxu0 %v177
    %476 = vmatprep.subr.bf16.mxu0 %v182
    %477 = vmatpush1.bf16.msra.mxu0 %v181
    %478 = vmatprep.subr.bf16.mxu0 %v186
    %479 = vmatpush1.bf16.msra.mxu0 %v185
    %480 = vmatprep.subr.bf16.mxu0 0
    %481 = vmatpush1.bf16.msra.mxu0 0
    %482 = vmatprep.subr.bf16.mxu0 0
    %483 = vmatpush1.bf16.msra.mxu0 0
    %484 = vmatprep.subr.bf16.mxu0 0
    %485 = vmatpush1.bf16.msra.mxu0 0
    %486 = vmatprep.subr.bf16.mxu0 0
    %487 = vmatpush1.bf16.msra.mxu0 0
    %488 = vmatprep.subr.bf16.mxu0 0
    %489 = vmatpush1.bf16.msra.mxu0 0
    %490 = vmatprep.subr.bf16.mxu0 0
    %491 = vmatpush1.bf16.msra.mxu0 0
    %492 = vmatprep.subr.bf16.mxu0 0
    %493 = vmatpush1.bf16.msra.mxu0 0
    %494 = vmatprep.subr.bf16.mxu0 0
    %495 = vmatpush1.bf16.msra.mxu0 0
    %496 = vmatprep.mubr.bf16.mxu0 0
    %497 = vmatmul.mubr.bf16.gmra.mrb[0].mxu0 %v463
    %v498 = vpop.f32.mrb[0].mxu0
    %v499 = vadd.f32 0.0, %v498
    %v500 = vpop.f32.mrb[0].mxu0
    %v501 = vadd.f32 0.0, %v500
    %v502 = vpop.f32.mrb[0].mxu0
    %v503 = vpop.f32.mrb[0].mxu0
    %504 = vdwg.mxu0
    %505 = vmatprep.subr.bf16.mxu0 %v160
    %506 = vmatpush1.bf16.msra.mxu0 %v159
    %507 = vmatprep.subr.bf16.mxu0 %v164
    %508 = vmatpush1.bf16.msra.mxu0 %v163
    %509 = vmatprep.subr.bf16.mxu0 %v168
    %510 = vmatpush1.bf16.msra.mxu0 %v167
    %511 = vmatprep.subr.bf16.mxu0 %v172
    %512 = vmatpush1.bf16.msra.mxu0 %v171
    %513 = vmatprep.subr.bf16.mxu0 %v176
    %514 = vmatpush1.bf16.msra.mxu0 %v175
    %515 = vmatprep.subr.bf16.mxu0 %v180
    %516 = vmatpush1.bf16.msra.mxu0 %v179
    %517 = vmatprep.subr.bf16.mxu0 %v184
    %518 = vmatpush1.bf16.msra.mxu0 %v183
    %519 = vmatprep.subr.bf16.mxu0 %v188
    %520 = vmatpush1.bf16.msra.mxu0 %v187
    %521 = vmatprep.subr.bf16.mxu0 0
    %522 = vmatpush1.bf16.msra.mxu0 0
    %523 = vmatprep.subr.bf16.mxu0 0
    %524 = vmatpush1.bf16.msra.mxu0 0
    %525 = vmatprep.subr.bf16.mxu0 0
    %526 = vmatpush1.bf16.msra.mxu0 0
    %527 = vmatprep.subr.bf16.mxu0 0
    %528 = vmatpush1.bf16.msra.mxu0 0
    %529 = vmatprep.subr.bf16.mxu0 0
    %530 = vmatpush1.bf16.msra.mxu0 0
    %531 = vmatprep.subr.bf16.mxu0 0
    %532 = vmatpush1.bf16.msra.mxu0 0
    %533 = vmatprep.subr.bf16.mxu0 0
    %534 = vmatpush1.bf16.msra.mxu0 0
    %535 = vmatprep.subr.bf16.mxu0 0
    %536 = vmatpush1.bf16.msra.mxu0 0
    %537 = vmatprep.mubr.bf16.mxu0 0
    %538 = vmatmul.mubr.bf16.gmra.mrb[0].mxu0 %v463
    %v539 = vpop.f32.mrb[0].mxu0
    %v540 = vadd.f32 0.0, %v539
    %v541 = vpop.f32.mrb[0].mxu0
    %v542 = vadd.f32 0.0, %v541
    %v543 = vpop.f32.mrb[0].mxu0
    %v544 = vpop.f32.mrb[0].mxu0
    %545 = vdwg.mxu0
    %v546 = vadd.f32 %v459, %v499
    %v547 = vadd.f32 %v460, %v501
    %v548 = vadd.f32 %v461, %v540
    %v549 = vadd.f32 %v462, %v542
    %v550 = vxor.u32 %v546, 2147483648
    %v551 = vmul.f32 %v550, 1.442695
    %v552 = vpow.pop %v551
    %v553 = vadd.f32 %v552, 1.0
    %v554 = vrcp.pop %v553
    %v555 = vmul.f32 1.0, %v554
    %v556 = vxor.u32 %v547, 2147483648
    %v557 = vmul.f32 %v556, 1.442695
    %v558 = vpow.pop %v557
    %v559 = vadd.f32 %v558, 1.0
    %v560 = vrcp.pop %v559
    %v561 = vmul.f32 1.0, %v560
    %v562 = vtanh.pop %v548
    %v563 = vxor.u32 %v549, 2147483648
    %v564 = vmul.f32 %v563, 1.442695
    %v565 = vpow.pop %v564
    %v566 = vadd.f32 %v565, 1.0
    %v567 = vrcp.pop %v566
    %v568 = vmul.f32 1.0, %v567
    %v569 = vmul.f32 %v561, %v457
    %v570 = vmul.f32 %v555, %v562
    %v571 = vadd.f32 %v569, %v570
    %v572 = vtanh.pop %v571
    %v573 = vmul.f32 %v568, %v572
    %574 = vst [vmem:[#allocation2] sm:$0xff] %v573
    %575 = vst [vmem:[#allocation3] sm:$0xff] %v571
    %s576 = scalar_lea.vmem %s2, 16
    %577 = vst [vmem:[%s576] sm:$0xff] %v573
    %v578 = vld [vmem:[#allocation2] sm:$0xff]
    %v579 = vld [vmem:[#allocation3] sm:$0xff]
    %s580 = scalar_lea.vmem %s0, 96
    %v581 = vld [vmem:[%s580] sm:$0xff]
    %v582 = vld [vmem:[%s580 + $0x8] sm:$0xff]
    %v583 = vld [vmem:[%s580 + $0x10] sm:$0xff]
    %v584 = vld [vmem:[%s580 + $0x18] sm:$0xff]
    %v585 = vpack.c.bf16 %v578, %v578
    %586 = vmatprep.subr.bf16.mxu0 %v158
    %587 = vmatpush1.bf16.msra.mxu0 %v157
    %588 = vmatprep.subr.bf16.mxu0 %v162
    %589 = vmatpush1.bf16.msra.mxu0 %v161
    %590 = vmatprep.subr.bf16.mxu0 %v166
    %591 = vmatpush1.bf16.msra.mxu0 %v165
    %592 = vmatprep.subr.bf16.mxu0 %v170
    %593 = vmatpush1.bf16.msra.mxu0 %v169
    %594 = vmatprep.subr.bf16.mxu0 %v174
    %595 = vmatpush1.bf16.msra.mxu0 %v173
    %596 = vmatprep.subr.bf16.mxu0 %v178
    %597 = vmatpush1.bf16.msra.mxu0 %v177
    %598 = vmatprep.subr.bf16.mxu0 %v182
    %599 = vmatpush1.bf16.msra.mxu0 %v181
    %600 = vmatprep.subr.bf16.mxu0 %v186
    %601 = vmatpush1.bf16.msra.mxu0 %v185
    %602 = vmatprep.subr.bf16.mxu0 0
    %603 = vmatpush1.bf16.msra.mxu0 0
    %604 = vmatprep.subr.bf16.mxu0 0
    %605 = vmatpush1.bf16.msra.mxu0 0
    %606 = vmatprep.subr.bf16.mxu0 0
    %607 = vmatpush1.bf16.msra.mxu0 0
    %608 = vmatprep.subr.bf16.mxu0 0
    %609 = vmatpush1.bf16.msra.mxu0 0
    %610 = vmatprep.subr.bf16.mxu0 0
    %611 = vmatpush1.bf16.msra.mxu0 0
    %612 = vmatprep.subr.bf16.mxu0 0
    %613 = vmatpush1.bf16.msra.mxu0 0
    %614 = vmatprep.subr.bf16.mxu0 0
    %615 = vmatpush1.bf16.msra.mxu0 0
    %616 = vmatprep.subr.bf16.mxu0 0
    %617 = vmatpush1.bf16.msra.mxu0 0
    %618 = vmatprep.mubr.bf16.mxu0 0
    %619 = vmatmul.mubr.bf16.gmra.mrb[0].mxu0 %v585
    %v620 = vpop.f32.mrb[0].mxu0
    %v621 = vadd.f32 0.0, %v620
    %v622 = vpop.f32.mrb[0].mxu0
    %v623 = vadd.f32 0.0, %v622
    %v624 = vpop.f32.mrb[0].mxu0
    %v625 = vpop.f32.mrb[0].mxu0
    %626 = vdwg.mxu0
    %627 = vmatprep.subr.bf16.mxu0 %v160
    %628 = vmatpush1.bf16.msra.mxu0 %v159
    %629 = vmatprep.subr.bf16.mxu0 %v164
    %630 = vmatpush1.bf16.msra.mxu0 %v163
    %631 = vmatprep.subr.bf16.mxu0 %v168
    %632 = vmatpush1.bf16.msra.mxu0 %v167
    %633 = vmatprep.subr.bf16.mxu0 %v172
    %634 = vmatpush1.bf16.msra.mxu0 %v171
    %635 = vmatprep.subr.bf16.mxu0 %v176
    %636 = vmatpush1.bf16.msra.mxu0 %v175
    %637 = vmatprep.subr.bf16.mxu0 %v180
    %638 = vmatpush1.bf16.msra.mxu0 %v179
    %639 = vmatprep.subr.bf16.mxu0 %v184
    %640 = vmatpush1.bf16.msra.mxu0 %v183
    %641 = vmatprep.subr.bf16.mxu0 %v188
    %642 = vmatpush1.bf16.msra.mxu0 %v187
    %643 = vmatprep.subr.bf16.mxu0 0
    %644 = vmatpush1.bf16.msra.mxu0 0
    %645 = vmatprep.subr.bf16.mxu0 0
    %646 = vmatpush1.bf16.msra.mxu0 0
    %647 = vmatprep.subr.bf16.mxu0 0
    %648 = vmatpush1.bf16.msra.mxu0 0
    %649 = vmatprep.subr.bf16.mxu0 0
    %650 = vmatpush1.bf16.msra.mxu0 0
    %651 = vmatprep.subr.bf16.mxu0 0
    %652 = vmatpush1.bf16.msra.mxu0 0
    %653 = vmatprep.subr.bf16.mxu0 0
    %654 = vmatpush1.bf16.msra.mxu0 0
    %655 = vmatprep.subr.bf16.mxu0 0
    %656 = vmatpush1.bf16.msra.mxu0 0
    %657 = vmatprep.subr.bf16.mxu0 0
    %658 = vmatpush1.bf16.msra.mxu0 0
    %659 = vmatprep.mubr.bf16.mxu0 0
    %660 = vmatmul.mubr.bf16.gmra.mrb[0].mxu0 %v585
    %v661 = vpop.f32.mrb[0].mxu0
    %v662 = vadd.f32 0.0, %v661
    %v663 = vpop.f32.mrb[0].mxu0
    %v664 = vadd.f32 0.0, %v663
    %v665 = vpop.f32.mrb[0].mxu0
    %v666 = vpop.f32.mrb[0].mxu0
    %667 = vdwg.mxu0
    %v668 = vadd.f32 %v581, %v621
    %v669 = vadd.f32 %v582, %v623
    %v670 = vadd.f32 %v583, %v662
    %v671 = vadd.f32 %v584, %v664
    %v672 = vxor.u32 %v668, 2147483648
    %v673 = vmul.f32 %v672, 1.442695
    %v674 = vpow.pop %v673
    %v675 = vadd.f32 %v674, 1.0
    %v676 = vrcp.pop %v675
    %v677 = vmul.f32 1.0, %v676
    %v678 = vxor.u32 %v669, 2147483648
    %v679 = vmul.f32 %v678, 1.442695
    %v680 = vpow.pop %v679
    %v681 = vadd.f32 %v680, 1.0
    %v682 = vrcp.pop %v681
    %v683 = vmul.f32 1.0, %v682
    %v684 = vtanh.pop %v670
    %v685 = vxor.u32 %v671, 2147483648
    %v686 = vmul.f32 %v685, 1.442695
    %v687 = vpow.pop %v686
    %v688 = vadd.f32 %v687, 1.0
    %v689 = vrcp.pop %v688
    %v690 = vmul.f32 1.0, %v689
    %v691 = vmul.f32 %v683, %v579
    %v692 = vmul.f32 %v677, %v684
    %v693 = vadd.f32 %v691, %v692
    %v694 = vtanh.pop %v693
    %v695 = vmul.f32 %v690, %v694
    %696 = vst [vmem:[#allocation2] sm:$0xff] %v695
    %697 = vst [vmem:[#allocation3] sm:$0xff] %v693
    %s698 = scalar_lea.vmem %s2, 24
    %699 = vst [vmem:[%s698] sm:$0xff] %v695
    %v700 = vld [vmem:[#allocation2] sm:$0xff]
    %v701 = vld [vmem:[#allocation3] sm:$0xff]
    %s702 = scalar_lea.vmem %s0, 128
    %v703 = vld [vmem:[%s702] sm:$0xff]
    %v704 = vld [vmem:[%s702 + $0x8] sm:$0xff]
    %v705 = vld [vmem:[%s702 + $0x10] sm:$0xff]
    %v706 = vld [vmem:[%s702 + $0x18] sm:$0xff]
    %v707 = vpack.c.bf16 %v700, %v700
    %708 = vmatprep.subr.bf16.mxu0 %v158
    %709 = vmatpush1.bf16.msra.mxu0 %v157
    %710 = vmatprep.subr.bf16.mxu0 %v162
    %711 = vmatpush1.bf16.msra.mxu0 %v161
    %712 = vmatprep.subr.bf16.mxu0 %v166
    %713 = vmatpush1.bf16.msra.mxu0 %v165
    %714 = vmatprep.subr.bf16.mxu0 %v170
    %715 = vmatpush1.bf16.msra.mxu0 %v169
    %716 = vmatprep.subr.bf16.mxu0 %v174
    %717 = vmatpush1.bf16.msra.mxu0 %v173
    %718 = vmatprep.subr.bf16.mxu0 %v178
    %719 = vmatpush1.bf16.msra.mxu0 %v177
    %720 = vmatprep.subr.bf16.mxu0 %v182
    %721 = vmatpush1.bf16.msra.mxu0 %v181
    %722 = vmatprep.subr.bf16.mxu0 %v186
    %723 = vmatpush1.bf16.msra.mxu0 %v185
    %724 = vmatprep.subr.bf16.mxu0 0
    %725 = vmatpush1.bf16.msra.mxu0 0
    %726 = vmatprep.subr.bf16.mxu0 0
    %727 = vmatpush1.bf16.msra.mxu0 0
    %728 = vmatprep.subr.bf16.mxu0 0
    %729 = vmatpush1.bf16.msra.mxu0 0
    %730 = vmatprep.subr.bf16.mxu0 0
    %731 = vmatpush1.bf16.msra.mxu0 0
    %732 = vmatprep.subr.bf16.mxu0 0
    %733 = vmatpush1.bf16.msra.mxu0 0
    %734 = vmatprep.subr.bf16.mxu0 0
    %735 = vmatpush1.bf16.msra.mxu0 0
    %736 = vmatprep.subr.bf16.mxu0 0
    %737 = vmatpush1.bf16.msra.mxu0 0
    %738 = vmatprep.subr.bf16.mxu0 0
    %739 = vmatpush1.bf16.msra.mxu0 0
    %740 = vmatprep.mubr.bf16.mxu0 0
    %741 = vmatmul.mubr.bf16.gmra.mrb[0].mxu0 %v707
    %v742 = vpop.f32.mrb[0].mxu0
    %v743 = vadd.f32 0.0, %v742
    %v744 = vpop.f32.mrb[0].mxu0
    %v745 = vadd.f32 0.0, %v744
    %v746 = vpop.f32.mrb[0].mxu0
    %v747 = vpop.f32.mrb[0].mxu0
    %748 = vdwg.mxu0
    %749 = vmatprep.subr.bf16.mxu0 %v160
    %750 = vmatpush1.bf16.msra.mxu0 %v159
    %751 = vmatprep.subr.bf16.mxu0 %v164
    %752 = vmatpush1.bf16.msra.mxu0 %v163
    %753 = vmatprep.subr.bf16.mxu0 %v168
    %754 = vmatpush1.bf16.msra.mxu0 %v167
    %755 = vmatprep.subr.bf16.mxu0 %v172
    %756 = vmatpush1.bf16.msra.mxu0 %v171
    %757 = vmatprep.subr.bf16.mxu0 %v176
    %758 = vmatpush1.bf16.msra.mxu0 %v175
    %759 = vmatprep.subr.bf16.mxu0 %v180
    %760 = vmatpush1.bf16.msra.mxu0 %v179
    %761 = vmatprep.subr.bf16.mxu0 %v184
    %762 = vmatpush1.bf16.msra.mxu0 %v183
    %763 = vmatprep.subr.bf16.mxu0 %v188
    %764 = vmatpush1.bf16.msra.mxu0 %v187
    %765 = vmatprep.subr.bf16.mxu0 0
    %766 = vmatpush1.bf16.msra.mxu0 0
    %767 = vmatprep.subr.bf16.mxu0 0
    %768 = vmatpush1.bf16.msra.mxu0 0
    %769 = vmatprep.subr.bf16.mxu0 0
    %770 = vmatpush1.bf16.msra.mxu0 0
    %771 = vmatprep.subr.bf16.mxu0 0
    %772 = vmatpush1.bf16.msra.mxu0 0
    %773 = vmatprep.subr.bf16.mxu0 0
    %774 = vmatpush1.bf16.msra.mxu0 0
    %775 = vmatprep.subr.bf16.mxu0 0
    %776 = vmatpush1.bf16.msra.mxu0 0
    %777 = vmatprep.subr.bf16.mxu0 0
    %778 = vmatpush1.bf16.msra.mxu0 0
    %779 = vmatprep.subr.bf16.mxu0 0
    %780 = vmatpush1.bf16.msra.mxu0 0
    %781 = vmatprep.mubr.bf16.mxu0 0
    %782 = vmatmul.mubr.bf16.gmra.mrb[0].mxu0 %v707
    %v783 = vpop.f32.mrb[0].mxu0
    %v784 = vadd.f32 0.0, %v783
    %v785 = vpop.f32.mrb[0].mxu0
    %v786 = vadd.f32 0.0, %v785
    %v787 = vpop.f32.mrb[0].mxu0
    %v788 = vpop.f32.mrb[0].mxu0
    %789 = vdwg.mxu0
    %v790 = vadd.f32 %v703, %v743
    %v791 = vadd.f32 %v704, %v745
    %v792 = vadd.f32 %v705, %v784
    %v793 = vadd.f32 %v706, %v786
    %v794 = vxor.u32 %v790, 2147483648
    %v795 = vmul.f32 %v794, 1.442695
    %v796 = vpow.pop %v795
    %v797 = vadd.f32 %v796, 1.0
    %v798 = vrcp.pop %v797
    %v799 = vmul.f32 1.0, %v798
    %v800 = vxor.u32 %v791, 2147483648
    %v801 = vmul.f32 %v800, 1.442695
    %v802 = vpow.pop %v801
    %v803 = vadd.f32 %v802, 1.0
    %v804 = vrcp.pop %v803
    %v805 = vmul.f32 1.0, %v804
    %v806 = vtanh.pop %v792
    %v807 = vxor.u32 %v793, 2147483648
    %v808 = vmul.f32 %v807, 1.442695
    %v809 = vpow.pop %v808
    %v810 = vadd.f32 %v809, 1.0
    %v811 = vrcp.pop %v810
    %v812 = vmul.f32 1.0, %v811
    %v813 = vmul.f32 %v805, %v701
    %v814 = vmul.f32 %v799, %v806
    %v815 = vadd.f32 %v813, %v814
    %v816 = vtanh.pop %v815
    %v817 = vmul.f32 %v812, %v816
    %818 = vst [vmem:[#allocation2] sm:$0xff] %v817
    %819 = vst [vmem:[#allocation3] sm:$0xff] %v815
    %s820 = scalar_lea.vmem %s2, 32
    %821 = vst [vmem:[%s820] sm:$0xff] %v817
    %v822 = vld [vmem:[#allocation2] sm:$0xff]
    %v823 = vld [vmem:[#allocation3] sm:$0xff]
    %s824 = scalar_lea.vmem %s0, 160
    %v825 = vld [vmem:[%s824] sm:$0xff]
    %v826 = vld [vmem:[%s824 + $0x8] sm:$0xff]
    %v827 = vld [vmem:[%s824 + $0x10] sm:$0xff]
    %v828 = vld [vmem:[%s824 + $0x18] sm:$0xff]
    %v829 = vpack.c.bf16 %v822, %v822
    %830 = vmatprep.subr.bf16.mxu0 %v158
    %831 = vmatpush1.bf16.msra.mxu0 %v157
    %832 = vmatprep.subr.bf16.mxu0 %v162
    %833 = vmatpush1.bf16.msra.mxu0 %v161
    %834 = vmatprep.subr.bf16.mxu0 %v166
    %835 = vmatpush1.bf16.msra.mxu0 %v165
    %836 = vmatprep.subr.bf16.mxu0 %v170
    %837 = vmatpush1.bf16.msra.mxu0 %v169
    %838 = vmatprep.subr.bf16.mxu0 %v174
    %839 = vmatpush1.bf16.msra.mxu0 %v173
    %840 = vmatprep.subr.bf16.mxu0 %v178
    %841 = vmatpush1.bf16.msra.mxu0 %v177
    %842 = vmatprep.subr.bf16.mxu0 %v182
    %843 = vmatpush1.bf16.msra.mxu0 %v181
    %844 = vmatprep.subr.bf16.mxu0 %v186
    %845 = vmatpush1.bf16.msra.mxu0 %v185
    %846 = vmatprep.subr.bf16.mxu0 0
    %847 = vmatpush1.bf16.msra.mxu0 0
    %848 = vmatprep.subr.bf16.mxu0 0
    %849 = vmatpush1.bf16.msra.mxu0 0
    %850 = vmatprep.subr.bf16.mxu0 0
    %851 = vmatpush1.bf16.msra.mxu0 0
    %852 = vmatprep.subr.bf16.mxu0 0
    %853 = vmatpush1.bf16.msra.mxu0 0
    %854 = vmatprep.subr.bf16.mxu0 0
    %855 = vmatpush1.bf16.msra.mxu0 0
    %856 = vmatprep.subr.bf16.mxu0 0
    %857 = vmatpush1.bf16.msra.mxu0 0
    %858 = vmatprep.subr.bf16.mxu0 0
    %859 = vmatpush1.bf16.msra.mxu0 0
    %860 = vmatprep.subr.bf16.mxu0 0
    %861 = vmatpush1.bf16.msra.mxu0 0
    %862 = vmatprep.mubr.bf16.mxu0 0
    %863 = vmatmul.mubr.bf16.gmra.mrb[0].mxu0 %v829
    %v864 = vpop.f32.mrb[0].mxu0
    %v865 = vadd.f32 0.0, %v864
    %v866 = vpop.f32.mrb[0].mxu0
    %v867 = vadd.f32 0.0, %v866
    %v868 = vpop.f32.mrb[0].mxu0
    %v869 = vpop.f32.mrb[0].mxu0
    %870 = vdwg.mxu0
    %871 = vmatprep.subr.bf16.mxu0 %v160
    %872 = vmatpush1.bf16.msra.mxu0 %v159
    %873 = vmatprep.subr.bf16.mxu0 %v164
    %874 = vmatpush1.bf16.msra.mxu0 %v163
    %875 = vmatprep.subr.bf16.mxu0 %v168
    %876 = vmatpush1.bf16.msra.mxu0 %v167
    %877 = vmatprep.subr.bf16.mxu0 %v172
    %878 = vmatpush1.bf16.msra.mxu0 %v171
    %879 = vmatprep.subr.bf16.mxu0 %v176
    %880 = vmatpush1.bf16.msra.mxu0 %v175
    %881 = vmatprep.subr.bf16.mxu0 %v180
    %882 = vmatpush1.bf16.msra.mxu0 %v179
    %883 = vmatprep.subr.bf16.mxu0 %v184
    %884 = vmatpush1.bf16.msra.mxu0 %v183
    %885 = vmatprep.subr.bf16.mxu0 %v188
    %886 = vmatpush1.bf16.msra.mxu0 %v187
    %887 = vmatprep.subr.bf16.mxu0 0
    %888 = vmatpush1.bf16.msra.mxu0 0
    %889 = vmatprep.subr.bf16.mxu0 0
    %890 = vmatpush1.bf16.msra.mxu0 0
    %891 = vmatprep.subr.bf16.mxu0 0
    %892 = vmatpush1.bf16.msra.mxu0 0
    %893 = vmatprep.subr.bf16.mxu0 0
    %894 = vmatpush1.bf16.msra.mxu0 0
    %895 = vmatprep.subr.bf16.mxu0 0
    %896 = vmatpush1.bf16.msra.mxu0 0
    %897 = vmatprep.subr.bf16.mxu0 0
    %898 = vmatpush1.bf16.msra.mxu0 0
    %899 = vmatprep.subr.bf16.mxu0 0
    %900 = vmatpush1.bf16.msra.mxu0 0
    %901 = vmatprep.subr.bf16.mxu0 0
    %902 = vmatpush1.bf16.msra.mxu0 0
    %903 = vmatprep.mubr.bf16.mxu0 0
    %904 = vmatmul.mubr.bf16.gmra.mrb[0].mxu0 %v829
    %v905 = vpop.f32.mrb[0].mxu0
    %v906 = vadd.f32 0.0, %v905
    %v907 = vpop.f32.mrb[0].mxu0
    %v908 = vadd.f32 0.0, %v907
    %v909 = vpop.f32.mrb[0].mxu0
    %v910 = vpop.f32.mrb[0].mxu0
    %911 = vdwg.mxu0
    %v912 = vadd.f32 %v825, %v865
    %v913 = vadd.f32 %v826, %v867
    %v914 = vadd.f32 %v827, %v906
    %v915 = vadd.f32 %v828, %v908
    %v916 = vxor.u32 %v912, 2147483648
    %v917 = vmul.f32 %v916, 1.442695
    %v918 = vpow.pop %v917
    %v919 = vadd.f32 %v918, 1.0
    %v920 = vrcp.pop %v919
    %v921 = vmul.f32 1.0, %v920
    %v922 = vxor.u32 %v913, 2147483648
    %v923 = vmul.f32 %v922, 1.442695
    %v924 = vpow.pop %v923
    %v925 = vadd.f32 %v924, 1.0
    %v926 = vrcp.pop %v925
    %v927 = vmul.f32 1.0, %v926
    %v928 = vtanh.pop %v914
    %v929 = vxor.u32 %v915, 2147483648
    %v930 = vmul.f32 %v929, 1.442695
    %v931 = vpow.pop %v930
    %v932 = vadd.f32 %v931, 1.0
    %v933 = vrcp.pop %v932
    %v934 = vmul.f32 1.0, %v933
    %v935 = vmul.f32 %v927, %v823
    %v936 = vmul.f32 %v921, %v928
    %v937 = vadd.f32 %v935, %v936
    %v938 = vtanh.pop %v937
    %v939 = vmul.f32 %v934, %v938
    %940 = vst [vmem:[#allocation2] sm:$0xff] %v939
    %941 = vst [vmem:[#allocation3] sm:$0xff] %v937
    %s942 = scalar_lea.vmem %s2, 40
    %943 = vst [vmem:[%s942] sm:$0xff] %v939
    %v944 = vld [vmem:[#allocation2] sm:$0xff]
    %v945 = vld [vmem:[#allocation3] sm:$0xff]
    %s946 = scalar_lea.vmem %s0, 192
    %v947 = vld [vmem:[%s946] sm:$0xff]
    %v948 = vld [vmem:[%s946 + $0x8] sm:$0xff]
    %v949 = vld [vmem:[%s946 + $0x10] sm:$0xff]
    %v950 = vld [vmem:[%s946 + $0x18] sm:$0xff]
    %v951 = vpack.c.bf16 %v944, %v944
    %952 = vmatprep.subr.bf16.mxu0 %v158
    %953 = vmatpush1.bf16.msra.mxu0 %v157
    %954 = vmatprep.subr.bf16.mxu0 %v162
    %955 = vmatpush1.bf16.msra.mxu0 %v161
    %956 = vmatprep.subr.bf16.mxu0 %v166
    %957 = vmatpush1.bf16.msra.mxu0 %v165
    %958 = vmatprep.subr.bf16.mxu0 %v170
    %959 = vmatpush1.bf16.msra.mxu0 %v169
    %960 = vmatprep.subr.bf16.mxu0 %v174
    %961 = vmatpush1.bf16.msra.mxu0 %v173
    %962 = vmatprep.subr.bf16.mxu0 %v178
    %963 = vmatpush1.bf16.msra.mxu0 %v177
    %964 = vmatprep.subr.bf16.mxu0 %v182
    %965 = vmatpush1.bf16.msra.mxu0 %v181
    %966 = vmatprep.subr.bf16.mxu0 %v186
    %967 = vmatpush1.bf16.msra.mxu0 %v185
    %968 = vmatprep.subr.bf16.mxu0 0
    %969 = vmatpush1.bf16.msra.mxu0 0
    %970 = vmatprep.subr.bf16.mxu0 0
    %971 = vmatpush1.bf16.msra.mxu0 0
    %972 = vmatprep.subr.bf16.mxu0 0
    %973 = vmatpush1.bf16.msra.mxu0 0
    %974 = vmatprep.subr.bf16.mxu0 0
    %975 = vmatpush1.bf16.msra.mxu0 0
    %976 = vmatprep.subr.bf16.mxu0 0
    %977 = vmatpush1.bf16.msra.mxu0 0
    %978 = vmatprep.subr.bf16.mxu0 0
    %979 = vmatpush1.bf16.msra.mxu0 0
    %980 = vmatprep.subr.bf16.mxu0 0
    %981 = vmatpush1.bf16.msra.mxu0 0
    %982 = vmatprep.subr.bf16.mxu0 0
    %983 = vmatpush1.bf16.msra.mxu0 0
    %984 = vmatprep.mubr.bf16.mxu0 0
    %985 = vmatmul.mubr.bf16.gmra.mrb[0].mxu0 %v951
    %v986 = vpop.f32.mrb[0].mxu0
    %v987 = vadd.f32 0.0, %v986
    %v988 = vpop.f32.mrb[0].mxu0
    %v989 = vadd.f32 0.0, %v988
    %v990 = vpop.f32.mrb[0].mxu0
    %v991 = vpop.f32.mrb[0].mxu0
    %992 = vdwg.mxu0
    %993 = vmatprep.subr.bf16.mxu0 %v160
    %994 = vmatpush1.bf16.msra.mxu0 %v159
    %995 = vmatprep.subr.bf16.mxu0 %v164
    %996 = vmatpush1.bf16.msra.mxu0 %v163
    %997 = vmatprep.subr.bf16.mxu0 %v168
    %998 = vmatpush1.bf16.msra.mxu0 %v167
    %999 = vmatprep.subr.bf16.mxu0 %v172
    %1000 = vmatpush1.bf16.msra.mxu0 %v171
    %1001 = vmatprep.subr.bf16.mxu0 %v176
    %1002 = vmatpush1.bf16.msra.mxu0 %v175
    %1003 = vmatprep.subr.bf16.mxu0 %v180
    %1004 = vmatpush1.bf16.msra.mxu0 %v179
    %1005 = vmatprep.subr.bf16.mxu0 %v184
    %1006 = vmatpush1.bf16.msra.mxu0 %v183
    %1007 = vmatprep.subr.bf16.mxu0 %v188
    %1008 = vmatpush1.bf16.msra.mxu0 %v187
    %1009 = vmatprep.subr.bf16.mxu0 0
    %1010 = vmatpush1.bf16.msra.mxu0 0
    %1011 = vmatprep.subr.bf16.mxu0 0
    %1012 = vmatpush1.bf16.msra.mxu0 0
    %1013 = vmatprep.subr.bf16.mxu0 0
    %1014 = vmatpush1.bf16.msra.mxu0 0
    %1015 = vmatprep.subr.bf16.mxu0 0
    %1016 = vmatpush1.bf16.msra.mxu0 0
    %1017 = vmatprep.subr.bf16.mxu0 0
    %1018 = vmatpush1.bf16.msra.mxu0 0
    %1019 = vmatprep.subr.bf16.mxu0 0
    %1020 = vmatpush1.bf16.msra.mxu0 0
    %1021 = vmatprep.subr.bf16.mxu0 0
    %1022 = vmatpush1.bf16.msra.mxu0 0
    %1023 = vmatprep.subr.bf16.mxu0 0
    %1024 = vmatpush1.bf16.msra.mxu0 0
    %1025 = vmatprep.mubr.bf16.mxu0 0
    %1026 = vmatmul.mubr.bf16.gmra.mrb[0].mxu0 %v951
    %v1027 = vpop.f32.mrb[0].mxu0
    %v1028 = vadd.f32 0.0, %v1027
    %v1029 = vpop.f32.mrb[0].mxu0
    %v1030 = vadd.f32 0.0, %v1029
    %v1031 = vpop.f32.mrb[0].mxu0
    %v1032 = vpop.f32.mrb[0].mxu0
    %1033 = vdwg.mxu0
    %v1034 = vadd.f32 %v947, %v987
    %v1035 = vadd.f32 %v948, %v989
    %v1036 = vadd.f32 %v949, %v1028
    %v1037 = vadd.f32 %v950, %v1030
    %v1038 = vxor.u32 %v1034, 2147483648
    %v1039 = vmul.f32 %v1038, 1.442695
    %v1040 = vpow.pop %v1039
    %v1041 = vadd.f32 %v1040, 1.0
    %v1042 = vrcp.pop %v1041
    %v1043 = vmul.f32 1.0, %v1042
    %v1044 = vxor.u32 %v1035, 2147483648
    %v1045 = vmul.f32 %v1044, 1.442695
    %v1046 = vpow.pop %v1045
    %v1047 = vadd.f32 %v1046, 1.0
    %v1048 = vrcp.pop %v1047
    %v1049 = vmul.f32 1.0, %v1048
    %v1050 = vtanh.pop %v1036
    %v1051 = vxor.u32 %v1037, 2147483648
    %v1052 = vmul.f32 %v1051, 1.442695
    %v1053 = vpow.pop %v1052
    %v1054 = vadd.f32 %v1053, 1.0
    %v1055 = vrcp.pop %v1054
    %v1056 = vmul.f32 1.0, %v1055
    %v1057 = vmul.f32 %v1049, %v945
    %v1058 = vmul.f32 %v1043, %v1050
    %v1059 = vadd.f32 %v1057, %v1058
    %v1060 = vtanh.pop %v1059
    %v1061 = vmul.f32 %v1056, %v1060
    %1062 = vst [vmem:[#allocation2] sm:$0xff] %v1061
    %1063 = vst [vmem:[#allocation3] sm:$0xff] %v1059
    %s1064 = scalar_lea.vmem %s2, 48
    %1065 = vst [vmem:[%s1064] sm:$0xff] %v1061
    %v1066 = vld [vmem:[#allocation2] sm:$0xff]
    %v1067 = vld [vmem:[#allocation3] sm:$0xff]
    %s1068 = scalar_lea.vmem %s0, 224
    %v1069 = vld [vmem:[%s1068] sm:$0xff]
    %v1070 = vld [vmem:[%s1068 + $0x8] sm:$0xff]
    %v1071 = vld [vmem:[%s1068 + $0x10] sm:$0xff]
    %v1072 = vld [vmem:[%s1068 + $0x18] sm:$0xff]
    %v1073 = vpack.c.bf16 %v1066, %v1066
    %1074 = vmatprep.subr.bf16.mxu0 %v158
    %1075 = vmatpush1.bf16.msra.mxu0 %v157
    %1076 = vmatprep.subr.bf16.mxu0 %v162
    %1077 = vmatpush1.bf16.msra.mxu0 %v161
    %1078 = vmatprep.subr.bf16.mxu0 %v166
    %1079 = vmatpush1.bf16.msra.mxu0 %v165
    %1080 = vmatprep.subr.bf16.mxu0 %v170
    %1081 = vmatpush1.bf16.msra.mxu0 %v169
    %1082 = vmatprep.subr.bf16.mxu0 %v174
    %1083 = vmatpush1.bf16.msra.mxu0 %v173
    %1084 = vmatprep.subr.bf16.mxu0 %v178
    %1085 = vmatpush1.bf16.msra.mxu0 %v177
    %1086 = vmatprep.subr.bf16.mxu0 %v182
    %1087 = vmatpush1.bf16.msra.mxu0 %v181
    %1088 = vmatprep.subr.bf16.mxu0 %v186
    %1089 = vmatpush1.bf16.msra.mxu0 %v185
    %1090 = vmatprep.subr.bf16.mxu0 0
    %1091 = vmatpush1.bf16.msra.mxu0 0
    %1092 = vmatprep.subr.bf16.mxu0 0
    %1093 = vmatpush1.bf16.msra.mxu0 0
    %1094 = vmatprep.subr.bf16.mxu0 0
    %1095 = vmatpush1.bf16.msra.mxu0 0
    %1096 = vmatprep.subr.bf16.mxu0 0
    %1097 = vmatpush1.bf16.msra.mxu0 0
    %1098 = vmatprep.subr.bf16.mxu0 0
    %1099 = vmatpush1.bf16.msra.mxu0 0
    %1100 = vmatprep.subr.bf16.mxu0 0
    %1101 = vmatpush1.bf16.msra.mxu0 0
    %1102 = vmatprep.subr.bf16.mxu0 0
    %1103 = vmatpush1.bf16.msra.mxu0 0
    %1104 = vmatprep.subr.bf16.mxu0 0
    %1105 = vmatpush1.bf16.msra.mxu0 0
    %1106 = vmatprep.mubr.bf16.mxu0 0
    %1107 = vmatmul.mubr.bf16.gmra.mrb[0].mxu0 %v1073
    %v1108 = vpop.f32.mrb[0].mxu0
    %v1109 = vadd.f32 0.0, %v1108
    %v1110 = vpop.f32.mrb[0].mxu0
    %v1111 = vadd.f32 0.0, %v1110
    %v1112 = vpop.f32.mrb[0].mxu0
    %v1113 = vpop.f32.mrb[0].mxu0
    %1114 = vdwg.mxu0
    %1115 = vmatprep.subr.bf16.mxu0 %v160
    %1116 = vmatpush1.bf16.msra.mxu0 %v159
    %1117 = vmatprep.subr.bf16.mxu0 %v164
    %1118 = vmatpush1.bf16.msra.mxu0 %v163
    %1119 = vmatprep.subr.bf16.mxu0 %v168
    %1120 = vmatpush1.bf16.msra.mxu0 %v167
    %1121 = vmatprep.subr.bf16.mxu0 %v172
    %1122 = vmatpush1.bf16.msra.mxu0 %v171
    %1123 = vmatprep.subr.bf16.mxu0 %v176
    %1124 = vmatpush1.bf16.msra.mxu0 %v175
    %1125 = vmatprep.subr.bf16.mxu0 %v180
    %1126 = vmatpush1.bf16.msra.mxu0 %v179
    %1127 = vmatprep.subr.bf16.mxu0 %v184
    %1128 = vmatpush1.bf16.msra.mxu0 %v183
    %1129 = vmatprep.subr.bf16.mxu0 %v188
    %1130 = vmatpush1.bf16.msra.mxu0 %v187
    %1131 = vmatprep.subr.bf16.mxu0 0
    %1132 = vmatpush1.bf16.msra.mxu0 0
    %1133 = vmatprep.subr.bf16.mxu0 0
    %1134 = vmatpush1.bf16.msra.mxu0 0
    %1135 = vmatprep.subr.bf16.mxu0 0
    %1136 = vmatpush1.bf16.msra.mxu0 0
    %1137 = vmatprep.subr.bf16.mxu0 0
    %1138 = vmatpush1.bf16.msra.mxu0 0
    %1139 = vmatprep.subr.bf16.mxu0 0
    %1140 = vmatpush1.bf16.msra.mxu0 0
    %1141 = vmatprep.subr.bf16.mxu0 0
    %1142 = vmatpush1.bf16.msra.mxu0 0
    %1143 = vmatprep.subr.bf16.mxu0 0
    %1144 = vmatpush1.bf16.msra.mxu0 0
    %1145 = vmatprep.subr.bf16.mxu0 0
    %1146 = vmatpush1.bf16.msra.mxu0 0
    %1147 = vmatprep.mubr.bf16.mxu0 0
    %1148 = vmatmul.mubr.bf16.gmra.mrb[0].mxu0 %v1073
    %v1149 = vpop.f32.mrb[0].mxu0
    %v1150 = vadd.f32 0.0, %v1149
    %v1151 = vpop.f32.mrb[0].mxu0
    %v1152 = vadd.f32 0.0, %v1151
    %v1153 = vpop.f32.mrb[0].mxu0
    %v1154 = vpop.f32.mrb[0].mxu0
    %1155 = vdwg.mxu0
    %v1156 = vadd.f32 %v1069, %v1109
    %v1157 = vadd.f32 %v1070, %v1111
    %v1158 = vadd.f32 %v1071, %v1150
    %v1159 = vadd.f32 %v1072, %v1152
    %v1160 = vxor.u32 %v1156, 2147483648
    %v1161 = vmul.f32 %v1160, 1.442695
    %v1162 = vpow.pop %v1161
    %v1163 = vadd.f32 %v1162, 1.0
    %v1164 = vrcp.pop %v1163
    %v1165 = vmul.f32 1.0, %v1164
    %v1166 = vxor.u32 %v1157, 2147483648
    %v1167 = vmul.f32 %v1166, 1.442695
    %v1168 = vpow.pop %v1167
    %v1169 = vadd.f32 %v1168, 1.0
    %v1170 = vrcp.pop %v1169
    %v1171 = vmul.f32 1.0, %v1170
    %v1172 = vtanh.pop %v1158
    %v1173 = vxor.u32 %v1159, 2147483648
    %v1174 = vmul.f32 %v1173, 1.442695
    %v1175 = vpow.pop %v1174
    %v1176 = vadd.f32 %v1175, 1.0
    %v1177 = vrcp.pop %v1176
    %v1178 = vmul.f32 1.0, %v1177
    %v1179 = vmul.f32 %v1171, %v1067
    %v1180 = vmul.f32 %v1165, %v1172
    %v1181 = vadd.f32 %v1179, %v1180
    %v1182 = vtanh.pop %v1181
    %v1183 = vmul.f32 %v1178, %v1182
    %1184 = vst [vmem:[#allocation2] sm:$0xff] %v1183
    %1185 = vst [vmem:[#allocation3] sm:$0xff] %v1181
    %s1186 = scalar_lea.vmem %s2, 56
    %1187 = vst [vmem:[%s1186] sm:$0xff] %v1183
    // Predicated region
    $region14: #{lstm_autoencoder_forward.4} parent=1 // pred_check
      %p1188 = pneg %p16
    $region15: #{lstm_autoencoder_forward.4} parent=1 // pred_check_branch
      %1190 = sbr.rel (%p1188) target = $region17
    $region16: #{lstm_autoencoder_forward.4} parent=1 // pred_region
      %v1191 = vld [vmem:[#allocation2] sm:$0xff]
      %1192 = vst [vmem:[%s3] sm:$0xff] %v1191
      %v1193 = vld [vmem:[#allocation3] sm:$0xff]
      %1194 = vst [vmem:[#allocation4] sm:$0xff] %v1193
    $region17: #{lstm_autoencoder_forward.4} parent=1 // pred_fallthru
      _
    // Predicated region
    $region18: #{lstm_autoencoder_forward.4} parent=1 // pred_check
      _
    $region19: #{lstm_autoencoder_forward.4} parent=1 // pred_check_branch
      %1196 = sbr.rel (0) target = $region21
    $region20: #{lstm_autoencoder_forward.4} parent=1 // pred_region
      _
    $region21: #{lstm_autoencoder_forward.4} parent=1 // pred_fallthru
      _
    // Predicated region
    $region22: #{lstm_autoencoder_forward.4} parent=1 // pred_check
      _
    $region23: #{lstm_autoencoder_forward.4} parent=1 // pred_check_branch
      %1198 = sbr.rel (0) target = $region25
    $region24: #{lstm_autoencoder_forward.4} parent=1 // pred_region
      _
    $region25: #{lstm_autoencoder_forward.4} parent=1 // pred_fallthru
      _
    // Predicated region
    $region26: #{lstm_autoencoder_forward.4} parent=1 // pred_check
      _
    $region27: #{lstm_autoencoder_forward.4} parent=1 // pred_check_branch
      %1200 = sbr.rel (0) target = $region29
    $region28: #{lstm_autoencoder_forward.4} parent=1 // pred_region
      %s1202 = ssub.s32 128, 128
      %1203 = vsyncadd [#allocation5], %s1202
      %s1205 = sshll.u32 [#allocation4], 4
      %s1206 = int_to_ptr.vmem [resolvable:$true] %s1205
      %1208 = dma.vmem_to_hbm [thread:$0]  %s1206, 128, %s4, [#allocation5]
    $region29: #{lstm_autoencoder_forward.4} parent=1 // pred_fallthru
      _
    // Predicated region
    $region30: #{lstm_autoencoder_forward.4} parent=1 // pred_check
      _
    $region31: #{lstm_autoencoder_forward.4} parent=1 // pred_check_branch
      %1210 = sbr.rel (0) target = $region33
    $region32: #{lstm_autoencoder_forward.4} parent=1 // pred_region
      _
    $region33: #{lstm_autoencoder_forward.4} parent=1 // pred_fallthru
      _
    // Predicated region
    $region34: #{lstm_autoencoder_forward.4} parent=1 // pred_check
      _
    $region35: #{lstm_autoencoder_forward.4} parent=1 // pred_check_branch
      %1212 = sbr.rel (0) target = $region37
    $region36: #{lstm_autoencoder_forward.4} parent=1 // pred_region
      _
    $region37: #{lstm_autoencoder_forward.4} parent=1 // pred_fallthru
      _
    // Predicated region
    $region38: #{lstm_autoencoder_forward.4} parent=1 // pred_check
      _
    $region39: #{lstm_autoencoder_forward.4} parent=1 // pred_check_branch
      %1214 = sbr.rel (0) target = $region41
    $region40: #{lstm_autoencoder_forward.4} parent=1 // pred_region
      %1215 = dma.done [#allocation5], 128
    $region41: #{lstm_autoencoder_forward.4} parent=1 // pred_fallthru
      _
    %1216 = vsyncpa [#allocation5], 1

// kernel: lstm_autoencoder_forward.5
$region0: #{lstm_autoencoder_forward.5}
  #allocation0 [shape = 'u32[]', space=smem, size = 0x4, offset = 0x4, fixed_abs, tag = 'smem constant byte address 0x4 - core index']
  #allocation1 [shape = 'u32[144,128]{1,0:T(1,128)}', space=vmem, size = 0x12000, scoped, tag = 'internal scratch']
  #allocation2 [shape = 'f32[8,128]{1,0:T(8,128)}', space=vmem, size = 0x1000, scoped, tag = 'scratch operand']
  #allocation3 [shape = 'f32[8,128]{1,0:T(8,128)}', space=vmem, size = 0x1000, scoped, tag = 'scratch operand']
  %s0 = inlined_call_operand.vmem [shape: f32[8,8,512], index: 0, kind: input, shape index: {}]
  %s1 = inlined_call_operand.vmem [shape: bf16[128,512], index: 1, kind: input, shape index: {}]
  %s2 = inlined_call_operand.hbm [shape: f32[8,8,128], index: 2, kind: output, shape index: {0}]
  %s3 = inlined_call_operand.vmem [shape: f32[8,128], index: 3, kind: output, shape index: {1}]
  %s4 = inlined_call_operand.hbm [shape: f32[8,128], index: 4, kind: output, shape index: {2}]
  %5 = xla_tuple %s2, %s3, %s4
  %s6 = sld [smem:[#allocation0]]
  $region42: #{lstm_autoencoder_forward.5} parent=0
    _
  %s8 = ssub.s32 1, %s6
  %s9 = scalar_select 0, %s8, %s6
  $region1: #{lstm_autoencoder_forward.5} parent=0
    #allocation4 [shape = 'u8[32768]{0}', space=vmem, size = 0x8000, scoped, tag = 'output window, operand 0, single buffered']
    #allocation5 [shape = 's32[1]{0}', space=sflag, size = 0x4, scoped, tag = 'scoped memory for lstm_autoencoder_forward.5']
    #allocation6 [shape = 'u8[4096]{0}', space=vmem, size = 0x1000, scoped, tag = 'output window, operand 2, single buffered']
    #allocation7 [shape = 's32[1]{0}', space=sflag, size = 0x4, scoped, tag = 'scoped memory for lstm_autoencoder_forward.5']
    %10 = vsyncpa [#allocation5], 0
    %11 = vsyncpa [#allocation7], 0
    // Predicated region
    $region2: #{lstm_autoencoder_forward.5} parent=1 // pred_check
      _
    $region3: #{lstm_autoencoder_forward.5} parent=1 // pred_check_branch
      %13 = sbr.rel (0) target = $region5
    $region4: #{lstm_autoencoder_forward.5} parent=1 // pred_region
      _
    $region5: #{lstm_autoencoder_forward.5} parent=1 // pred_fallthru
      _
    // Predicated region
    $region6: #{lstm_autoencoder_forward.5} parent=1 // pred_check
      _
    $region7: #{lstm_autoencoder_forward.5} parent=1 // pred_check_branch
      %15 = sbr.rel (0) target = $region9
    $region8: #{lstm_autoencoder_forward.5} parent=1 // pred_region
      _
    $region9: #{lstm_autoencoder_forward.5} parent=1 // pred_fallthru
      _
    %p17 = scmp.eq.s32.totalorder 0, 0
    // Predicated region
    $region10: #{lstm_autoencoder_forward.5} parent=1 // pred_check
      %p18 = pneg %p17
    $region11: #{lstm_autoencoder_forward.5} parent=1 // pred_check_branch
      %20 = sbr.rel (%p18) target = $region13
    $region12: #{lstm_autoencoder_forward.5} parent=1 // pred_region
      %21 = vst [vmem:[#allocation2] sm:$0xff] 0.0
      %22 = vst [vmem:[#allocation3] sm:$0xff] 0.0
    $region13: #{lstm_autoencoder_forward.5} parent=1 // pred_fallthru
      _
    %v23 = vld [vmem:[%s1] sm:$0xff]
    %v24 = vld [vmem:[%s1 + $0x8] sm:$0xff]
    %v25 = vld [vmem:[%s1 + $0x10] sm:$0xff]
    %v26 = vld [vmem:[%s1 + $0x18] sm:$0xff]
    %v27 = vld [vmem:[%s1 + $0x20] sm:$0xff]
    %v28 = vld [vmem:[%s1 + $0x28] sm:$0xff]
    %v29 = vld [vmem:[%s1 + $0x30] sm:$0xff]
    %v30 = vld [vmem:[%s1 + $0x38] sm:$0xff]
    %v31 = vld [vmem:[%s1 + $0x40] sm:$0xff]
    %v32 = vld [vmem:[%s1 + $0x48] sm:$0xff]
    %v33 = vld [vmem:[%s1 + $0x50] sm:$0xff]
    %v34 = vld [vmem:[%s1 + $0x58] sm:$0xff]
    %v35 = vld [vmem:[%s1 + $0x60] sm:$0xff]
    %v36 = vld [vmem:[%s1 + $0x68] sm:$0xff]
    %v37 = vld [vmem:[%s1 + $0x70] sm:$0xff]
    %v38 = vld [vmem:[%s1 + $0x78] sm:$0xff]
    %v39 = vld [vmem:[%s1 + $0x80] sm:$0xff]
    %v40 = vld [vmem:[%s1 + $0x88] sm:$0xff]
    %v41 = vld [vmem:[%s1 + $0x90] sm:$0xff]
    %v42 = vld [vmem:[%s1 + $0x98] sm:$0xff]
    %v43 = vld [vmem:[%s1 + $0xa0] sm:$0xff]
    %v44 = vld [vmem:[%s1 + $0xa8] sm:$0xff]
    %v45 = vld [vmem:[%s1 + $0xb0] sm:$0xff]
    %v46 = vld [vmem:[%s1 + $0xb8] sm:$0xff]
    %v47 = vld [vmem:[%s1 + $0xc0] sm:$0xff]
    %v48 = vld [vmem:[%s1 + $0xc8] sm:$0xff]
    %v49 = vld [vmem:[%s1 + $0xd0] sm:$0xff]
    %v50 = vld [vmem:[%s1 + $0xd8] sm:$0xff]
    %v51 = vld [vmem:[%s1 + $0xe0] sm:$0xff]
    %v52 = vld [vmem:[%s1 + $0xe8] sm:$0xff]
    %v53 = vld [vmem:[%s1 + $0xf0] sm:$0xff]
    %v54 = vld [vmem:[%s1 + $0xf8] sm:$0xff]
    %v55 = vld [vmem:[#allocation2] sm:$0xff]
    %v56 = vld [vmem:[#allocation3] sm:$0xff]
    %v57 = vld [vmem:[%s0] sm:$0xff]
    %v58 = vld [vmem:[%s0 + $0x8] sm:$0xff]
    %v59 = vld [vmem:[%s0 + $0x10] sm:$0xff]
    %v60 = vld [vmem:[%s0 + $0x18] sm:$0xff]
    %v61 = vpack.c.bf16 %v55, %v55
    %v94 = vunpack.c.l.b16 %v23
    %v95 = vunpack.c.h.b16 %v23
    %v96 = vunpack.c.l.b16 %v24
    %v97 = vunpack.c.h.b16 %v24
    %v98 = vunpack.c.l.b16 %v25
    %v99 = vunpack.c.h.b16 %v25
    %v100 = vunpack.c.l.b16 %v26
    %v101 = vunpack.c.h.b16 %v26
    %v102 = vunpack.c.l.b16 %v27
    %v103 = vunpack.c.h.b16 %v27
    %v104 = vunpack.c.l.b16 %v28
    %v105 = vunpack.c.h.b16 %v28
    %v106 = vunpack.c.l.b16 %v29
    %v107 = vunpack.c.h.b16 %v29
    %v108 = vunpack.c.l.b16 %v30
    %v109 = vunpack.c.h.b16 %v30
    %v110 = vunpack.c.l.b16 %v31
    %v111 = vunpack.c.h.b16 %v31
    %v112 = vunpack.c.l.b16 %v32
    %v113 = vunpack.c.h.b16 %v32
    %v114 = vunpack.c.l.b16 %v33
    %v115 = vunpack.c.h.b16 %v33
    %v116 = vunpack.c.l.b16 %v34
    %v117 = vunpack.c.h.b16 %v34
    %v118 = vunpack.c.l.b16 %v35
    %v119 = vunpack.c.h.b16 %v35
    %v120 = vunpack.c.l.b16 %v36
    %v121 = vunpack.c.h.b16 %v36
    %v122 = vunpack.c.l.b16 %v37
    %v123 = vunpack.c.h.b16 %v37
    %v124 = vunpack.c.l.b16 %v38
    %v125 = vunpack.c.h.b16 %v38
    %v126 = vunpack.c.l.b16 %v39
    %v127 = vunpack.c.h.b16 %v39
    %v128 = vunpack.c.l.b16 %v40
    %v129 = vunpack.c.h.b16 %v40
    %v130 = vunpack.c.l.b16 %v41
    %v131 = vunpack.c.h.b16 %v41
    %v132 = vunpack.c.l.b16 %v42
    %v133 = vunpack.c.h.b16 %v42
    %v134 = vunpack.c.l.b16 %v43
    %v135 = vunpack.c.h.b16 %v43
    %v136 = vunpack.c.l.b16 %v44
    %v137 = vunpack.c.h.b16 %v44
    %v138 = vunpack.c.l.b16 %v45
    %v139 = vunpack.c.h.b16 %v45
    %v140 = vunpack.c.l.b16 %v46
    %v141 = vunpack.c.h.b16 %v46
    %v142 = vunpack.c.l.b16 %v47
    %v143 = vunpack.c.h.b16 %v47
    %v144 = vunpack.c.l.b16 %v48
    %v145 = vunpack.c.h.b16 %v48
    %v146 = vunpack.c.l.b16 %v49
    %v147 = vunpack.c.h.b16 %v49
    %v148 = vunpack.c.l.b16 %v50
    %v149 = vunpack.c.h.b16 %v50
    %v150 = vunpack.c.l.b16 %v51
    %v151 = vunpack.c.h.b16 %v51
    %v152 = vunpack.c.l.b16 %v52
    %v153 = vunpack.c.h.b16 %v52
    %v154 = vunpack.c.l.b16 %v53
    %v155 = vunpack.c.h.b16 %v53
    %v156 = vunpack.c.l.b16 %v54
    %v157 = vunpack.c.h.b16 %v54
    %v158 = vpack.c.b16 %v98, %v94
    %v159 = vpack.c.b16 %v99, %v95
    %v160 = vpack.c.b16 %v100, %v96
    %v161 = vpack.c.b16 %v101, %v97
    %v162 = vpack.c.b16 %v106, %v102
    %v163 = vpack.c.b16 %v107, %v103
    %v164 = vpack.c.b16 %v108, %v104
    %v165 = vpack.c.b16 %v109, %v105
    %v166 = vpack.c.b16 %v114, %v110
    %v167 = vpack.c.b16 %v115, %v111
    %v168 = vpack.c.b16 %v116, %v112
    %v169 = vpack.c.b16 %v117, %v113
    %v170 = vpack.c.b16 %v122, %v118
    %v171 = vpack.c.b16 %v123, %v119
    %v172 = vpack.c.b16 %v124, %v120
    %v173 = vpack.c.b16 %v125, %v121
    %v174 = vpack.c.b16 %v130, %v126
    %v175 = vpack.c.b16 %v131, %v127
    %v176 = vpack.c.b16 %v132, %v128
    %v177 = vpack.c.b16 %v133, %v129
    %v178 = vpack.c.b16 %v138, %v134
    %v179 = vpack.c.b16 %v139, %v135
    %v180 = vpack.c.b16 %v140, %v136
    %v181 = vpack.c.b16 %v141, %v137
    %v182 = vpack.c.b16 %v146, %v142
    %v183 = vpack.c.b16 %v147, %v143
    %v184 = vpack.c.b16 %v148, %v144
    %v185 = vpack.c.b16 %v149, %v145
    %v186 = vpack.c.b16 %v154, %v150
    %v187 = vpack.c.b16 %v155, %v151
    %v188 = vpack.c.b16 %v156, %v152
    %v189 = vpack.c.b16 %v157, %v153
    %222 = vmatprep.subr.bf16.mxu0 %v159
    %223 = vmatpush1.bf16.msra.mxu0 %v158
    %224 = vmatprep.subr.bf16.mxu0 %v163
    %225 = vmatpush1.bf16.msra.mxu0 %v162
    %226 = vmatprep.subr.bf16.mxu0 %v167
    %227 = vmatpush1.bf16.msra.mxu0 %v166
    %228 = vmatprep.subr.bf16.mxu0 %v171
    %229 = vmatpush1.bf16.msra.mxu0 %v170
    %230 = vmatprep.subr.bf16.mxu0 %v175
    %231 = vmatpush1.bf16.msra.mxu0 %v174
    %232 = vmatprep.subr.bf16.mxu0 %v179
    %233 = vmatpush1.bf16.msra.mxu0 %v178
    %234 = vmatprep.subr.bf16.mxu0 %v183
    %235 = vmatpush1.bf16.msra.mxu0 %v182
    %236 = vmatprep.subr.bf16.mxu0 %v187
    %237 = vmatpush1.bf16.msra.mxu0 %v186
    %238 = vmatprep.subr.bf16.mxu0 0
    %239 = vmatpush1.bf16.msra.mxu0 0
    %240 = vmatprep.subr.bf16.mxu0 0
    %241 = vmatpush1.bf16.msra.mxu0 0
    %242 = vmatprep.subr.bf16.mxu0 0
    %243 = vmatpush1.bf16.msra.mxu0 0
    %244 = vmatprep.subr.bf16.mxu0 0
    %245 = vmatpush1.bf16.msra.mxu0 0
    %246 = vmatprep.subr.bf16.mxu0 0
    %247 = vmatpush1.bf16.msra.mxu0 0
    %248 = vmatprep.subr.bf16.mxu0 0
    %249 = vmatpush1.bf16.msra.mxu0 0
    %250 = vmatprep.subr.bf16.mxu0 0
    %251 = vmatpush1.bf16.msra.mxu0 0
    %252 = vmatprep.subr.bf16.mxu0 0
    %253 = vmatpush1.bf16.msra.mxu0 0
    %254 = vmatprep.mubr.bf16.mxu0 0
    %255 = vmatmul.mubr.bf16.gmra.mrb[0].mxu0 %v61
    %v256 = vpop.f32.mrb[0].mxu0
    %v257 = vadd.f32 0.0, %v256
    %v258 = vpop.f32.mrb[0].mxu0
    %v259 = vadd.f32 0.0, %v258
    %v260 = vpop.f32.mrb[0].mxu0
    %v261 = vpop.f32.mrb[0].mxu0
    %262 = vdwg.mxu0
    %263 = vmatprep.subr.bf16.mxu0 %v161
    %264 = vmatpush1.bf16.msra.mxu0 %v160
    %265 = vmatprep.subr.bf16.mxu0 %v165
    %266 = vmatpush1.bf16.msra.mxu0 %v164
    %267 = vmatprep.subr.bf16.mxu0 %v169
    %268 = vmatpush1.bf16.msra.mxu0 %v168
    %269 = vmatprep.subr.bf16.mxu0 %v173
    %270 = vmatpush1.bf16.msra.mxu0 %v172
    %271 = vmatprep.subr.bf16.mxu0 %v177
    %272 = vmatpush1.bf16.msra.mxu0 %v176
    %273 = vmatprep.subr.bf16.mxu0 %v181
    %274 = vmatpush1.bf16.msra.mxu0 %v180
    %275 = vmatprep.subr.bf16.mxu0 %v185
    %276 = vmatpush1.bf16.msra.mxu0 %v184
    %277 = vmatprep.subr.bf16.mxu0 %v189
    %278 = vmatpush1.bf16.msra.mxu0 %v188
    %279 = vmatprep.subr.bf16.mxu0 0
    %280 = vmatpush1.bf16.msra.mxu0 0
    %281 = vmatprep.subr.bf16.mxu0 0
    %282 = vmatpush1.bf16.msra.mxu0 0
    %283 = vmatprep.subr.bf16.mxu0 0
    %284 = vmatpush1.bf16.msra.mxu0 0
    %285 = vmatprep.subr.bf16.mxu0 0
    %286 = vmatpush1.bf16.msra.mxu0 0
    %287 = vmatprep.subr.bf16.mxu0 0
    %288 = vmatpush1.bf16.msra.mxu0 0
    %289 = vmatprep.subr.bf16.mxu0 0
    %290 = vmatpush1.bf16.msra.mxu0 0
    %291 = vmatprep.subr.bf16.mxu0 0
    %292 = vmatpush1.bf16.msra.mxu0 0
    %293 = vmatprep.subr.bf16.mxu0 0
    %294 = vmatpush1.bf16.msra.mxu0 0
    %295 = vmatprep.mubr.bf16.mxu0 0
    %296 = vmatmul.mubr.bf16.gmra.mrb[0].mxu0 %v61
    %v297 = vpop.f32.mrb[0].mxu0
    %v298 = vadd.f32 0.0, %v297
    %v299 = vpop.f32.mrb[0].mxu0
    %v300 = vadd.f32 0.0, %v299
    %v301 = vpop.f32.mrb[0].mxu0
    %v302 = vpop.f32.mrb[0].mxu0
    %303 = vdwg.mxu0
    %v304 = vadd.f32 %v57, %v257
    %v305 = vadd.f32 %v58, %v259
    %v306 = vadd.f32 %v59, %v298
    %v307 = vadd.f32 %v60, %v300
    %v308 = vxor.u32 %v304, 2147483648
    %v309 = vmul.f32 %v308, 1.442695
    %v310 = vpow.pop %v309
    %v311 = vadd.f32 %v310, 1.0
    %v312 = vrcp.pop %v311
    %v313 = vmul.f32 1.0, %v312
    %v314 = vxor.u32 %v305, 2147483648
    %v315 = vmul.f32 %v314, 1.442695
    %v316 = vpow.pop %v315
    %v317 = vadd.f32 %v316, 1.0
    %v318 = vrcp.pop %v317
    %v319 = vmul.f32 1.0, %v318
    %v320 = vtanh.pop %v306
    %v321 = vxor.u32 %v307, 2147483648
    %v322 = vmul.f32 %v321, 1.442695
    %v323 = vpow.pop %v322
    %v324 = vadd.f32 %v323, 1.0
    %v325 = vrcp.pop %v324
    %v326 = vmul.f32 1.0, %v325
    %v327 = vmul.f32 %v319, %v56
    %v328 = vmul.f32 %v313, %v320
    %v329 = vadd.f32 %v327, %v328
    %v330 = vtanh.pop %v329
    %v331 = vmul.f32 %v326, %v330
    %332 = vst [vmem:[#allocation2] sm:$0xff] %v331
    %333 = vst [vmem:[#allocation3] sm:$0xff] %v329
    %334 = vst [vmem:[#allocation4] sm:$0xff] %v331
    %v335 = vld [vmem:[#allocation2] sm:$0xff]
    %v336 = vld [vmem:[#allocation3] sm:$0xff]
    %s337 = scalar_lea.vmem %s0, 32
    %v338 = vld [vmem:[%s337] sm:$0xff]
    %v339 = vld [vmem:[%s337 + $0x8] sm:$0xff]
    %v340 = vld [vmem:[%s337 + $0x10] sm:$0xff]
    %v341 = vld [vmem:[%s337 + $0x18] sm:$0xff]
    %v342 = vpack.c.bf16 %v335, %v335
    %343 = vmatprep.subr.bf16.mxu0 %v159
    %344 = vmatpush1.bf16.msra.mxu0 %v158
    %345 = vmatprep.subr.bf16.mxu0 %v163
    %346 = vmatpush1.bf16.msra.mxu0 %v162
    %347 = vmatprep.subr.bf16.mxu0 %v167
    %348 = vmatpush1.bf16.msra.mxu0 %v166
    %349 = vmatprep.subr.bf16.mxu0 %v171
    %350 = vmatpush1.bf16.msra.mxu0 %v170
    %351 = vmatprep.subr.bf16.mxu0 %v175
    %352 = vmatpush1.bf16.msra.mxu0 %v174
    %353 = vmatprep.subr.bf16.mxu0 %v179
    %354 = vmatpush1.bf16.msra.mxu0 %v178
    %355 = vmatprep.subr.bf16.mxu0 %v183
    %356 = vmatpush1.bf16.msra.mxu0 %v182
    %357 = vmatprep.subr.bf16.mxu0 %v187
    %358 = vmatpush1.bf16.msra.mxu0 %v186
    %359 = vmatprep.subr.bf16.mxu0 0
    %360 = vmatpush1.bf16.msra.mxu0 0
    %361 = vmatprep.subr.bf16.mxu0 0
    %362 = vmatpush1.bf16.msra.mxu0 0
    %363 = vmatprep.subr.bf16.mxu0 0
    %364 = vmatpush1.bf16.msra.mxu0 0
    %365 = vmatprep.subr.bf16.mxu0 0
    %366 = vmatpush1.bf16.msra.mxu0 0
    %367 = vmatprep.subr.bf16.mxu0 0
    %368 = vmatpush1.bf16.msra.mxu0 0
    %369 = vmatprep.subr.bf16.mxu0 0
    %370 = vmatpush1.bf16.msra.mxu0 0
    %371 = vmatprep.subr.bf16.mxu0 0
    %372 = vmatpush1.bf16.msra.mxu0 0
    %373 = vmatprep.subr.bf16.mxu0 0
    %374 = vmatpush1.bf16.msra.mxu0 0
    %375 = vmatprep.mubr.bf16.mxu0 0
    %376 = vmatmul.mubr.bf16.gmra.mrb[0].mxu0 %v342
    %v377 = vpop.f32.mrb[0].mxu0
    %v378 = vadd.f32 0.0, %v377
    %v379 = vpop.f32.mrb[0].mxu0
    %v380 = vadd.f32 0.0, %v379
    %v381 = vpop.f32.mrb[0].mxu0
    %v382 = vpop.f32.mrb[0].mxu0
    %383 = vdwg.mxu0
    %384 = vmatprep.subr.bf16.mxu0 %v161
    %385 = vmatpush1.bf16.msra.mxu0 %v160
    %386 = vmatprep.subr.bf16.mxu0 %v165
    %387 = vmatpush1.bf16.msra.mxu0 %v164
    %388 = vmatprep.subr.bf16.mxu0 %v169
    %389 = vmatpush1.bf16.msra.mxu0 %v168
    %390 = vmatprep.subr.bf16.mxu0 %v173
    %391 = vmatpush1.bf16.msra.mxu0 %v172
    %392 = vmatprep.subr.bf16.mxu0 %v177
    %393 = vmatpush1.bf16.msra.mxu0 %v176
    %394 = vmatprep.subr.bf16.mxu0 %v181
    %395 = vmatpush1.bf16.msra.mxu0 %v180
    %396 = vmatprep.subr.bf16.mxu0 %v185
    %397 = vmatpush1.bf16.msra.mxu0 %v184
    %398 = vmatprep.subr.bf16.mxu0 %v189
    %399 = vmatpush1.bf16.msra.mxu0 %v188
    %400 = vmatprep.subr.bf16.mxu0 0
    %401 = vmatpush1.bf16.msra.mxu0 0
    %402 = vmatprep.subr.bf16.mxu0 0
    %403 = vmatpush1.bf16.msra.mxu0 0
    %404 = vmatprep.subr.bf16.mxu0 0
    %405 = vmatpush1.bf16.msra.mxu0 0
    %406 = vmatprep.subr.bf16.mxu0 0
    %407 = vmatpush1.bf16.msra.mxu0 0
    %408 = vmatprep.subr.bf16.mxu0 0
    %409 = vmatpush1.bf16.msra.mxu0 0
    %410 = vmatprep.subr.bf16.mxu0 0
    %411 = vmatpush1.bf16.msra.mxu0 0
    %412 = vmatprep.subr.bf16.mxu0 0
    %413 = vmatpush1.bf16.msra.mxu0 0
    %414 = vmatprep.subr.bf16.mxu0 0
    %415 = vmatpush1.bf16.msra.mxu0 0
    %416 = vmatprep.mubr.bf16.mxu0 0
    %417 = vmatmul.mubr.bf16.gmra.mrb[0].mxu0 %v342
    %v418 = vpop.f32.mrb[0].mxu0
    %v419 = vadd.f32 0.0, %v418
    %v420 = vpop.f32.mrb[0].mxu0
    %v421 = vadd.f32 0.0, %v420
    %v422 = vpop.f32.mrb[0].mxu0
    %v423 = vpop.f32.mrb[0].mxu0
    %424 = vdwg.mxu0
    %v425 = vadd.f32 %v338, %v378
    %v426 = vadd.f32 %v339, %v380
    %v427 = vadd.f32 %v340, %v419
    %v428 = vadd.f32 %v341, %v421
    %v429 = vxor.u32 %v425, 2147483648
    %v430 = vmul.f32 %v429, 1.442695
    %v431 = vpow.pop %v430
    %v432 = vadd.f32 %v431, 1.0
    %v433 = vrcp.pop %v432
    %v434 = vmul.f32 1.0, %v433
    %v435 = vxor.u32 %v426, 2147483648
    %v436 = vmul.f32 %v435, 1.442695
    %v437 = vpow.pop %v436
    %v438 = vadd.f32 %v437, 1.0
    %v439 = vrcp.pop %v438
    %v440 = vmul.f32 1.0, %v439
    %v441 = vtanh.pop %v427
    %v442 = vxor.u32 %v428, 2147483648
    %v443 = vmul.f32 %v442, 1.442695
    %v444 = vpow.pop %v443
    %v445 = vadd.f32 %v444, 1.0
    %v446 = vrcp.pop %v445
    %v447 = vmul.f32 1.0, %v446
    %v448 = vmul.f32 %v440, %v336
    %v449 = vmul.f32 %v434, %v441
    %v450 = vadd.f32 %v448, %v449
    %v451 = vtanh.pop %v450
    %v452 = vmul.f32 %v447, %v451
    %453 = vst [vmem:[#allocation2] sm:$0xff] %v452
    %454 = vst [vmem:[#allocation3] sm:$0xff] %v450
    %s455 = scalar_lea.vmem [#allocation4], 8
    %456 = vst [vmem:[%s455] sm:$0xff] %v452
    %v457 = vld [vmem:[#allocation2] sm:$0xff]
    %v458 = vld [vmem:[#allocation3] sm:$0xff]
    %s459 = scalar_lea.vmem %s0, 64
    %v460 = vld [vmem:[%s459] sm:$0xff]
    %v461 = vld [vmem:[%s459 + $0x8] sm:$0xff]
    %v462 = vld [vmem:[%s459 + $0x10] sm:$0xff]
    %v463 = vld [vmem:[%s459 + $0x18] sm:$0xff]
    %v464 = vpack.c.bf16 %v457, %v457
    %465 = vmatprep.subr.bf16.mxu0 %v159
    %466 = vmatpush1.bf16.msra.mxu0 %v158
    %467 = vmatprep.subr.bf16.mxu0 %v163
    %468 = vmatpush1.bf16.msra.mxu0 %v162
    %469 = vmatprep.subr.bf16.mxu0 %v167
    %470 = vmatpush1.bf16.msra.mxu0 %v166
    %471 = vmatprep.subr.bf16.mxu0 %v171
    %472 = vmatpush1.bf16.msra.mxu0 %v170
    %473 = vmatprep.subr.bf16.mxu0 %v175
    %474 = vmatpush1.bf16.msra.mxu0 %v174
    %475 = vmatprep.subr.bf16.mxu0 %v179
    %476 = vmatpush1.bf16.msra.mxu0 %v178
    %477 = vmatprep.subr.bf16.mxu0 %v183
    %478 = vmatpush1.bf16.msra.mxu0 %v182
    %479 = vmatprep.subr.bf16.mxu0 %v187
    %480 = vmatpush1.bf16.msra.mxu0 %v186
    %481 = vmatprep.subr.bf16.mxu0 0
    %482 = vmatpush1.bf16.msra.mxu0 0
    %483 = vmatprep.subr.bf16.mxu0 0
    %484 = vmatpush1.bf16.msra.mxu0 0
    %485 = vmatprep.subr.bf16.mxu0 0
    %486 = vmatpush1.bf16.msra.mxu0 0
    %487 = vmatprep.subr.bf16.mxu0 0
    %488 = vmatpush1.bf16.msra.mxu0 0
    %489 = vmatprep.subr.bf16.mxu0 0
    %490 = vmatpush1.bf16.msra.mxu0 0
    %491 = vmatprep.subr.bf16.mxu0 0
    %492 = vmatpush1.bf16.msra.mxu0 0
    %493 = vmatprep.subr.bf16.mxu0 0
    %494 = vmatpush1.bf16.msra.mxu0 0
    %495 = vmatprep.subr.bf16.mxu0 0
    %496 = vmatpush1.bf16.msra.mxu0 0
    %497 = vmatprep.mubr.bf16.mxu0 0
    %498 = vmatmul.mubr.bf16.gmra.mrb[0].mxu0 %v464
    %v499 = vpop.f32.mrb[0].mxu0
    %v500 = vadd.f32 0.0, %v499
    %v501 = vpop.f32.mrb[0].mxu0
    %v502 = vadd.f32 0.0, %v501
    %v503 = vpop.f32.mrb[0].mxu0
    %v504 = vpop.f32.mrb[0].mxu0
    %505 = vdwg.mxu0
    %506 = vmatprep.subr.bf16.mxu0 %v161
    %507 = vmatpush1.bf16.msra.mxu0 %v160
    %508 = vmatprep.subr.bf16.mxu0 %v165
    %509 = vmatpush1.bf16.msra.mxu0 %v164
    %510 = vmatprep.subr.bf16.mxu0 %v169
    %511 = vmatpush1.bf16.msra.mxu0 %v168
    %512 = vmatprep.subr.bf16.mxu0 %v173
    %513 = vmatpush1.bf16.msra.mxu0 %v172
    %514 = vmatprep.subr.bf16.mxu0 %v177
    %515 = vmatpush1.bf16.msra.mxu0 %v176
    %516 = vmatprep.subr.bf16.mxu0 %v181
    %517 = vmatpush1.bf16.msra.mxu0 %v180
    %518 = vmatprep.subr.bf16.mxu0 %v185
    %519 = vmatpush1.bf16.msra.mxu0 %v184
    %520 = vmatprep.subr.bf16.mxu0 %v189
    %521 = vmatpush1.bf16.msra.mxu0 %v188
    %522 = vmatprep.subr.bf16.mxu0 0
    %523 = vmatpush1.bf16.msra.mxu0 0
    %524 = vmatprep.subr.bf16.mxu0 0
    %525 = vmatpush1.bf16.msra.mxu0 0
    %526 = vmatprep.subr.bf16.mxu0 0
    %527 = vmatpush1.bf16.msra.mxu0 0
    %528 = vmatprep.subr.bf16.mxu0 0
    %529 = vmatpush1.bf16.msra.mxu0 0
    %530 = vmatprep.subr.bf16.mxu0 0
    %531 = vmatpush1.bf16.msra.mxu0 0
    %532 = vmatprep.subr.bf16.mxu0 0
    %533 = vmatpush1.bf16.msra.mxu0 0
    %534 = vmatprep.subr.bf16.mxu0 0
    %535 = vmatpush1.bf16.msra.mxu0 0
    %536 = vmatprep.subr.bf16.mxu0 0
    %537 = vmatpush1.bf16.msra.mxu0 0
    %538 = vmatprep.mubr.bf16.mxu0 0
    %539 = vmatmul.mubr.bf16.gmra.mrb[0].mxu0 %v464
    %v540 = vpop.f32.mrb[0].mxu0
    %v541 = vadd.f32 0.0, %v540
    %v542 = vpop.f32.mrb[0].mxu0
    %v543 = vadd.f32 0.0, %v542
    %v544 = vpop.f32.mrb[0].mxu0
    %v545 = vpop.f32.mrb[0].mxu0
    %546 = vdwg.mxu0
    %v547 = vadd.f32 %v460, %v500
    %v548 = vadd.f32 %v461, %v502
    %v549 = vadd.f32 %v462, %v541
    %v550 = vadd.f32 %v463, %v543
    %v551 = vxor.u32 %v547, 2147483648
    %v552 = vmul.f32 %v551, 1.442695
    %v553 = vpow.pop %v552
    %v554 = vadd.f32 %v553, 1.0
    %v555 = vrcp.pop %v554
    %v556 = vmul.f32 1.0, %v555
    %v557 = vxor.u32 %v548, 2147483648
    %v558 = vmul.f32 %v557, 1.442695
    %v559 = vpow.pop %v558
    %v560 = vadd.f32 %v559, 1.0
    %v561 = vrcp.pop %v560
    %v562 = vmul.f32 1.0, %v561
    %v563 = vtanh.pop %v549
    %v564 = vxor.u32 %v550, 2147483648
    %v565 = vmul.f32 %v564, 1.442695
    %v566 = vpow.pop %v565
    %v567 = vadd.f32 %v566, 1.0
    %v568 = vrcp.pop %v567
    %v569 = vmul.f32 1.0, %v568
    %v570 = vmul.f32 %v562, %v458
    %v571 = vmul.f32 %v556, %v563
    %v572 = vadd.f32 %v570, %v571
    %v573 = vtanh.pop %v572
    %v574 = vmul.f32 %v569, %v573
    %575 = vst [vmem:[#allocation2] sm:$0xff] %v574
    %576 = vst [vmem:[#allocation3] sm:$0xff] %v572
    %s577 = scalar_lea.vmem [#allocation4], 16
    %578 = vst [vmem:[%s577] sm:$0xff] %v574
    %v579 = vld [vmem:[#allocation2] sm:$0xff]
    %v580 = vld [vmem:[#allocation3] sm:$0xff]
    %s581 = scalar_lea.vmem %s0, 96
    %v582 = vld [vmem:[%s581] sm:$0xff]
    %v583 = vld [vmem:[%s581 + $0x8] sm:$0xff]
    %v584 = vld [vmem:[%s581 + $0x10] sm:$0xff]
    %v585 = vld [vmem:[%s581 + $0x18] sm:$0xff]
    %v586 = vpack.c.bf16 %v579, %v579
    %587 = vmatprep.subr.bf16.mxu0 %v159
    %588 = vmatpush1.bf16.msra.mxu0 %v158
    %589 = vmatprep.subr.bf16.mxu0 %v163
    %590 = vmatpush1.bf16.msra.mxu0 %v162
    %591 = vmatprep.subr.bf16.mxu0 %v167
    %592 = vmatpush1.bf16.msra.mxu0 %v166
    %593 = vmatprep.subr.bf16.mxu0 %v171
    %594 = vmatpush1.bf16.msra.mxu0 %v170
    %595 = vmatprep.subr.bf16.mxu0 %v175
    %596 = vmatpush1.bf16.msra.mxu0 %v174
    %597 = vmatprep.subr.bf16.mxu0 %v179
    %598 = vmatpush1.bf16.msra.mxu0 %v178
    %599 = vmatprep.subr.bf16.mxu0 %v183
    %600 = vmatpush1.bf16.msra.mxu0 %v182
    %601 = vmatprep.subr.bf16.mxu0 %v187
    %602 = vmatpush1.bf16.msra.mxu0 %v186
    %603 = vmatprep.subr.bf16.mxu0 0
    %604 = vmatpush1.bf16.msra.mxu0 0
    %605 = vmatprep.subr.bf16.mxu0 0
    %606 = vmatpush1.bf16.msra.mxu0 0
    %607 = vmatprep.subr.bf16.mxu0 0
    %608 = vmatpush1.bf16.msra.mxu0 0
    %609 = vmatprep.subr.bf16.mxu0 0
    %610 = vmatpush1.bf16.msra.mxu0 0
    %611 = vmatprep.subr.bf16.mxu0 0
    %612 = vmatpush1.bf16.msra.mxu0 0
    %613 = vmatprep.subr.bf16.mxu0 0
    %614 = vmatpush1.bf16.msra.mxu0 0
    %615 = vmatprep.subr.bf16.mxu0 0
    %616 = vmatpush1.bf16.msra.mxu0 0
    %617 = vmatprep.subr.bf16.mxu0 0
    %618 = vmatpush1.bf16.msra.mxu0 0
    %619 = vmatprep.mubr.bf16.mxu0 0
    %620 = vmatmul.mubr.bf16.gmra.mrb[0].mxu0 %v586
    %v621 = vpop.f32.mrb[0].mxu0
    %v622 = vadd.f32 0.0, %v621
    %v623 = vpop.f32.mrb[0].mxu0
    %v624 = vadd.f32 0.0, %v623
    %v625 = vpop.f32.mrb[0].mxu0
    %v626 = vpop.f32.mrb[0].mxu0
    %627 = vdwg.mxu0
    %628 = vmatprep.subr.bf16.mxu0 %v161
    %629 = vmatpush1.bf16.msra.mxu0 %v160
    %630 = vmatprep.subr.bf16.mxu0 %v165
    %631 = vmatpush1.bf16.msra.mxu0 %v164
    %632 = vmatprep.subr.bf16.mxu0 %v169
    %633 = vmatpush1.bf16.msra.mxu0 %v168
    %634 = vmatprep.subr.bf16.mxu0 %v173
    %635 = vmatpush1.bf16.msra.mxu0 %v172
    %636 = vmatprep.subr.bf16.mxu0 %v177
    %637 = vmatpush1.bf16.msra.mxu0 %v176
    %638 = vmatprep.subr.bf16.mxu0 %v181
    %639 = vmatpush1.bf16.msra.mxu0 %v180
    %640 = vmatprep.subr.bf16.mxu0 %v185
    %641 = vmatpush1.bf16.msra.mxu0 %v184
    %642 = vmatprep.subr.bf16.mxu0 %v189
    %643 = vmatpush1.bf16.msra.mxu0 %v188
    %644 = vmatprep.subr.bf16.mxu0 0
    %645 = vmatpush1.bf16.msra.mxu0 0
    %646 = vmatprep.subr.bf16.mxu0 0
    %647 = vmatpush1.bf16.msra.mxu0 0
    %648 = vmatprep.subr.bf16.mxu0 0
    %649 = vmatpush1.bf16.msra.mxu0 0
    %650 = vmatprep.subr.bf16.mxu0 0
    %651 = vmatpush1.bf16.msra.mxu0 0
    %652 = vmatprep.subr.bf16.mxu0 0
    %653 = vmatpush1.bf16.msra.mxu0 0
    %654 = vmatprep.subr.bf16.mxu0 0
    %655 = vmatpush1.bf16.msra.mxu0 0
    %656 = vmatprep.subr.bf16.mxu0 0
    %657 = vmatpush1.bf16.msra.mxu0 0
    %658 = vmatprep.subr.bf16.mxu0 0
    %659 = vmatpush1.bf16.msra.mxu0 0
    %660 = vmatprep.mubr.bf16.mxu0 0
    %661 = vmatmul.mubr.bf16.gmra.mrb[0].mxu0 %v586
    %v662 = vpop.f32.mrb[0].mxu0
    %v663 = vadd.f32 0.0, %v662
    %v664 = vpop.f32.mrb[0].mxu0
    %v665 = vadd.f32 0.0, %v664
    %v666 = vpop.f32.mrb[0].mxu0
    %v667 = vpop.f32.mrb[0].mxu0
    %668 = vdwg.mxu0
    %v669 = vadd.f32 %v582, %v622
    %v670 = vadd.f32 %v583, %v624
    %v671 = vadd.f32 %v584, %v663
    %v672 = vadd.f32 %v585, %v665
    %v673 = vxor.u32 %v669, 2147483648
    %v674 = vmul.f32 %v673, 1.442695
    %v675 = vpow.pop %v674
    %v676 = vadd.f32 %v675, 1.0
    %v677 = vrcp.pop %v676
    %v678 = vmul.f32 1.0, %v677
    %v679 = vxor.u32 %v670, 2147483648
    %v680 = vmul.f32 %v679, 1.442695
    %v681 = vpow.pop %v680
    %v682 = vadd.f32 %v681, 1.0
    %v683 = vrcp.pop %v682
    %v684 = vmul.f32 1.0, %v683
    %v685 = vtanh.pop %v671
    %v686 = vxor.u32 %v672, 2147483648
    %v687 = vmul.f32 %v686, 1.442695
    %v688 = vpow.pop %v687
    %v689 = vadd.f32 %v688, 1.0
    %v690 = vrcp.pop %v689
    %v691 = vmul.f32 1.0, %v690
    %v692 = vmul.f32 %v684, %v580
    %v693 = vmul.f32 %v678, %v685
    %v694 = vadd.f32 %v692, %v693
    %v695 = vtanh.pop %v694
    %v696 = vmul.f32 %v691, %v695
    %697 = vst [vmem:[#allocation2] sm:$0xff] %v696
    %698 = vst [vmem:[#allocation3] sm:$0xff] %v694
    %s699 = scalar_lea.vmem [#allocation4], 24
    %700 = vst [vmem:[%s699] sm:$0xff] %v696
    %v701 = vld [vmem:[#allocation2] sm:$0xff]
    %v702 = vld [vmem:[#allocation3] sm:$0xff]
    %s703 = scalar_lea.vmem %s0, 128
    %v704 = vld [vmem:[%s703] sm:$0xff]
    %v705 = vld [vmem:[%s703 + $0x8] sm:$0xff]
    %v706 = vld [vmem:[%s703 + $0x10] sm:$0xff]
    %v707 = vld [vmem:[%s703 + $0x18] sm:$0xff]
    %v708 = vpack.c.bf16 %v701, %v701
    %709 = vmatprep.subr.bf16.mxu0 %v159
    %710 = vmatpush1.bf16.msra.mxu0 %v158
    %711 = vmatprep.subr.bf16.mxu0 %v163
    %712 = vmatpush1.bf16.msra.mxu0 %v162
    %713 = vmatprep.subr.bf16.mxu0 %v167
    %714 = vmatpush1.bf16.msra.mxu0 %v166
    %715 = vmatprep.subr.bf16.mxu0 %v171
    %716 = vmatpush1.bf16.msra.mxu0 %v170
    %717 = vmatprep.subr.bf16.mxu0 %v175
    %718 = vmatpush1.bf16.msra.mxu0 %v174
    %719 = vmatprep.subr.bf16.mxu0 %v179
    %720 = vmatpush1.bf16.msra.mxu0 %v178
    %721 = vmatprep.subr.bf16.mxu0 %v183
    %722 = vmatpush1.bf16.msra.mxu0 %v182
    %723 = vmatprep.subr.bf16.mxu0 %v187
    %724 = vmatpush1.bf16.msra.mxu0 %v186
    %725 = vmatprep.subr.bf16.mxu0 0
    %726 = vmatpush1.bf16.msra.mxu0 0
    %727 = vmatprep.subr.bf16.mxu0 0
    %728 = vmatpush1.bf16.msra.mxu0 0
    %729 = vmatprep.subr.bf16.mxu0 0
    %730 = vmatpush1.bf16.msra.mxu0 0
    %731 = vmatprep.subr.bf16.mxu0 0
    %732 = vmatpush1.bf16.msra.mxu0 0
    %733 = vmatprep.subr.bf16.mxu0 0
    %734 = vmatpush1.bf16.msra.mxu0 0
    %735 = vmatprep.subr.bf16.mxu0 0
    %736 = vmatpush1.bf16.msra.mxu0 0
    %737 = vmatprep.subr.bf16.mxu0 0
    %738 = vmatpush1.bf16.msra.mxu0 0
    %739 = vmatprep.subr.bf16.mxu0 0
    %740 = vmatpush1.bf16.msra.mxu0 0
    %741 = vmatprep.mubr.bf16.mxu0 0
    %742 = vmatmul.mubr.bf16.gmra.mrb[0].mxu0 %v708
    %v743 = vpop.f32.mrb[0].mxu0
    %v744 = vadd.f32 0.0, %v743
    %v745 = vpop.f32.mrb[0].mxu0
    %v746 = vadd.f32 0.0, %v745
    %v747 = vpop.f32.mrb[0].mxu0
    %v748 = vpop.f32.mrb[0].mxu0
    %749 = vdwg.mxu0
    %750 = vmatprep.subr.bf16.mxu0 %v161
    %751 = vmatpush1.bf16.msra.mxu0 %v160
    %752 = vmatprep.subr.bf16.mxu0 %v165
    %753 = vmatpush1.bf16.msra.mxu0 %v164
    %754 = vmatprep.subr.bf16.mxu0 %v169
    %755 = vmatpush1.bf16.msra.mxu0 %v168
    %756 = vmatprep.subr.bf16.mxu0 %v173
    %757 = vmatpush1.bf16.msra.mxu0 %v172
    %758 = vmatprep.subr.bf16.mxu0 %v177
    %759 = vmatpush1.bf16.msra.mxu0 %v176
    %760 = vmatprep.subr.bf16.mxu0 %v181
    %761 = vmatpush1.bf16.msra.mxu0 %v180
    %762 = vmatprep.subr.bf16.mxu0 %v185
    %763 = vmatpush1.bf16.msra.mxu0 %v184
    %764 = vmatprep.subr.bf16.mxu0 %v189
    %765 = vmatpush1.bf16.msra.mxu0 %v188
    %766 = vmatprep.subr.bf16.mxu0 0
    %767 = vmatpush1.bf16.msra.mxu0 0
    %768 = vmatprep.subr.bf16.mxu0 0
    %769 = vmatpush1.bf16.msra.mxu0 0
    %770 = vmatprep.subr.bf16.mxu0 0
    %771 = vmatpush1.bf16.msra.mxu0 0
    %772 = vmatprep.subr.bf16.mxu0 0
    %773 = vmatpush1.bf16.msra.mxu0 0
    %774 = vmatprep.subr.bf16.mxu0 0
    %775 = vmatpush1.bf16.msra.mxu0 0
    %776 = vmatprep.subr.bf16.mxu0 0
    %777 = vmatpush1.bf16.msra.mxu0 0
    %778 = vmatprep.subr.bf16.mxu0 0
    %779 = vmatpush1.bf16.msra.mxu0 0
    %780 = vmatprep.subr.bf16.mxu0 0
    %781 = vmatpush1.bf16.msra.mxu0 0
    %782 = vmatprep.mubr.bf16.mxu0 0
    %783 = vmatmul.mubr.bf16.gmra.mrb[0].mxu0 %v708
    %v784 = vpop.f32.mrb[0].mxu0
    %v785 = vadd.f32 0.0, %v784
    %v786 = vpop.f32.mrb[0].mxu0
    %v787 = vadd.f32 0.0, %v786
    %v788 = vpop.f32.mrb[0].mxu0
    %v789 = vpop.f32.mrb[0].mxu0
    %790 = vdwg.mxu0
    %v791 = vadd.f32 %v704, %v744
    %v792 = vadd.f32 %v705, %v746
    %v793 = vadd.f32 %v706, %v785
    %v794 = vadd.f32 %v707, %v787
    %v795 = vxor.u32 %v791, 2147483648
    %v796 = vmul.f32 %v795, 1.442695
    %v797 = vpow.pop %v796
    %v798 = vadd.f32 %v797, 1.0
    %v799 = vrcp.pop %v798
    %v800 = vmul.f32 1.0, %v799
    %v801 = vxor.u32 %v792, 2147483648
    %v802 = vmul.f32 %v801, 1.442695
    %v803 = vpow.pop %v802
    %v804 = vadd.f32 %v803, 1.0
    %v805 = vrcp.pop %v804
    %v806 = vmul.f32 1.0, %v805
    %v807 = vtanh.pop %v793
    %v808 = vxor.u32 %v794, 2147483648
    %v809 = vmul.f32 %v808, 1.442695
    %v810 = vpow.pop %v809
    %v811 = vadd.f32 %v810, 1.0
    %v812 = vrcp.pop %v811
    %v813 = vmul.f32 1.0, %v812
    %v814 = vmul.f32 %v806, %v702
    %v815 = vmul.f32 %v800, %v807
    %v816 = vadd.f32 %v814, %v815
    %v817 = vtanh.pop %v816
    %v818 = vmul.f32 %v813, %v817
    %819 = vst [vmem:[#allocation2] sm:$0xff] %v818
    %820 = vst [vmem:[#allocation3] sm:$0xff] %v816
    %s821 = scalar_lea.vmem [#allocation4], 32
    %822 = vst [vmem:[%s821] sm:$0xff] %v818
    %v823 = vld [vmem:[#allocation2] sm:$0xff]
    %v824 = vld [vmem:[#allocation3] sm:$0xff]
    %s825 = scalar_lea.vmem %s0, 160
    %v826 = vld [vmem:[%s825] sm:$0xff]
    %v827 = vld [vmem:[%s825 + $0x8] sm:$0xff]
    %v828 = vld [vmem:[%s825 + $0x10] sm:$0xff]
    %v829 = vld [vmem:[%s825 + $0x18] sm:$0xff]
    %v830 = vpack.c.bf16 %v823, %v823
    %831 = vmatprep.subr.bf16.mxu0 %v159
    %832 = vmatpush1.bf16.msra.mxu0 %v158
    %833 = vmatprep.subr.bf16.mxu0 %v163
    %834 = vmatpush1.bf16.msra.mxu0 %v162
    %835 = vmatprep.subr.bf16.mxu0 %v167
    %836 = vmatpush1.bf16.msra.mxu0 %v166
    %837 = vmatprep.subr.bf16.mxu0 %v171
    %838 = vmatpush1.bf16.msra.mxu0 %v170
    %839 = vmatprep.subr.bf16.mxu0 %v175
    %840 = vmatpush1.bf16.msra.mxu0 %v174
    %841 = vmatprep.subr.bf16.mxu0 %v179
    %842 = vmatpush1.bf16.msra.mxu0 %v178
    %843 = vmatprep.subr.bf16.mxu0 %v183
    %844 = vmatpush1.bf16.msra.mxu0 %v182
    %845 = vmatprep.subr.bf16.mxu0 %v187
    %846 = vmatpush1.bf16.msra.mxu0 %v186
    %847 = vmatprep.subr.bf16.mxu0 0
    %848 = vmatpush1.bf16.msra.mxu0 0
    %849 = vmatprep.subr.bf16.mxu0 0
    %850 = vmatpush1.bf16.msra.mxu0 0
    %851 = vmatprep.subr.bf16.mxu0 0
    %852 = vmatpush1.bf16.msra.mxu0 0
    %853 = vmatprep.subr.bf16.mxu0 0
    %854 = vmatpush1.bf16.msra.mxu0 0
    %855 = vmatprep.subr.bf16.mxu0 0
    %856 = vmatpush1.bf16.msra.mxu0 0
    %857 = vmatprep.subr.bf16.mxu0 0
    %858 = vmatpush1.bf16.msra.mxu0 0
    %859 = vmatprep.subr.bf16.mxu0 0
    %860 = vmatpush1.bf16.msra.mxu0 0
    %861 = vmatprep.subr.bf16.mxu0 0
    %862 = vmatpush1.bf16.msra.mxu0 0
    %863 = vmatprep.mubr.bf16.mxu0 0
    %864 = vmatmul.mubr.bf16.gmra.mrb[0].mxu0 %v830
    %v865 = vpop.f32.mrb[0].mxu0
    %v866 = vadd.f32 0.0, %v865
    %v867 = vpop.f32.mrb[0].mxu0
    %v868 = vadd.f32 0.0, %v867
    %v869 = vpop.f32.mrb[0].mxu0
    %v870 = vpop.f32.mrb[0].mxu0
    %871 = vdwg.mxu0
    %872 = vmatprep.subr.bf16.mxu0 %v161
    %873 = vmatpush1.bf16.msra.mxu0 %v160
    %874 = vmatprep.subr.bf16.mxu0 %v165
    %875 = vmatpush1.bf16.msra.mxu0 %v164
    %876 = vmatprep.subr.bf16.mxu0 %v169
    %877 = vmatpush1.bf16.msra.mxu0 %v168
    %878 = vmatprep.subr.bf16.mxu0 %v173
    %879 = vmatpush1.bf16.msra.mxu0 %v172
    %880 = vmatprep.subr.bf16.mxu0 %v177
    %881 = vmatpush1.bf16.msra.mxu0 %v176
    %882 = vmatprep.subr.bf16.mxu0 %v181
    %883 = vmatpush1.bf16.msra.mxu0 %v180
    %884 = vmatprep.subr.bf16.mxu0 %v185
    %885 = vmatpush1.bf16.msra.mxu0 %v184
    %886 = vmatprep.subr.bf16.mxu0 %v189
    %887 = vmatpush1.bf16.msra.mxu0 %v188
    %888 = vmatprep.subr.bf16.mxu0 0
    %889 = vmatpush1.bf16.msra.mxu0 0
    %890 = vmatprep.subr.bf16.mxu0 0
    %891 = vmatpush1.bf16.msra.mxu0 0
    %892 = vmatprep.subr.bf16.mxu0 0
    %893 = vmatpush1.bf16.msra.mxu0 0
    %894 = vmatprep.subr.bf16.mxu0 0
    %895 = vmatpush1.bf16.msra.mxu0 0
    %896 = vmatprep.subr.bf16.mxu0 0
    %897 = vmatpush1.bf16.msra.mxu0 0
    %898 = vmatprep.subr.bf16.mxu0 0
    %899 = vmatpush1.bf16.msra.mxu0 0
    %900 = vmatprep.subr.bf16.mxu0 0
    %901 = vmatpush1.bf16.msra.mxu0 0
    %902 = vmatprep.subr.bf16.mxu0 0
    %903 = vmatpush1.bf16.msra.mxu0 0
    %904 = vmatprep.mubr.bf16.mxu0 0
    %905 = vmatmul.mubr.bf16.gmra.mrb[0].mxu0 %v830
    %v906 = vpop.f32.mrb[0].mxu0
    %v907 = vadd.f32 0.0, %v906
    %v908 = vpop.f32.mrb[0].mxu0
    %v909 = vadd.f32 0.0, %v908
    %v910 = vpop.f32.mrb[0].mxu0
    %v911 = vpop.f32.mrb[0].mxu0
    %912 = vdwg.mxu0
    %v913 = vadd.f32 %v826, %v866
    %v914 = vadd.f32 %v827, %v868
    %v915 = vadd.f32 %v828, %v907
    %v916 = vadd.f32 %v829, %v909
    %v917 = vxor.u32 %v913, 2147483648
    %v918 = vmul.f32 %v917, 1.442695
    %v919 = vpow.pop %v918
    %v920 = vadd.f32 %v919, 1.0
    %v921 = vrcp.pop %v920
    %v922 = vmul.f32 1.0, %v921
    %v923 = vxor.u32 %v914, 2147483648
    %v924 = vmul.f32 %v923, 1.442695
    %v925 = vpow.pop %v924
    %v926 = vadd.f32 %v925, 1.0
    %v927 = vrcp.pop %v926
    %v928 = vmul.f32 1.0, %v927
    %v929 = vtanh.pop %v915
    %v930 = vxor.u32 %v916, 2147483648
    %v931 = vmul.f32 %v930, 1.442695
    %v932 = vpow.pop %v931
    %v933 = vadd.f32 %v932, 1.0
    %v934 = vrcp.pop %v933
    %v935 = vmul.f32 1.0, %v934
    %v936 = vmul.f32 %v928, %v824
    %v937 = vmul.f32 %v922, %v929
    %v938 = vadd.f32 %v936, %v937
    %v939 = vtanh.pop %v938
    %v940 = vmul.f32 %v935, %v939
    %941 = vst [vmem:[#allocation2] sm:$0xff] %v940
    %942 = vst [vmem:[#allocation3] sm:$0xff] %v938
    %s943 = scalar_lea.vmem [#allocation4], 40
    %944 = vst [vmem:[%s943] sm:$0xff] %v940
    %v945 = vld [vmem:[#allocation2] sm:$0xff]
    %v946 = vld [vmem:[#allocation3] sm:$0xff]
    %s947 = scalar_lea.vmem %s0, 192
    %v948 = vld [vmem:[%s947] sm:$0xff]
    %v949 = vld [vmem:[%s947 + $0x8] sm:$0xff]
    %v950 = vld [vmem:[%s947 + $0x10] sm:$0xff]
    %v951 = vld [vmem:[%s947 + $0x18] sm:$0xff]
    %v952 = vpack.c.bf16 %v945, %v945
    %953 = vmatprep.subr.bf16.mxu0 %v159
    %954 = vmatpush1.bf16.msra.mxu0 %v158
    %955 = vmatprep.subr.bf16.mxu0 %v163
    %956 = vmatpush1.bf16.msra.mxu0 %v162
    %957 = vmatprep.subr.bf16.mxu0 %v167
    %958 = vmatpush1.bf16.msra.mxu0 %v166
    %959 = vmatprep.subr.bf16.mxu0 %v171
    %960 = vmatpush1.bf16.msra.mxu0 %v170
    %961 = vmatprep.subr.bf16.mxu0 %v175
    %962 = vmatpush1.bf16.msra.mxu0 %v174
    %963 = vmatprep.subr.bf16.mxu0 %v179
    %964 = vmatpush1.bf16.msra.mxu0 %v178
    %965 = vmatprep.subr.bf16.mxu0 %v183
    %966 = vmatpush1.bf16.msra.mxu0 %v182
    %967 = vmatprep.subr.bf16.mxu0 %v187
    %968 = vmatpush1.bf16.msra.mxu0 %v186
    %969 = vmatprep.subr.bf16.mxu0 0
    %970 = vmatpush1.bf16.msra.mxu0 0
    %971 = vmatprep.subr.bf16.mxu0 0
    %972 = vmatpush1.bf16.msra.mxu0 0
    %973 = vmatprep.subr.bf16.mxu0 0
    %974 = vmatpush1.bf16.msra.mxu0 0
    %975 = vmatprep.subr.bf16.mxu0 0
    %976 = vmatpush1.bf16.msra.mxu0 0
    %977 = vmatprep.subr.bf16.mxu0 0
    %978 = vmatpush1.bf16.msra.mxu0 0
    %979 = vmatprep.subr.bf16.mxu0 0
    %980 = vmatpush1.bf16.msra.mxu0 0
    %981 = vmatprep.subr.bf16.mxu0 0
    %982 = vmatpush1.bf16.msra.mxu0 0
    %983 = vmatprep.subr.bf16.mxu0 0
    %984 = vmatpush1.bf16.msra.mxu0 0
    %985 = vmatprep.mubr.bf16.mxu0 0
    %986 = vmatmul.mubr.bf16.gmra.mrb[0].mxu0 %v952
    %v987 = vpop.f32.mrb[0].mxu0
    %v988 = vadd.f32 0.0, %v987
    %v989 = vpop.f32.mrb[0].mxu0
    %v990 = vadd.f32 0.0, %v989
    %v991 = vpop.f32.mrb[0].mxu0
    %v992 = vpop.f32.mrb[0].mxu0
    %993 = vdwg.mxu0
    %994 = vmatprep.subr.bf16.mxu0 %v161
    %995 = vmatpush1.bf16.msra.mxu0 %v160
    %996 = vmatprep.subr.bf16.mxu0 %v165
    %997 = vmatpush1.bf16.msra.mxu0 %v164
    %998 = vmatprep.subr.bf16.mxu0 %v169
    %999 = vmatpush1.bf16.msra.mxu0 %v168
    %1000 = vmatprep.subr.bf16.mxu0 %v173
    %1001 = vmatpush1.bf16.msra.mxu0 %v172
    %1002 = vmatprep.subr.bf16.mxu0 %v177
    %1003 = vmatpush1.bf16.msra.mxu0 %v176
    %1004 = vmatprep.subr.bf16.mxu0 %v181
    %1005 = vmatpush1.bf16.msra.mxu0 %v180
    %1006 = vmatprep.subr.bf16.mxu0 %v185
    %1007 = vmatpush1.bf16.msra.mxu0 %v184
    %1008 = vmatprep.subr.bf16.mxu0 %v189
    %1009 = vmatpush1.bf16.msra.mxu0 %v188
    %1010 = vmatprep.subr.bf16.mxu0 0
    %1011 = vmatpush1.bf16.msra.mxu0 0
    %1012 = vmatprep.subr.bf16.mxu0 0
    %1013 = vmatpush1.bf16.msra.mxu0 0
    %1014 = vmatprep.subr.bf16.mxu0 0
    %1015 = vmatpush1.bf16.msra.mxu0 0
    %1016 = vmatprep.subr.bf16.mxu0 0
    %1017 = vmatpush1.bf16.msra.mxu0 0
    %1018 = vmatprep.subr.bf16.mxu0 0
    %1019 = vmatpush1.bf16.msra.mxu0 0
    %1020 = vmatprep.subr.bf16.mxu0 0
    %1021 = vmatpush1.bf16.msra.mxu0 0
    %1022 = vmatprep.subr.bf16.mxu0 0
    %1023 = vmatpush1.bf16.msra.mxu0 0
    %1024 = vmatprep.subr.bf16.mxu0 0
    %1025 = vmatpush1.bf16.msra.mxu0 0
    %1026 = vmatprep.mubr.bf16.mxu0 0
    %1027 = vmatmul.mubr.bf16.gmra.mrb[0].mxu0 %v952
    %v1028 = vpop.f32.mrb[0].mxu0
    %v1029 = vadd.f32 0.0, %v1028
    %v1030 = vpop.f32.mrb[0].mxu0
    %v1031 = vadd.f32 0.0, %v1030
    %v1032 = vpop.f32.mrb[0].mxu0
    %v1033 = vpop.f32.mrb[0].mxu0
    %1034 = vdwg.mxu0
    %v1035 = vadd.f32 %v948, %v988
    %v1036 = vadd.f32 %v949, %v990
    %v1037 = vadd.f32 %v950, %v1029
    %v1038 = vadd.f32 %v951, %v1031
    %v1039 = vxor.u32 %v1035, 2147483648
    %v1040 = vmul.f32 %v1039, 1.442695
    %v1041 = vpow.pop %v1040
    %v1042 = vadd.f32 %v1041, 1.0
    %v1043 = vrcp.pop %v1042
    %v1044 = vmul.f32 1.0, %v1043
    %v1045 = vxor.u32 %v1036, 2147483648
    %v1046 = vmul.f32 %v1045, 1.442695
    %v1047 = vpow.pop %v1046
    %v1048 = vadd.f32 %v1047, 1.0
    %v1049 = vrcp.pop %v1048
    %v1050 = vmul.f32 1.0, %v1049
    %v1051 = vtanh.pop %v1037
    %v1052 = vxor.u32 %v1038, 2147483648
    %v1053 = vmul.f32 %v1052, 1.442695
    %v1054 = vpow.pop %v1053
    %v1055 = vadd.f32 %v1054, 1.0
    %v1056 = vrcp.pop %v1055
    %v1057 = vmul.f32 1.0, %v1056
    %v1058 = vmul.f32 %v1050, %v946
    %v1059 = vmul.f32 %v1044, %v1051
    %v1060 = vadd.f32 %v1058, %v1059
    %v1061 = vtanh.pop %v1060
    %v1062 = vmul.f32 %v1057, %v1061
    %1063 = vst [vmem:[#allocation2] sm:$0xff] %v1062
    %1064 = vst [vmem:[#allocation3] sm:$0xff] %v1060
    %s1065 = scalar_lea.vmem [#allocation4], 48
    %1066 = vst [vmem:[%s1065] sm:$0xff] %v1062
    %v1067 = vld [vmem:[#allocation2] sm:$0xff]
    %v1068 = vld [vmem:[#allocation3] sm:$0xff]
    %s1069 = scalar_lea.vmem %s0, 224
    %v1070 = vld [vmem:[%s1069] sm:$0xff]
    %v1071 = vld [vmem:[%s1069 + $0x8] sm:$0xff]
    %v1072 = vld [vmem:[%s1069 + $0x10] sm:$0xff]
    %v1073 = vld [vmem:[%s1069 + $0x18] sm:$0xff]
    %v1074 = vpack.c.bf16 %v1067, %v1067
    %1075 = vmatprep.subr.bf16.mxu0 %v159
    %1076 = vmatpush1.bf16.msra.mxu0 %v158
    %1077 = vmatprep.subr.bf16.mxu0 %v163
    %1078 = vmatpush1.bf16.msra.mxu0 %v162
    %1079 = vmatprep.subr.bf16.mxu0 %v167
    %1080 = vmatpush1.bf16.msra.mxu0 %v166
    %1081 = vmatprep.subr.bf16.mxu0 %v171
    %1082 = vmatpush1.bf16.msra.mxu0 %v170
    %1083 = vmatprep.subr.bf16.mxu0 %v175
    %1084 = vmatpush1.bf16.msra.mxu0 %v174
    %1085 = vmatprep.subr.bf16.mxu0 %v179
    %1086 = vmatpush1.bf16.msra.mxu0 %v178
    %1087 = vmatprep.subr.bf16.mxu0 %v183
    %1088 = vmatpush1.bf16.msra.mxu0 %v182
    %1089 = vmatprep.subr.bf16.mxu0 %v187
    %1090 = vmatpush1.bf16.msra.mxu0 %v186
    %1091 = vmatprep.subr.bf16.mxu0 0
    %1092 = vmatpush1.bf16.msra.mxu0 0
    %1093 = vmatprep.subr.bf16.mxu0 0
    %1094 = vmatpush1.bf16.msra.mxu0 0
    %1095 = vmatprep.subr.bf16.mxu0 0
    %1096 = vmatpush1.bf16.msra.mxu0 0
    %1097 = vmatprep.subr.bf16.mxu0 0
    %1098 = vmatpush1.bf16.msra.mxu0 0
    %1099 = vmatprep.subr.bf16.mxu0 0
    %1100 = vmatpush1.bf16.msra.mxu0 0
    %1101 = vmatprep.subr.bf16.mxu0 0
    %1102 = vmatpush1.bf16.msra.mxu0 0
    %1103 = vmatprep.subr.bf16.mxu0 0
    %1104 = vmatpush1.bf16.msra.mxu0 0
    %1105 = vmatprep.subr.bf16.mxu0 0
    %1106 = vmatpush1.bf16.msra.mxu0 0
    %1107 = vmatprep.mubr.bf16.mxu0 0
    %1108 = vmatmul.mubr.bf16.gmra.mrb[0].mxu0 %v1074
    %v1109 = vpop.f32.mrb[0].mxu0
    %v1110 = vadd.f32 0.0, %v1109
    %v1111 = vpop.f32.mrb[0].mxu0
    %v1112 = vadd.f32 0.0, %v1111
    %v1113 = vpop.f32.mrb[0].mxu0
    %v1114 = vpop.f32.mrb[0].mxu0
    %1115 = vdwg.mxu0
    %1116 = vmatprep.subr.bf16.mxu0 %v161
    %1117 = vmatpush1.bf16.msra.mxu0 %v160
    %1118 = vmatprep.subr.bf16.mxu0 %v165
    %1119 = vmatpush1.bf16.msra.mxu0 %v164
    %1120 = vmatprep.subr.bf16.mxu0 %v169
    %1121 = vmatpush1.bf16.msra.mxu0 %v168
    %1122 = vmatprep.subr.bf16.mxu0 %v173
    %1123 = vmatpush1.bf16.msra.mxu0 %v172
    %1124 = vmatprep.subr.bf16.mxu0 %v177
    %1125 = vmatpush1.bf16.msra.mxu0 %v176
    %1126 = vmatprep.subr.bf16.mxu0 %v181
    %1127 = vmatpush1.bf16.msra.mxu0 %v180
    %1128 = vmatprep.subr.bf16.mxu0 %v185
    %1129 = vmatpush1.bf16.msra.mxu0 %v184
    %1130 = vmatprep.subr.bf16.mxu0 %v189
    %1131 = vmatpush1.bf16.msra.mxu0 %v188
    %1132 = vmatprep.subr.bf16.mxu0 0
    %1133 = vmatpush1.bf16.msra.mxu0 0
    %1134 = vmatprep.subr.bf16.mxu0 0
    %1135 = vmatpush1.bf16.msra.mxu0 0
    %1136 = vmatprep.subr.bf16.mxu0 0
    %1137 = vmatpush1.bf16.msra.mxu0 0
    %1138 = vmatprep.subr.bf16.mxu0 0
    %1139 = vmatpush1.bf16.msra.mxu0 0
    %1140 = vmatprep.subr.bf16.mxu0 0
    %1141 = vmatpush1.bf16.msra.mxu0 0
    %1142 = vmatprep.subr.bf16.mxu0 0
    %1143 = vmatpush1.bf16.msra.mxu0 0
    %1144 = vmatprep.subr.bf16.mxu0 0
    %1145 = vmatpush1.bf16.msra.mxu0 0
    %1146 = vmatprep.subr.bf16.mxu0 0
    %1147 = vmatpush1.bf16.msra.mxu0 0
    %1148 = vmatprep.mubr.bf16.mxu0 0
    %1149 = vmatmul.mubr.bf16.gmra.mrb[0].mxu0 %v1074
    %v1150 = vpop.f32.mrb[0].mxu0
    %v1151 = vadd.f32 0.0, %v1150
    %v1152 = vpop.f32.mrb[0].mxu0
    %v1153 = vadd.f32 0.0, %v1152
    %v1154 = vpop.f32.mrb[0].mxu0
    %v1155 = vpop.f32.mrb[0].mxu0
    %1156 = vdwg.mxu0
    %v1157 = vadd.f32 %v1070, %v1110
    %v1158 = vadd.f32 %v1071, %v1112
    %v1159 = vadd.f32 %v1072, %v1151
    %v1160 = vadd.f32 %v1073, %v1153
    %v1161 = vxor.u32 %v1157, 2147483648
    %v1162 = vmul.f32 %v1161, 1.442695
    %v1163 = vpow.pop %v1162
    %v1164 = vadd.f32 %v1163, 1.0
    %v1165 = vrcp.pop %v1164
    %v1166 = vmul.f32 1.0, %v1165
    %v1167 = vxor.u32 %v1158, 2147483648
    %v1168 = vmul.f32 %v1167, 1.442695
    %v1169 = vpow.pop %v1168
    %v1170 = vadd.f32 %v1169, 1.0
    %v1171 = vrcp.pop %v1170
    %v1172 = vmul.f32 1.0, %v1171
    %v1173 = vtanh.pop %v1159
    %v1174 = vxor.u32 %v1160, 2147483648
    %v1175 = vmul.f32 %v1174, 1.442695
    %v1176 = vpow.pop %v1175
    %v1177 = vadd.f32 %v1176, 1.0
    %v1178 = vrcp.pop %v1177
    %v1179 = vmul.f32 1.0, %v1178
    %v1180 = vmul.f32 %v1172, %v1068
    %v1181 = vmul.f32 %v1166, %v1173
    %v1182 = vadd.f32 %v1180, %v1181
    %v1183 = vtanh.pop %v1182
    %v1184 = vmul.f32 %v1179, %v1183
    %1185 = vst [vmem:[#allocation2] sm:$0xff] %v1184
    %1186 = vst [vmem:[#allocation3] sm:$0xff] %v1182
    %s1187 = scalar_lea.vmem [#allocation4], 56
    %1188 = vst [vmem:[%s1187] sm:$0xff] %v1184
    // Predicated region
    $region14: #{lstm_autoencoder_forward.5} parent=1 // pred_check
      %p1189 = pneg %p17
    $region15: #{lstm_autoencoder_forward.5} parent=1 // pred_check_branch
      %1191 = sbr.rel (%p1189) target = $region17
    $region16: #{lstm_autoencoder_forward.5} parent=1 // pred_region
      %v1192 = vld [vmem:[#allocation2] sm:$0xff]
      %1193 = vst [vmem:[%s3] sm:$0xff] %v1192
      %v1194 = vld [vmem:[#allocation3] sm:$0xff]
      %1195 = vst [vmem:[#allocation6] sm:$0xff] %v1194
    $region17: #{lstm_autoencoder_forward.5} parent=1 // pred_fallthru
      _
    // Predicated region
    $region18: #{lstm_autoencoder_forward.5} parent=1 // pred_check
      _
    $region19: #{lstm_autoencoder_forward.5} parent=1 // pred_check_branch
      %1197 = sbr.rel (0) target = $region21
    $region20: #{lstm_autoencoder_forward.5} parent=1 // pred_region
      %s1199 = ssub.s32 1024, 1024
      %1200 = vsyncadd [#allocation5], %s1199
      %s1201 = sshll.u32 [#allocation4], 4
      %s1202 = int_to_ptr.vmem [resolvable:$true] %s1201
      %1207 = dma.vmem_to_hbm [thread:$0]  %s1202, 1024, %s2, [#allocation5], 128, 128, 8
    $region21: #{lstm_autoencoder_forward.5} parent=1 // pred_fallthru
      _
    // Predicated region
    $region22: #{lstm_autoencoder_forward.5} parent=1 // pred_check
      _
    $region23: #{lstm_autoencoder_forward.5} parent=1 // pred_check_branch
      %1209 = sbr.rel (0) target = $region25
    $region24: #{lstm_autoencoder_forward.5} parent=1 // pred_region
      _
    $region25: #{lstm_autoencoder_forward.5} parent=1 // pred_fallthru
      _
    // Predicated region
    $region26: #{lstm_autoencoder_forward.5} parent=1 // pred_check
      _
    $region27: #{lstm_autoencoder_forward.5} parent=1 // pred_check_branch
      %1211 = sbr.rel (0) target = $region29
    $region28: #{lstm_autoencoder_forward.5} parent=1 // pred_region
      %s1213 = ssub.s32 128, 128
      %1214 = vsyncadd [#allocation7], %s1213
      %s1216 = sshll.u32 [#allocation6], 4
      %s1217 = int_to_ptr.vmem [resolvable:$true] %s1216
      %1219 = dma.vmem_to_hbm [thread:$0]  %s1217, 128, %s4, [#allocation7]
    $region29: #{lstm_autoencoder_forward.5} parent=1 // pred_fallthru
      _
    // Predicated region
    $region30: #{lstm_autoencoder_forward.5} parent=1 // pred_check
      _
    $region31: #{lstm_autoencoder_forward.5} parent=1 // pred_check_branch
      %1221 = sbr.rel (0) target = $region33
    $region32: #{lstm_autoencoder_forward.5} parent=1 // pred_region
      %1222 = dma.done [#allocation5], 1024
    $region33: #{lstm_autoencoder_forward.5} parent=1 // pred_fallthru
      _
    // Predicated region
    $region34: #{lstm_autoencoder_forward.5} parent=1 // pred_check
      _
    $region35: #{lstm_autoencoder_forward.5} parent=1 // pred_check_branch
      %1224 = sbr.rel (0) target = $region37
    $region36: #{lstm_autoencoder_forward.5} parent=1 // pred_region
      _
    $region37: #{lstm_autoencoder_forward.5} parent=1 // pred_fallthru
      _
    // Predicated region
    $region38: #{lstm_autoencoder_forward.5} parent=1 // pred_check
      _
    $region39: #{lstm_autoencoder_forward.5} parent=1 // pred_check_branch
      %1226 = sbr.rel (0) target = $region41
    $region40: #{lstm_autoencoder_forward.5} parent=1 // pred_region
      %1227 = dma.done [#allocation7], 128
    $region41: #{lstm_autoencoder_forward.5} parent=1 // pred_fallthru
      _
    %1228 = vsyncpa [#allocation5], 1
    %1229 = vsyncpa [#allocation7], 1

// kernel: lstm_autoencoder_forward.6
$region0: #{lstm_autoencoder_forward.6}
  #allocation0 [shape = 'u32[]', space=smem, size = 0x4, offset = 0x4, fixed_abs, tag = 'smem constant byte address 0x4 - core index']
  #allocation1 [shape = 'u32[144,128]{1,0:T(1,128)}', space=vmem, size = 0x12000, scoped, tag = 'internal scratch']
  #allocation2 [shape = 'f32[8,128]{1,0:T(8,128)}', space=vmem, size = 0x1000, scoped, tag = 'scratch operand']
  #allocation3 [shape = 'f32[8,128]{1,0:T(8,128)}', space=vmem, size = 0x1000, scoped, tag = 'scratch operand']
  %s0 = inlined_call_operand.vmem [shape: f32[16,8,512], index: 0, kind: input, shape index: {}]
  %s1 = inlined_call_operand.vmem [shape: bf16[128,512], index: 1, kind: input, shape index: {}]
  %s2 = inlined_call_operand.vmem [shape: f32[16,8,128], index: 2, kind: output, shape index: {0}]
  %s3 = inlined_call_operand.hbm [shape: f32[8,128], index: 3, kind: output, shape index: {1}]
  %s4 = inlined_call_operand.hbm [shape: f32[8,128], index: 4, kind: output, shape index: {2}]
  %5 = xla_tuple %s2, %s3, %s4
  %s6 = sld [smem:[#allocation0]]
  $region42: #{lstm_autoencoder_forward.6} parent=0
    _
  %s8 = ssub.s32 1, %s6
  %s9 = scalar_select 0, %s8, %s6
  $region1: #{lstm_autoencoder_forward.6} parent=0
    #allocation4 [shape = 'u8[4096]{0}', space=vmem, size = 0x1000, scoped, tag = 'output window, operand 1, single buffered']
    #allocation5 [shape = 's32[1]{0}', space=sflag, size = 0x4, scoped, tag = 'scoped memory for lstm_autoencoder_forward.6']
    #allocation6 [shape = 'u8[4096]{0}', space=vmem, size = 0x1000, scoped, tag = 'output window, operand 2, single buffered']
    #allocation7 [shape = 's32[1]{0}', space=sflag, size = 0x4, scoped, tag = 'scoped memory for lstm_autoencoder_forward.6']
    %10 = vsyncpa [#allocation5], 0
    %11 = vsyncpa [#allocation7], 0
    // Predicated region
    $region2: #{lstm_autoencoder_forward.6} parent=1 // pred_check
      _
    $region3: #{lstm_autoencoder_forward.6} parent=1 // pred_check_branch
      %13 = sbr.rel (0) target = $region5
    $region4: #{lstm_autoencoder_forward.6} parent=1 // pred_region
      _
    $region5: #{lstm_autoencoder_forward.6} parent=1 // pred_fallthru
      _
    // Predicated region
    $region6: #{lstm_autoencoder_forward.6} parent=1 // pred_check
      _
    $region7: #{lstm_autoencoder_forward.6} parent=1 // pred_check_branch
      %15 = sbr.rel (0) target = $region9
    $region8: #{lstm_autoencoder_forward.6} parent=1 // pred_region
      _
    $region9: #{lstm_autoencoder_forward.6} parent=1 // pred_fallthru
      _
    %p17 = scmp.eq.s32.totalorder 0, 0
    // Predicated region
    $region10: #{lstm_autoencoder_forward.6} parent=1 // pred_check
      %p18 = pneg %p17
    $region11: #{lstm_autoencoder_forward.6} parent=1 // pred_check_branch
      %20 = sbr.rel (%p18) target = $region13
    $region12: #{lstm_autoencoder_forward.6} parent=1 // pred_region
      %21 = vst [vmem:[#allocation2] sm:$0xff] 0.0
      %22 = vst [vmem:[#allocation3] sm:$0xff] 0.0
    $region13: #{lstm_autoencoder_forward.6} parent=1 // pred_fallthru
      _
    %v23 = vld [vmem:[%s1] sm:$0xff]
    %v24 = vld [vmem:[%s1 + $0x8] sm:$0xff]
    %v25 = vld [vmem:[%s1 + $0x10] sm:$0xff]
    %v26 = vld [vmem:[%s1 + $0x18] sm:$0xff]
    %v27 = vld [vmem:[%s1 + $0x20] sm:$0xff]
    %v28 = vld [vmem:[%s1 + $0x28] sm:$0xff]
    %v29 = vld [vmem:[%s1 + $0x30] sm:$0xff]
    %v30 = vld [vmem:[%s1 + $0x38] sm:$0xff]
    %v31 = vld [vmem:[%s1 + $0x40] sm:$0xff]
    %v32 = vld [vmem:[%s1 + $0x48] sm:$0xff]
    %v33 = vld [vmem:[%s1 + $0x50] sm:$0xff]
    %v34 = vld [vmem:[%s1 + $0x58] sm:$0xff]
    %v35 = vld [vmem:[%s1 + $0x60] sm:$0xff]
    %v36 = vld [vmem:[%s1 + $0x68] sm:$0xff]
    %v37 = vld [vmem:[%s1 + $0x70] sm:$0xff]
    %v38 = vld [vmem:[%s1 + $0x78] sm:$0xff]
    %v39 = vld [vmem:[%s1 + $0x80] sm:$0xff]
    %v40 = vld [vmem:[%s1 + $0x88] sm:$0xff]
    %v41 = vld [vmem:[%s1 + $0x90] sm:$0xff]
    %v42 = vld [vmem:[%s1 + $0x98] sm:$0xff]
    %v43 = vld [vmem:[%s1 + $0xa0] sm:$0xff]
    %v44 = vld [vmem:[%s1 + $0xa8] sm:$0xff]
    %v45 = vld [vmem:[%s1 + $0xb0] sm:$0xff]
    %v46 = vld [vmem:[%s1 + $0xb8] sm:$0xff]
    %v47 = vld [vmem:[%s1 + $0xc0] sm:$0xff]
    %v48 = vld [vmem:[%s1 + $0xc8] sm:$0xff]
    %v49 = vld [vmem:[%s1 + $0xd0] sm:$0xff]
    %v50 = vld [vmem:[%s1 + $0xd8] sm:$0xff]
    %v51 = vld [vmem:[%s1 + $0xe0] sm:$0xff]
    %v52 = vld [vmem:[%s1 + $0xe8] sm:$0xff]
    %v53 = vld [vmem:[%s1 + $0xf0] sm:$0xff]
    %v54 = vld [vmem:[%s1 + $0xf8] sm:$0xff]
    %v55 = vld [vmem:[#allocation2] sm:$0xff]
    %v56 = vld [vmem:[#allocation3] sm:$0xff]
    %v57 = vld [vmem:[%s0] sm:$0xff]
    %v58 = vld [vmem:[%s0 + $0x8] sm:$0xff]
    %v59 = vld [vmem:[%s0 + $0x10] sm:$0xff]
    %v60 = vld [vmem:[%s0 + $0x18] sm:$0xff]
    %v61 = vpack.c.bf16 %v55, %v55
    %v94 = vunpack.c.l.b16 %v23
    %v95 = vunpack.c.h.b16 %v23
    %v96 = vunpack.c.l.b16 %v24
    %v97 = vunpack.c.h.b16 %v24
    %v98 = vunpack.c.l.b16 %v25
    %v99 = vunpack.c.h.b16 %v25
    %v100 = vunpack.c.l.b16 %v26
    %v101 = vunpack.c.h.b16 %v26
    %v102 = vunpack.c.l.b16 %v27
    %v103 = vunpack.c.h.b16 %v27
    %v104 = vunpack.c.l.b16 %v28
    %v105 = vunpack.c.h.b16 %v28
    %v106 = vunpack.c.l.b16 %v29
    %v107 = vunpack.c.h.b16 %v29
    %v108 = vunpack.c.l.b16 %v30
    %v109 = vunpack.c.h.b16 %v30
    %v110 = vunpack.c.l.b16 %v31
    %v111 = vunpack.c.h.b16 %v31
    %v112 = vunpack.c.l.b16 %v32
    %v113 = vunpack.c.h.b16 %v32
    %v114 = vunpack.c.l.b16 %v33
    %v115 = vunpack.c.h.b16 %v33
    %v116 = vunpack.c.l.b16 %v34
    %v117 = vunpack.c.h.b16 %v34
    %v118 = vunpack.c.l.b16 %v35
    %v119 = vunpack.c.h.b16 %v35
    %v120 = vunpack.c.l.b16 %v36
    %v121 = vunpack.c.h.b16 %v36
    %v122 = vunpack.c.l.b16 %v37
    %v123 = vunpack.c.h.b16 %v37
    %v124 = vunpack.c.l.b16 %v38
    %v125 = vunpack.c.h.b16 %v38
    %v126 = vunpack.c.l.b16 %v39
    %v127 = vunpack.c.h.b16 %v39
    %v128 = vunpack.c.l.b16 %v40
    %v129 = vunpack.c.h.b16 %v40
    %v130 = vunpack.c.l.b16 %v41
    %v131 = vunpack.c.h.b16 %v41
    %v132 = vunpack.c.l.b16 %v42
    %v133 = vunpack.c.h.b16 %v42
    %v134 = vunpack.c.l.b16 %v43
    %v135 = vunpack.c.h.b16 %v43
    %v136 = vunpack.c.l.b16 %v44
    %v137 = vunpack.c.h.b16 %v44
    %v138 = vunpack.c.l.b16 %v45
    %v139 = vunpack.c.h.b16 %v45
    %v140 = vunpack.c.l.b16 %v46
    %v141 = vunpack.c.h.b16 %v46
    %v142 = vunpack.c.l.b16 %v47
    %v143 = vunpack.c.h.b16 %v47
    %v144 = vunpack.c.l.b16 %v48
    %v145 = vunpack.c.h.b16 %v48
    %v146 = vunpack.c.l.b16 %v49
    %v147 = vunpack.c.h.b16 %v49
    %v148 = vunpack.c.l.b16 %v50
    %v149 = vunpack.c.h.b16 %v50
    %v150 = vunpack.c.l.b16 %v51
    %v151 = vunpack.c.h.b16 %v51
    %v152 = vunpack.c.l.b16 %v52
    %v153 = vunpack.c.h.b16 %v52
    %v154 = vunpack.c.l.b16 %v53
    %v155 = vunpack.c.h.b16 %v53
    %v156 = vunpack.c.l.b16 %v54
    %v157 = vunpack.c.h.b16 %v54
    %v158 = vpack.c.b16 %v98, %v94
    %v159 = vpack.c.b16 %v99, %v95
    %v160 = vpack.c.b16 %v100, %v96
    %v161 = vpack.c.b16 %v101, %v97
    %v162 = vpack.c.b16 %v106, %v102
    %v163 = vpack.c.b16 %v107, %v103
    %v164 = vpack.c.b16 %v108, %v104
    %v165 = vpack.c.b16 %v109, %v105
    %v166 = vpack.c.b16 %v114, %v110
    %v167 = vpack.c.b16 %v115, %v111
    %v168 = vpack.c.b16 %v116, %v112
    %v169 = vpack.c.b16 %v117, %v113
    %v170 = vpack.c.b16 %v122, %v118
    %v171 = vpack.c.b16 %v123, %v119
    %v172 = vpack.c.b16 %v124, %v120
    %v173 = vpack.c.b16 %v125, %v121
    %v174 = vpack.c.b16 %v130, %v126
    %v175 = vpack.c.b16 %v131, %v127
    %v176 = vpack.c.b16 %v132, %v128
    %v177 = vpack.c.b16 %v133, %v129
    %v178 = vpack.c.b16 %v138, %v134
    %v179 = vpack.c.b16 %v139, %v135
    %v180 = vpack.c.b16 %v140, %v136
    %v181 = vpack.c.b16 %v141, %v137
    %v182 = vpack.c.b16 %v146, %v142
    %v183 = vpack.c.b16 %v147, %v143
    %v184 = vpack.c.b16 %v148, %v144
    %v185 = vpack.c.b16 %v149, %v145
    %v186 = vpack.c.b16 %v154, %v150
    %v187 = vpack.c.b16 %v155, %v151
    %v188 = vpack.c.b16 %v156, %v152
    %v189 = vpack.c.b16 %v157, %v153
    %222 = vmatprep.subr.bf16.mxu0 %v159
    %223 = vmatpush1.bf16.msra.mxu0 %v158
    %224 = vmatprep.subr.bf16.mxu0 %v163
    %225 = vmatpush1.bf16.msra.mxu0 %v162
    %226 = vmatprep.subr.bf16.mxu0 %v167
    %227 = vmatpush1.bf16.msra.mxu0 %v166
    %228 = vmatprep.subr.bf16.mxu0 %v171
    %229 = vmatpush1.bf16.msra.mxu0 %v170
    %230 = vmatprep.subr.bf16.mxu0 %v175
    %231 = vmatpush1.bf16.msra.mxu0 %v174
    %232 = vmatprep.subr.bf16.mxu0 %v179
    %233 = vmatpush1.bf16.msra.mxu0 %v178
    %234 = vmatprep.subr.bf16.mxu0 %v183
    %235 = vmatpush1.bf16.msra.mxu0 %v182
    %236 = vmatprep.subr.bf16.mxu0 %v187
    %237 = vmatpush1.bf16.msra.mxu0 %v186
    %238 = vmatprep.subr.bf16.mxu0 0
    %239 = vmatpush1.bf16.msra.mxu0 0
    %240 = vmatprep.subr.bf16.mxu0 0
    %241 = vmatpush1.bf16.msra.mxu0 0
    %242 = vmatprep.subr.bf16.mxu0 0
    %243 = vmatpush1.bf16.msra.mxu0 0
    %244 = vmatprep.subr.bf16.mxu0 0
    %245 = vmatpush1.bf16.msra.mxu0 0
    %246 = vmatprep.subr.bf16.mxu0 0
    %247 = vmatpush1.bf16.msra.mxu0 0
    %248 = vmatprep.subr.bf16.mxu0 0
    %249 = vmatpush1.bf16.msra.mxu0 0
    %250 = vmatprep.subr.bf16.mxu0 0
    %251 = vmatpush1.bf16.msra.mxu0 0
    %252 = vmatprep.subr.bf16.mxu0 0
    %253 = vmatpush1.bf16.msra.mxu0 0
    %254 = vmatprep.mubr.bf16.mxu0 0
    %255 = vmatmul.mubr.bf16.gmra.mrb[0].mxu0 %v61
    %v256 = vpop.f32.mrb[0].mxu0
    %v257 = vadd.f32 0.0, %v256
    %v258 = vpop.f32.mrb[0].mxu0
    %v259 = vadd.f32 0.0, %v258
    %v260 = vpop.f32.mrb[0].mxu0
    %v261 = vpop.f32.mrb[0].mxu0
    %262 = vdwg.mxu0
    %263 = vmatprep.subr.bf16.mxu0 %v161
    %264 = vmatpush1.bf16.msra.mxu0 %v160
    %265 = vmatprep.subr.bf16.mxu0 %v165
    %266 = vmatpush1.bf16.msra.mxu0 %v164
    %267 = vmatprep.subr.bf16.mxu0 %v169
    %268 = vmatpush1.bf16.msra.mxu0 %v168
    %269 = vmatprep.subr.bf16.mxu0 %v173
    %270 = vmatpush1.bf16.msra.mxu0 %v172
    %271 = vmatprep.subr.bf16.mxu0 %v177
    %272 = vmatpush1.bf16.msra.mxu0 %v176
    %273 = vmatprep.subr.bf16.mxu0 %v181
    %274 = vmatpush1.bf16.msra.mxu0 %v180
    %275 = vmatprep.subr.bf16.mxu0 %v185
    %276 = vmatpush1.bf16.msra.mxu0 %v184
    %277 = vmatprep.subr.bf16.mxu0 %v189
    %278 = vmatpush1.bf16.msra.mxu0 %v188
    %279 = vmatprep.subr.bf16.mxu0 0
    %280 = vmatpush1.bf16.msra.mxu0 0
    %281 = vmatprep.subr.bf16.mxu0 0
    %282 = vmatpush1.bf16.msra.mxu0 0
    %283 = vmatprep.subr.bf16.mxu0 0
    %284 = vmatpush1.bf16.msra.mxu0 0
    %285 = vmatprep.subr.bf16.mxu0 0
    %286 = vmatpush1.bf16.msra.mxu0 0
    %287 = vmatprep.subr.bf16.mxu0 0
    %288 = vmatpush1.bf16.msra.mxu0 0
    %289 = vmatprep.subr.bf16.mxu0 0
    %290 = vmatpush1.bf16.msra.mxu0 0
    %291 = vmatprep.subr.bf16.mxu0 0
    %292 = vmatpush1.bf16.msra.mxu0 0
    %293 = vmatprep.subr.bf16.mxu0 0
    %294 = vmatpush1.bf16.msra.mxu0 0
    %295 = vmatprep.mubr.bf16.mxu0 0
    %296 = vmatmul.mubr.bf16.gmra.mrb[0].mxu0 %v61
    %v297 = vpop.f32.mrb[0].mxu0
    %v298 = vadd.f32 0.0, %v297
    %v299 = vpop.f32.mrb[0].mxu0
    %v300 = vadd.f32 0.0, %v299
    %v301 = vpop.f32.mrb[0].mxu0
    %v302 = vpop.f32.mrb[0].mxu0
    %303 = vdwg.mxu0
    %v304 = vadd.f32 %v57, %v257
    %v305 = vadd.f32 %v58, %v259
    %v306 = vadd.f32 %v59, %v298
    %v307 = vadd.f32 %v60, %v300
    %v308 = vxor.u32 %v304, 2147483648
    %v309 = vmul.f32 %v308, 1.442695
    %v310 = vpow.pop %v309
    %v311 = vadd.f32 %v310, 1.0
    %v312 = vrcp.pop %v311
    %v313 = vmul.f32 1.0, %v312
    %v314 = vxor.u32 %v305, 2147483648
    %v315 = vmul.f32 %v314, 1.442695
    %v316 = vpow.pop %v315
    %v317 = vadd.f32 %v316, 1.0
    %v318 = vrcp.pop %v317
    %v319 = vmul.f32 1.0, %v318
    %v320 = vtanh.pop %v306
    %v321 = vxor.u32 %v307, 2147483648
    %v322 = vmul.f32 %v321, 1.442695
    %v323 = vpow.pop %v322
    %v324 = vadd.f32 %v323, 1.0
    %v325 = vrcp.pop %v324
    %v326 = vmul.f32 1.0, %v325
    %v327 = vmul.f32 %v319, %v56
    %v328 = vmul.f32 %v313, %v320
    %v329 = vadd.f32 %v327, %v328
    %v330 = vtanh.pop %v329
    %v331 = vmul.f32 %v326, %v330
    %332 = vst [vmem:[#allocation2] sm:$0xff] %v331
    %333 = vst [vmem:[#allocation3] sm:$0xff] %v329
    %334 = vst [vmem:[%s2] sm:$0xff] %v331
    %v335 = vld [vmem:[#allocation2] sm:$0xff]
    %v336 = vld [vmem:[#allocation3] sm:$0xff]
    %s337 = scalar_lea.vmem %s0, 32
    %v338 = vld [vmem:[%s337] sm:$0xff]
    %v339 = vld [vmem:[%s337 + $0x8] sm:$0xff]
    %v340 = vld [vmem:[%s337 + $0x10] sm:$0xff]
    %v341 = vld [vmem:[%s337 + $0x18] sm:$0xff]
    %v342 = vpack.c.bf16 %v335, %v335
    %343 = vmatprep.subr.bf16.mxu0 %v159
    %344 = vmatpush1.bf16.msra.mxu0 %v158
    %345 = vmatprep.subr.bf16.mxu0 %v163
    %346 = vmatpush1.bf16.msra.mxu0 %v162
    %347 = vmatprep.subr.bf16.mxu0 %v167
    %348 = vmatpush1.bf16.msra.mxu0 %v166
    %349 = vmatprep.subr.bf16.mxu0 %v171
    %350 = vmatpush1.bf16.msra.mxu0 %v170
    %351 = vmatprep.subr.bf16.mxu0 %v175
    %352 = vmatpush1.bf16.msra.mxu0 %v174
    %353 = vmatprep.subr.bf16.mxu0 %v179
    %354 = vmatpush1.bf16.msra.mxu0 %v178
    %355 = vmatprep.subr.bf16.mxu0 %v183
    %356 = vmatpush1.bf16.msra.mxu0 %v182
    %357 = vmatprep.subr.bf16.mxu0 %v187
    %358 = vmatpush1.bf16.msra.mxu0 %v186
    %359 = vmatprep.subr.bf16.mxu0 0
    %360 = vmatpush1.bf16.msra.mxu0 0
    %361 = vmatprep.subr.bf16.mxu0 0
    %362 = vmatpush1.bf16.msra.mxu0 0
    %363 = vmatprep.subr.bf16.mxu0 0
    %364 = vmatpush1.bf16.msra.mxu0 0
    %365 = vmatprep.subr.bf16.mxu0 0
    %366 = vmatpush1.bf16.msra.mxu0 0
    %367 = vmatprep.subr.bf16.mxu0 0
    %368 = vmatpush1.bf16.msra.mxu0 0
    %369 = vmatprep.subr.bf16.mxu0 0
    %370 = vmatpush1.bf16.msra.mxu0 0
    %371 = vmatprep.subr.bf16.mxu0 0
    %372 = vmatpush1.bf16.msra.mxu0 0
    %373 = vmatprep.subr.bf16.mxu0 0
    %374 = vmatpush1.bf16.msra.mxu0 0
    %375 = vmatprep.mubr.bf16.mxu0 0
    %376 = vmatmul.mubr.bf16.gmra.mrb[0].mxu0 %v342
    %v377 = vpop.f32.mrb[0].mxu0
    %v378 = vadd.f32 0.0, %v377
    %v379 = vpop.f32.mrb[0].mxu0
    %v380 = vadd.f32 0.0, %v379
    %v381 = vpop.f32.mrb[0].mxu0
    %v382 = vpop.f32.mrb[0].mxu0
    %383 = vdwg.mxu0
    %384 = vmatprep.subr.bf16.mxu0 %v161
    %385 = vmatpush1.bf16.msra.mxu0 %v160
    %386 = vmatprep.subr.bf16.mxu0 %v165
    %387 = vmatpush1.bf16.msra.mxu0 %v164
    %388 = vmatprep.subr.bf16.mxu0 %v169
    %389 = vmatpush1.bf16.msra.mxu0 %v168
    %390 = vmatprep.subr.bf16.mxu0 %v173
    %391 = vmatpush1.bf16.msra.mxu0 %v172
    %392 = vmatprep.subr.bf16.mxu0 %v177
    %393 = vmatpush1.bf16.msra.mxu0 %v176
    %394 = vmatprep.subr.bf16.mxu0 %v181
    %395 = vmatpush1.bf16.msra.mxu0 %v180
    %396 = vmatprep.subr.bf16.mxu0 %v185
    %397 = vmatpush1.bf16.msra.mxu0 %v184
    %398 = vmatprep.subr.bf16.mxu0 %v189
    %399 = vmatpush1.bf16.msra.mxu0 %v188
    %400 = vmatprep.subr.bf16.mxu0 0
    %401 = vmatpush1.bf16.msra.mxu0 0
    %402 = vmatprep.subr.bf16.mxu0 0
    %403 = vmatpush1.bf16.msra.mxu0 0
    %404 = vmatprep.subr.bf16.mxu0 0
    %405 = vmatpush1.bf16.msra.mxu0 0
    %406 = vmatprep.subr.bf16.mxu0 0
    %407 = vmatpush1.bf16.msra.mxu0 0
    %408 = vmatprep.subr.bf16.mxu0 0
    %409 = vmatpush1.bf16.msra.mxu0 0
    %410 = vmatprep.subr.bf16.mxu0 0
    %411 = vmatpush1.bf16.msra.mxu0 0
    %412 = vmatprep.subr.bf16.mxu0 0
    %413 = vmatpush1.bf16.msra.mxu0 0
    %414 = vmatprep.subr.bf16.mxu0 0
    %415 = vmatpush1.bf16.msra.mxu0 0
    %416 = vmatprep.mubr.bf16.mxu0 0
    %417 = vmatmul.mubr.bf16.gmra.mrb[0].mxu0 %v342
    %v418 = vpop.f32.mrb[0].mxu0
    %v419 = vadd.f32 0.0, %v418
    %v420 = vpop.f32.mrb[0].mxu0
    %v421 = vadd.f32 0.0, %v420
    %v422 = vpop.f32.mrb[0].mxu0
    %v423 = vpop.f32.mrb[0].mxu0
    %424 = vdwg.mxu0
    %v425 = vadd.f32 %v338, %v378
    %v426 = vadd.f32 %v339, %v380
    %v427 = vadd.f32 %v340, %v419
    %v428 = vadd.f32 %v341, %v421
    %v429 = vxor.u32 %v425, 2147483648
    %v430 = vmul.f32 %v429, 1.442695
    %v431 = vpow.pop %v430
    %v432 = vadd.f32 %v431, 1.0
    %v433 = vrcp.pop %v432
    %v434 = vmul.f32 1.0, %v433
    %v435 = vxor.u32 %v426, 2147483648
    %v436 = vmul.f32 %v435, 1.442695
    %v437 = vpow.pop %v436
    %v438 = vadd.f32 %v437, 1.0
    %v439 = vrcp.pop %v438
    %v440 = vmul.f32 1.0, %v439
    %v441 = vtanh.pop %v427
    %v442 = vxor.u32 %v428, 2147483648
    %v443 = vmul.f32 %v442, 1.442695
    %v444 = vpow.pop %v443
    %v445 = vadd.f32 %v444, 1.0
    %v446 = vrcp.pop %v445
    %v447 = vmul.f32 1.0, %v446
    %v448 = vmul.f32 %v440, %v336
    %v449 = vmul.f32 %v434, %v441
    %v450 = vadd.f32 %v448, %v449
    %v451 = vtanh.pop %v450
    %v452 = vmul.f32 %v447, %v451
    %453 = vst [vmem:[#allocation2] sm:$0xff] %v452
    %454 = vst [vmem:[#allocation3] sm:$0xff] %v450
    %s455 = scalar_lea.vmem %s2, 8
    %456 = vst [vmem:[%s455] sm:$0xff] %v452
    %v457 = vld [vmem:[#allocation2] sm:$0xff]
    %v458 = vld [vmem:[#allocation3] sm:$0xff]
    %s459 = scalar_lea.vmem %s0, 64
    %v460 = vld [vmem:[%s459] sm:$0xff]
    %v461 = vld [vmem:[%s459 + $0x8] sm:$0xff]
    %v462 = vld [vmem:[%s459 + $0x10] sm:$0xff]
    %v463 = vld [vmem:[%s459 + $0x18] sm:$0xff]
    %v464 = vpack.c.bf16 %v457, %v457
    %465 = vmatprep.subr.bf16.mxu0 %v159
    %466 = vmatpush1.bf16.msra.mxu0 %v158
    %467 = vmatprep.subr.bf16.mxu0 %v163
    %468 = vmatpush1.bf16.msra.mxu0 %v162
    %469 = vmatprep.subr.bf16.mxu0 %v167
    %470 = vmatpush1.bf16.msra.mxu0 %v166
    %471 = vmatprep.subr.bf16.mxu0 %v171
    %472 = vmatpush1.bf16.msra.mxu0 %v170
    %473 = vmatprep.subr.bf16.mxu0 %v175
    %474 = vmatpush1.bf16.msra.mxu0 %v174
    %475 = vmatprep.subr.bf16.mxu0 %v179
    %476 = vmatpush1.bf16.msra.mxu0 %v178
    %477 = vmatprep.subr.bf16.mxu0 %v183
    %478 = vmatpush1.bf16.msra.mxu0 %v182
    %479 = vmatprep.subr.bf16.mxu0 %v187
    %480 = vmatpush1.bf16.msra.mxu0 %v186
    %481 = vmatprep.subr.bf16.mxu0 0
    %482 = vmatpush1.bf16.msra.mxu0 0
    %483 = vmatprep.subr.bf16.mxu0 0
    %484 = vmatpush1.bf16.msra.mxu0 0
    %485 = vmatprep.subr.bf16.mxu0 0
    %486 = vmatpush1.bf16.msra.mxu0 0
    %487 = vmatprep.subr.bf16.mxu0 0
    %488 = vmatpush1.bf16.msra.mxu0 0
    %489 = vmatprep.subr.bf16.mxu0 0
    %490 = vmatpush1.bf16.msra.mxu0 0
    %491 = vmatprep.subr.bf16.mxu0 0
    %492 = vmatpush1.bf16.msra.mxu0 0
    %493 = vmatprep.subr.bf16.mxu0 0
    %494 = vmatpush1.bf16.msra.mxu0 0
    %495 = vmatprep.subr.bf16.mxu0 0
    %496 = vmatpush1.bf16.msra.mxu0 0
    %497 = vmatprep.mubr.bf16.mxu0 0
    %498 = vmatmul.mubr.bf16.gmra.mrb[0].mxu0 %v464
    %v499 = vpop.f32.mrb[0].mxu0
    %v500 = vadd.f32 0.0, %v499
    %v501 = vpop.f32.mrb[0].mxu0
    %v502 = vadd.f32 0.0, %v501
    %v503 = vpop.f32.mrb[0].mxu0
    %v504 = vpop.f32.mrb[0].mxu0
    %505 = vdwg.mxu0
    %506 = vmatprep.subr.bf16.mxu0 %v161
    %507 = vmatpush1.bf16.msra.mxu0 %v160
    %508 = vmatprep.subr.bf16.mxu0 %v165
    %509 = vmatpush1.bf16.msra.mxu0 %v164
    %510 = vmatprep.subr.bf16.mxu0 %v169
    %511 = vmatpush1.bf16.msra.mxu0 %v168
    %512 = vmatprep.subr.bf16.mxu0 %v173
    %513 = vmatpush1.bf16.msra.mxu0 %v172
    %514 = vmatprep.subr.bf16.mxu0 %v177
    %515 = vmatpush1.bf16.msra.mxu0 %v176
    %516 = vmatprep.subr.bf16.mxu0 %v181
    %517 = vmatpush1.bf16.msra.mxu0 %v180
    %518 = vmatprep.subr.bf16.mxu0 %v185
    %519 = vmatpush1.bf16.msra.mxu0 %v184
    %520 = vmatprep.subr.bf16.mxu0 %v189
    %521 = vmatpush1.bf16.msra.mxu0 %v188
    %522 = vmatprep.subr.bf16.mxu0 0
    %523 = vmatpush1.bf16.msra.mxu0 0
    %524 = vmatprep.subr.bf16.mxu0 0
    %525 = vmatpush1.bf16.msra.mxu0 0
    %526 = vmatprep.subr.bf16.mxu0 0
    %527 = vmatpush1.bf16.msra.mxu0 0
    %528 = vmatprep.subr.bf16.mxu0 0
    %529 = vmatpush1.bf16.msra.mxu0 0
    %530 = vmatprep.subr.bf16.mxu0 0
    %531 = vmatpush1.bf16.msra.mxu0 0
    %532 = vmatprep.subr.bf16.mxu0 0
    %533 = vmatpush1.bf16.msra.mxu0 0
    %534 = vmatprep.subr.bf16.mxu0 0
    %535 = vmatpush1.bf16.msra.mxu0 0
    %536 = vmatprep.subr.bf16.mxu0 0
    %537 = vmatpush1.bf16.msra.mxu0 0
    %538 = vmatprep.mubr.bf16.mxu0 0
    %539 = vmatmul.mubr.bf16.gmra.mrb[0].mxu0 %v464
    %v540 = vpop.f32.mrb[0].mxu0
    %v541 = vadd.f32 0.0, %v540
    %v542 = vpop.f32.mrb[0].mxu0
    %v543 = vadd.f32 0.0, %v542
    %v544 = vpop.f32.mrb[0].mxu0
    %v545 = vpop.f32.mrb[0].mxu0
    %546 = vdwg.mxu0
    %v547 = vadd.f32 %v460, %v500
    %v548 = vadd.f32 %v461, %v502
    %v549 = vadd.f32 %v462, %v541
    %v550 = vadd.f32 %v463, %v543
    %v551 = vxor.u32 %v547, 2147483648
    %v552 = vmul.f32 %v551, 1.442695
    %v553 = vpow.pop %v552
    %v554 = vadd.f32 %v553, 1.0
    %v555 = vrcp.pop %v554
    %v556 = vmul.f32 1.0, %v555
    %v557 = vxor.u32 %v548, 2147483648
    %v558 = vmul.f32 %v557, 1.442695
    %v559 = vpow.pop %v558
    %v560 = vadd.f32 %v559, 1.0
    %v561 = vrcp.pop %v560
    %v562 = vmul.f32 1.0, %v561
    %v563 = vtanh.pop %v549
    %v564 = vxor.u32 %v550, 2147483648
    %v565 = vmul.f32 %v564, 1.442695
    %v566 = vpow.pop %v565
    %v567 = vadd.f32 %v566, 1.0
    %v568 = vrcp.pop %v567
    %v569 = vmul.f32 1.0, %v568
    %v570 = vmul.f32 %v562, %v458
    %v571 = vmul.f32 %v556, %v563
    %v572 = vadd.f32 %v570, %v571
    %v573 = vtanh.pop %v572
    %v574 = vmul.f32 %v569, %v573
    %575 = vst [vmem:[#allocation2] sm:$0xff] %v574
    %576 = vst [vmem:[#allocation3] sm:$0xff] %v572
    %s577 = scalar_lea.vmem %s2, 16
    %578 = vst [vmem:[%s577] sm:$0xff] %v574
    %v579 = vld [vmem:[#allocation2] sm:$0xff]
    %v580 = vld [vmem:[#allocation3] sm:$0xff]
    %s581 = scalar_lea.vmem %s0, 96
    %v582 = vld [vmem:[%s581] sm:$0xff]
    %v583 = vld [vmem:[%s581 + $0x8] sm:$0xff]
    %v584 = vld [vmem:[%s581 + $0x10] sm:$0xff]
    %v585 = vld [vmem:[%s581 + $0x18] sm:$0xff]
    %v586 = vpack.c.bf16 %v579, %v579
    %587 = vmatprep.subr.bf16.mxu0 %v159
    %588 = vmatpush1.bf16.msra.mxu0 %v158
    %589 = vmatprep.subr.bf16.mxu0 %v163
    %590 = vmatpush1.bf16.msra.mxu0 %v162
    %591 = vmatprep.subr.bf16.mxu0 %v167
    %592 = vmatpush1.bf16.msra.mxu0 %v166
    %593 = vmatprep.subr.bf16.mxu0 %v171
    %594 = vmatpush1.bf16.msra.mxu0 %v170
    %595 = vmatprep.subr.bf16.mxu0 %v175
    %596 = vmatpush1.bf16.msra.mxu0 %v174
    %597 = vmatprep.subr.bf16.mxu0 %v179
    %598 = vmatpush1.bf16.msra.mxu0 %v178
    %599 = vmatprep.subr.bf16.mxu0 %v183
    %600 = vmatpush1.bf16.msra.mxu0 %v182
    %601 = vmatprep.subr.bf16.mxu0 %v187
    %602 = vmatpush1.bf16.msra.mxu0 %v186
    %603 = vmatprep.subr.bf16.mxu0 0
    %604 = vmatpush1.bf16.msra.mxu0 0
    %605 = vmatprep.subr.bf16.mxu0 0
    %606 = vmatpush1.bf16.msra.mxu0 0
    %607 = vmatprep.subr.bf16.mxu0 0
    %608 = vmatpush1.bf16.msra.mxu0 0
    %609 = vmatprep.subr.bf16.mxu0 0
    %610 = vmatpush1.bf16.msra.mxu0 0
    %611 = vmatprep.subr.bf16.mxu0 0
    %612 = vmatpush1.bf16.msra.mxu0 0
    %613 = vmatprep.subr.bf16.mxu0 0
    %614 = vmatpush1.bf16.msra.mxu0 0
    %615 = vmatprep.subr.bf16.mxu0 0
    %616 = vmatpush1.bf16.msra.mxu0 0
    %617 = vmatprep.subr.bf16.mxu0 0
    %618 = vmatpush1.bf16.msra.mxu0 0
    %619 = vmatprep.mubr.bf16.mxu0 0
    %620 = vmatmul.mubr.bf16.gmra.mrb[0].mxu0 %v586
    %v621 = vpop.f32.mrb[0].mxu0
    %v622 = vadd.f32 0.0, %v621
    %v623 = vpop.f32.mrb[0].mxu0
    %v624 = vadd.f32 0.0, %v623
    %v625 = vpop.f32.mrb[0].mxu0
    %v626 = vpop.f32.mrb[0].mxu0
    %627 = vdwg.mxu0
    %628 = vmatprep.subr.bf16.mxu0 %v161
    %629 = vmatpush1.bf16.msra.mxu0 %v160
    %630 = vmatprep.subr.bf16.mxu0 %v165
    %631 = vmatpush1.bf16.msra.mxu0 %v164
    %632 = vmatprep.subr.bf16.mxu0 %v169
    %633 = vmatpush1.bf16.msra.mxu0 %v168
    %634 = vmatprep.subr.bf16.mxu0 %v173
    %635 = vmatpush1.bf16.msra.mxu0 %v172
    %636 = vmatprep.subr.bf16.mxu0 %v177
    %637 = vmatpush1.bf16.msra.mxu0 %v176
    %638 = vmatprep.subr.bf16.mxu0 %v181
    %639 = vmatpush1.bf16.msra.mxu0 %v180
    %640 = vmatprep.subr.bf16.mxu0 %v185
    %641 = vmatpush1.bf16.msra.mxu0 %v184
    %642 = vmatprep.subr.bf16.mxu0 %v189
    %643 = vmatpush1.bf16.msra.mxu0 %v188
    %644 = vmatprep.subr.bf16.mxu0 0
    %645 = vmatpush1.bf16.msra.mxu0 0
    %646 = vmatprep.subr.bf16.mxu0 0
    %647 = vmatpush1.bf16.msra.mxu0 0
    %648 = vmatprep.subr.bf16.mxu0 0
    %649 = vmatpush1.bf16.msra.mxu0 0
    %650 = vmatprep.subr.bf16.mxu0 0
    %651 = vmatpush1.bf16.msra.mxu0 0
    %652 = vmatprep.subr.bf16.mxu0 0
    %653 = vmatpush1.bf16.msra.mxu0 0
    %654 = vmatprep.subr.bf16.mxu0 0
    %655 = vmatpush1.bf16.msra.mxu0 0
    %656 = vmatprep.subr.bf16.mxu0 0
    %657 = vmatpush1.bf16.msra.mxu0 0
    %658 = vmatprep.subr.bf16.mxu0 0
    %659 = vmatpush1.bf16.msra.mxu0 0
    %660 = vmatprep.mubr.bf16.mxu0 0
    %661 = vmatmul.mubr.bf16.gmra.mrb[0].mxu0 %v586
    %v662 = vpop.f32.mrb[0].mxu0
    %v663 = vadd.f32 0.0, %v662
    %v664 = vpop.f32.mrb[0].mxu0
    %v665 = vadd.f32 0.0, %v664
    %v666 = vpop.f32.mrb[0].mxu0
    %v667 = vpop.f32.mrb[0].mxu0
    %668 = vdwg.mxu0
    %v669 = vadd.f32 %v582, %v622
    %v670 = vadd.f32 %v583, %v624
    %v671 = vadd.f32 %v584, %v663
    %v672 = vadd.f32 %v585, %v665
    %v673 = vxor.u32 %v669, 2147483648
    %v674 = vmul.f32 %v673, 1.442695
    %v675 = vpow.pop %v674
    %v676 = vadd.f32 %v675, 1.0
    %v677 = vrcp.pop %v676
    %v678 = vmul.f32 1.0, %v677
    %v679 = vxor.u32 %v670, 2147483648
    %v680 = vmul.f32 %v679, 1.442695
    %v681 = vpow.pop %v680
    %v682 = vadd.f32 %v681, 1.0
    %v683 = vrcp.pop %v682
    %v684 = vmul.f32 1.0, %v683
    %v685 = vtanh.pop %v671
    %v686 = vxor.u32 %v672, 2147483648
    %v687 = vmul.f32 %v686, 1.442695
    %v688 = vpow.pop %v687
    %v689 = vadd.f32 %v688, 1.0
    %v690 = vrcp.pop %v689
    %v691 = vmul.f32 1.0, %v690
    %v692 = vmul.f32 %v684, %v580
    %v693 = vmul.f32 %v678, %v685
    %v694 = vadd.f32 %v692, %v693
    %v695 = vtanh.pop %v694
    %v696 = vmul.f32 %v691, %v695
    %697 = vst [vmem:[#allocation2] sm:$0xff] %v696
    %698 = vst [vmem:[#allocation3] sm:$0xff] %v694
    %s699 = scalar_lea.vmem %s2, 24
    %700 = vst [vmem:[%s699] sm:$0xff] %v696
    %v701 = vld [vmem:[#allocation2] sm:$0xff]
    %v702 = vld [vmem:[#allocation3] sm:$0xff]
    %s703 = scalar_lea.vmem %s0, 128
    %v704 = vld [vmem:[%s703] sm:$0xff]
    %v705 = vld [vmem:[%s703 + $0x8] sm:$0xff]
    %v706 = vld [vmem:[%s703 + $0x10] sm:$0xff]
    %v707 = vld [vmem:[%s703 + $0x18] sm:$0xff]
    %v708 = vpack.c.bf16 %v701, %v701
    %709 = vmatprep.subr.bf16.mxu0 %v159
    %710 = vmatpush1.bf16.msra.mxu0 %v158
    %711 = vmatprep.subr.bf16.mxu0 %v163
    %712 = vmatpush1.bf16.msra.mxu0 %v162
    %713 = vmatprep.subr.bf16.mxu0 %v167
    %714 = vmatpush1.bf16.msra.mxu0 %v166
    %715 = vmatprep.subr.bf16.mxu0 %v171
    %716 = vmatpush1.bf16.msra.mxu0 %v170
    %717 = vmatprep.subr.bf16.mxu0 %v175
    %718 = vmatpush1.bf16.msra.mxu0 %v174
    %719 = vmatprep.subr.bf16.mxu0 %v179
    %720 = vmatpush1.bf16.msra.mxu0 %v178
    %721 = vmatprep.subr.bf16.mxu0 %v183
    %722 = vmatpush1.bf16.msra.mxu0 %v182
    %723 = vmatprep.subr.bf16.mxu0 %v187
    %724 = vmatpush1.bf16.msra.mxu0 %v186
    %725 = vmatprep.subr.bf16.mxu0 0
    %726 = vmatpush1.bf16.msra.mxu0 0
    %727 = vmatprep.subr.bf16.mxu0 0
    %728 = vmatpush1.bf16.msra.mxu0 0
    %729 = vmatprep.subr.bf16.mxu0 0
    %730 = vmatpush1.bf16.msra.mxu0 0
    %731 = vmatprep.subr.bf16.mxu0 0
    %732 = vmatpush1.bf16.msra.mxu0 0
    %733 = vmatprep.subr.bf16.mxu0 0
    %734 = vmatpush1.bf16.msra.mxu0 0
    %735 = vmatprep.subr.bf16.mxu0 0
    %736 = vmatpush1.bf16.msra.mxu0 0
    %737 = vmatprep.subr.bf16.mxu0 0
    %738 = vmatpush1.bf16.msra.mxu0 0
    %739 = vmatprep.subr.bf16.mxu0 0
    %740 = vmatpush1.bf16.msra.mxu0 0
    %741 = vmatprep.mubr.bf16.mxu0 0
    %742 = vmatmul.mubr.bf16.gmra.mrb[0].mxu0 %v708
    %v743 = vpop.f32.mrb[0].mxu0
    %v744 = vadd.f32 0.0, %v743
    %v745 = vpop.f32.mrb[0].mxu0
    %v746 = vadd.f32 0.0, %v745
    %v747 = vpop.f32.mrb[0].mxu0
    %v748 = vpop.f32.mrb[0].mxu0
    %749 = vdwg.mxu0
    %750 = vmatprep.subr.bf16.mxu0 %v161
    %751 = vmatpush1.bf16.msra.mxu0 %v160
    %752 = vmatprep.subr.bf16.mxu0 %v165
    %753 = vmatpush1.bf16.msra.mxu0 %v164
    %754 = vmatprep.subr.bf16.mxu0 %v169
    %755 = vmatpush1.bf16.msra.mxu0 %v168
    %756 = vmatprep.subr.bf16.mxu0 %v173
    %757 = vmatpush1.bf16.msra.mxu0 %v172
    %758 = vmatprep.subr.bf16.mxu0 %v177
    %759 = vmatpush1.bf16.msra.mxu0 %v176
    %760 = vmatprep.subr.bf16.mxu0 %v181
    %761 = vmatpush1.bf16.msra.mxu0 %v180
    %762 = vmatprep.subr.bf16.mxu0 %v185
    %763 = vmatpush1.bf16.msra.mxu0 %v184
    %764 = vmatprep.subr.bf16.mxu0 %v189
    %765 = vmatpush1.bf16.msra.mxu0 %v188
    %766 = vmatprep.subr.bf16.mxu0 0
    %767 = vmatpush1.bf16.msra.mxu0 0
    %768 = vmatprep.subr.bf16.mxu0 0
    %769 = vmatpush1.bf16.msra.mxu0 0
    %770 = vmatprep.subr.bf16.mxu0 0
    %771 = vmatpush1.bf16.msra.mxu0 0
    %772 = vmatprep.subr.bf16.mxu0 0
    %773 = vmatpush1.bf16.msra.mxu0 0
    %774 = vmatprep.subr.bf16.mxu0 0
    %775 = vmatpush1.bf16.msra.mxu0 0
    %776 = vmatprep.subr.bf16.mxu0 0
    %777 = vmatpush1.bf16.msra.mxu0 0
    %778 = vmatprep.subr.bf16.mxu0 0
    %779 = vmatpush1.bf16.msra.mxu0 0
    %780 = vmatprep.subr.bf16.mxu0 0
    %781 = vmatpush1.bf16.msra.mxu0 0
    %782 = vmatprep.mubr.bf16.mxu0 0
    %783 = vmatmul.mubr.bf16.gmra.mrb[0].mxu0 %v708
    %v784 = vpop.f32.mrb[0].mxu0
    %v785 = vadd.f32 0.0, %v784
    %v786 = vpop.f32.mrb[0].mxu0
    %v787 = vadd.f32 0.0, %v786
    %v788 = vpop.f32.mrb[0].mxu0
    %v789 = vpop.f32.mrb[0].mxu0
    %790 = vdwg.mxu0
    %v791 = vadd.f32 %v704, %v744
    %v792 = vadd.f32 %v705, %v746
    %v793 = vadd.f32 %v706, %v785
    %v794 = vadd.f32 %v707, %v787
    %v795 = vxor.u32 %v791, 2147483648
    %v796 = vmul.f32 %v795, 1.442695
    %v797 = vpow.pop %v796
    %v798 = vadd.f32 %v797, 1.0
    %v799 = vrcp.pop %v798
    %v800 = vmul.f32 1.0, %v799
    %v801 = vxor.u32 %v792, 2147483648
    %v802 = vmul.f32 %v801, 1.442695
    %v803 = vpow.pop %v802
    %v804 = vadd.f32 %v803, 1.0
    %v805 = vrcp.pop %v804
    %v806 = vmul.f32 1.0, %v805
    %v807 = vtanh.pop %v793
    %v808 = vxor.u32 %v794, 2147483648
    %v809 = vmul.f32 %v808, 1.442695
    %v810 = vpow.pop %v809
    %v811 = vadd.f32 %v810, 1.0
    %v812 = vrcp.pop %v811
    %v813 = vmul.f32 1.0, %v812
    %v814 = vmul.f32 %v806, %v702
    %v815 = vmul.f32 %v800, %v807
    %v816 = vadd.f32 %v814, %v815
    %v817 = vtanh.pop %v816
    %v818 = vmul.f32 %v813, %v817
    %819 = vst [vmem:[#allocation2] sm:$0xff] %v818
    %820 = vst [vmem:[#allocation3] sm:$0xff] %v816
    %s821 = scalar_lea.vmem %s2, 32
    %822 = vst [vmem:[%s821] sm:$0xff] %v818
    %v823 = vld [vmem:[#allocation2] sm:$0xff]
    %v824 = vld [vmem:[#allocation3] sm:$0xff]
    %s825 = scalar_lea.vmem %s0, 160
    %v826 = vld [vmem:[%s825] sm:$0xff]
    %v827 = vld [vmem:[%s825 + $0x8] sm:$0xff]
    %v828 = vld [vmem:[%s825 + $0x10] sm:$0xff]
    %v829 = vld [vmem:[%s825 + $0x18] sm:$0xff]
    %v830 = vpack.c.bf16 %v823, %v823
    %831 = vmatprep.subr.bf16.mxu0 %v159
    %832 = vmatpush1.bf16.msra.mxu0 %v158
    %833 = vmatprep.subr.bf16.mxu0 %v163
    %834 = vmatpush1.bf16.msra.mxu0 %v162
    %835 = vmatprep.subr.bf16.mxu0 %v167
    %836 = vmatpush1.bf16.msra.mxu0 %v166
    %837 = vmatprep.subr.bf16.mxu0 %v171
    %838 = vmatpush1.bf16.msra.mxu0 %v170
    %839 = vmatprep.subr.bf16.mxu0 %v175
    %840 = vmatpush1.bf16.msra.mxu0 %v174
    %841 = vmatprep.subr.bf16.mxu0 %v179
    %842 = vmatpush1.bf16.msra.mxu0 %v178
    %843 = vmatprep.subr.bf16.mxu0 %v183
    %844 = vmatpush1.bf16.msra.mxu0 %v182
    %845 = vmatprep.subr.bf16.mxu0 %v187
    %846 = vmatpush1.bf16.msra.mxu0 %v186
    %847 = vmatprep.subr.bf16.mxu0 0
    %848 = vmatpush1.bf16.msra.mxu0 0
    %849 = vmatprep.subr.bf16.mxu0 0
    %850 = vmatpush1.bf16.msra.mxu0 0
    %851 = vmatprep.subr.bf16.mxu0 0
    %852 = vmatpush1.bf16.msra.mxu0 0
    %853 = vmatprep.subr.bf16.mxu0 0
    %854 = vmatpush1.bf16.msra.mxu0 0
    %855 = vmatprep.subr.bf16.mxu0 0
    %856 = vmatpush1.bf16.msra.mxu0 0
    %857 = vmatprep.subr.bf16.mxu0 0
    %858 = vmatpush1.bf16.msra.mxu0 0
    %859 = vmatprep.subr.bf16.mxu0 0
    %860 = vmatpush1.bf16.msra.mxu0 0
    %861 = vmatprep.subr.bf16.mxu0 0
    %862 = vmatpush1.bf16.msra.mxu0 0
    %863 = vmatprep.mubr.bf16.mxu0 0
    %864 = vmatmul.mubr.bf16.gmra.mrb[0].mxu0 %v830
    %v865 = vpop.f32.mrb[0].mxu0
    %v866 = vadd.f32 0.0, %v865
    %v867 = vpop.f32.mrb[0].mxu0
    %v868 = vadd.f32 0.0, %v867
    %v869 = vpop.f32.mrb[0].mxu0
    %v870 = vpop.f32.mrb[0].mxu0
    %871 = vdwg.mxu0
    %872 = vmatprep.subr.bf16.mxu0 %v161
    %873 = vmatpush1.bf16.msra.mxu0 %v160
    %874 = vmatprep.subr.bf16.mxu0 %v165
    %875 = vmatpush1.bf16.msra.mxu0 %v164
    %876 = vmatprep.subr.bf16.mxu0 %v169
    %877 = vmatpush1.bf16.msra.mxu0 %v168
    %878 = vmatprep.subr.bf16.mxu0 %v173
    %879 = vmatpush1.bf16.msra.mxu0 %v172
    %880 = vmatprep.subr.bf16.mxu0 %v177
    %881 = vmatpush1.bf16.msra.mxu0 %v176
    %882 = vmatprep.subr.bf16.mxu0 %v181
    %883 = vmatpush1.bf16.msra.mxu0 %v180
    %884 = vmatprep.subr.bf16.mxu0 %v185
    %885 = vmatpush1.bf16.msra.mxu0 %v184
    %886 = vmatprep.subr.bf16.mxu0 %v189
    %887 = vmatpush1.bf16.msra.mxu0 %v188
    %888 = vmatprep.subr.bf16.mxu0 0
    %889 = vmatpush1.bf16.msra.mxu0 0
    %890 = vmatprep.subr.bf16.mxu0 0
    %891 = vmatpush1.bf16.msra.mxu0 0
    %892 = vmatprep.subr.bf16.mxu0 0
    %893 = vmatpush1.bf16.msra.mxu0 0
    %894 = vmatprep.subr.bf16.mxu0 0
    %895 = vmatpush1.bf16.msra.mxu0 0
    %896 = vmatprep.subr.bf16.mxu0 0
    %897 = vmatpush1.bf16.msra.mxu0 0
    %898 = vmatprep.subr.bf16.mxu0 0
    %899 = vmatpush1.bf16.msra.mxu0 0
    %900 = vmatprep.subr.bf16.mxu0 0
    %901 = vmatpush1.bf16.msra.mxu0 0
    %902 = vmatprep.subr.bf16.mxu0 0
    %903 = vmatpush1.bf16.msra.mxu0 0
    %904 = vmatprep.mubr.bf16.mxu0 0
    %905 = vmatmul.mubr.bf16.gmra.mrb[0].mxu0 %v830
    %v906 = vpop.f32.mrb[0].mxu0
    %v907 = vadd.f32 0.0, %v906
    %v908 = vpop.f32.mrb[0].mxu0
    %v909 = vadd.f32 0.0, %v908
    %v910 = vpop.f32.mrb[0].mxu0
    %v911 = vpop.f32.mrb[0].mxu0
    %912 = vdwg.mxu0
    %v913 = vadd.f32 %v826, %v866
    %v914 = vadd.f32 %v827, %v868
    %v915 = vadd.f32 %v828, %v907
    %v916 = vadd.f32 %v829, %v909
    %v917 = vxor.u32 %v913, 2147483648
    %v918 = vmul.f32 %v917, 1.442695
    %v919 = vpow.pop %v918
    %v920 = vadd.f32 %v919, 1.0
    %v921 = vrcp.pop %v920
    %v922 = vmul.f32 1.0, %v921
    %v923 = vxor.u32 %v914, 2147483648
    %v924 = vmul.f32 %v923, 1.442695
    %v925 = vpow.pop %v924
    %v926 = vadd.f32 %v925, 1.0
    %v927 = vrcp.pop %v926
    %v928 = vmul.f32 1.0, %v927
    %v929 = vtanh.pop %v915
    %v930 = vxor.u32 %v916, 2147483648
    %v931 = vmul.f32 %v930, 1.442695
    %v932 = vpow.pop %v931
    %v933 = vadd.f32 %v932, 1.0
    %v934 = vrcp.pop %v933
    %v935 = vmul.f32 1.0, %v934
    %v936 = vmul.f32 %v928, %v824
    %v937 = vmul.f32 %v922, %v929
    %v938 = vadd.f32 %v936, %v937
    %v939 = vtanh.pop %v938
    %v940 = vmul.f32 %v935, %v939
    %941 = vst [vmem:[#allocation2] sm:$0xff] %v940
    %942 = vst [vmem:[#allocation3] sm:$0xff] %v938
    %s943 = scalar_lea.vmem %s2, 40
    %944 = vst [vmem:[%s943] sm:$0xff] %v940
    %v945 = vld [vmem:[#allocation2] sm:$0xff]
    %v946 = vld [vmem:[#allocation3] sm:$0xff]
    %s947 = scalar_lea.vmem %s0, 192
    %v948 = vld [vmem:[%s947] sm:$0xff]
    %v949 = vld [vmem:[%s947 + $0x8] sm:$0xff]
    %v950 = vld [vmem:[%s947 + $0x10] sm:$0xff]
    %v951 = vld [vmem:[%s947 + $0x18] sm:$0xff]
    %v952 = vpack.c.bf16 %v945, %v945
    %953 = vmatprep.subr.bf16.mxu0 %v159
    %954 = vmatpush1.bf16.msra.mxu0 %v158
    %955 = vmatprep.subr.bf16.mxu0 %v163
    %956 = vmatpush1.bf16.msra.mxu0 %v162
    %957 = vmatprep.subr.bf16.mxu0 %v167
    %958 = vmatpush1.bf16.msra.mxu0 %v166
    %959 = vmatprep.subr.bf16.mxu0 %v171
    %960 = vmatpush1.bf16.msra.mxu0 %v170
    %961 = vmatprep.subr.bf16.mxu0 %v175
    %962 = vmatpush1.bf16.msra.mxu0 %v174
    %963 = vmatprep.subr.bf16.mxu0 %v179
    %964 = vmatpush1.bf16.msra.mxu0 %v178
    %965 = vmatprep.subr.bf16.mxu0 %v183
    %966 = vmatpush1.bf16.msra.mxu0 %v182
    %967 = vmatprep.subr.bf16.mxu0 %v187
    %968 = vmatpush1.bf16.msra.mxu0 %v186
    %969 = vmatprep.subr.bf16.mxu0 0
    %970 = vmatpush1.bf16.msra.mxu0 0
    %971 = vmatprep.subr.bf16.mxu0 0
    %972 = vmatpush1.bf16.msra.mxu0 0
    %973 = vmatprep.subr.bf16.mxu0 0
    %974 = vmatpush1.bf16.msra.mxu0 0
    %975 = vmatprep.subr.bf16.mxu0 0
    %976 = vmatpush1.bf16.msra.mxu0 0
    %977 = vmatprep.subr.bf16.mxu0 0
    %978 = vmatpush1.bf16.msra.mxu0 0
    %979 = vmatprep.subr.bf16.mxu0 0
    %980 = vmatpush1.bf16.msra.mxu0 0
    %981 = vmatprep.subr.bf16.mxu0 0
    %982 = vmatpush1.bf16.msra.mxu0 0
    %983 = vmatprep.subr.bf16.mxu0 0
    %984 = vmatpush1.bf16.msra.mxu0 0
    %985 = vmatprep.mubr.bf16.mxu0 0
    %986 = vmatmul.mubr.bf16.gmra.mrb[0].mxu0 %v952
    %v987 = vpop.f32.mrb[0].mxu0
    %v988 = vadd.f32 0.0, %v987
    %v989 = vpop.f32.mrb[0].mxu0
    %v990 = vadd.f32 0.0, %v989
    %v991 = vpop.f32.mrb[0].mxu0
    %v992 = vpop.f32.mrb[0].mxu0
    %993 = vdwg.mxu0
    %994 = vmatprep.subr.bf16.mxu0 %v161
    %995 = vmatpush1.bf16.msra.mxu0 %v160
    %996 = vmatprep.subr.bf16.mxu0 %v165
    %997 = vmatpush1.bf16.msra.mxu0 %v164
    %998 = vmatprep.subr.bf16.mxu0 %v169
    %999 = vmatpush1.bf16.msra.mxu0 %v168
    %1000 = vmatprep.subr.bf16.mxu0 %v173
    %1001 = vmatpush1.bf16.msra.mxu0 %v172
    %1002 = vmatprep.subr.bf16.mxu0 %v177
    %1003 = vmatpush1.bf16.msra.mxu0 %v176
    %1004 = vmatprep.subr.bf16.mxu0 %v181
    %1005 = vmatpush1.bf16.msra.mxu0 %v180
    %1006 = vmatprep.subr.bf16.mxu0 %v185
    %1007 = vmatpush1.bf16.msra.mxu0 %v184
    %1008 = vmatprep.subr.bf16.mxu0 %v189
    %1009 = vmatpush1.bf16.msra.mxu0 %v188
    %1010 = vmatprep.subr.bf16.mxu0 0
    %1011 = vmatpush1.bf16.msra.mxu0 0
    %1012 = vmatprep.subr.bf16.mxu0 0
    %1013 = vmatpush1.bf16.msra.mxu0 0
    %1014 = vmatprep.subr.bf16.mxu0 0
    %1015 = vmatpush1.bf16.msra.mxu0 0
    %1016 = vmatprep.subr.bf16.mxu0 0
    %1017 = vmatpush1.bf16.msra.mxu0 0
    %1018 = vmatprep.subr.bf16.mxu0 0
    %1019 = vmatpush1.bf16.msra.mxu0 0
    %1020 = vmatprep.subr.bf16.mxu0 0
    %1021 = vmatpush1.bf16.msra.mxu0 0
    %1022 = vmatprep.subr.bf16.mxu0 0
    %1023 = vmatpush1.bf16.msra.mxu0 0
    %1024 = vmatprep.subr.bf16.mxu0 0
    %1025 = vmatpush1.bf16.msra.mxu0 0
    %1026 = vmatprep.mubr.bf16.mxu0 0
    %1027 = vmatmul.mubr.bf16.gmra.mrb[0].mxu0 %v952
    %v1028 = vpop.f32.mrb[0].mxu0
    %v1029 = vadd.f32 0.0, %v1028
    %v1030 = vpop.f32.mrb[0].mxu0
    %v1031 = vadd.f32 0.0, %v1030
    %v1032 = vpop.f32.mrb[0].mxu0
    %v1033 = vpop.f32.mrb[0].mxu0
    %1034 = vdwg.mxu0
    %v1035 = vadd.f32 %v948, %v988
    %v1036 = vadd.f32 %v949, %v990
    %v1037 = vadd.f32 %v950, %v1029
    %v1038 = vadd.f32 %v951, %v1031
    %v1039 = vxor.u32 %v1035, 2147483648
    %v1040 = vmul.f32 %v1039, 1.442695
    %v1041 = vpow.pop %v1040
    %v1042 = vadd.f32 %v1041, 1.0
    %v1043 = vrcp.pop %v1042
    %v1044 = vmul.f32 1.0, %v1043
    %v1045 = vxor.u32 %v1036, 2147483648
    %v1046 = vmul.f32 %v1045, 1.442695
    %v1047 = vpow.pop %v1046
    %v1048 = vadd.f32 %v1047, 1.0
    %v1049 = vrcp.pop %v1048
    %v1050 = vmul.f32 1.0, %v1049
    %v1051 = vtanh.pop %v1037
    %v1052 = vxor.u32 %v1038, 2147483648
    %v1053 = vmul.f32 %v1052, 1.442695
    %v1054 = vpow.pop %v1053
    %v1055 = vadd.f32 %v1054, 1.0
    %v1056 = vrcp.pop %v1055
    %v1057 = vmul.f32 1.0, %v1056
    %v1058 = vmul.f32 %v1050, %v946
    %v1059 = vmul.f32 %v1044, %v1051
    %v1060 = vadd.f32 %v1058, %v1059
    %v1061 = vtanh.pop %v1060
    %v1062 = vmul.f32 %v1057, %v1061
    %1063 = vst [vmem:[#allocation2] sm:$0xff] %v1062
    %1064 = vst [vmem:[#allocation3] sm:$0xff] %v1060
    %s1065 = scalar_lea.vmem %s2, 48
    %1066 = vst [vmem:[%s1065] sm:$0xff] %v1062
    %v1067 = vld [vmem:[#allocation2] sm:$0xff]
    %v1068 = vld [vmem:[#allocation3] sm:$0xff]
    %s1069 = scalar_lea.vmem %s0, 224
    %v1070 = vld [vmem:[%s1069] sm:$0xff]
    %v1071 = vld [vmem:[%s1069 + $0x8] sm:$0xff]
    %v1072 = vld [vmem:[%s1069 + $0x10] sm:$0xff]
    %v1073 = vld [vmem:[%s1069 + $0x18] sm:$0xff]
    %v1074 = vpack.c.bf16 %v1067, %v1067
    %1075 = vmatprep.subr.bf16.mxu0 %v159
    %1076 = vmatpush1.bf16.msra.mxu0 %v158
    %1077 = vmatprep.subr.bf16.mxu0 %v163
    %1078 = vmatpush1.bf16.msra.mxu0 %v162
    %1079 = vmatprep.subr.bf16.mxu0 %v167
    %1080 = vmatpush1.bf16.msra.mxu0 %v166
    %1081 = vmatprep.subr.bf16.mxu0 %v171
    %1082 = vmatpush1.bf16.msra.mxu0 %v170
    %1083 = vmatprep.subr.bf16.mxu0 %v175
    %1084 = vmatpush1.bf16.msra.mxu0 %v174
    %1085 = vmatprep.subr.bf16.mxu0 %v179
    %1086 = vmatpush1.bf16.msra.mxu0 %v178
    %1087 = vmatprep.subr.bf16.mxu0 %v183
    %1088 = vmatpush1.bf16.msra.mxu0 %v182
    %1089 = vmatprep.subr.bf16.mxu0 %v187
    %1090 = vmatpush1.bf16.msra.mxu0 %v186
    %1091 = vmatprep.subr.bf16.mxu0 0
    %1092 = vmatpush1.bf16.msra.mxu0 0
    %1093 = vmatprep.subr.bf16.mxu0 0
    %1094 = vmatpush1.bf16.msra.mxu0 0
    %1095 = vmatprep.subr.bf16.mxu0 0
    %1096 = vmatpush1.bf16.msra.mxu0 0
    %1097 = vmatprep.subr.bf16.mxu0 0
    %1098 = vmatpush1.bf16.msra.mxu0 0
    %1099 = vmatprep.subr.bf16.mxu0 0
    %1100 = vmatpush1.bf16.msra.mxu0 0
    %1101 = vmatprep.subr.bf16.mxu0 0
    %1102 = vmatpush1.bf16.msra.mxu0 0
    %1103 = vmatprep.subr.bf16.mxu0 0
    %1104 = vmatpush1.bf16.msra.mxu0 0
    %1105 = vmatprep.subr.bf16.mxu0 0
    %1106 = vmatpush1.bf16.msra.mxu0 0
    %1107 = vmatprep.mubr.bf16.mxu0 0
    %1108 = vmatmul.mubr.bf16.gmra.mrb[0].mxu0 %v1074
    %v1109 = vpop.f32.mrb[0].mxu0
    %v1110 = vadd.f32 0.0, %v1109
    %v1111 = vpop.f32.mrb[0].mxu0
    %v1112 = vadd.f32 0.0, %v1111
    %v1113 = vpop.f32.mrb[0].mxu0
    %v1114 = vpop.f32.mrb[0].mxu0
    %1115 = vdwg.mxu0
    %1116 = vmatprep.subr.bf16.mxu0 %v161
    %1117 = vmatpush1.bf16.msra.mxu0 %v160
    %1118 = vmatprep.subr.bf16.mxu0 %v165
    %1119 = vmatpush1.bf16.msra.mxu0 %v164
    %1120 = vmatprep.subr.bf16.mxu0 %v169
    %1121 = vmatpush1.bf16.msra.mxu0 %v168
    %1122 = vmatprep.subr.bf16.mxu0 %v173
    %1123 = vmatpush1.bf16.msra.mxu0 %v172
    %1124 = vmatprep.subr.bf16.mxu0 %v177
    %1125 = vmatpush1.bf16.msra.mxu0 %v176
    %1126 = vmatprep.subr.bf16.mxu0 %v181
    %1127 = vmatpush1.bf16.msra.mxu0 %v180
    %1128 = vmatprep.subr.bf16.mxu0 %v185
    %1129 = vmatpush1.bf16.msra.mxu0 %v184
    %1130 = vmatprep.subr.bf16.mxu0 %v189
    %1131 = vmatpush1.bf16.msra.mxu0 %v188
    %1132 = vmatprep.subr.bf16.mxu0 0
    %1133 = vmatpush1.bf16.msra.mxu0 0
    %1134 = vmatprep.subr.bf16.mxu0 0
    %1135 = vmatpush1.bf16.msra.mxu0 0
    %1136 = vmatprep.subr.bf16.mxu0 0
    %1137 = vmatpush1.bf16.msra.mxu0 0
    %1138 = vmatprep.subr.bf16.mxu0 0
    %1139 = vmatpush1.bf16.msra.mxu0 0
    %1140 = vmatprep.subr.bf16.mxu0 0
    %1141 = vmatpush1.bf16.msra.mxu0 0
    %1142 = vmatprep.subr.bf16.mxu0 0
    %1143 = vmatpush1.bf16.msra.mxu0 0
    %1144 = vmatprep.subr.bf16.mxu0 0
    %1145 = vmatpush1.bf16.msra.mxu0 0
    %1146 = vmatprep.subr.bf16.mxu0 0
    %1147 = vmatpush1.bf16.msra.mxu0 0
    %1148 = vmatprep.mubr.bf16.mxu0 0
    %1149 = vmatmul.mubr.bf16.gmra.mrb[0].mxu0 %v1074
    %v1150 = vpop.f32.mrb[0].mxu0
    %v1151 = vadd.f32 0.0, %v1150
    %v1152 = vpop.f32.mrb[0].mxu0
    %v1153 = vadd.f32 0.0, %v1152
    %v1154 = vpop.f32.mrb[0].mxu0
    %v1155 = vpop.f32.mrb[0].mxu0
    %1156 = vdwg.mxu0
    %v1157 = vadd.f32 %v1070, %v1110
    %v1158 = vadd.f32 %v1071, %v1112
    %v1159 = vadd.f32 %v1072, %v1151
    %v1160 = vadd.f32 %v1073, %v1153
    %v1161 = vxor.u32 %v1157, 2147483648
    %v1162 = vmul.f32 %v1161, 1.442695
    %v1163 = vpow.pop %v1162
    %v1164 = vadd.f32 %v1163, 1.0
    %v1165 = vrcp.pop %v1164
    %v1166 = vmul.f32 1.0, %v1165
    %v1167 = vxor.u32 %v1158, 2147483648
    %v1168 = vmul.f32 %v1167, 1.442695
    %v1169 = vpow.pop %v1168
    %v1170 = vadd.f32 %v1169, 1.0
    %v1171 = vrcp.pop %v1170
    %v1172 = vmul.f32 1.0, %v1171
    %v1173 = vtanh.pop %v1159
    %v1174 = vxor.u32 %v1160, 2147483648
    %v1175 = vmul.f32 %v1174, 1.442695
    %v1176 = vpow.pop %v1175
    %v1177 = vadd.f32 %v1176, 1.0
    %v1178 = vrcp.pop %v1177
    %v1179 = vmul.f32 1.0, %v1178
    %v1180 = vmul.f32 %v1172, %v1068
    %v1181 = vmul.f32 %v1166, %v1173
    %v1182 = vadd.f32 %v1180, %v1181
    %v1183 = vtanh.pop %v1182
    %v1184 = vmul.f32 %v1179, %v1183
    %1185 = vst [vmem:[#allocation2] sm:$0xff] %v1184
    %1186 = vst [vmem:[#allocation3] sm:$0xff] %v1182
    %s1187 = scalar_lea.vmem %s2, 56
    %1188 = vst [vmem:[%s1187] sm:$0xff] %v1184
    %v1189 = vld [vmem:[#allocation2] sm:$0xff]
    %v1190 = vld [vmem:[#allocation3] sm:$0xff]
    %s1191 = scalar_lea.vmem %s0, 256
    %v1192 = vld [vmem:[%s1191] sm:$0xff]
    %v1193 = vld [vmem:[%s1191 + $0x8] sm:$0xff]
    %v1194 = vld [vmem:[%s1191 + $0x10] sm:$0xff]
    %v1195 = vld [vmem:[%s1191 + $0x18] sm:$0xff]
    %v1196 = vpack.c.bf16 %v1189, %v1189
    %1197 = vmatprep.subr.bf16.mxu0 %v159
    %1198 = vmatpush1.bf16.msra.mxu0 %v158
    %1199 = vmatprep.subr.bf16.mxu0 %v163
    %1200 = vmatpush1.bf16.msra.mxu0 %v162
    %1201 = vmatprep.subr.bf16.mxu0 %v167
    %1202 = vmatpush1.bf16.msra.mxu0 %v166
    %1203 = vmatprep.subr.bf16.mxu0 %v171
    %1204 = vmatpush1.bf16.msra.mxu0 %v170
    %1205 = vmatprep.subr.bf16.mxu0 %v175
    %1206 = vmatpush1.bf16.msra.mxu0 %v174
    %1207 = vmatprep.subr.bf16.mxu0 %v179
    %1208 = vmatpush1.bf16.msra.mxu0 %v178
    %1209 = vmatprep.subr.bf16.mxu0 %v183
    %1210 = vmatpush1.bf16.msra.mxu0 %v182
    %1211 = vmatprep.subr.bf16.mxu0 %v187
    %1212 = vmatpush1.bf16.msra.mxu0 %v186
    %1213 = vmatprep.subr.bf16.mxu0 0
    %1214 = vmatpush1.bf16.msra.mxu0 0
    %1215 = vmatprep.subr.bf16.mxu0 0
    %1216 = vmatpush1.bf16.msra.mxu0 0
    %1217 = vmatprep.subr.bf16.mxu0 0
    %1218 = vmatpush1.bf16.msra.mxu0 0
    %1219 = vmatprep.subr.bf16.mxu0 0
    %1220 = vmatpush1.bf16.msra.mxu0 0
    %1221 = vmatprep.subr.bf16.mxu0 0
    %1222 = vmatpush1.bf16.msra.mxu0 0
    %1223 = vmatprep.subr.bf16.mxu0 0
    %1224 = vmatpush1.bf16.msra.mxu0 0
    %1225 = vmatprep.subr.bf16.mxu0 0
    %1226 = vmatpush1.bf16.msra.mxu0 0
    %1227 = vmatprep.subr.bf16.mxu0 0
    %1228 = vmatpush1.bf16.msra.mxu0 0
    %1229 = vmatprep.mubr.bf16.mxu0 0
    %1230 = vmatmul.mubr.bf16.gmra.mrb[0].mxu0 %v1196
    %v1231 = vpop.f32.mrb[0].mxu0
    %v1232 = vadd.f32 0.0, %v1231
    %v1233 = vpop.f32.mrb[0].mxu0
    %v1234 = vadd.f32 0.0, %v1233
    %v1235 = vpop.f32.mrb[0].mxu0
    %v1236 = vpop.f32.mrb[0].mxu0
    %1237 = vdwg.mxu0
    %1238 = vmatprep.subr.bf16.mxu0 %v161
    %1239 = vmatpush1.bf16.msra.mxu0 %v160
    %1240 = vmatprep.subr.bf16.mxu0 %v165
    %1241 = vmatpush1.bf16.msra.mxu0 %v164
    %1242 = vmatprep.subr.bf16.mxu0 %v169
    %1243 = vmatpush1.bf16.msra.mxu0 %v168
    %1244 = vmatprep.subr.bf16.mxu0 %v173
    %1245 = vmatpush1.bf16.msra.mxu0 %v172
    %1246 = vmatprep.subr.bf16.mxu0 %v177
    %1247 = vmatpush1.bf16.msra.mxu0 %v176
    %1248 = vmatprep.subr.bf16.mxu0 %v181
    %1249 = vmatpush1.bf16.msra.mxu0 %v180
    %1250 = vmatprep.subr.bf16.mxu0 %v185
    %1251 = vmatpush1.bf16.msra.mxu0 %v184
    %1252 = vmatprep.subr.bf16.mxu0 %v189
    %1253 = vmatpush1.bf16.msra.mxu0 %v188
    %1254 = vmatprep.subr.bf16.mxu0 0
    %1255 = vmatpush1.bf16.msra.mxu0 0
    %1256 = vmatprep.subr.bf16.mxu0 0
    %1257 = vmatpush1.bf16.msra.mxu0 0
    %1258 = vmatprep.subr.bf16.mxu0 0
    %1259 = vmatpush1.bf16.msra.mxu0 0
    %1260 = vmatprep.subr.bf16.mxu0 0
    %1261 = vmatpush1.bf16.msra.mxu0 0
    %1262 = vmatprep.subr.bf16.mxu0 0
    %1263 = vmatpush1.bf16.msra.mxu0 0
    %1264 = vmatprep.subr.bf16.mxu0 0
    %1265 = vmatpush1.bf16.msra.mxu0 0
    %1266 = vmatprep.subr.bf16.mxu0 0
    %1267 = vmatpush1.bf16.msra.mxu0 0
    %1268 = vmatprep.subr.bf16.mxu0 0
    %1269 = vmatpush1.bf16.msra.mxu0 0
    %1270 = vmatprep.mubr.bf16.mxu0 0
    %1271 = vmatmul.mubr.bf16.gmra.mrb[0].mxu0 %v1196
    %v1272 = vpop.f32.mrb[0].mxu0
    %v1273 = vadd.f32 0.0, %v1272
    %v1274 = vpop.f32.mrb[0].mxu0
    %v1275 = vadd.f32 0.0, %v1274
    %v1276 = vpop.f32.mrb[0].mxu0
    %v1277 = vpop.f32.mrb[0].mxu0
    %1278 = vdwg.mxu0
    %v1279 = vadd.f32 %v1192, %v1232
    %v1280 = vadd.f32 %v1193, %v1234
    %v1281 = vadd.f32 %v1194, %v1273
    %v1282 = vadd.f32 %v1195, %v1275
    %v1283 = vxor.u32 %v1279, 2147483648
    %v1284 = vmul.f32 %v1283, 1.442695
    %v1285 = vpow.pop %v1284
    %v1286 = vadd.f32 %v1285, 1.0
    %v1287 = vrcp.pop %v1286
    %v1288 = vmul.f32 1.0, %v1287
    %v1289 = vxor.u32 %v1280, 2147483648
    %v1290 = vmul.f32 %v1289, 1.442695
    %v1291 = vpow.pop %v1290
    %v1292 = vadd.f32 %v1291, 1.0
    %v1293 = vrcp.pop %v1292
    %v1294 = vmul.f32 1.0, %v1293
    %v1295 = vtanh.pop %v1281
    %v1296 = vxor.u32 %v1282, 2147483648
    %v1297 = vmul.f32 %v1296, 1.442695
    %v1298 = vpow.pop %v1297
    %v1299 = vadd.f32 %v1298, 1.0
    %v1300 = vrcp.pop %v1299
    %v1301 = vmul.f32 1.0, %v1300
    %v1302 = vmul.f32 %v1294, %v1190
    %v1303 = vmul.f32 %v1288, %v1295
    %v1304 = vadd.f32 %v1302, %v1303
    %v1305 = vtanh.pop %v1304
    %v1306 = vmul.f32 %v1301, %v1305
    %1307 = vst [vmem:[#allocation2] sm:$0xff] %v1306
    %1308 = vst [vmem:[#allocation3] sm:$0xff] %v1304
    %s1309 = scalar_lea.vmem %s2, 64
    %1310 = vst [vmem:[%s1309] sm:$0xff] %v1306
    %v1311 = vld [vmem:[#allocation2] sm:$0xff]
    %v1312 = vld [vmem:[#allocation3] sm:$0xff]
    %s1313 = scalar_lea.vmem %s0, 288
    %v1314 = vld [vmem:[%s1313] sm:$0xff]
    %v1315 = vld [vmem:[%s1313 + $0x8] sm:$0xff]
    %v1316 = vld [vmem:[%s1313 + $0x10] sm:$0xff]
    %v1317 = vld [vmem:[%s1313 + $0x18] sm:$0xff]
    %v1318 = vpack.c.bf16 %v1311, %v1311
    %1319 = vmatprep.subr.bf16.mxu0 %v159
    %1320 = vmatpush1.bf16.msra.mxu0 %v158
    %1321 = vmatprep.subr.bf16.mxu0 %v163
    %1322 = vmatpush1.bf16.msra.mxu0 %v162
    %1323 = vmatprep.subr.bf16.mxu0 %v167
    %1324 = vmatpush1.bf16.msra.mxu0 %v166
    %1325 = vmatprep.subr.bf16.mxu0 %v171
    %1326 = vmatpush1.bf16.msra.mxu0 %v170
    %1327 = vmatprep.subr.bf16.mxu0 %v175
    %1328 = vmatpush1.bf16.msra.mxu0 %v174
    %1329 = vmatprep.subr.bf16.mxu0 %v179
    %1330 = vmatpush1.bf16.msra.mxu0 %v178
    %1331 = vmatprep.subr.bf16.mxu0 %v183
    %1332 = vmatpush1.bf16.msra.mxu0 %v182
    %1333 = vmatprep.subr.bf16.mxu0 %v187
    %1334 = vmatpush1.bf16.msra.mxu0 %v186
    %1335 = vmatprep.subr.bf16.mxu0 0
    %1336 = vmatpush1.bf16.msra.mxu0 0
    %1337 = vmatprep.subr.bf16.mxu0 0
    %1338 = vmatpush1.bf16.msra.mxu0 0
    %1339 = vmatprep.subr.bf16.mxu0 0
    %1340 = vmatpush1.bf16.msra.mxu0 0
    %1341 = vmatprep.subr.bf16.mxu0 0
    %1342 = vmatpush1.bf16.msra.mxu0 0
    %1343 = vmatprep.subr.bf16.mxu0 0
    %1344 = vmatpush1.bf16.msra.mxu0 0
    %1345 = vmatprep.subr.bf16.mxu0 0
    %1346 = vmatpush1.bf16.msra.mxu0 0
    %1347 = vmatprep.subr.bf16.mxu0 0
    %1348 = vmatpush1.bf16.msra.mxu0 0
    %1349 = vmatprep.subr.bf16.mxu0 0
    %1350 = vmatpush1.bf16.msra.mxu0 0
    %1351 = vmatprep.mubr.bf16.mxu0 0
    %1352 = vmatmul.mubr.bf16.gmra.mrb[0].mxu0 %v1318
    %v1353 = vpop.f32.mrb[0].mxu0
    %v1354 = vadd.f32 0.0, %v1353
    %v1355 = vpop.f32.mrb[0].mxu0
    %v1356 = vadd.f32 0.0, %v1355
    %v1357 = vpop.f32.mrb[0].mxu0
    %v1358 = vpop.f32.mrb[0].mxu0
    %1359 = vdwg.mxu0
    %1360 = vmatprep.subr.bf16.mxu0 %v161
    %1361 = vmatpush1.bf16.msra.mxu0 %v160
    %1362 = vmatprep.subr.bf16.mxu0 %v165
    %1363 = vmatpush1.bf16.msra.mxu0 %v164
    %1364 = vmatprep.subr.bf16.mxu0 %v169
    %1365 = vmatpush1.bf16.msra.mxu0 %v168
    %1366 = vmatprep.subr.bf16.mxu0 %v173
    %1367 = vmatpush1.bf16.msra.mxu0 %v172
    %1368 = vmatprep.subr.bf16.mxu0 %v177
    %1369 = vmatpush1.bf16.msra.mxu0 %v176
    %1370 = vmatprep.subr.bf16.mxu0 %v181
    %1371 = vmatpush1.bf16.msra.mxu0 %v180
    %1372 = vmatprep.subr.bf16.mxu0 %v185
    %1373 = vmatpush1.bf16.msra.mxu0 %v184
    %1374 = vmatprep.subr.bf16.mxu0 %v189
    %1375 = vmatpush1.bf16.msra.mxu0 %v188
    %1376 = vmatprep.subr.bf16.mxu0 0
    %1377 = vmatpush1.bf16.msra.mxu0 0
    %1378 = vmatprep.subr.bf16.mxu0 0
    %1379 = vmatpush1.bf16.msra.mxu0 0
    %1380 = vmatprep.subr.bf16.mxu0 0
    %1381 = vmatpush1.bf16.msra.mxu0 0
    %1382 = vmatprep.subr.bf16.mxu0 0
    %1383 = vmatpush1.bf16.msra.mxu0 0
    %1384 = vmatprep.subr.bf16.mxu0 0
    %1385 = vmatpush1.bf16.msra.mxu0 0
    %1386 = vmatprep.subr.bf16.mxu0 0
    %1387 = vmatpush1.bf16.msra.mxu0 0
    %1388 = vmatprep.subr.bf16.mxu0 0
    %1389 = vmatpush1.bf16.msra.mxu0 0
    %1390 = vmatprep.subr.bf16.mxu0 0
    %1391 = vmatpush1.bf16.msra.mxu0 0
    %1392 = vmatprep.mubr.bf16.mxu0 0
    %1393 = vmatmul.mubr.bf16.gmra.mrb[0].mxu0 %v1318
    %v1394 = vpop.f32.mrb[0].mxu0
    %v1395 = vadd.f32 0.0, %v1394
    %v1396 = vpop.f32.mrb[0].mxu0
    %v1397 = vadd.f32 0.0, %v1396
    %v1398 = vpop.f32.mrb[0].mxu0
    %v1399 = vpop.f32.mrb[0].mxu0
    %1400 = vdwg.mxu0
    %v1401 = vadd.f32 %v1314, %v1354
    %v1402 = vadd.f32 %v1315, %v1356
    %v1403 = vadd.f32 %v1316, %v1395
    %v1404 = vadd.f32 %v1317, %v1397
    %v1405 = vxor.u32 %v1401, 2147483648
    %v1406 = vmul.f32 %v1405, 1.442695
    %v1407 = vpow.pop %v1406
    %v1408 = vadd.f32 %v1407, 1.0
    %v1409 = vrcp.pop %v1408
    %v1410 = vmul.f32 1.0, %v1409
    %v1411 = vxor.u32 %v1402, 2147483648
    %v1412 = vmul.f32 %v1411, 1.442695
    %v1413 = vpow.pop %v1412
    %v1414 = vadd.f32 %v1413, 1.0
    %v1415 = vrcp.pop %v1414
    %v1416 = vmul.f32 1.0, %v1415
    %v1417 = vtanh.pop %v1403
    %v1418 = vxor.u32 %v1404, 2147483648
    %v1419 = vmul.f32 %v1418, 1.442695
    %v1420 = vpow.pop %v1419
    %v1421 = vadd.f32 %v1420, 1.0
    %v1422 = vrcp.pop %v1421
    %v1423 = vmul.f32 1.0, %v1422
    %v1424 = vmul.f32 %v1416, %v1312
    %v1425 = vmul.f32 %v1410, %v1417
    %v1426 = vadd.f32 %v1424, %v1425
    %v1427 = vtanh.pop %v1426
    %v1428 = vmul.f32 %v1423, %v1427
    %1429 = vst [vmem:[#allocation2] sm:$0xff] %v1428
    %1430 = vst [vmem:[#allocation3] sm:$0xff] %v1426
    %s1431 = scalar_lea.vmem %s2, 72
    %1432 = vst [vmem:[%s1431] sm:$0xff] %v1428
    %v1433 = vld [vmem:[#allocation2] sm:$0xff]
    %v1434 = vld [vmem:[#allocation3] sm:$0xff]
    %s1435 = scalar_lea.vmem %s0, 320
    %v1436 = vld [vmem:[%s1435] sm:$0xff]
    %v1437 = vld [vmem:[%s1435 + $0x8] sm:$0xff]
    %v1438 = vld [vmem:[%s1435 + $0x10] sm:$0xff]
    %v1439 = vld [vmem:[%s1435 + $0x18] sm:$0xff]
    %v1440 = vpack.c.bf16 %v1433, %v1433
    %1441 = vmatprep.subr.bf16.mxu0 %v159
    %1442 = vmatpush1.bf16.msra.mxu0 %v158
    %1443 = vmatprep.subr.bf16.mxu0 %v163
    %1444 = vmatpush1.bf16.msra.mxu0 %v162
    %1445 = vmatprep.subr.bf16.mxu0 %v167
    %1446 = vmatpush1.bf16.msra.mxu0 %v166
    %1447 = vmatprep.subr.bf16.mxu0 %v171
    %1448 = vmatpush1.bf16.msra.mxu0 %v170
    %1449 = vmatprep.subr.bf16.mxu0 %v175
    %1450 = vmatpush1.bf16.msra.mxu0 %v174
    %1451 = vmatprep.subr.bf16.mxu0 %v179
    %1452 = vmatpush1.bf16.msra.mxu0 %v178
    %1453 = vmatprep.subr.bf16.mxu0 %v183
    %1454 = vmatpush1.bf16.msra.mxu0 %v182
    %1455 = vmatprep.subr.bf16.mxu0 %v187
    %1456 = vmatpush1.bf16.msra.mxu0 %v186
    %1457 = vmatprep.subr.bf16.mxu0 0
    %1458 = vmatpush1.bf16.msra.mxu0 0
    %1459 = vmatprep.subr.bf16.mxu0 0
    %1460 = vmatpush1.bf16.msra.mxu0 0
    %1461 = vmatprep.subr.bf16.mxu0 0
    %1462 = vmatpush1.bf16.msra.mxu0 0
    %1463 = vmatprep.subr.bf16.mxu0 0
    %1464 = vmatpush1.bf16.msra.mxu0 0
    %1465 = vmatprep.subr.bf16.mxu0 0
    %1466 = vmatpush1.bf16.msra.mxu0 0
    %1467 = vmatprep.subr.bf16.mxu0 0
    %1468 = vmatpush1.bf16.msra.mxu0 0
    %1469 = vmatprep.subr.bf16.mxu0 0
    %1470 = vmatpush1.bf16.msra.mxu0 0
    %1471 = vmatprep.subr.bf16.mxu0 0
    %1472 = vmatpush1.bf16.msra.mxu0 0
    %1473 = vmatprep.mubr.bf16.mxu0 0
    %1474 = vmatmul.mubr.bf16.gmra.mrb[0].mxu0 %v1440
    %v1475 = vpop.f32.mrb[0].mxu0
    %v1476 = vadd.f32 0.0, %v1475
    %v1477 = vpop.f32.mrb[0].mxu0
    %v1478 = vadd.f32 0.0, %v1477
    %v1479 = vpop.f32.mrb[0].mxu0
    %v1480 = vpop.f32.mrb[0].mxu0
    %1481 = vdwg.mxu0
    %1482 = vmatprep.subr.bf16.mxu0 %v161
    %1483 = vmatpush1.bf16.msra.mxu0 %v160
    %1484 = vmatprep.subr.bf16.mxu0 %v165
    %1485 = vmatpush1.bf16.msra.mxu0 %v164
    %1486 = vmatprep.subr.bf16.mxu0 %v169
    %1487 = vmatpush1.bf16.msra.mxu0 %v168
    %1488 = vmatprep.subr.bf16.mxu0 %v173
    %1489 = vmatpush1.bf16.msra.mxu0 %v172
    %1490 = vmatprep.subr.bf16.mxu0 %v177
    %1491 = vmatpush1.bf16.msra.mxu0 %v176
    %1492 = vmatprep.subr.bf16.mxu0 %v181
    %1493 = vmatpush1.bf16.msra.mxu0 %v180
    %1494 = vmatprep.subr.bf16.mxu0 %v185
    %1495 = vmatpush1.bf16.msra.mxu0 %v184
    %1496 = vmatprep.subr.bf16.mxu0 %v189
    %1497 = vmatpush1.bf16.msra.mxu0 %v188
    %1498 = vmatprep.subr.bf16.mxu0 0
    %1499 = vmatpush1.bf16.msra.mxu0 0
    %1500 = vmatprep.subr.bf16.mxu0 0
    %1501 = vmatpush1.bf16.msra.mxu0 0
    %1502 = vmatprep.subr.bf16.mxu0 0
    %1503 = vmatpush1.bf16.msra.mxu0 0
    %1504 = vmatprep.subr.bf16.mxu0 0
    %1505 = vmatpush1.bf16.msra.mxu0 0
    %1506 = vmatprep.subr.bf16.mxu0 0
    %1507 = vmatpush1.bf16.msra.mxu0 0
    %1508 = vmatprep.subr.bf16.mxu0 0
    %1509 = vmatpush1.bf16.msra.mxu0 0
    %1510 = vmatprep.subr.bf16.mxu0 0
    %1511 = vmatpush1.bf16.msra.mxu0 0
    %1512 = vmatprep.subr.bf16.mxu0 0
    %1513 = vmatpush1.bf16.msra.mxu0 0
    %1514 = vmatprep.mubr.bf16.mxu0 0
    %1515 = vmatmul.mubr.bf16.gmra.mrb[0].mxu0 %v1440
    %v1516 = vpop.f32.mrb[0].mxu0
    %v1517 = vadd.f32 0.0, %v1516
    %v1518 = vpop.f32.mrb[0].mxu0
    %v1519 = vadd.f32 0.0, %v1518
    %v1520 = vpop.f32.mrb[0].mxu0
    %v1521 = vpop.f32.mrb[0].mxu0
    %1522 = vdwg.mxu0
    %v1523 = vadd.f32 %v1436, %v1476
    %v1524 = vadd.f32 %v1437, %v1478
    %v1525 = vadd.f32 %v1438, %v1517
    %v1526 = vadd.f32 %v1439, %v1519
    %v1527 = vxor.u32 %v1523, 2147483648
    %v1528 = vmul.f32 %v1527, 1.442695
    %v1529 = vpow.pop %v1528
    %v1530 = vadd.f32 %v1529, 1.0
    %v1531 = vrcp.pop %v1530
    %v1532 = vmul.f32 1.0, %v1531
    %v1533 = vxor.u32 %v1524, 2147483648
    %v1534 = vmul.f32 %v1533, 1.442695
    %v1535 = vpow.pop %v1534
    %v1536 = vadd.f32 %v1535, 1.0
    %v1537 = vrcp.pop %v1536
    %v1538 = vmul.f32 1.0, %v1537
    %v1539 = vtanh.pop %v1525
    %v1540 = vxor.u32 %v1526, 2147483648
    %v1541 = vmul.f32 %v1540, 1.442695
    %v1542 = vpow.pop %v1541
    %v1543 = vadd.f32 %v1542, 1.0
    %v1544 = vrcp.pop %v1543
    %v1545 = vmul.f32 1.0, %v1544
    %v1546 = vmul.f32 %v1538, %v1434
    %v1547 = vmul.f32 %v1532, %v1539
    %v1548 = vadd.f32 %v1546, %v1547
    %v1549 = vtanh.pop %v1548
    %v1550 = vmul.f32 %v1545, %v1549
    %1551 = vst [vmem:[#allocation2] sm:$0xff] %v1550
    %1552 = vst [vmem:[#allocation3] sm:$0xff] %v1548
    %s1553 = scalar_lea.vmem %s2, 80
    %1554 = vst [vmem:[%s1553] sm:$0xff] %v1550
    %v1555 = vld [vmem:[#allocation2] sm:$0xff]
    %v1556 = vld [vmem:[#allocation3] sm:$0xff]
    %s1557 = scalar_lea.vmem %s0, 352
    %v1558 = vld [vmem:[%s1557] sm:$0xff]
    %v1559 = vld [vmem:[%s1557 + $0x8] sm:$0xff]
    %v1560 = vld [vmem:[%s1557 + $0x10] sm:$0xff]
    %v1561 = vld [vmem:[%s1557 + $0x18] sm:$0xff]
    %v1562 = vpack.c.bf16 %v1555, %v1555
    %1563 = vmatprep.subr.bf16.mxu0 %v159
    %1564 = vmatpush1.bf16.msra.mxu0 %v158
    %1565 = vmatprep.subr.bf16.mxu0 %v163
    %1566 = vmatpush1.bf16.msra.mxu0 %v162
    %1567 = vmatprep.subr.bf16.mxu0 %v167
    %1568 = vmatpush1.bf16.msra.mxu0 %v166
    %1569 = vmatprep.subr.bf16.mxu0 %v171
    %1570 = vmatpush1.bf16.msra.mxu0 %v170
    %1571 = vmatprep.subr.bf16.mxu0 %v175
    %1572 = vmatpush1.bf16.msra.mxu0 %v174
    %1573 = vmatprep.subr.bf16.mxu0 %v179
    %1574 = vmatpush1.bf16.msra.mxu0 %v178
    %1575 = vmatprep.subr.bf16.mxu0 %v183
    %1576 = vmatpush1.bf16.msra.mxu0 %v182
    %1577 = vmatprep.subr.bf16.mxu0 %v187
    %1578 = vmatpush1.bf16.msra.mxu0 %v186
    %1579 = vmatprep.subr.bf16.mxu0 0
    %1580 = vmatpush1.bf16.msra.mxu0 0
    %1581 = vmatprep.subr.bf16.mxu0 0
    %1582 = vmatpush1.bf16.msra.mxu0 0
    %1583 = vmatprep.subr.bf16.mxu0 0
    %1584 = vmatpush1.bf16.msra.mxu0 0
    %1585 = vmatprep.subr.bf16.mxu0 0
    %1586 = vmatpush1.bf16.msra.mxu0 0
    %1587 = vmatprep.subr.bf16.mxu0 0
    %1588 = vmatpush1.bf16.msra.mxu0 0
    %1589 = vmatprep.subr.bf16.mxu0 0
    %1590 = vmatpush1.bf16.msra.mxu0 0
    %1591 = vmatprep.subr.bf16.mxu0 0
    %1592 = vmatpush1.bf16.msra.mxu0 0
    %1593 = vmatprep.subr.bf16.mxu0 0
    %1594 = vmatpush1.bf16.msra.mxu0 0
    %1595 = vmatprep.mubr.bf16.mxu0 0
    %1596 = vmatmul.mubr.bf16.gmra.mrb[0].mxu0 %v1562
    %v1597 = vpop.f32.mrb[0].mxu0
    %v1598 = vadd.f32 0.0, %v1597
    %v1599 = vpop.f32.mrb[0].mxu0
    %v1600 = vadd.f32 0.0, %v1599
    %v1601 = vpop.f32.mrb[0].mxu0
    %v1602 = vpop.f32.mrb[0].mxu0
    %1603 = vdwg.mxu0
    %1604 = vmatprep.subr.bf16.mxu0 %v161
    %1605 = vmatpush1.bf16.msra.mxu0 %v160
    %1606 = vmatprep.subr.bf16.mxu0 %v165
    %1607 = vmatpush1.bf16.msra.mxu0 %v164
    %1608 = vmatprep.subr.bf16.mxu0 %v169
    %1609 = vmatpush1.bf16.msra.mxu0 %v168
    %1610 = vmatprep.subr.bf16.mxu0 %v173
    %1611 = vmatpush1.bf16.msra.mxu0 %v172
    %1612 = vmatprep.subr.bf16.mxu0 %v177
    %1613 = vmatpush1.bf16.msra.mxu0 %v176
    %1614 = vmatprep.subr.bf16.mxu0 %v181
    %1615 = vmatpush1.bf16.msra.mxu0 %v180
    %1616 = vmatprep.subr.bf16.mxu0 %v185
    %1617 = vmatpush1.bf16.msra.mxu0 %v184
    %1618 = vmatprep.subr.bf16.mxu0 %v189
    %1619 = vmatpush1.bf16.msra.mxu0 %v188
    %1620 = vmatprep.subr.bf16.mxu0 0
    %1621 = vmatpush1.bf16.msra.mxu0 0
    %1622 = vmatprep.subr.bf16.mxu0 0
    %1623 = vmatpush1.bf16.msra.mxu0 0
    %1624 = vmatprep.subr.bf16.mxu0 0
    %1625 = vmatpush1.bf16.msra.mxu0 0
    %1626 = vmatprep.subr.bf16.mxu0 0
    %1627 = vmatpush1.bf16.msra.mxu0 0
    %1628 = vmatprep.subr.bf16.mxu0 0
    %1629 = vmatpush1.bf16.msra.mxu0 0
    %1630 = vmatprep.subr.bf16.mxu0 0
    %1631 = vmatpush1.bf16.msra.mxu0 0
    %1632 = vmatprep.subr.bf16.mxu0 0
    %1633 = vmatpush1.bf16.msra.mxu0 0
    %1634 = vmatprep.subr.bf16.mxu0 0
    %1635 = vmatpush1.bf16.msra.mxu0 0
    %1636 = vmatprep.mubr.bf16.mxu0 0
    %1637 = vmatmul.mubr.bf16.gmra.mrb[0].mxu0 %v1562
    %v1638 = vpop.f32.mrb[0].mxu0
    %v1639 = vadd.f32 0.0, %v1638
    %v1640 = vpop.f32.mrb[0].mxu0
    %v1641 = vadd.f32 0.0, %v1640
    %v1642 = vpop.f32.mrb[0].mxu0
    %v1643 = vpop.f32.mrb[0].mxu0
    %1644 = vdwg.mxu0
    %v1645 = vadd.f32 %v1558, %v1598
    %v1646 = vadd.f32 %v1559, %v1600
    %v1647 = vadd.f32 %v1560, %v1639
    %v1648 = vadd.f32 %v1561, %v1641
    %v1649 = vxor.u32 %v1645, 2147483648
    %v1650 = vmul.f32 %v1649, 1.442695
    %v1651 = vpow.pop %v1650
    %v1652 = vadd.f32 %v1651, 1.0
    %v1653 = vrcp.pop %v1652
    %v1654 = vmul.f32 1.0, %v1653
    %v1655 = vxor.u32 %v1646, 2147483648
    %v1656 = vmul.f32 %v1655, 1.442695
    %v1657 = vpow.pop %v1656
    %v1658 = vadd.f32 %v1657, 1.0
    %v1659 = vrcp.pop %v1658
    %v1660 = vmul.f32 1.0, %v1659
    %v1661 = vtanh.pop %v1647
    %v1662 = vxor.u32 %v1648, 2147483648
    %v1663 = vmul.f32 %v1662, 1.442695
    %v1664 = vpow.pop %v1663
    %v1665 = vadd.f32 %v1664, 1.0
    %v1666 = vrcp.pop %v1665
    %v1667 = vmul.f32 1.0, %v1666
    %v1668 = vmul.f32 %v1660, %v1556
    %v1669 = vmul.f32 %v1654, %v1661
    %v1670 = vadd.f32 %v1668, %v1669
    %v1671 = vtanh.pop %v1670
    %v1672 = vmul.f32 %v1667, %v1671
    %1673 = vst [vmem:[#allocation2] sm:$0xff] %v1672
    %1674 = vst [vmem:[#allocation3] sm:$0xff] %v1670
    %s1675 = scalar_lea.vmem %s2, 88
    %1676 = vst [vmem:[%s1675] sm:$0xff] %v1672
    %v1677 = vld [vmem:[#allocation2] sm:$0xff]
    %v1678 = vld [vmem:[#allocation3] sm:$0xff]
    %s1679 = scalar_lea.vmem %s0, 384
    %v1680 = vld [vmem:[%s1679] sm:$0xff]
    %v1681 = vld [vmem:[%s1679 + $0x8] sm:$0xff]
    %v1682 = vld [vmem:[%s1679 + $0x10] sm:$0xff]
    %v1683 = vld [vmem:[%s1679 + $0x18] sm:$0xff]
    %v1684 = vpack.c.bf16 %v1677, %v1677
    %1685 = vmatprep.subr.bf16.mxu0 %v159
    %1686 = vmatpush1.bf16.msra.mxu0 %v158
    %1687 = vmatprep.subr.bf16.mxu0 %v163
    %1688 = vmatpush1.bf16.msra.mxu0 %v162
    %1689 = vmatprep.subr.bf16.mxu0 %v167
    %1690 = vmatpush1.bf16.msra.mxu0 %v166
    %1691 = vmatprep.subr.bf16.mxu0 %v171
    %1692 = vmatpush1.bf16.msra.mxu0 %v170
    %1693 = vmatprep.subr.bf16.mxu0 %v175
    %1694 = vmatpush1.bf16.msra.mxu0 %v174
    %1695 = vmatprep.subr.bf16.mxu0 %v179
    %1696 = vmatpush1.bf16.msra.mxu0 %v178
    %1697 = vmatprep.subr.bf16.mxu0 %v183
    %1698 = vmatpush1.bf16.msra.mxu0 %v182
    %1699 = vmatprep.subr.bf16.mxu0 %v187
    %1700 = vmatpush1.bf16.msra.mxu0 %v186
    %1701 = vmatprep.subr.bf16.mxu0 0
    %1702 = vmatpush1.bf16.msra.mxu0 0
    %1703 = vmatprep.subr.bf16.mxu0 0
    %1704 = vmatpush1.bf16.msra.mxu0 0
    %1705 = vmatprep.subr.bf16.mxu0 0
    %1706 = vmatpush1.bf16.msra.mxu0 0
    %1707 = vmatprep.subr.bf16.mxu0 0
    %1708 = vmatpush1.bf16.msra.mxu0 0
    %1709 = vmatprep.subr.bf16.mxu0 0
    %1710 = vmatpush1.bf16.msra.mxu0 0
    %1711 = vmatprep.subr.bf16.mxu0 0
    %1712 = vmatpush1.bf16.msra.mxu0 0
    %1713 = vmatprep.subr.bf16.mxu0 0
    %1714 = vmatpush1.bf16.msra.mxu0 0
    %1715 = vmatprep.subr.bf16.mxu0 0
    %1716 = vmatpush1.bf16.msra.mxu0 0
    %1717 = vmatprep.mubr.bf16.mxu0 0
    %1718 = vmatmul.mubr.bf16.gmra.mrb[0].mxu0 %v1684
    %v1719 = vpop.f32.mrb[0].mxu0
    %v1720 = vadd.f32 0.0, %v1719
    %v1721 = vpop.f32.mrb[0].mxu0
    %v1722 = vadd.f32 0.0, %v1721
    %v1723 = vpop.f32.mrb[0].mxu0
    %v1724 = vpop.f32.mrb[0].mxu0
    %1725 = vdwg.mxu0
    %1726 = vmatprep.subr.bf16.mxu0 %v161
    %1727 = vmatpush1.bf16.msra.mxu0 %v160
    %1728 = vmatprep.subr.bf16.mxu0 %v165
    %1729 = vmatpush1.bf16.msra.mxu0 %v164
    %1730 = vmatprep.subr.bf16.mxu0 %v169
    %1731 = vmatpush1.bf16.msra.mxu0 %v168
    %1732 = vmatprep.subr.bf16.mxu0 %v173
    %1733 = vmatpush1.bf16.msra.mxu0 %v172
    %1734 = vmatprep.subr.bf16.mxu0 %v177
    %1735 = vmatpush1.bf16.msra.mxu0 %v176
    %1736 = vmatprep.subr.bf16.mxu0 %v181
    %1737 = vmatpush1.bf16.msra.mxu0 %v180
    %1738 = vmatprep.subr.bf16.mxu0 %v185
    %1739 = vmatpush1.bf16.msra.mxu0 %v184
    %1740 = vmatprep.subr.bf16.mxu0 %v189
    %1741 = vmatpush1.bf16.msra.mxu0 %v188
    %1742 = vmatprep.subr.bf16.mxu0 0
    %1743 = vmatpush1.bf16.msra.mxu0 0
    %1744 = vmatprep.subr.bf16.mxu0 0
    %1745 = vmatpush1.bf16.msra.mxu0 0
    %1746 = vmatprep.subr.bf16.mxu0 0
    %1747 = vmatpush1.bf16.msra.mxu0 0
    %1748 = vmatprep.subr.bf16.mxu0 0
    %1749 = vmatpush1.bf16.msra.mxu0 0
    %1750 = vmatprep.subr.bf16.mxu0 0
    %1751 = vmatpush1.bf16.msra.mxu0 0
    %1752 = vmatprep.subr.bf16.mxu0 0
    %1753 = vmatpush1.bf16.msra.mxu0 0
    %1754 = vmatprep.subr.bf16.mxu0 0
    %1755 = vmatpush1.bf16.msra.mxu0 0
    %1756 = vmatprep.subr.bf16.mxu0 0
    %1757 = vmatpush1.bf16.msra.mxu0 0
    %1758 = vmatprep.mubr.bf16.mxu0 0
    %1759 = vmatmul.mubr.bf16.gmra.mrb[0].mxu0 %v1684
    %v1760 = vpop.f32.mrb[0].mxu0
    %v1761 = vadd.f32 0.0, %v1760
    %v1762 = vpop.f32.mrb[0].mxu0
    %v1763 = vadd.f32 0.0, %v1762
    %v1764 = vpop.f32.mrb[0].mxu0
    %v1765 = vpop.f32.mrb[0].mxu0
    %1766 = vdwg.mxu0
    %v1767 = vadd.f32 %v1680, %v1720
    %v1768 = vadd.f32 %v1681, %v1722
    %v1769 = vadd.f32 %v1682, %v1761
    %v1770 = vadd.f32 %v1683, %v1763
    %v1771 = vxor.u32 %v1767, 2147483648
    %v1772 = vmul.f32 %v1771, 1.442695
    %v1773 = vpow.pop %v1772
    %v1774 = vadd.f32 %v1773, 1.0
    %v1775 = vrcp.pop %v1774
    %v1776 = vmul.f32 1.0, %v1775
    %v1777 = vxor.u32 %v1768, 2147483648
    %v1778 = vmul.f32 %v1777, 1.442695
    %v1779 = vpow.pop %v1778
    %v1780 = vadd.f32 %v1779, 1.0
    %v1781 = vrcp.pop %v1780
    %v1782 = vmul.f32 1.0, %v1781
    %v1783 = vtanh.pop %v1769
    %v1784 = vxor.u32 %v1770, 2147483648
    %v1785 = vmul.f32 %v1784, 1.442695
    %v1786 = vpow.pop %v1785
    %v1787 = vadd.f32 %v1786, 1.0
    %v1788 = vrcp.pop %v1787
    %v1789 = vmul.f32 1.0, %v1788
    %v1790 = vmul.f32 %v1782, %v1678
    %v1791 = vmul.f32 %v1776, %v1783
    %v1792 = vadd.f32 %v1790, %v1791
    %v1793 = vtanh.pop %v1792
    %v1794 = vmul.f32 %v1789, %v1793
    %1795 = vst [vmem:[#allocation2] sm:$0xff] %v1794
    %1796 = vst [vmem:[#allocation3] sm:$0xff] %v1792
    %s1797 = scalar_lea.vmem %s2, 96
    %1798 = vst [vmem:[%s1797] sm:$0xff] %v1794
    %v1799 = vld [vmem:[#allocation2] sm:$0xff]
    %v1800 = vld [vmem:[#allocation3] sm:$0xff]
    %s1801 = scalar_lea.vmem %s0, 416
    %v1802 = vld [vmem:[%s1801] sm:$0xff]
    %v1803 = vld [vmem:[%s1801 + $0x8] sm:$0xff]
    %v1804 = vld [vmem:[%s1801 + $0x10] sm:$0xff]
    %v1805 = vld [vmem:[%s1801 + $0x18] sm:$0xff]
    %v1806 = vpack.c.bf16 %v1799, %v1799
    %1807 = vmatprep.subr.bf16.mxu0 %v159
    %1808 = vmatpush1.bf16.msra.mxu0 %v158
    %1809 = vmatprep.subr.bf16.mxu0 %v163
    %1810 = vmatpush1.bf16.msra.mxu0 %v162
    %1811 = vmatprep.subr.bf16.mxu0 %v167
    %1812 = vmatpush1.bf16.msra.mxu0 %v166
    %1813 = vmatprep.subr.bf16.mxu0 %v171
    %1814 = vmatpush1.bf16.msra.mxu0 %v170
    %1815 = vmatprep.subr.bf16.mxu0 %v175
    %1816 = vmatpush1.bf16.msra.mxu0 %v174
    %1817 = vmatprep.subr.bf16.mxu0 %v179
    %1818 = vmatpush1.bf16.msra.mxu0 %v178
    %1819 = vmatprep.subr.bf16.mxu0 %v183
    %1820 = vmatpush1.bf16.msra.mxu0 %v182
    %1821 = vmatprep.subr.bf16.mxu0 %v187
    %1822 = vmatpush1.bf16.msra.mxu0 %v186
    %1823 = vmatprep.subr.bf16.mxu0 0
    %1824 = vmatpush1.bf16.msra.mxu0 0
    %1825 = vmatprep.subr.bf16.mxu0 0
    %1826 = vmatpush1.bf16.msra.mxu0 0
    %1827 = vmatprep.subr.bf16.mxu0 0
    %1828 = vmatpush1.bf16.msra.mxu0 0
    %1829 = vmatprep.subr.bf16.mxu0 0
    %1830 = vmatpush1.bf16.msra.mxu0 0
    %1831 = vmatprep.subr.bf16.mxu0 0
    %1832 = vmatpush1.bf16.msra.mxu0 0
    %1833 = vmatprep.subr.bf16.mxu0 0
    %1834 = vmatpush1.bf16.msra.mxu0 0
    %1835 = vmatprep.subr.bf16.mxu0 0
    %1836 = vmatpush1.bf16.msra.mxu0 0
    %1837 = vmatprep.subr.bf16.mxu0 0
    %1838 = vmatpush1.bf16.msra.mxu0 0
    %1839 = vmatprep.mubr.bf16.mxu0 0
    %1840 = vmatmul.mubr.bf16.gmra.mrb[0].mxu0 %v1806
    %v1841 = vpop.f32.mrb[0].mxu0
    %v1842 = vadd.f32 0.0, %v1841
    %v1843 = vpop.f32.mrb[0].mxu0
    %v1844 = vadd.f32 0.0, %v1843
    %v1845 = vpop.f32.mrb[0].mxu0
    %v1846 = vpop.f32.mrb[0].mxu0
    %1847 = vdwg.mxu0
    %1848 = vmatprep.subr.bf16.mxu0 %v161
    %1849 = vmatpush1.bf16.msra.mxu0 %v160
    %1850 = vmatprep.subr.bf16.mxu0 %v165
    %1851 = vmatpush1.bf16.msra.mxu0 %v164
    %1852 = vmatprep.subr.bf16.mxu0 %v169
    %1853 = vmatpush1.bf16.msra.mxu0 %v168
    %1854 = vmatprep.subr.bf16.mxu0 %v173
    %1855 = vmatpush1.bf16.msra.mxu0 %v172
    %1856 = vmatprep.subr.bf16.mxu0 %v177
    %1857 = vmatpush1.bf16.msra.mxu0 %v176
    %1858 = vmatprep.subr.bf16.mxu0 %v181
    %1859 = vmatpush1.bf16.msra.mxu0 %v180
    %1860 = vmatprep.subr.bf16.mxu0 %v185
    %1861 = vmatpush1.bf16.msra.mxu0 %v184
    %1862 = vmatprep.subr.bf16.mxu0 %v189
    %1863 = vmatpush1.bf16.msra.mxu0 %v188
    %1864 = vmatprep.subr.bf16.mxu0 0
    %1865 = vmatpush1.bf16.msra.mxu0 0
    %1866 = vmatprep.subr.bf16.mxu0 0
    %1867 = vmatpush1.bf16.msra.mxu0 0
    %1868 = vmatprep.subr.bf16.mxu0 0
    %1869 = vmatpush1.bf16.msra.mxu0 0
    %1870 = vmatprep.subr.bf16.mxu0 0
    %1871 = vmatpush1.bf16.msra.mxu0 0
    %1872 = vmatprep.subr.bf16.mxu0 0
    %1873 = vmatpush1.bf16.msra.mxu0 0
    %1874 = vmatprep.subr.bf16.mxu0 0
    %1875 = vmatpush1.bf16.msra.mxu0 0
    %1876 = vmatprep.subr.bf16.mxu0 0
    %1877 = vmatpush1.bf16.msra.mxu0 0
    %1878 = vmatprep.subr.bf16.mxu0 0
    %1879 = vmatpush1.bf16.msra.mxu0 0
    %1880 = vmatprep.mubr.bf16.mxu0 0
    %1881 = vmatmul.mubr.bf16.gmra.mrb[0].mxu0 %v1806
    %v1882 = vpop.f32.mrb[0].mxu0
    %v1883 = vadd.f32 0.0, %v1882
    %v1884 = vpop.f32.mrb[0].mxu0
    %v1885 = vadd.f32 0.0, %v1884
    %v1886 = vpop.f32.mrb[0].mxu0
    %v1887 = vpop.f32.mrb[0].mxu0
    %1888 = vdwg.mxu0
    %v1889 = vadd.f32 %v1802, %v1842
    %v1890 = vadd.f32 %v1803, %v1844
    %v1891 = vadd.f32 %v1804, %v1883
    %v1892 = vadd.f32 %v1805, %v1885
    %v1893 = vxor.u32 %v1889, 2147483648
    %v1894 = vmul.f32 %v1893, 1.442695
    %v1895 = vpow.pop %v1894
    %v1896 = vadd.f32 %v1895, 1.0
    %v1897 = vrcp.pop %v1896
    %v1898 = vmul.f32 1.0, %v1897
    %v1899 = vxor.u32 %v1890, 2147483648
    %v1900 = vmul.f32 %v1899, 1.442695
    %v1901 = vpow.pop %v1900
    %v1902 = vadd.f32 %v1901, 1.0
    %v1903 = vrcp.pop %v1902
    %v1904 = vmul.f32 1.0, %v1903
    %v1905 = vtanh.pop %v1891
    %v1906 = vxor.u32 %v1892, 2147483648
    %v1907 = vmul.f32 %v1906, 1.442695
    %v1908 = vpow.pop %v1907
    %v1909 = vadd.f32 %v1908, 1.0
    %v1910 = vrcp.pop %v1909
    %v1911 = vmul.f32 1.0, %v1910
    %v1912 = vmul.f32 %v1904, %v1800
    %v1913 = vmul.f32 %v1898, %v1905
    %v1914 = vadd.f32 %v1912, %v1913
    %v1915 = vtanh.pop %v1914
    %v1916 = vmul.f32 %v1911, %v1915
    %1917 = vst [vmem:[#allocation2] sm:$0xff] %v1916
    %1918 = vst [vmem:[#allocation3] sm:$0xff] %v1914
    %s1919 = scalar_lea.vmem %s2, 104
    %1920 = vst [vmem:[%s1919] sm:$0xff] %v1916
    %v1921 = vld [vmem:[#allocation2] sm:$0xff]
    %v1922 = vld [vmem:[#allocation3] sm:$0xff]
    %s1923 = scalar_lea.vmem %s0, 448
    %v1924 = vld [vmem:[%s1923] sm:$0xff]
    %v1925 = vld [vmem:[%s1923 + $0x8] sm:$0xff]
    %v1926 = vld [vmem:[%s1923 + $0x10] sm:$0xff]
    %v1927 = vld [vmem:[%s1923 + $0x18] sm:$0xff]
    %v1928 = vpack.c.bf16 %v1921, %v1921
    %1929 = vmatprep.subr.bf16.mxu0 %v159
    %1930 = vmatpush1.bf16.msra.mxu0 %v158
    %1931 = vmatprep.subr.bf16.mxu0 %v163
    %1932 = vmatpush1.bf16.msra.mxu0 %v162
    %1933 = vmatprep.subr.bf16.mxu0 %v167
    %1934 = vmatpush1.bf16.msra.mxu0 %v166
    %1935 = vmatprep.subr.bf16.mxu0 %v171
    %1936 = vmatpush1.bf16.msra.mxu0 %v170
    %1937 = vmatprep.subr.bf16.mxu0 %v175
    %1938 = vmatpush1.bf16.msra.mxu0 %v174
    %1939 = vmatprep.subr.bf16.mxu0 %v179
    %1940 = vmatpush1.bf16.msra.mxu0 %v178
    %1941 = vmatprep.subr.bf16.mxu0 %v183
    %1942 = vmatpush1.bf16.msra.mxu0 %v182
    %1943 = vmatprep.subr.bf16.mxu0 %v187
    %1944 = vmatpush1.bf16.msra.mxu0 %v186
    %1945 = vmatprep.subr.bf16.mxu0 0
    %1946 = vmatpush1.bf16.msra.mxu0 0
    %1947 = vmatprep.subr.bf16.mxu0 0
    %1948 = vmatpush1.bf16.msra.mxu0 0
    %1949 = vmatprep.subr.bf16.mxu0 0
    %1950 = vmatpush1.bf16.msra.mxu0 0
    %1951 = vmatprep.subr.bf16.mxu0 0
    %1952 = vmatpush1.bf16.msra.mxu0 0
    %1953 = vmatprep.subr.bf16.mxu0 0
    %1954 = vmatpush1.bf16.msra.mxu0 0
    %1955 = vmatprep.subr.bf16.mxu0 0
    %1956 = vmatpush1.bf16.msra.mxu0 0
    %1957 = vmatprep.subr.bf16.mxu0 0
    %1958 = vmatpush1.bf16.msra.mxu0 0
    %1959 = vmatprep.subr.bf16.mxu0 0
    %1960 = vmatpush1.bf16.msra.mxu0 0
    %1961 = vmatprep.mubr.bf16.mxu0 0
    %1962 = vmatmul.mubr.bf16.gmra.mrb[0].mxu0 %v1928
    %v1963 = vpop.f32.mrb[0].mxu0
    %v1964 = vadd.f32 0.0, %v1963
    %v1965 = vpop.f32.mrb[0].mxu0
    %v1966 = vadd.f32 0.0, %v1965
    %v1967 = vpop.f32.mrb[0].mxu0
    %v1968 = vpop.f32.mrb[0].mxu0
    %1969 = vdwg.mxu0
    %1970 = vmatprep.subr.bf16.mxu0 %v161
    %1971 = vmatpush1.bf16.msra.mxu0 %v160
    %1972 = vmatprep.subr.bf16.mxu0 %v165
    %1973 = vmatpush1.bf16.msra.mxu0 %v164
    %1974 = vmatprep.subr.bf16.mxu0 %v169
    %1975 = vmatpush1.bf16.msra.mxu0 %v168
    %1976 = vmatprep.subr.bf16.mxu0 %v173
    %1977 = vmatpush1.bf16.msra.mxu0 %v172
    %1978 = vmatprep.subr.bf16.mxu0 %v177
    %1979 = vmatpush1.bf16.msra.mxu0 %v176
    %1980 = vmatprep.subr.bf16.mxu0 %v181
    %1981 = vmatpush1.bf16.msra.mxu0 %v180
    %1982 = vmatprep.subr.bf16.mxu0 %v185
    %1983 = vmatpush1.bf16.msra.mxu0 %v184
    %1984 = vmatprep.subr.bf16.mxu0 %v189
    %1985 = vmatpush1.bf16.msra.mxu0 %v188
    %1986 = vmatprep.subr.bf16.mxu0 0
    %1987 = vmatpush1.bf16.msra.mxu0 0
    %1988 = vmatprep.subr.bf16.mxu0 0
    %1989 = vmatpush1.bf16.msra.mxu0 0
    %1990 = vmatprep.subr.bf16.mxu0 0
    %1991 = vmatpush1.bf16.msra.mxu0 0
    %1992 = vmatprep.subr.bf16.mxu0 0
    %1993 = vmatpush1.bf16.msra.mxu0 0
    %1994 = vmatprep.subr.bf16.mxu0 0
    %1995 = vmatpush1.bf16.msra.mxu0 0
    %1996 = vmatprep.subr.bf16.mxu0 0
    %1997 = vmatpush1.bf16.msra.mxu0 0
    %1998 = vmatprep.subr.bf16.mxu0 0
    %1999 = vmatpush1.bf16.msra.mxu0 0
    %2000 = vmatprep.subr.bf16.mxu0 0
    %2001 = vmatpush1.bf16.msra.mxu0 0
    %2002 = vmatprep.mubr.bf16.mxu0 0
    %2003 = vmatmul.mubr.bf16.gmra.mrb[0].mxu0 %v1928
    %v2004 = vpop.f32.mrb[0].mxu0
    %v2005 = vadd.f32 0.0, %v2004
    %v2006 = vpop.f32.mrb[0].mxu0
    %v2007 = vadd.f32 0.0, %v2006
    %v2008 = vpop.f32.mrb[0].mxu0
    %v2009 = vpop.f32.mrb[0].mxu0
    %2010 = vdwg.mxu0
    %v2011 = vadd.f32 %v1924, %v1964
    %v2012 = vadd.f32 %v1925, %v1966
    %v2013 = vadd.f32 %v1926, %v2005
    %v2014 = vadd.f32 %v1927, %v2007
    %v2015 = vxor.u32 %v2011, 2147483648
    %v2016 = vmul.f32 %v2015, 1.442695
    %v2017 = vpow.pop %v2016
    %v2018 = vadd.f32 %v2017, 1.0
    %v2019 = vrcp.pop %v2018
    %v2020 = vmul.f32 1.0, %v2019
    %v2021 = vxor.u32 %v2012, 2147483648
    %v2022 = vmul.f32 %v2021, 1.442695
    %v2023 = vpow.pop %v2022
    %v2024 = vadd.f32 %v2023, 1.0
    %v2025 = vrcp.pop %v2024
    %v2026 = vmul.f32 1.0, %v2025
    %v2027 = vtanh.pop %v2013
    %v2028 = vxor.u32 %v2014, 2147483648
    %v2029 = vmul.f32 %v2028, 1.442695
    %v2030 = vpow.pop %v2029
    %v2031 = vadd.f32 %v2030, 1.0
    %v2032 = vrcp.pop %v2031
    %v2033 = vmul.f32 1.0, %v2032
    %v2034 = vmul.f32 %v2026, %v1922
    %v2035 = vmul.f32 %v2020, %v2027
    %v2036 = vadd.f32 %v2034, %v2035
    %v2037 = vtanh.pop %v2036
    %v2038 = vmul.f32 %v2033, %v2037
    %2039 = vst [vmem:[#allocation2] sm:$0xff] %v2038
    %2040 = vst [vmem:[#allocation3] sm:$0xff] %v2036
    %s2041 = scalar_lea.vmem %s2, 112
    %2042 = vst [vmem:[%s2041] sm:$0xff] %v2038
    %v2043 = vld [vmem:[#allocation2] sm:$0xff]
    %v2044 = vld [vmem:[#allocation3] sm:$0xff]
    %s2045 = scalar_lea.vmem %s0, 480
    %v2046 = vld [vmem:[%s2045] sm:$0xff]
    %v2047 = vld [vmem:[%s2045 + $0x8] sm:$0xff]
    %v2048 = vld [vmem:[%s2045 + $0x10] sm:$0xff]
    %v2049 = vld [vmem:[%s2045 + $0x18] sm:$0xff]
    %v2050 = vpack.c.bf16 %v2043, %v2043
    %2051 = vmatprep.subr.bf16.mxu0 %v159
    %2052 = vmatpush1.bf16.msra.mxu0 %v158
    %2053 = vmatprep.subr.bf16.mxu0 %v163
    %2054 = vmatpush1.bf16.msra.mxu0 %v162
    %2055 = vmatprep.subr.bf16.mxu0 %v167
    %2056 = vmatpush1.bf16.msra.mxu0 %v166
    %2057 = vmatprep.subr.bf16.mxu0 %v171
    %2058 = vmatpush1.bf16.msra.mxu0 %v170
    %2059 = vmatprep.subr.bf16.mxu0 %v175
    %2060 = vmatpush1.bf16.msra.mxu0 %v174
    %2061 = vmatprep.subr.bf16.mxu0 %v179
    %2062 = vmatpush1.bf16.msra.mxu0 %v178
    %2063 = vmatprep.subr.bf16.mxu0 %v183
    %2064 = vmatpush1.bf16.msra.mxu0 %v182
    %2065 = vmatprep.subr.bf16.mxu0 %v187
    %2066 = vmatpush1.bf16.msra.mxu0 %v186
    %2067 = vmatprep.subr.bf16.mxu0 0
    %2068 = vmatpush1.bf16.msra.mxu0 0
    %2069 = vmatprep.subr.bf16.mxu0 0
    %2070 = vmatpush1.bf16.msra.mxu0 0
    %2071 = vmatprep.subr.bf16.mxu0 0
    %2072 = vmatpush1.bf16.msra.mxu0 0
    %2073 = vmatprep.subr.bf16.mxu0 0
    %2074 = vmatpush1.bf16.msra.mxu0 0
    %2075 = vmatprep.subr.bf16.mxu0 0
    %2076 = vmatpush1.bf16.msra.mxu0 0
    %2077 = vmatprep.subr.bf16.mxu0 0
    %2078 = vmatpush1.bf16.msra.mxu0 0
    %2079 = vmatprep.subr.bf16.mxu0 0
    %2080 = vmatpush1.bf16.msra.mxu0 0
    %2081 = vmatprep.subr.bf16.mxu0 0
    %2082 = vmatpush1.bf16.msra.mxu0 0
    %2083 = vmatprep.mubr.bf16.mxu0 0
    %2084 = vmatmul.mubr.bf16.gmra.mrb[0].mxu0 %v2050
    %v2085 = vpop.f32.mrb[0].mxu0
    %v2086 = vadd.f32 0.0, %v2085
    %v2087 = vpop.f32.mrb[0].mxu0
    %v2088 = vadd.f32 0.0, %v2087
    %v2089 = vpop.f32.mrb[0].mxu0
    %v2090 = vpop.f32.mrb[0].mxu0
    %2091 = vdwg.mxu0
    %2092 = vmatprep.subr.bf16.mxu0 %v161
    %2093 = vmatpush1.bf16.msra.mxu0 %v160
    %2094 = vmatprep.subr.bf16.mxu0 %v165
    %2095 = vmatpush1.bf16.msra.mxu0 %v164
    %2096 = vmatprep.subr.bf16.mxu0 %v169
    %2097 = vmatpush1.bf16.msra.mxu0 %v168
    %2098 = vmatprep.subr.bf16.mxu0 %v173
    %2099 = vmatpush1.bf16.msra.mxu0 %v172
    %2100 = vmatprep.subr.bf16.mxu0 %v177
    %2101 = vmatpush1.bf16.msra.mxu0 %v176
    %2102 = vmatprep.subr.bf16.mxu0 %v181
    %2103 = vmatpush1.bf16.msra.mxu0 %v180
    %2104 = vmatprep.subr.bf16.mxu0 %v185
    %2105 = vmatpush1.bf16.msra.mxu0 %v184
    %2106 = vmatprep.subr.bf16.mxu0 %v189
    %2107 = vmatpush1.bf16.msra.mxu0 %v188
    %2108 = vmatprep.subr.bf16.mxu0 0
    %2109 = vmatpush1.bf16.msra.mxu0 0
    %2110 = vmatprep.subr.bf16.mxu0 0
    %2111 = vmatpush1.bf16.msra.mxu0 0
    %2112 = vmatprep.subr.bf16.mxu0 0
    %2113 = vmatpush1.bf16.msra.mxu0 0
    %2114 = vmatprep.subr.bf16.mxu0 0
    %2115 = vmatpush1.bf16.msra.mxu0 0
    %2116 = vmatprep.subr.bf16.mxu0 0
    %2117 = vmatpush1.bf16.msra.mxu0 0
    %2118 = vmatprep.subr.bf16.mxu0 0
    %2119 = vmatpush1.bf16.msra.mxu0 0
    %2120 = vmatprep.subr.bf16.mxu0 0
    %2121 = vmatpush1.bf16.msra.mxu0 0
    %2122 = vmatprep.subr.bf16.mxu0 0
    %2123 = vmatpush1.bf16.msra.mxu0 0
    %2124 = vmatprep.mubr.bf16.mxu0 0
    %2125 = vmatmul.mubr.bf16.gmra.mrb[0].mxu0 %v2050
    %v2126 = vpop.f32.mrb[0].mxu0
    %v2127 = vadd.f32 0.0, %v2126
    %v2128 = vpop.f32.mrb[0].mxu0
    %v2129 = vadd.f32 0.0, %v2128
    %v2130 = vpop.f32.mrb[0].mxu0
    %v2131 = vpop.f32.mrb[0].mxu0
    %2132 = vdwg.mxu0
    %v2133 = vadd.f32 %v2046, %v2086
    %v2134 = vadd.f32 %v2047, %v2088
    %v2135 = vadd.f32 %v2048, %v2127
    %v2136 = vadd.f32 %v2049, %v2129
    %v2137 = vxor.u32 %v2133, 2147483648
    %v2138 = vmul.f32 %v2137, 1.442695
    %v2139 = vpow.pop %v2138
    %v2140 = vadd.f32 %v2139, 1.0
    %v2141 = vrcp.pop %v2140
    %v2142 = vmul.f32 1.0, %v2141
    %v2143 = vxor.u32 %v2134, 2147483648
    %v2144 = vmul.f32 %v2143, 1.442695
    %v2145 = vpow.pop %v2144
    %v2146 = vadd.f32 %v2145, 1.0
    %v2147 = vrcp.pop %v2146
    %v2148 = vmul.f32 1.0, %v2147
    %v2149 = vtanh.pop %v2135
    %v2150 = vxor.u32 %v2136, 2147483648
    %v2151 = vmul.f32 %v2150, 1.442695
    %v2152 = vpow.pop %v2151
    %v2153 = vadd.f32 %v2152, 1.0
    %v2154 = vrcp.pop %v2153
    %v2155 = vmul.f32 1.0, %v2154
    %v2156 = vmul.f32 %v2148, %v2044
    %v2157 = vmul.f32 %v2142, %v2149
    %v2158 = vadd.f32 %v2156, %v2157
    %v2159 = vtanh.pop %v2158
    %v2160 = vmul.f32 %v2155, %v2159
    %2161 = vst [vmem:[#allocation2] sm:$0xff] %v2160
    %2162 = vst [vmem:[#allocation3] sm:$0xff] %v2158
    %s2163 = scalar_lea.vmem %s2, 120
    %2164 = vst [vmem:[%s2163] sm:$0xff] %v2160
    // Predicated region
    $region14: #{lstm_autoencoder_forward.6} parent=1 // pred_check
      %p2165 = pneg %p17
    $region15: #{lstm_autoencoder_forward.6} parent=1 // pred_check_branch
      %2167 = sbr.rel (%p2165) target = $region17
    $region16: #{lstm_autoencoder_forward.6} parent=1 // pred_region
      %v2168 = vld [vmem:[#allocation2] sm:$0xff]
      %2169 = vst [vmem:[#allocation4] sm:$0xff] %v2168
      %v2170 = vld [vmem:[#allocation3] sm:$0xff]
      %2171 = vst [vmem:[#allocation6] sm:$0xff] %v2170
    $region17: #{lstm_autoencoder_forward.6} parent=1 // pred_fallthru
      _
    // Predicated region
    $region18: #{lstm_autoencoder_forward.6} parent=1 // pred_check
      _
    $region19: #{lstm_autoencoder_forward.6} parent=1 // pred_check_branch
      %2173 = sbr.rel (0) target = $region21
    $region20: #{lstm_autoencoder_forward.6} parent=1 // pred_region
      _
    $region21: #{lstm_autoencoder_forward.6} parent=1 // pred_fallthru
      _
    // Predicated region
    $region22: #{lstm_autoencoder_forward.6} parent=1 // pred_check
      _
    $region23: #{lstm_autoencoder_forward.6} parent=1 // pred_check_branch
      %2175 = sbr.rel (0) target = $region25
    $region24: #{lstm_autoencoder_forward.6} parent=1 // pred_region
      %s2177 = ssub.s32 128, 128
      %2178 = vsyncadd [#allocation5], %s2177
      %s2180 = sshll.u32 [#allocation4], 4
      %s2181 = int_to_ptr.vmem [resolvable:$true] %s2180
      %2183 = dma.vmem_to_hbm [thread:$0]  %s2181, 128, %s3, [#allocation5]
    $region25: #{lstm_autoencoder_forward.6} parent=1 // pred_fallthru
      _
    // Predicated region
    $region26: #{lstm_autoencoder_forward.6} parent=1 // pred_check
      _
    $region27: #{lstm_autoencoder_forward.6} parent=1 // pred_check_branch
      %2185 = sbr.rel (0) target = $region29
    $region28: #{lstm_autoencoder_forward.6} parent=1 // pred_region
      %s2187 = ssub.s32 128, 128
      %2188 = vsyncadd [#allocation7], %s2187
      %s2190 = sshll.u32 [#allocation6], 4
      %s2191 = int_to_ptr.vmem [resolvable:$true] %s2190
      %2193 = dma.vmem_to_hbm [thread:$0]  %s2191, 128, %s4, [#allocation7]
    $region29: #{lstm_autoencoder_forward.6} parent=1 // pred_fallthru
      _
    // Predicated region
    $region30: #{lstm_autoencoder_forward.6} parent=1 // pred_check
      _
    $region31: #{lstm_autoencoder_forward.6} parent=1 // pred_check_branch
      %2195 = sbr.rel (0) target = $region33
    $region32: #{lstm_autoencoder_forward.6} parent=1 // pred_region
      _
    $region33: #{lstm_autoencoder_forward.6} parent=1 // pred_fallthru
      _
    // Predicated region
    $region34: #{lstm_autoencoder_forward.6} parent=1 // pred_check
      _
    $region35: #{lstm_autoencoder_forward.6} parent=1 // pred_check_branch
      %2197 = sbr.rel (0) target = $region37
    $region36: #{lstm_autoencoder_forward.6} parent=1 // pred_region
      %2198 = dma.done [#allocation5], 128
    $region37: #{lstm_autoencoder_forward.6} parent=1 // pred_fallthru
      _
    // Predicated region
    $region38: #{lstm_autoencoder_forward.6} parent=1 // pred_check
      _
    $region39: #{lstm_autoencoder_forward.6} parent=1 // pred_check_branch
      %2200 = sbr.rel (0) target = $region41
    $region40: #{lstm_autoencoder_forward.6} parent=1 // pred_region
      %2201 = dma.done [#allocation7], 128
    $region41: #{lstm_autoencoder_forward.6} parent=1 // pred_fallthru
      _
    %2202 = vsyncpa [#allocation5], 1
    %2203 = vsyncpa [#allocation7], 1

</llo_original>
